<compile_context>
chip_gen: v6e
topology: v6e:2x2x1
jax: 0.10.0
libtpu: 0.0.40
codegen_flags: <defaults>
</compile_context>

<pallas_src>
import jax
import jax.numpy as jnp
from jax.experimental import pallas as pl
from jax.experimental.pallas import tpu as pltpu

_EPS = 1e-5
_VMEM_FALLBACK = 64 * 1024 * 1024


def _vmem_limit_bytes():
    # ~75% of physical VMEM: ~96 MiB on 128-MiB parts (v5e/v6e, well above the
    # 16/32-MiB scoped defaults), ~48 MiB on v7x's 64-MiB parts (headroom).
    try:
        cap = int(pltpu.get_tpu_info().vmem_capacity_bytes)
    except Exception:  # defensive: API surface may vary across JAX versions
        cap = _VMEM_FALLBACK
    return int(min((cap * 3) // 4, 100 * 1024 * 1024))


def _cparams(grid_rank):
    return pltpu.CompilerParams(
        dimension_semantics=("parallel",) * grid_rank,
        vmem_limit_bytes=_vmem_limit_bytes(),
    )


# ------------------------------------------------------------------ kernels --

def _make_deconv_kernel(h, w, cin, cout4):
    # ConvTranspose2d(k=2, s=2) has non-overlapping taps -> per input pixel it
    # is a pure matmul Cin -> Cout*2*2 plus bias. bf16 operands, f32 accum,
    # bf16 output (halves the HBM traffic of the depth-to-space copy).
    def kernel(x_ref, w_ref, b_ref, o_ref):
        x = x_ref[0].reshape(h * w, cin).astype(jnp.bfloat16)
        y = jnp.dot(x, w_ref[...], preferred_element_type=jnp.float32)
        o_ref[0] = (y + b_ref[...]).astype(jnp.bfloat16).reshape(h, w, cout4)

    return kernel


def _accumulate_taps(xp_ref, w_ref, hf, wf, c, acc_ref, first):
    # 3x3 conv as 3 kw-merged matmuls: per kh, a (hf*wf, 3*c) slab built from
    # three lane-contiguous slices of the padded bf16 scratch, contracted with
    # a (3*c, cout) weight block, accumulated into the f32 VMEM accumulator.
    for kh in range(3):
        slab = jnp.concatenate(
            [xp_ref[kh:kh + hf, kw:kw + wf, :] for kw in range(3)], axis=-1)
        slab = slab.reshape(hf * wf, 3 * c)
        contrib = jnp.dot(slab, w_ref[kh], preferred_element_type=jnp.float32)
        if first and kh == 0:
            acc_ref[...] = contrib
        else:
            acc_ref[...] += contrib


def _emit_output_and_stats(acc_ref, y_ref, stats_ref, hf, wf, cout):
    # bf16 pre-BN activations + per-image channel (sum, sumsq) for two-pass BN.
    acc = acc_ref[...]
    y_ref[0] = acc.reshape(hf, wf, cout).astype(jnp.bfloat16)
    s = jnp.sum(acc, axis=0, keepdims=True)
    ss = jnp.sum(acc * acc, axis=0, keepdims=True)
    stats_ref[0] = jnp.concatenate([s, ss], axis=0)


def _make_conv1_kernel(hu, wu, cup, hf, wf, cft, cout, pads):
    # conv1: inputs are the (already depth-to-space'd) deconv output `up`
    # (bf16, shape hu x wu x cup, placed at the F.pad offset) and the skip
    # features (f32 -> bf16). Channel concat is realised as two tap-matmul
    # groups accumulating into the same f32 accumulator. The conv bias is
    # intentionally omitted (cancelled by the training-mode BN that follows).
    pt, pb, pw_l, pw_r = pads
    hp, wp = hf + 2, wf + 2

    def kernel(up_ref, feat_ref, wup_ref, wft_ref, y_ref, stats_ref,
               xp_up, xp_ft, acc_ref):
        # -- deconv-branch scratch: interior rows written width-padded, halo /
        #    F.pad rows zeroed explicitly (no full-scratch zero per step). ----
        row_u = jnp.concatenate(
            [jnp.zeros((hu, 1 + pw_l, cup), jnp.bfloat16),
             up_ref[0],
             jnp.zeros((hu, 1 + pw_r, cup), jnp.bfloat16)], axis=1)
        xp_up[1 + pt:1 + pt + hu, :, :] = row_u
        for r0, r1 in ((0, 1 + pt), (1 + pt + hu, hp)):
            if r1 > r0:
                xp_up[r0:r1, :, :] = jnp.zeros((r1 - r0, wp, cup),
                                               jnp.bfloat16)

        # -- skip-feature scratch ----------------------------------------------
        zc = jnp.zeros((hf, 1, cft), jnp.bfloat16)
        xp_ft[1:1 + hf, :, :] = jnp.concatenate(
            [zc, feat_ref[0].astype(jnp.bfloat16), zc], axis=1)
        zr = jnp.zeros((1, wp, cft), jnp.bfloat16)
        xp_ft[0:1, :, :] = zr
        xp_ft[hp - 1:hp, :, :] = zr

        # -- 2 groups x 3 kw-merged tap matmuls into one f32 accumulator ------
        _accumulate_taps(xp_up, wup_ref, hf, wf, cup, acc_ref, first=True)
        _accumulate_taps(xp_ft, wft_ref, hf, wf, cft, acc_ref, first=False)

        _emit_output_and_stats(acc_ref, y_ref, stats_ref, hf, wf, cout)

    return kernel


def _make_conv2_kernel(hf, wf, cin, cout):
    # conv2: previous layer's folded BN + ReLU is applied in f32 and cast to
    # bf16 exactly once while filling the padded scratch. Conv bias omitted
    # (cancelled by the training-mode BN that follows).
    hp, wp = hf + 2, wf + 2

    def kernel(x_ref, scale_ref, shift_ref, w_ref, y_ref, stats_ref,
               xp_ref, acc_ref):
        x = jnp.maximum(
            x_ref[0].astype(jnp.float32) * scale_ref[...] + shift_ref[...],
            0.0).astype(jnp.bfloat16)
        zc = jnp.zeros((hf, 1, cin), jnp.bfloat16)
        xp_ref[1:1 + hf, :, :] = jnp.concatenate([zc, x, zc], axis=1)
        zr = jnp.zeros((1, wp, cin), jnp.bfloat16)
        xp_ref[0:1, :, :] = zr
        xp_ref[hp - 1:hp, :, :] = zr

        _accumulate_taps(xp_ref, w_ref, hf, wf, cin, acc_ref, first=True)

        _emit_output_and_stats(acc_ref, y_ref, stats_ref, hf, wf, cout)

    return kernel


def _scale_shift_relu_kernel(x_ref, scale_ref, shift_ref, o_ref):
    # Final folded-BN (scale/shift) + ReLU epilogue; bf16 in, f32 math/out.
    o_ref[...] = jnp.maximum(
        x_ref[...].astype(jnp.float32) * scale_ref[...] + shift_ref[...], 0.0)


# ----------------------------------------------------------------- wrappers --

def _deconv(x_nhwc, w_bf16, b_row):
    n, h, w, cin = x_nhwc.shape
    cout4 = w_bf16.shape[1]
    return pl.pallas_call(
        _make_deconv_kernel(h, w, cin, cout4),
        out_shape=jax.ShapeDtypeStruct((n, h, w, cout4), jnp.bfloat16),
        grid=(n,),
        in_specs=[
            pl.BlockSpec((1, h, w, cin), lambda i: (i, 0, 0, 0)),
            pl.BlockSpec((cin, cout4), lambda i: (0, 0)),
            pl.BlockSpec((1, cout4), lambda i: (0, 0)),
        ],
        out_specs=pl.BlockSpec((1, h, w, cout4), lambda i: (i, 0, 0, 0)),
        compiler_params=_cparams(1),
    )(x_nhwc, w_bf16, b_row)


def _conv1(up_bf16, feat_f32, w_up, w_ft, pads):
    n, hu, wu, cup = up_bf16.shape
    _, hf, wf, cft = feat_f32.shape
    cout = w_up.shape[-1]
    return pl.pallas_call(
        _make_conv1_kernel(hu, wu, cup, hf, wf, cft, cout, pads),
        out_shape=(jax.ShapeDtypeStruct((n, hf, wf, cout), jnp.bfloat16),
                   jax.ShapeDtypeStruct((n, 2, cout), jnp.float32)),
        grid=(n,),
        in_specs=[
            pl.BlockSpec((1, hu, wu, cup), lambda i: (i, 0, 0, 0)),
            pl.BlockSpec((1, hf, wf, cft), lambda i: (i, 0, 0, 0)),
            pl.BlockSpec(w_up.shape, lambda i: (0, 0, 0)),
            pl.BlockSpec(w_ft.shape, lambda i: (0, 0, 0)),
        ],
        out_specs=(pl.BlockSpec((1, hf, wf, cout), lambda i: (i, 0, 0, 0)),
                   pl.BlockSpec((1, 2, cout), lambda i: (i, 0, 0))),
        scratch_shapes=[
            pltpu.VMEM((hf + 2, wf + 2, cup), jnp.bfloat16),
            pltpu.VMEM((hf + 2, wf + 2, cft), jnp.bfloat16),
            pltpu.VMEM((hf * wf, cout), jnp.float32),
        ],
        compiler_params=_cparams(1),
    )(up_bf16, feat_f32, w_up, w_ft)


def _conv2(y1_bf16, scale_row, shift_row, w_taps):
    n, hf, wf, cin = y1_bf16.shape
    cout = w_taps.shape[-1]
    return pl.pallas_call(
        _make_conv2_kernel(hf, wf, cin, cout),
        out_shape=(jax.ShapeDtypeStruct((n, hf, wf, cout), jnp.bfloat16),
                   jax.ShapeDtypeStruct((n, 2, cout), jnp.float32)),
        grid=(n,),
        in_specs=[
            pl.BlockSpec((1, hf, wf, cin), lambda i: (i, 0, 0, 0)),
            pl.BlockSpec((1, cin), lambda i: (0, 0)),
            pl.BlockSpec((1, cin), lambda i: (0, 0)),
            pl.BlockSpec(w_taps.shape, lambda i: (0, 0, 0)),
        ],
        out_specs=(pl.BlockSpec((1, hf, wf, cout), lambda i: (i, 0, 0, 0)),
                   pl.BlockSpec((1, 2, cout), lambda i: (i, 0, 0))),
        scratch_shapes=[
            pltpu.VMEM((hf + 2, wf + 2, cin), jnp.bfloat16),
            pltpu.VMEM((hf * wf, cout), jnp.float32),
        ],
        compiler_params=_cparams(1),
    )(y1_bf16, scale_row, shift_row, w_taps)


def _scale_shift_relu(x_bf16, scale_row, shift_row):
    n, h, w, c = x_bf16.shape
    return pl.pallas_call(
        _scale_shift_relu_kernel,
        out_shape=jax.ShapeDtypeStruct((n, h, w, c), jnp.float32),
        grid=(n,),
        in_specs=[pl.BlockSpec((1, h, w, c), lambda i: (i, 0, 0, 0)),
                  pl.BlockSpec((1, c), lambda i: (0, 0)),
                  pl.BlockSpec((1, c), lambda i: (0, 0))],
        out_specs=pl.BlockSpec((1, h, w, c), lambda i: (i, 0, 0, 0)),
        compiler_params=_cparams(1),
    )(x_bf16, scale_row, shift_row)


# --------------------------------------------------------------- parameters --

def init_params(key, in_channels, out_channels):
    ks = jax.random.split(key, 6)

    def u(k, shape, fan_in):
        bound = 1.0 / jnp.sqrt(jnp.float32(fan_in))
        return jax.random.uniform(k, shape, jnp.float32, -bound, bound)

    p = {}
    # ConvTranspose2d(in, out, kernel_size=2, stride=2): weight (in, out, 2, 2)
    p["deconv_w"] = u(ks[0], (in_channels, out_channels, 2, 2), in_channels * 4)
    p["deconv_b"] = u(ks[1], (out_channels,), in_channels * 4)
    # Conv2d(in, out, 3, padding=1). Conv biases kept for parameter parity but
    # have no forward effect (cancelled by the training-mode BN that follows).
    p["conv1_w"] = u(ks[2], (out_channels, in_channels, 3, 3), in_channels * 9)
    p["conv1_b"] = u(ks[3], (out_channels,), in_channels * 9)
    p["bn1_gamma"] = jnp.ones((out_channels,), jnp.float32)
    p["bn1_beta"] = jnp.zeros((out_channels,), jnp.float32)
    # Conv2d(out, out, 3, padding=1)
    p["conv2_w"] = u(ks[4], (out_channels, out_channels, 3, 3), out_channels * 9)
    p["conv2_b"] = u(ks[5], (out_channels,), out_channels * 9)
    p["bn2_gamma"] = jnp.ones((out_channels,), jnp.float32)
    p["bn2_beta"] = jnp.zeros((out_channels,), jnp.float32)
    return p


# ------------------------------------------------------------------ forward --

def _folded_bn(stats, gamma, beta, count):
    # Per-image (sum, sumsq) -> batch mean/var (biased, like PyTorch training
    # forward) -> single scale/shift pair applied downstream.
    s = jnp.sum(stats[:, 0, :], axis=0)
    ss = jnp.sum(stats[:, 1, :], axis=0)
    mean = s / count
    var = ss / count - mean * mean
    scale = gamma * jax.lax.rsqrt(var + _EPS)
    shift = beta - mean * scale
    return scale[None, :], shift[None, :]
    # TODO(synk): BatchNorm running-stats update is training-side state with no
    # effect on the forward output, so it is intentionally not modeled.


def up_block_forward(x_nchw, feat_nchw, p):
    n, cin, h, w = x_nchw.shape
    cout = p["deconv_b"].shape[0]
    _, cf, hf, wf = feat_nchw.shape

    x = jnp.transpose(x_nchw, (0, 2, 3, 1))           # NHWC (channels = lanes)
    feat = jnp.transpose(feat_nchw, (0, 2, 3, 1))

    # --- ConvTranspose2d(k=2, s=2) as per-pixel matmul (bf16 output) ----------
    w_mm = p["deconv_w"].reshape(cin, cout * 4).astype(jnp.bfloat16)
    b_mm = jnp.repeat(p["deconv_b"], 4)[None, :].astype(jnp.float32)
    y = _deconv(x, w_mm, b_mm)                        # (N,h,w,Cout*4), (o,kh,kw)

    # depth-to-space: cheap XLA copy on the bf16 tensor (see TODO at top).
    up = jnp.transpose(y.reshape(n, h, w, cout, 2, 2),
                       (0, 1, 4, 2, 5, 3)).reshape(n, 2 * h, 2 * w, cout)

    # F.pad offsets are applied INSIDE conv1 while filling its padded scratch;
    # the channel concat never materializes in HBM.
    h_diff, w_diff = hf - 2 * h, wf - 2 * w
    pads = (h_diff // 2, h_diff - h_diff // 2,
            w_diff // 2, w_diff - w_diff // 2)

    # conv1 weights split into the up-channel and feat-channel rows, kw merged
    # into the K dimension: (3, 3*C, cout), K index = kw*C + c.
    w1 = jnp.transpose(p["conv1_w"], (2, 3, 1, 0))    # (kh, kw, cin1, cout)
    w1_up = w1[:, :, :cout, :].reshape(3, 3 * cout, cout).astype(jnp.bfloat16)
    w1_ft = w1[:, :, cout:, :].reshape(3, 3 * cf, cout).astype(jnp.bfloat16)

    count = jnp.float32(n * hf * wf)

    # --- conv1 (3x3, pad=1) -> bf16 pre-BN activations + BN1 statistics -------
    y1_pre, stats1 = _conv1(up, feat, w1_up, w1_ft, pads)
    scale1, shift1 = _folded_bn(stats1, p["bn1_gamma"], p["bn1_beta"], count)

    # --- conv2 (3x3) with BN1 + ReLU fused onto its input, + BN2 statistics ---
    w2 = jnp.transpose(p["conv2_w"], (2, 3, 1, 0)).reshape(3, 3 * cout, cout)
    y2_pre, stats2 = _conv2(y1_pre, scale1, shift1, w2.astype(jnp.bfloat16))
    scale2, shift2 = _folded_bn(stats2, p["bn2_gamma"], p["bn2_beta"], count)

    # --- BN2 + ReLU epilogue ---------------------------------------------------
    out = _scale_shift_relu(y2_pre, scale2, shift2)
    return jnp.transpose(out, (0, 3, 1, 2))           # back to NCHW


# --------------------------------------------------------- pure-JAX reference

def _reference(x_nchw, feat_nchw, p):
    hi = jax.lax.Precision.HIGHEST
    n, cin, h, w = x_nchw.shape
    cout = p["deconv_b"].shape[0]
    x = jnp.transpose(x_nchw, (0, 2, 3, 1))
    feat = jnp.transpose(feat_nchw, (0, 2, 3, 1))
    hf, wf = feat.shape[1], feat.shape[2]

    y = jnp.einsum("nhwc,cf->nhwf", x, p["deconv_w"].reshape(cin, cout * 4),
                   precision=hi) + jnp.repeat(p["deconv_b"], 4)
    up = jnp.transpose(y.reshape(n, h, w, cout, 2, 2),
                       (0, 1, 4, 2, 5, 3)).reshape(n, 2 * h, 2 * w, cout)
    hd, wd = hf - 2 * h, wf - 2 * w
    up = jnp.pad(up, ((0, 0), (hd // 2, hd - hd // 2),
                      (wd // 2, wd - wd // 2), (0, 0)))
    z = jnp.concatenate([up, feat], axis=-1)

    def conv_bn_relu(z, wgt, bias, gamma, beta):
        zp = jnp.pad(z, ((0, 0), (1, 1), (1, 1), (0, 0)))
        cols = [zp[:, kh:kh + hf, kw:kw + wf, :]
                for kh in range(3) for kw in range(3)]
        patches = jnp.concatenate(cols, axis=-1)
        wk = jnp.transpose(wgt, (2, 3, 1, 0)).reshape(-1, wgt.shape[0])
        o = jnp.einsum("nhwk,kf->nhwf", patches, wk, precision=hi) + bias
        mean = jnp.mean(o, axis=(0, 1, 2))
        var = jnp.mean((o - mean) ** 2, axis=(0, 1, 2))
        o = (o - mean) * jax.lax.rsqrt(var + _EPS) * gamma + beta
        return jnp.maximum(o, 0.0)

    z = conv_bn_relu(z, p["conv1_w"], p["conv1_b"], p["bn1_gamma"], p["bn1_beta"])
    z = conv_bn_relu(z, p["conv2_w"], p["conv2_b"], p["bn2_gamma"], p["bn2_beta"])
    return jnp.transpose(z, (0, 3, 1, 2))


# --------------------------------------------------------------------- main --

if __name__ == "__main__":
    key = jax.random.PRNGKey(0)
    k_x, k_f, k_p = jax.random.split(key, 3)

    in_channels, out_channels = 8, 4
    n, h, w = 2, 8, 8
    hf, wf = 2 * h, 2 * w                              # features are 2x spatial
    feat_channels = in_channels - out_channels         # cat -> in_channels

    x = jax.random.normal(k_x, (n, in_channels, h, w), jnp.float32)
    feats = jax.random.normal(k_f, (n, feat_channels, hf, wf), jnp.float32)
    params = init_params(k_p, in_channels, out_channels)

    out = jax.jit(up_block_forward)(x, feats, params)
    out = jax.block_until_ready(out)

    assert out.shape == (n, out_channels, hf, wf), out.shape
    assert bool(jnp.all(jnp.isfinite(out)))

    ref = _reference(x, feats, params)
    max_err = float(jnp.max(jnp.abs(out - ref)))
    assert bool(jnp.allclose(out, ref, rtol=5e-2, atol=5e-2)), max_err

    print("KERNEL_OK")
</pallas_src>

<mosaic_0001>
module attributes {stable_mosaic.version = 11 : i64} {
  func.func @kernel(%arg0: i32, %arg1: memref<1x8x8x8xf32, #tpu.memory_space<vmem>>, %arg2: memref<8x16xbf16, #tpu.memory_space<vmem>>, %arg3: memref<1x16xf32, #tpu.memory_space<vmem>>, %arg4: memref<1x8x8x16xbf16, #tpu.memory_space<vmem>>) attributes {dimension_semantics = [#tpu.dimension_semantics<parallel>], iteration_bounds = array<i64: 2>, scalar_prefetch = 0 : i64, scratch_operands = 0 : i64, tpu.core_type = #tpu.core_type<tc>, window_params = [{transform_indices = @transform_0, window_bounds = array<i64: 1, 8, 8, 8>}, {pipeline_mode = #tpu.pipeline_mode<synchronous>, transform_indices = @transform_1, window_bounds = array<i64: 8, 16>}, {pipeline_mode = #tpu.pipeline_mode<synchronous>, transform_indices = @transform_2, window_bounds = array<i64: 1, 16>}, {transform_indices = @transform_3, window_bounds = array<i64: 1, 8, 8, 16>}]} {
    %c0 = arith.constant 0 : index
    %c0_0 = arith.constant 0 : index
    %c0_1 = arith.constant 0 : index
    %c0_2 = arith.constant 0 : index
    %0 = vector.load %arg1[%c0, %c0_0, %c0_1, %c0_2] : memref<1x8x8x8xf32, #tpu.memory_space<vmem>>, vector<1x8x8x8xf32>
    %1 = vector.shape_cast %0 : vector<1x8x8x8xf32> to vector<8x8x8xf32>
    %2 = vector.shape_cast %1 : vector<8x8x8xf32> to vector<64x8xf32>
    %3 = arith.truncf %2 : vector<64x8xf32> to vector<64x8xbf16>
    %c0_3 = arith.constant 0 : index
    %c0_4 = arith.constant 0 : index
    %4 = vector.load %arg2[%c0_3, %c0_4] : memref<8x16xbf16, #tpu.memory_space<vmem>>, vector<8x16xbf16>
    %cst = arith.constant dense<0.000000e+00> : vector<64x16xf32>
    %5 = tpu.matmul %3, %4, %cst {dimension_numbers = #tpu.dot_dimension_numbers<[1], [0], [0], [1], [0, 0, 1, 1], [], []>} : vector<64x8xbf16>, vector<8x16xbf16>, vector<64x16xf32> -> vector<64x16xf32>
    %c0_5 = arith.constant 0 : index
    %c0_6 = arith.constant 0 : index
    %6 = vector.load %arg3[%c0_5, %c0_6] : memref<1x16xf32, #tpu.memory_space<vmem>>, vector<1x16xf32>
    %7 = vector.broadcast %6 : vector<1x16xf32> to vector<64x16xf32>
    %8 = arith.addf %5, %7 : vector<64x16xf32>
    %9 = arith.truncf %8 : vector<64x16xf32> to vector<64x16xbf16>
    %10 = vector.shape_cast %9 : vector<64x16xbf16> to vector<8x8x16xbf16>
    %c0_7 = arith.constant 0 : index
    %c0_8 = arith.constant 0 : index
    %c0_9 = arith.constant 0 : index
    %c0_10 = arith.constant 0 : index
    %11 = vector.load %arg4[%c0_7, %c0_8, %c0_9, %c0_10] : memref<1x8x8x16xbf16, #tpu.memory_space<vmem>>, vector<1x8x8x16xbf16>
    %12 = vector.shape_cast %11 : vector<1x8x8x16xbf16> to vector<8x8x16xbf16>
    %13 = vector.shape_cast %10 : vector<8x8x16xbf16> to vector<1x8x8x16xbf16>
    tpu.vector_store %arg4[%c0_7, %c0_8, %c0_9, %c0_10], %13 {strides = array<i32>} : memref<1x8x8x16xbf16, #tpu.memory_space<vmem>>, vector<1x8x8x16xbf16>,
    return
  }
  func.func @transform_0(%arg0: i32) -> (i32, i32, i32, i32) {
    %c0_i32 = arith.constant 0 : i32
    %c0_i32_0 = arith.constant 0 : i32
    %c0_i32_1 = arith.constant 0 : i32
    %c0_i32_2 = arith.constant 0 : i32
    return %arg0, %c0_i32, %c0_i32_0, %c0_i32_1 : i32, i32, i32, i32
  }
  func.func @transform_1(%arg0: i32) -> (i32, i32) {
    %c0_i32 = arith.constant 0 : i32
    %c0_i32_0 = arith.constant 0 : i32
    %c0_i32_1 = arith.constant 0 : i32
    return %c0_i32, %c0_i32_0 : i32, i32
  }
  func.func @transform_2(%arg0: i32) -> (i32, i32) {
    %c0_i32 = arith.constant 0 : i32
    %c0_i32_0 = arith.constant 0 : i32
    %c0_i32_1 = arith.constant 0 : i32
    return %c0_i32, %c0_i32_0 : i32, i32
  }
  func.func @transform_3(%arg0: i32) -> (i32, i32, i32, i32) {
    %c0_i32 = arith.constant 0 : i32
    %c0_i32_0 = arith.constant 0 : i32
    %c0_i32_1 = arith.constant 0 : i32
    %c0_i32_2 = arith.constant 0 : i32
    return %arg0, %c0_i32, %c0_i32_0, %c0_i32_1 : i32, i32, i32, i32
  }
}

module attributes {stable_mosaic.version = 11 : i64} {
  func.func @kernel(%arg0: i32, %arg1: memref<1x16x16x4xbf16, #tpu.memory_space<vmem>>, %arg2: memref<1x16x16x4xf32, #tpu.memory_space<vmem>>, %arg3: memref<3x12x4xbf16, #tpu.memory_space<vmem>>, %arg4: memref<3x12x4xbf16, #tpu.memory_space<vmem>>, %arg5: memref<1x16x16x4xbf16, #tpu.memory_space<vmem>>, %arg6: memref<1x2x4xf32, #tpu.memory_space<vmem>>, %arg7: memref<18x18x4xbf16, #tpu.memory_space<vmem>>, %arg8: memref<18x18x4xbf16, #tpu.memory_space<vmem>>, %arg9: memref<256x4xf32, #tpu.memory_space<vmem>>) attributes {dimension_semantics = [#tpu.dimension_semantics<parallel>], iteration_bounds = array<i64: 2>, scalar_prefetch = 0 : i64, scratch_operands = 3 : i64, tpu.core_type = #tpu.core_type<tc>, window_params = [{transform_indices = @transform_0, window_bounds = array<i64: 1, 16, 16, 4>}, {transform_indices = @transform_1, window_bounds = array<i64: 1, 16, 16, 4>}, {pipeline_mode = #tpu.pipeline_mode<synchronous>, transform_indices = @transform_2, window_bounds = array<i64: 3, 12, 4>}, {pipeline_mode = #tpu.pipeline_mode<synchronous>, transform_indices = @transform_3, window_bounds = array<i64: 3, 12, 4>}, {transform_indices = @transform_4, window_bounds = array<i64: 1, 16, 16, 4>}, {transform_indices = @transform_5, window_bounds = array<i64: 1, 2, 4>}]} {
    %cst = arith.constant 0.000000e+00 : bf16
    %0 = vector.broadcast %cst : bf16 to vector<16x1x4xbf16>
    %c0 = arith.constant 0 : index
    %c0_0 = arith.constant 0 : index
    %c0_1 = arith.constant 0 : index
    %c0_2 = arith.constant 0 : index
    %1 = vector.load %arg1[%c0, %c0_0, %c0_1, %c0_2] : memref<1x16x16x4xbf16, #tpu.memory_space<vmem>>, vector<1x16x16x4xbf16>
    %2 = vector.shape_cast %1 : vector<1x16x16x4xbf16> to vector<16x16x4xbf16>
    %cst_3 = arith.constant 0.000000e+00 : bf16
    %3 = vector.broadcast %cst_3 : bf16 to vector<16x1x4xbf16>
    %4 = tpu.concatenate %0, %2, %3 in 1 : vector<16x1x4xbf16>, vector<16x16x4xbf16>, vector<16x1x4xbf16> -> vector<16x18x4xbf16>
    %c1 = arith.constant 1 : index
    %c0_4 = arith.constant 0 : index
    %c0_5 = arith.constant 0 : index
    %5 = vector.load %arg7[%c1, %c0_4, %c0_5] : memref<18x18x4xbf16, #tpu.memory_space<vmem>>, vector<16x18x4xbf16>
    tpu.vector_store %arg7[%c1, %c0_4, %c0_5], %4 {strides = array<i32>} : memref<18x18x4xbf16, #tpu.memory_space<vmem>>, vector<16x18x4xbf16>,
    %cst_6 = arith.constant 0.000000e+00 : bf16
    %6 = vector.broadcast %cst_6 : bf16 to vector<1x18x4xbf16>
    %c0_7 = arith.constant 0 : index
    %c0_8 = arith.constant 0 : index
    %c0_9 = arith.constant 0 : index
    %7 = vector.load %arg7[%c0_7, %c0_8, %c0_9] : memref<18x18x4xbf16, #tpu.memory_space<vmem>>, vector<1x18x4xbf16>
    tpu.vector_store %arg7[%c0_7, %c0_8, %c0_9], %6 {strides = array<i32>} : memref<18x18x4xbf16, #tpu.memory_space<vmem>>, vector<1x18x4xbf16>,
    %cst_10 = arith.constant 0.000000e+00 : bf16
    %8 = vector.broadcast %cst_10 : bf16 to vector<1x18x4xbf16>
    %c17 = arith.constant 17 : index
    %c0_11 = arith.constant 0 : index
    %c0_12 = arith.constant 0 : index
    %9 = vector.load %arg7[%c17, %c0_11, %c0_12] : memref<18x18x4xbf16, #tpu.memory_space<vmem>>, vector<1x18x4xbf16>
    tpu.vector_store %arg7[%c17, %c0_11, %c0_12], %8 {strides = array<i32>} : memref<18x18x4xbf16, #tpu.memory_space<vmem>>, vector<1x18x4xbf16>,
    %cst_13 = arith.constant 0.000000e+00 : bf16
    %10 = vector.broadcast %cst_13 : bf16 to vector<16x1x4xbf16>
    %c0_14 = arith.constant 0 : index
    %c0_15 = arith.constant 0 : index
    %c0_16 = arith.constant 0 : index
    %c0_17 = arith.constant 0 : index
    %11 = vector.load %arg2[%c0_14, %c0_15, %c0_16, %c0_17] : memref<1x16x16x4xf32, #tpu.memory_space<vmem>>, vector<1x16x16x4xf32>
    %12 = vector.shape_cast %11 : vector<1x16x16x4xf32> to vector<16x16x4xf32>
    %13 = arith.truncf %12 : vector<16x16x4xf32> to vector<16x16x4xbf16>
    %14 = tpu.concatenate %10, %13, %10 in 1 : vector<16x1x4xbf16>, vector<16x16x4xbf16>, vector<16x1x4xbf16> -> vector<16x18x4xbf16>
    %c1_18 = arith.constant 1 : index
    %c0_19 = arith.constant 0 : index
    %c0_20 = arith.constant 0 : index
    %15 = vector.load %arg8[%c1_18, %c0_19, %c0_20] : memref<18x18x4xbf16, #tpu.memory_space<vmem>>, vector<16x18x4xbf16>
    tpu.vector_store %arg8[%c1_18, %c0_19, %c0_20], %14 {strides = array<i32>} : memref<18x18x4xbf16, #tpu.memory_space<vmem>>, vector<16x18x4xbf16>,
    %cst_21 = arith.constant 0.000000e+00 : bf16
    %16 = vector.broadcast %cst_21 : bf16 to vector<1x18x4xbf16>
    %c0_22 = arith.constant 0 : index
    %c0_23 = arith.constant 0 : index
    %c0_24 = arith.constant 0 : index
    %17 = vector.load %arg8[%c0_22, %c0_23, %c0_24] : memref<18x18x4xbf16, #tpu.memory_space<vmem>>, vector<1x18x4xbf16>
    tpu.vector_store %arg8[%c0_22, %c0_23, %c0_24], %16 {strides = array<i32>} : memref<18x18x4xbf16, #tpu.memory_space<vmem>>, vector<1x18x4xbf16>,
    %c17_25 = arith.constant 17 : index
    %c0_26 = arith.constant 0 : index
    %c0_27 = arith.constant 0 : index
    %18 = vector.load %arg8[%c17_25, %c0_26, %c0_27] : memref<18x18x4xbf16, #tpu.memory_space<vmem>>, vector<1x18x4xbf16>
    tpu.vector_store %arg8[%c17_25, %c0_26, %c0_27], %16 {strides = array<i32>} : memref<18x18x4xbf16, #tpu.memory_space<vmem>>, vector<1x18x4xbf16>,
    %c0_28 = arith.constant 0 : index
    %c0_29 = arith.constant 0 : index
    %c0_30 = arith.constant 0 : index
    %19 = vector.load %arg7[%c0_28, %c0_29, %c0_30] : memref<18x18x4xbf16, #tpu.memory_space<vmem>>, vector<16x16x4xbf16>
    %c0_31 = arith.constant 0 : index
    %c1_32 = arith.constant 1 : index
    %c0_33 = arith.constant 0 : index
    %20 = vector.load %arg7[%c0_31, %c1_32, %c0_33] : memref<18x18x4xbf16, #tpu.memory_space<vmem>>, vector<16x16x4xbf16>
    %c0_34 = arith.constant 0 : index
    %c2 = arith.constant 2 : index
    %c0_35 = arith.constant 0 : index
    %21 = vector.load %arg7[%c0_34, %c2, %c0_35] : memref<18x18x4xbf16, #tpu.memory_space<vmem>>, vector<16x16x4xbf16>
    %22 = tpu.concatenate %19, %20, %21 in 2 : vector<16x16x4xbf16>, vector<16x16x4xbf16>, vector<16x16x4xbf16> -> vector<16x16x12xbf16>
    %23 = vector.shape_cast %22 : vector<16x16x12xbf16> to vector<256x12xbf16>
    %c0_36 = arith.constant 0 : index
    %c0_37 = arith.constant 0 : index
    %c0_38 = arith.constant 0 : index
    %24 = vector.load %arg3[%c0_36, %c0_37, %c0_38] : memref<3x12x4xbf16, #tpu.memory_space<vmem>>, vector<1x12x4xbf16>
    %25 = vector.shape_cast %24 : vector<1x12x4xbf16> to vector<12x4xbf16>
    %cst_39 = arith.constant dense<0.000000e+00> : vector<256x4xf32>
    %26 = tpu.matmul %23, %25, %cst_39 {dimension_numbers = #tpu.dot_dimension_numbers<[1], [0], [0], [1], [0, 0, 1, 1], [], []>} : vector<256x12xbf16>, vector<12x4xbf16>, vector<256x4xf32> -> vector<256x4xf32>
    %c0_40 = arith.constant 0 : index
    %c0_41 = arith.constant 0 : index
    %27 = vector.load %arg9[%c0_40, %c0_41] : memref<256x4xf32, #tpu.memory_space<vmem>>, vector<256x4xf32>
    tpu.vector_store %arg9[%c0_40, %c0_41], %26 {strides = array<i32>} : memref<256x4xf32, #tpu.memory_space<vmem>>, vector<256x4xf32>,
    %c1_42 = arith.constant 1 : index
    %c0_43 = arith.constant 0 : index
    %c0_44 = arith.constant 0 : index
    %28 = vector.load %arg7[%c1_42, %c0_43, %c0_44] : memref<18x18x4xbf16, #tpu.memory_space<vmem>>, vector<16x16x4xbf16>
    %c1_45 = arith.constant 1 : index
    %c1_46 = arith.constant 1 : index
    %c0_47 = arith.constant 0 : index
    %29 = vector.load %arg7[%c1_45, %c1_46, %c0_47] : memref<18x18x4xbf16, #tpu.memory_space<vmem>>, vector<16x16x4xbf16>
    %c1_48 = arith.constant 1 : index
    %c2_49 = arith.constant 2 : index
    %c0_50 = arith.constant 0 : index
    %30 = vector.load %arg7[%c1_48, %c2_49, %c0_50] : memref<18x18x4xbf16, #tpu.memory_space<vmem>>, vector<16x16x4xbf16>
    %31 = tpu.concatenate %28, %29, %30 in 2 : vector<16x16x4xbf16>, vector<16x16x4xbf16>, vector<16x16x4xbf16> -> vector<16x16x12xbf16>
    %32 = vector.shape_cast %31 : vector<16x16x12xbf16> to vector<256x12xbf16>
    %c1_51 = arith.constant 1 : index
    %c0_52 = arith.constant 0 : index
    %c0_53 = arith.constant 0 : index
    %33 = vector.load %arg3[%c1_51, %c0_52, %c0_53] : memref<3x12x4xbf16, #tpu.memory_space<vmem>>, vector<1x12x4xbf16>
    %34 = vector.shape_cast %33 : vector<1x12x4xbf16> to vector<12x4xbf16>
    %cst_54 = arith.constant dense<0.000000e+00> : vector<256x4xf32>
    %35 = tpu.matmul %32, %34, %cst_54 {dimension_numbers = #tpu.dot_dimension_numbers<[1], [0], [0], [1], [0, 0, 1, 1], [], []>} : vector<256x12xbf16>, vector<12x4xbf16>, vector<256x4xf32> -> vector<256x4xf32>
    %c0_55 = arith.constant 0 : index
    %c0_56 = arith.constant 0 : index
    %36 = vector.load %arg9[%c0_55, %c0_56] : memref<256x4xf32, #tpu.memory_space<vmem>>, vector<256x4xf32>
    %37 = arith.addf %36, %35 : vector<256x4xf32>
    %c0_57 = arith.constant 0 : index
    %c0_58 = arith.constant 0 : index
    %38 = vector.load %arg9[%c0_57, %c0_58] : memref<256x4xf32, #tpu.memory_space<vmem>>, vector<256x4xf32>
    tpu.vector_store %arg9[%c0_57, %c0_58], %37 {strides = array<i32>} : memref<256x4xf32, #tpu.memory_space<vmem>>, vector<256x4xf32>,
    %c2_59 = arith.constant 2 : index
    %c0_60 = arith.constant 0 : index
    %c0_61 = arith.constant 0 : index
    %39 = vector.load %arg7[%c2_59, %c0_60, %c0_61] : memref<18x18x4xbf16, #tpu.memory_space<vmem>>, vector<16x16x4xbf16>
    %c2_62 = arith.constant 2 : index
    %c1_63 = arith.constant 1 : index
    %c0_64 = arith.constant 0 : index
    %40 = vector.load %arg7[%c2_62, %c1_63, %c0_64] : memref<18x18x4xbf16, #tpu.memory_space<vmem>>, vector<16x16x4xbf16>
    %c2_65 = arith.constant 2 : index
    %c2_66 = arith.constant 2 : index
    %c0_67 = arith.constant 0 : index
    %41 = vector.load %arg7[%c2_65, %c2_66, %c0_67] : memref<18x18x4xbf16, #tpu.memory_space<vmem>>, vector<16x16x4xbf16>
    %42 = tpu.concatenate %39, %40, %41 in 2 : vector<16x16x4xbf16>, vector<16x16x4xbf16>, vector<16x16x4xbf16> -> vector<16x16x12xbf16>
    %43 = vector.shape_cast %42 : vector<16x16x12xbf16> to vector<256x12xbf16>
    %c2_68 = arith.constant 2 : index
    %c0_69 = arith.constant 0 : index
    %c0_70 = arith.constant 0 : index
    %44 = vector.load %arg3[%c2_68, %c0_69, %c0_70] : memref<3x12x4xbf16, #tpu.memory_space<vmem>>, vector<1x12x4xbf16>
    %45 = vector.shape_cast %44 : vector<1x12x4xbf16> to vector<12x4xbf16>
    %cst_71 = arith.constant dense<0.000000e+00> : vector<256x4xf32>
    %46 = tpu.matmul %43, %45, %cst_71 {dimension_numbers = #tpu.dot_dimension_numbers<[1], [0], [0], [1], [0, 0, 1, 1], [], []>} : vector<256x12xbf16>, vector<12x4xbf16>, vector<256x4xf32> -> vector<256x4xf32>
    %c0_72 = arith.constant 0 : index
    %c0_73 = arith.constant 0 : index
    %47 = vector.load %arg9[%c0_72, %c0_73] : memref<256x4xf32, #tpu.memory_space<vmem>>, vector<256x4xf32>
    %48 = arith.addf %47, %46 : vector<256x4xf32>
    %c0_74 = arith.constant 0 : index
    %c0_75 = arith.constant 0 : index
    %49 = vector.load %arg9[%c0_74, %c0_75] : memref<256x4xf32, #tpu.memory_space<vmem>>, vector<256x4xf32>
    tpu.vector_store %arg9[%c0_74, %c0_75], %48 {strides = array<i32>} : memref<256x4xf32, #tpu.memory_space<vmem>>, vector<256x4xf32>,
    %c0_76 = arith.constant 0 : index
    %c0_77 = arith.constant 0 : index
    %c0_78 = arith.constant 0 : index
    %50 = vector.load %arg8[%c0_76, %c0_77, %c0_78] : memref<18x18x4xbf16, #tpu.memory_space<vmem>>, vector<16x16x4xbf16>
    %c0_79 = arith.constant 0 : index
    %c1_80 = arith.constant 1 : index
    %c0_81 = arith.constant 0 : index
    %51 = vector.load %arg8[%c0_79, %c1_80, %c0_81] : memref<18x18x4xbf16, #tpu.memory_space<vmem>>, vector<16x16x4xbf16>
    %c0_82 = arith.constant 0 : index
    %c2_83 = arith.constant 2 : index
    %c0_84 = arith.constant 0 : index
    %52 = vector.load %arg8[%c0_82, %c2_83, %c0_84] : memref<18x18x4xbf16, #tpu.memory_space<vmem>>, vector<16x16x4xbf16>
    %53 = tpu.concatenate %50, %51, %52 in 2 : vector<16x16x4xbf16>, vector<16x16x4xbf16>, vector<16x16x4xbf16> -> vector<16x16x12xbf16>
    %54 = vector.shape_cast %53 : vector<16x16x12xbf16> to vector<256x12xbf16>
    %c0_85 = arith.constant 0 : index
    %c0_86 = arith.constant 0 : index
    %c0_87 = arith.constant 0 : index
    %55 = vector.load %arg4[%c0_85, %c0_86, %c0_87] : memref<3x12x4xbf16, #tpu.memory_space<vmem>>, vector<1x12x4xbf16>
    %56 = vector.shape_cast %55 : vector<1x12x4xbf16> to vector<12x4xbf16>
    %cst_88 = arith.constant dense<0.000000e+00> : vector<256x4xf32>
    %57 = tpu.matmul %54, %56, %cst_88 {dimension_numbers = #tpu.dot_dimension_numbers<[1], [0], [0], [1], [0, 0, 1, 1], [], []>} : vector<256x12xbf16>, vector<12x4xbf16>, vector<256x4xf32> -> vector<256x4xf32>
    %c0_89 = arith.constant 0 : index
    %c0_90 = arith.constant 0 : index
    %58 = vector.load %arg9[%c0_89, %c0_90] : memref<256x4xf32, #tpu.memory_space<vmem>>, vector<256x4xf32>
    %59 = arith.addf %58, %57 : vector<256x4xf32>
    %c0_91 = arith.constant 0 : index
    %c0_92 = arith.constant 0 : index
    %60 = vector.load %arg9[%c0_91, %c0_92] : memref<256x4xf32, #tpu.memory_space<vmem>>, vector<256x4xf32>
    tpu.vector_store %arg9[%c0_91, %c0_92], %59 {strides = array<i32>} : memref<256x4xf32, #tpu.memory_space<vmem>>, vector<256x4xf32>,
    %c1_93 = arith.constant 1 : index
    %c0_94 = arith.constant 0 : index
    %c0_95 = arith.constant 0 : index
    %61 = vector.load %arg8[%c1_93, %c0_94, %c0_95] : memref<18x18x4xbf16, #tpu.memory_space<vmem>>, vector<16x16x4xbf16>
    %c1_96 = arith.constant 1 : index
    %c1_97 = arith.constant 1 : index
    %c0_98 = arith.constant 0 : index
    %62 = vector.load %arg8[%c1_96, %c1_97, %c0_98] : memref<18x18x4xbf16, #tpu.memory_space<vmem>>, vector<16x16x4xbf16>
    %c1_99 = arith.constant 1 : index
    %c2_100 = arith.constant 2 : index
    %c0_101 = arith.constant 0 : index
    %63 = vector.load %arg8[%c1_99, %c2_100, %c0_101] : memref<18x18x4xbf16, #tpu.memory_space<vmem>>, vector<16x16x4xbf16>
    %64 = tpu.concatenate %61, %62, %63 in 2 : vector<16x16x4xbf16>, vector<16x16x4xbf16>, vector<16x16x4xbf16> -> vector<16x16x12xbf16>
    %65 = vector.shape_cast %64 : vector<16x16x12xbf16> to vector<256x12xbf16>
    %c1_102 = arith.constant 1 : index
    %c0_103 = arith.constant 0 : index
    %c0_104 = arith.constant 0 : index
    %66 = vector.load %arg4[%c1_102, %c0_103, %c0_104] : memref<3x12x4xbf16, #tpu.memory_space<vmem>>, vector<1x12x4xbf16>
    %67 = vector.shape_cast %66 : vector<1x12x4xbf16> to vector<12x4xbf16>
    %cst_105 = arith.constant dense<0.000000e+00> : vector<256x4xf32>
    %68 = tpu.matmul %65, %67, %cst_105 {dimension_numbers = #tpu.dot_dimension_numbers<[1], [0], [0], [1], [0, 0, 1, 1], [], []>} : vector<256x12xbf16>, vector<12x4xbf16>, vector<256x4xf32> -> vector<256x4xf32>
    %c0_106 = arith.constant 0 : index
    %c0_107 = arith.constant 0 : index
    %69 = vector.load %arg9[%c0_106, %c0_107] : memref<256x4xf32, #tpu.memory_space<vmem>>, vector<256x4xf32>
    %70 = arith.addf %69, %68 : vector<256x4xf32>
    %c0_108 = arith.constant 0 : index
    %c0_109 = arith.constant 0 : index
    %71 = vector.load %arg9[%c0_108, %c0_109] : memref<256x4xf32, #tpu.memory_space<vmem>>, vector<256x4xf32>
    tpu.vector_store %arg9[%c0_108, %c0_109], %70 {strides = array<i32>} : memref<256x4xf32, #tpu.memory_space<vmem>>, vector<256x4xf32>,
    %c2_110 = arith.constant 2 : index
    %c0_111 = arith.constant 0 : index
    %c0_112 = arith.constant 0 : index
    %72 = vector.load %arg8[%c2_110, %c0_111, %c0_112] : memref<18x18x4xbf16, #tpu.memory_space<vmem>>, vector<16x16x4xbf16>
    %c2_113 = arith.constant 2 : index
    %c1_114 = arith.constant 1 : index
    %c0_115 = arith.constant 0 : index
    %73 = vector.load %arg8[%c2_113, %c1_114, %c0_115] : memref<18x18x4xbf16, #tpu.memory_space<vmem>>, vector<16x16x4xbf16>
    %c2_116 = arith.constant 2 : index
    %c2_117 = arith.constant 2 : index
    %c0_118 = arith.constant 0 : index
    %74 = vector.load %arg8[%c2_116, %c2_117, %c0_118] : memref<18x18x4xbf16, #tpu.memory_space<vmem>>, vector<16x16x4xbf16>
    %75 = tpu.concatenate %72, %73, %74 in 2 : vector<16x16x4xbf16>, vector<16x16x4xbf16>, vector<16x16x4xbf16> -> vector<16x16x12xbf16>
    %76 = vector.shape_cast %75 : vector<16x16x12xbf16> to vector<256x12xbf16>
    %c2_119 = arith.constant 2 : index
    %c0_120 = arith.constant 0 : index
    %c0_121 = arith.constant 0 : index
    %77 = vector.load %arg4[%c2_119, %c0_120, %c0_121] : memref<3x12x4xbf16, #tpu.memory_space<vmem>>, vector<1x12x4xbf16>
    %78 = vector.shape_cast %77 : vector<1x12x4xbf16> to vector<12x4xbf16>
    %cst_122 = arith.constant dense<0.000000e+00> : vector<256x4xf32>
    %79 = tpu.matmul %76, %78, %cst_122 {dimension_numbers = #tpu.dot_dimension_numbers<[1], [0], [0], [1], [0, 0, 1, 1], [], []>} : vector<256x12xbf16>, vector<12x4xbf16>, vector<256x4xf32> -> vector<256x4xf32>
    %c0_123 = arith.constant 0 : index
    %c0_124 = arith.constant 0 : index
    %80 = vector.load %arg9[%c0_123, %c0_124] : memref<256x4xf32, #tpu.memory_space<vmem>>, vector<256x4xf32>
    %81 = arith.addf %80, %79 : vector<256x4xf32>
    %c0_125 = arith.constant 0 : index
    %c0_126 = arith.constant 0 : index
    %82 = vector.load %arg9[%c0_125, %c0_126] : memref<256x4xf32, #tpu.memory_space<vmem>>, vector<256x4xf32>
    tpu.vector_store %arg9[%c0_125, %c0_126], %81 {strides = array<i32>} : memref<256x4xf32, #tpu.memory_space<vmem>>, vector<256x4xf32>,
    %c0_127 = arith.constant 0 : index
    %c0_128 = arith.constant 0 : index
    %83 = vector.load %arg9[%c0_127, %c0_128] : memref<256x4xf32, #tpu.memory_space<vmem>>, vector<256x4xf32>
    %84 = vector.shape_cast %83 : vector<256x4xf32> to vector<16x16x4xf32>
    %85 = arith.truncf %84 : vector<16x16x4xf32> to vector<16x16x4xbf16>
    %c0_129 = arith.constant 0 : index
    %c0_130 = arith.constant 0 : index
    %c0_131 = arith.constant 0 : index
    %c0_132 = arith.constant 0 : index
    %86 = vector.load %arg5[%c0_129, %c0_130, %c0_131, %c0_132] : memref<1x16x16x4xbf16, #tpu.memory_space<vmem>>, vector<1x16x16x4xbf16>
    %87 = vector.shape_cast %86 : vector<1x16x16x4xbf16> to vector<16x16x4xbf16>
    %88 = vector.shape_cast %85 : vector<16x16x4xbf16> to vector<1x16x16x4xbf16>
    tpu.vector_store %arg5[%c0_129, %c0_130, %c0_131, %c0_132], %88 {strides = array<i32>} : memref<1x16x16x4xbf16, #tpu.memory_space<vmem>>, vector<1x16x16x4xbf16>,
    %cst_133 = arith.constant dense<0.000000e+00> : vector<4xf32>
    %89 = vector.multi_reduction <add>, %83, %cst_133 [0] : vector<256x4xf32> to vector<4xf32>
    %90 = vector.shape_cast %89 : vector<4xf32> to vector<1x4xf32>
    %91 = arith.mulf %83, %83 : vector<256x4xf32>
    %cst_134 = arith.constant dense<0.000000e+00> : vector<4xf32>
    %92 = vector.multi_reduction <add>, %91, %cst_134 [0] : vector<256x4xf32> to vector<4xf32>
    %93 = vector.shape_cast %92 : vector<4xf32> to vector<1x4xf32>
    %94 = tpu.concatenate %90, %93 in 0 : vector<1x4xf32>, vector<1x4xf32> -> vector<2x4xf32>
    %c0_135 = arith.constant 0 : index
    %c0_136 = arith.constant 0 : index
    %c0_137 = arith.constant 0 : index
    %95 = vector.load %arg6[%c0_135, %c0_136, %c0_137] : memref<1x2x4xf32, #tpu.memory_space<vmem>>, vector<1x2x4xf32>
    %96 = vector.shape_cast %95 : vector<1x2x4xf32> to vector<2x4xf32>
    %97 = vector.shape_cast %94 : vector<2x4xf32> to vector<1x2x4xf32>
    tpu.vector_store %arg6[%c0_135, %c0_136, %c0_137], %97 {strides = array<i32>} : memref<1x2x4xf32, #tpu.memory_space<vmem>>, vector<1x2x4xf32>,
    return
  }
  func.func @transform_0(%arg0: i32) -> (i32, i32, i32, i32) {
    %c0_i32 = arith.constant 0 : i32
    %c0_i32_0 = arith.constant 0 : i32
    %c0_i32_1 = arith.constant 0 : i32
    %c0_i32_2 = arith.constant 0 : i32
    return %arg0, %c0_i32, %c0_i32_0, %c0_i32_1 : i32, i32, i32, i32
  }
  func.func @transform_1(%arg0: i32) -> (i32, i32, i32, i32) {
    %c0_i32 = arith.constant 0 : i32
    %c0_i32_0 = arith.constant 0 : i32
    %c0_i32_1 = arith.constant 0 : i32
    %c0_i32_2 = arith.constant 0 : i32
    return %arg0, %c0_i32, %c0_i32_0, %c0_i32_1 : i32, i32, i32, i32
  }
  func.func @transform_2(%arg0: i32) -> (i32, i32, i32) {
    %c0_i32 = arith.constant 0 : i32
    %c0_i32_0 = arith.constant 0 : i32
    %c0_i32_1 = arith.constant 0 : i32
    %c0_i32_2 = arith.constant 0 : i32
    return %c0_i32, %c0_i32_0, %c0_i32_1 : i32, i32, i32
  }
  func.func @transform_3(%arg0: i32) -> (i32, i32, i32) {
    %c0_i32 = arith.constant 0 : i32
    %c0_i32_0 = arith.constant 0 : i32
    %c0_i32_1 = arith.constant 0 : i32
    %c0_i32_2 = arith.constant 0 : i32
    return %c0_i32, %c0_i32_0, %c0_i32_1 : i32, i32, i32
  }
  func.func @transform_4(%arg0: i32) -> (i32, i32, i32, i32) {
    %c0_i32 = arith.constant 0 : i32
    %c0_i32_0 = arith.constant 0 : i32
    %c0_i32_1 = arith.constant 0 : i32
    %c0_i32_2 = arith.constant 0 : i32
    return %arg0, %c0_i32, %c0_i32_0, %c0_i32_1 : i32, i32, i32, i32
  }
  func.func @transform_5(%arg0: i32) -> (i32, i32, i32) {
    %c0_i32 = arith.constant 0 : i32
    %c0_i32_0 = arith.constant 0 : i32
    %c0_i32_1 = arith.constant 0 : i32
    return %arg0, %c0_i32, %c0_i32_0 : i32, i32, i32
  }
}

module attributes {stable_mosaic.version = 11 : i64} {
  func.func @kernel(%arg0: i32, %arg1: memref<1x16x16x4xbf16, #tpu.memory_space<vmem>>, %arg2: memref<1x4xf32, #tpu.memory_space<vmem>>, %arg3: memref<1x4xf32, #tpu.memory_space<vmem>>, %arg4: memref<3x12x4xbf16, #tpu.memory_space<vmem>>, %arg5: memref<1x16x16x4xbf16, #tpu.memory_space<vmem>>, %arg6: memref<1x2x4xf32, #tpu.memory_space<vmem>>, %arg7: memref<18x18x4xbf16, #tpu.memory_space<vmem>>, %arg8: memref<256x4xf32, #tpu.memory_space<vmem>>) attributes {dimension_semantics = [#tpu.dimension_semantics<parallel>], iteration_bounds = array<i64: 2>, scalar_prefetch = 0 : i64, scratch_operands = 2 : i64, tpu.core_type = #tpu.core_type<tc>, window_params = [{transform_indices = @transform_0, window_bounds = array<i64: 1, 16, 16, 4>}, {pipeline_mode = #tpu.pipeline_mode<synchronous>, transform_indices = @transform_1, window_bounds = array<i64: 1, 4>}, {pipeline_mode = #tpu.pipeline_mode<synchronous>, transform_indices = @transform_2, window_bounds = array<i64: 1, 4>}, {pipeline_mode = #tpu.pipeline_mode<synchronous>, transform_indices = @transform_3, window_bounds = array<i64: 3, 12, 4>}, {transform_indices = @transform_4, window_bounds = array<i64: 1, 16, 16, 4>}, {transform_indices = @transform_5, window_bounds = array<i64: 1, 2, 4>}]} {
    %c0 = arith.constant 0 : index
    %c0_0 = arith.constant 0 : index
    %c0_1 = arith.constant 0 : index
    %c0_2 = arith.constant 0 : index
    %0 = vector.load %arg1[%c0, %c0_0, %c0_1, %c0_2] : memref<1x16x16x4xbf16, #tpu.memory_space<vmem>>, vector<1x16x16x4xbf16>
    %1 = vector.shape_cast %0 : vector<1x16x16x4xbf16> to vector<16x16x4xbf16>
    %2 = arith.extf %1 : vector<16x16x4xbf16> to vector<16x16x4xf32>
    %c0_3 = arith.constant 0 : index
    %c0_4 = arith.constant 0 : index
    %3 = vector.load %arg2[%c0_3, %c0_4] : memref<1x4xf32, #tpu.memory_space<vmem>>, vector<1x4xf32>
    %4 = vector.shape_cast %3 : vector<1x4xf32> to vector<1x1x4xf32>
    %5 = vector.broadcast %4 : vector<1x1x4xf32> to vector<16x16x4xf32>
    %6 = arith.mulf %2, %5 : vector<16x16x4xf32>
    %c0_5 = arith.constant 0 : index
    %c0_6 = arith.constant 0 : index
    %7 = vector.load %arg3[%c0_5, %c0_6] : memref<1x4xf32, #tpu.memory_space<vmem>>, vector<1x4xf32>
    %8 = vector.shape_cast %7 : vector<1x4xf32> to vector<1x1x4xf32>
    %9 = vector.broadcast %8 : vector<1x1x4xf32> to vector<16x16x4xf32>
    %10 = arith.addf %6, %9 : vector<16x16x4xf32>
    %cst = arith.constant 0.000000e+00 : f32
    %11 = vector.broadcast %cst : f32 to vector<16x16x4xf32>
    %12 = arith.maximumf %10, %11 : vector<16x16x4xf32>
    %13 = arith.truncf %12 : vector<16x16x4xf32> to vector<16x16x4xbf16>
    %cst_7 = arith.constant 0.000000e+00 : bf16
    %14 = vector.broadcast %cst_7 : bf16 to vector<16x1x4xbf16>
    %15 = tpu.concatenate %14, %13, %14 in 1 : vector<16x1x4xbf16>, vector<16x16x4xbf16>, vector<16x1x4xbf16> -> vector<16x18x4xbf16>
    %c1 = arith.constant 1 : index
    %c0_8 = arith.constant 0 : index
    %c0_9 = arith.constant 0 : index
    %16 = vector.load %arg7[%c1, %c0_8, %c0_9] : memref<18x18x4xbf16, #tpu.memory_space<vmem>>, vector<16x18x4xbf16>
    tpu.vector_store %arg7[%c1, %c0_8, %c0_9], %15 {strides = array<i32>} : memref<18x18x4xbf16, #tpu.memory_space<vmem>>, vector<16x18x4xbf16>,
    %cst_10 = arith.constant 0.000000e+00 : bf16
    %17 = vector.broadcast %cst_10 : bf16 to vector<1x18x4xbf16>
    %c0_11 = arith.constant 0 : index
    %c0_12 = arith.constant 0 : index
    %c0_13 = arith.constant 0 : index
    %18 = vector.load %arg7[%c0_11, %c0_12, %c0_13] : memref<18x18x4xbf16, #tpu.memory_space<vmem>>, vector<1x18x4xbf16>
    tpu.vector_store %arg7[%c0_11, %c0_12, %c0_13], %17 {strides = array<i32>} : memref<18x18x4xbf16, #tpu.memory_space<vmem>>, vector<1x18x4xbf16>,
    %c17 = arith.constant 17 : index
    %c0_14 = arith.constant 0 : index
    %c0_15 = arith.constant 0 : index
    %19 = vector.load %arg7[%c17, %c0_14, %c0_15] : memref<18x18x4xbf16, #tpu.memory_space<vmem>>, vector<1x18x4xbf16>
    tpu.vector_store %arg7[%c17, %c0_14, %c0_15], %17 {strides = array<i32>} : memref<18x18x4xbf16, #tpu.memory_space<vmem>>, vector<1x18x4xbf16>,
    %c0_16 = arith.constant 0 : index
    %c0_17 = arith.constant 0 : index
    %c0_18 = arith.constant 0 : index
    %20 = vector.load %arg7[%c0_16, %c0_17, %c0_18] : memref<18x18x4xbf16, #tpu.memory_space<vmem>>, vector<16x16x4xbf16>
    %c0_19 = arith.constant 0 : index
    %c1_20 = arith.constant 1 : index
    %c0_21 = arith.constant 0 : index
    %21 = vector.load %arg7[%c0_19, %c1_20, %c0_21] : memref<18x18x4xbf16, #tpu.memory_space<vmem>>, vector<16x16x4xbf16>
    %c0_22 = arith.constant 0 : index
    %c2 = arith.constant 2 : index
    %c0_23 = arith.constant 0 : index
    %22 = vector.load %arg7[%c0_22, %c2, %c0_23] : memref<18x18x4xbf16, #tpu.memory_space<vmem>>, vector<16x16x4xbf16>
    %23 = tpu.concatenate %20, %21, %22 in 2 : vector<16x16x4xbf16>, vector<16x16x4xbf16>, vector<16x16x4xbf16> -> vector<16x16x12xbf16>
    %24 = vector.shape_cast %23 : vector<16x16x12xbf16> to vector<256x12xbf16>
    %c0_24 = arith.constant 0 : index
    %c0_25 = arith.constant 0 : index
    %c0_26 = arith.constant 0 : index
    %25 = vector.load %arg4[%c0_24, %c0_25, %c0_26] : memref<3x12x4xbf16, #tpu.memory_space<vmem>>, vector<1x12x4xbf16>
    %26 = vector.shape_cast %25 : vector<1x12x4xbf16> to vector<12x4xbf16>
    %cst_27 = arith.constant dense<0.000000e+00> : vector<256x4xf32>
    %27 = tpu.matmul %24, %26, %cst_27 {dimension_numbers = #tpu.dot_dimension_numbers<[1], [0], [0], [1], [0, 0, 1, 1], [], []>} : vector<256x12xbf16>, vector<12x4xbf16>, vector<256x4xf32> -> vector<256x4xf32>
    %c0_28 = arith.constant 0 : index
    %c0_29 = arith.constant 0 : index
    %28 = vector.load %arg8[%c0_28, %c0_29] : memref<256x4xf32, #tpu.memory_space<vmem>>, vector<256x4xf32>
    tpu.vector_store %arg8[%c0_28, %c0_29], %27 {strides = array<i32>} : memref<256x4xf32, #tpu.memory_space<vmem>>, vector<256x4xf32>,
    %c1_30 = arith.constant 1 : index
    %c0_31 = arith.constant 0 : index
    %c0_32 = arith.constant 0 : index
    %29 = vector.load %arg7[%c1_30, %c0_31, %c0_32] : memref<18x18x4xbf16, #tpu.memory_space<vmem>>, vector<16x16x4xbf16>
    %c1_33 = arith.constant 1 : index
    %c1_34 = arith.constant 1 : index
    %c0_35 = arith.constant 0 : index
    %30 = vector.load %arg7[%c1_33, %c1_34, %c0_35] : memref<18x18x4xbf16, #tpu.memory_space<vmem>>, vector<16x16x4xbf16>
    %c1_36 = arith.constant 1 : index
    %c2_37 = arith.constant 2 : index
    %c0_38 = arith.constant 0 : index
    %31 = vector.load %arg7[%c1_36, %c2_37, %c0_38] : memref<18x18x4xbf16, #tpu.memory_space<vmem>>, vector<16x16x4xbf16>
    %32 = tpu.concatenate %29, %30, %31 in 2 : vector<16x16x4xbf16>, vector<16x16x4xbf16>, vector<16x16x4xbf16> -> vector<16x16x12xbf16>
    %33 = vector.shape_cast %32 : vector<16x16x12xbf16> to vector<256x12xbf16>
    %c1_39 = arith.constant 1 : index
    %c0_40 = arith.constant 0 : index
    %c0_41 = arith.constant 0 : index
    %34 = vector.load %arg4[%c1_39, %c0_40, %c0_41] : memref<3x12x4xbf16, #tpu.memory_space<vmem>>, vector<1x12x4xbf16>
    %35 = vector.shape_cast %34 : vector<1x12x4xbf16> to vector<12x4xbf16>
    %cst_42 = arith.constant dense<0.000000e+00> : vector<256x4xf32>
    %36 = tpu.matmul %33, %35, %cst_42 {dimension_numbers = #tpu.dot_dimension_numbers<[1], [0], [0], [1], [0, 0, 1, 1], [], []>} : vector<256x12xbf16>, vector<12x4xbf16>, vector<256x4xf32> -> vector<256x4xf32>
    %c0_43 = arith.constant 0 : index
    %c0_44 = arith.constant 0 : index
    %37 = vector.load %arg8[%c0_43, %c0_44] : memref<256x4xf32, #tpu.memory_space<vmem>>, vector<256x4xf32>
    %38 = arith.addf %37, %36 : vector<256x4xf32>
    %c0_45 = arith.constant 0 : index
    %c0_46 = arith.constant 0 : index
    %39 = vector.load %arg8[%c0_45, %c0_46] : memref<256x4xf32, #tpu.memory_space<vmem>>, vector<256x4xf32>
    tpu.vector_store %arg8[%c0_45, %c0_46], %38 {strides = array<i32>} : memref<256x4xf32, #tpu.memory_space<vmem>>, vector<256x4xf32>,
    %c2_47 = arith.constant 2 : index
    %c0_48 = arith.constant 0 : index
    %c0_49 = arith.constant 0 : index
    %40 = vector.load %arg7[%c2_47, %c0_48, %c0_49] : memref<18x18x4xbf16, #tpu.memory_space<vmem>>, vector<16x16x4xbf16>
    %c2_50 = arith.constant 2 : index
    %c1_51 = arith.constant 1 : index
    %c0_52 = arith.constant 0 : index
    %41 = vector.load %arg7[%c2_50, %c1_51, %c0_52] : memref<18x18x4xbf16, #tpu.memory_space<vmem>>, vector<16x16x4xbf16>
    %c2_53 = arith.constant 2 : index
    %c2_54 = arith.constant 2 : index
    %c0_55 = arith.constant 0 : index
    %42 = vector.load %arg7[%c2_53, %c2_54, %c0_55] : memref<18x18x4xbf16, #tpu.memory_space<vmem>>, vector<16x16x4xbf16>
    %43 = tpu.concatenate %40, %41, %42 in 2 : vector<16x16x4xbf16>, vector<16x16x4xbf16>, vector<16x16x4xbf16> -> vector<16x16x12xbf16>
    %44 = vector.shape_cast %43 : vector<16x16x12xbf16> to vector<256x12xbf16>
    %c2_56 = arith.constant 2 : index
    %c0_57 = arith.constant 0 : index
    %c0_58 = arith.constant 0 : index
    %45 = vector.load %arg4[%c2_56, %c0_57, %c0_58] : memref<3x12x4xbf16, #tpu.memory_space<vmem>>, vector<1x12x4xbf16>
    %46 = vector.shape_cast %45 : vector<1x12x4xbf16> to vector<12x4xbf16>
    %cst_59 = arith.constant dense<0.000000e+00> : vector<256x4xf32>
    %47 = tpu.matmul %44, %46, %cst_59 {dimension_numbers = #tpu.dot_dimension_numbers<[1], [0], [0], [1], [0, 0, 1, 1], [], []>} : vector<256x12xbf16>, vector<12x4xbf16>, vector<256x4xf32> -> vector<256x4xf32>
    %c0_60 = arith.constant 0 : index
    %c0_61 = arith.constant 0 : index
    %48 = vector.load %arg8[%c0_60, %c0_61] : memref<256x4xf32, #tpu.memory_space<vmem>>, vector<256x4xf32>
    %49 = arith.addf %48, %47 : vector<256x4xf32>
    %c0_62 = arith.constant 0 : index
    %c0_63 = arith.constant 0 : index
    %50 = vector.load %arg8[%c0_62, %c0_63] : memref<256x4xf32, #tpu.memory_space<vmem>>, vector<256x4xf32>
    tpu.vector_store %arg8[%c0_62, %c0_63], %49 {strides = array<i32>} : memref<256x4xf32, #tpu.memory_space<vmem>>, vector<256x4xf32>,
    %c0_64 = arith.constant 0 : index
    %c0_65 = arith.constant 0 : index
    %51 = vector.load %arg8[%c0_64, %c0_65] : memref<256x4xf32, #tpu.memory_space<vmem>>, vector<256x4xf32>
    %52 = vector.shape_cast %51 : vector<256x4xf32> to vector<16x16x4xf32>
    %53 = arith.truncf %52 : vector<16x16x4xf32> to vector<16x16x4xbf16>
    %c0_66 = arith.constant 0 : index
    %c0_67 = arith.constant 0 : index
    %c0_68 = arith.constant 0 : index
    %c0_69 = arith.constant 0 : index
    %54 = vector.load %arg5[%c0_66, %c0_67, %c0_68, %c0_69] : memref<1x16x16x4xbf16, #tpu.memory_space<vmem>>, vector<1x16x16x4xbf16>
    %55 = vector.shape_cast %54 : vector<1x16x16x4xbf16> to vector<16x16x4xbf16>
    %56 = vector.shape_cast %53 : vector<16x16x4xbf16> to vector<1x16x16x4xbf16>
    tpu.vector_store %arg5[%c0_66, %c0_67, %c0_68, %c0_69], %56 {strides = array<i32>} : memref<1x16x16x4xbf16, #tpu.memory_space<vmem>>, vector<1x16x16x4xbf16>,
    %cst_70 = arith.constant dense<0.000000e+00> : vector<4xf32>
    %57 = vector.multi_reduction <add>, %51, %cst_70 [0] : vector<256x4xf32> to vector<4xf32>
    %58 = vector.shape_cast %57 : vector<4xf32> to vector<1x4xf32>
    %59 = arith.mulf %51, %51 : vector<256x4xf32>
    %cst_71 = arith.constant dense<0.000000e+00> : vector<4xf32>
    %60 = vector.multi_reduction <add>, %59, %cst_71 [0] : vector<256x4xf32> to vector<4xf32>
    %61 = vector.shape_cast %60 : vector<4xf32> to vector<1x4xf32>
    %62 = tpu.concatenate %58, %61 in 0 : vector<1x4xf32>, vector<1x4xf32> -> vector<2x4xf32>
    %c0_72 = arith.constant 0 : index
    %c0_73 = arith.constant 0 : index
    %c0_74 = arith.constant 0 : index
    %63 = vector.load %arg6[%c0_72, %c0_73, %c0_74] : memref<1x2x4xf32, #tpu.memory_space<vmem>>, vector<1x2x4xf32>
    %64 = vector.shape_cast %63 : vector<1x2x4xf32> to vector<2x4xf32>
    %65 = vector.shape_cast %62 : vector<2x4xf32> to vector<1x2x4xf32>
    tpu.vector_store %arg6[%c0_72, %c0_73, %c0_74], %65 {strides = array<i32>} : memref<1x2x4xf32, #tpu.memory_space<vmem>>, vector<1x2x4xf32>,
    return
  }
  func.func @transform_0(%arg0: i32) -> (i32, i32, i32, i32) {
    %c0_i32 = arith.constant 0 : i32
    %c0_i32_0 = arith.constant 0 : i32
    %c0_i32_1 = arith.constant 0 : i32
    %c0_i32_2 = arith.constant 0 : i32
    return %arg0, %c0_i32, %c0_i32_0, %c0_i32_1 : i32, i32, i32, i32
  }
  func.func @transform_1(%arg0: i32) -> (i32, i32) {
    %c0_i32 = arith.constant 0 : i32
    %c0_i32_0 = arith.constant 0 : i32
    %c0_i32_1 = arith.constant 0 : i32
    return %c0_i32, %c0_i32_0 : i32, i32
  }
  func.func @transform_2(%arg0: i32) -> (i32, i32) {
    %c0_i32 = arith.constant 0 : i32
    %c0_i32_0 = arith.constant 0 : i32
    %c0_i32_1 = arith.constant 0 : i32
    return %c0_i32, %c0_i32_0 : i32, i32
  }
  func.func @transform_3(%arg0: i32) -> (i32, i32, i32) {
    %c0_i32 = arith.constant 0 : i32
    %c0_i32_0 = arith.constant 0 : i32
    %c0_i32_1 = arith.constant 0 : i32
    %c0_i32_2 = arith.constant 0 : i32
    return %c0_i32, %c0_i32_0, %c0_i32_1 : i32, i32, i32
  }
  func.func @transform_4(%arg0: i32) -> (i32, i32, i32, i32) {
    %c0_i32 = arith.constant 0 : i32
    %c0_i32_0 = arith.constant 0 : i32
    %c0_i32_1 = arith.constant 0 : i32
    %c0_i32_2 = arith.constant 0 : i32
    return %arg0, %c0_i32, %c0_i32_0, %c0_i32_1 : i32, i32, i32, i32
  }
  func.func @transform_5(%arg0: i32) -> (i32, i32, i32) {
    %c0_i32 = arith.constant 0 : i32
    %c0_i32_0 = arith.constant 0 : i32
    %c0_i32_1 = arith.constant 0 : i32
    return %arg0, %c0_i32, %c0_i32_0 : i32, i32, i32
  }
}

module attributes {stable_mosaic.version = 11 : i64} {
  func.func @_scale_shift_relu_kernel(%arg0: i32, %arg1: memref<1x16x16x4xbf16, #tpu.memory_space<vmem>>, %arg2: memref<1x4xf32, #tpu.memory_space<vmem>>, %arg3: memref<1x4xf32, #tpu.memory_space<vmem>>, %arg4: memref<1x16x16x4xf32, #tpu.memory_space<vmem>>) attributes {dimension_semantics = [#tpu.dimension_semantics<parallel>], iteration_bounds = array<i64: 2>, scalar_prefetch = 0 : i64, scratch_operands = 0 : i64, tpu.core_type = #tpu.core_type<tc>, window_params = [{transform_indices = @transform_0, window_bounds = array<i64: 1, 16, 16, 4>}, {pipeline_mode = #tpu.pipeline_mode<synchronous>, transform_indices = @transform_1, window_bounds = array<i64: 1, 4>}, {pipeline_mode = #tpu.pipeline_mode<synchronous>, transform_indices = @transform_2, window_bounds = array<i64: 1, 4>}, {transform_indices = @transform_3, window_bounds = array<i64: 1, 16, 16, 4>}]} {
    %c0 = arith.constant 0 : index
    %c0_0 = arith.constant 0 : index
    %c0_1 = arith.constant 0 : index
    %c0_2 = arith.constant 0 : index
    %0 = vector.load %arg1[%c0, %c0_0, %c0_1, %c0_2] : memref<1x16x16x4xbf16, #tpu.memory_space<vmem>>, vector<1x16x16x4xbf16>
    %1 = arith.extf %0 : vector<1x16x16x4xbf16> to vector<1x16x16x4xf32>
    %c0_3 = arith.constant 0 : index
    %c0_4 = arith.constant 0 : index
    %2 = vector.load %arg2[%c0_3, %c0_4] : memref<1x4xf32, #tpu.memory_space<vmem>>, vector<1x4xf32>
    %3 = vector.shape_cast %2 : vector<1x4xf32> to vector<1x1x1x4xf32>
    %4 = vector.broadcast %3 : vector<1x1x1x4xf32> to vector<1x16x16x4xf32>
    %5 = arith.mulf %1, %4 : vector<1x16x16x4xf32>
    %c0_5 = arith.constant 0 : index
    %c0_6 = arith.constant 0 : index
    %6 = vector.load %arg3[%c0_5, %c0_6] : memref<1x4xf32, #tpu.memory_space<vmem>>, vector<1x4xf32>
    %7 = vector.shape_cast %6 : vector<1x4xf32> to vector<1x1x1x4xf32>
    %8 = vector.broadcast %7 : vector<1x1x1x4xf32> to vector<1x16x16x4xf32>
    %9 = arith.addf %5, %8 : vector<1x16x16x4xf32>
    %cst = arith.constant 0.000000e+00 : f32
    %10 = vector.broadcast %cst : f32 to vector<1x16x16x4xf32>
    %11 = arith.maximumf %9, %10 : vector<1x16x16x4xf32>
    %c0_7 = arith.constant 0 : index
    %c0_8 = arith.constant 0 : index
    %c0_9 = arith.constant 0 : index
    %c0_10 = arith.constant 0 : index
    %12 = vector.load %arg4[%c0_7, %c0_8, %c0_9, %c0_10] : memref<1x16x16x4xf32, #tpu.memory_space<vmem>>, vector<1x16x16x4xf32>
    tpu.vector_store %arg4[%c0_7, %c0_8, %c0_9, %c0_10], %11 {strides = array<i32>} : memref<1x16x16x4xf32, #tpu.memory_space<vmem>>, vector<1x16x16x4xf32>,
    return
  }
  func.func @transform_0(%arg0: i32) -> (i32, i32, i32, i32) {
    %c0_i32 = arith.constant 0 : i32
    %c0_i32_0 = arith.constant 0 : i32
    %c0_i32_1 = arith.constant 0 : i32
    %c0_i32_2 = arith.constant 0 : i32
    return %arg0, %c0_i32, %c0_i32_0, %c0_i32_1 : i32, i32, i32, i32
  }
  func.func @transform_1(%arg0: i32) -> (i32, i32) {
    %c0_i32 = arith.constant 0 : i32
    %c0_i32_0 = arith.constant 0 : i32
    %c0_i32_1 = arith.constant 0 : i32
    return %c0_i32, %c0_i32_0 : i32, i32
  }
  func.func @transform_2(%arg0: i32) -> (i32, i32) {
    %c0_i32 = arith.constant 0 : i32
    %c0_i32_0 = arith.constant 0 : i32
    %c0_i32_1 = arith.constant 0 : i32
    return %c0_i32, %c0_i32_0 : i32, i32
  }
  func.func @transform_3(%arg0: i32) -> (i32, i32, i32, i32) {
    %c0_i32 = arith.constant 0 : i32
    %c0_i32_0 = arith.constant 0 : i32
    %c0_i32_1 = arith.constant 0 : i32
    %c0_i32_2 = arith.constant 0 : i32
    return %arg0, %c0_i32, %c0_i32_0, %c0_i32_1 : i32, i32, i32, i32
  }
}

</mosaic_0001>

<llo_original>
// kernel: up_block_forward.4
$region0: #{up_block_forward.4}
  #allocation0 [shape = 'u32[]', space=smem, size = 0x4, offset = 0x4, fixed_abs, tag = 'smem constant byte address 0x4 - core index']
  #allocation1 [shape = 'u32[144,128]{1,0:T(1,128)}', space=vmem, size = 0x12000, scoped, tag = 'internal scratch']
  %s0 = inlined_call_operand.vmem [shape: f32[2,8,8,8], index: 0, kind: input, shape index: {}]
  %s1 = inlined_call_operand.vmem [shape: bf16[8,16], index: 1, kind: input, shape index: {}]
  %s2 = inlined_call_operand.vmem [shape: f32[1,16], index: 2, kind: input, shape index: {}]
  %s3 = inlined_call_operand.vmem [shape: bf16[2,8,8,16], index: 3, kind: output, shape index: {}]
  %s4 = sld [smem:[#allocation0]]
  $region45: #{up_block_forward.4} parent=0
    _
  %s6 = ssub.s32 1, %s4
  %s7 = scalar_select 0, %s6, %s4
  loop: start=0, step=1, limit=4
  $region2: #{up_block_forward.4} parent=0 // loop_pre_header
    _
  $region3: #{up_block_forward.4} parent=0 // loop_header
    %s9 = sphi 0, %s13
    %p10 = scmp.ge.s32.totalorder %s9, 4
    %s19 = sphi 0, %s21
    %s22 = sphi 0, %s19
    %s23 = sphi 0, %s22
    %s39 = sphi 0, %s23
    %s43 = sphi 0, %s43
    %s45 = sphi 0, %s43
    %s46 = sphi 0, %s45
    %s60 = sphi 0, %s46
    %s64 = sphi 0, %s64
    %s66 = sphi 0, %s64
    %s67 = sphi 0, %s66
    %s81 = sphi 0, %s67
    %s87 = sphi 0, %s89
    %s90 = sphi 0, %s87
    %s91 = sphi 0, %s90
    %s107 = sphi 0, %s91
  $region4: #{up_block_forward.4} parent=0 // loop_header_branch
    %12 = sbr.rel (%p10) target = $region8
  $region5: #{up_block_forward.4} parent=0 // loop_body
    %s14 = ssub.s32 %s9, 1
    %s15 = ssub.s32 %s9, 2
    %s16 = sadd.s32 %s9, 1
    %s17 = ssub.s32 %s9, %s16
    %p18 = scmp.eq.s32.totalorder %s17, 0
    %s20 = sadd.s32 %s19, 1
    %s21 = scalar_select %p18, %s19, %s20
    %p24 = pneg %p18
    %p25 = scmp.eq.s32.totalorder %s9, 1
    %p26 = por %p24, %p25
    %p27 = scmp.ne.s32.totalorder %s19, %s22
    %p28 = scmp.eq.s32.totalorder %s9, 0
    %p29 = por %p27, %p28
    %p30 = scmp.ne.s32.totalorder %s19, %s22
    %p31 = scmp.eq.s32.totalorder %s14, 1
    %p32 = por %p30, %p31
    %p33 = scmp.ne.s32.totalorder %s22, %s23
    %p34 = scmp.eq.s32.totalorder %s14, 0
    %p35 = por %p33, %p34
    %p36 = scmp.ne.s32.totalorder %s22, %s23
    %p37 = scmp.eq.s32.totalorder %s15, 1
    %p38 = por %p36, %p37
    %p40 = scmp.ne.s32.totalorder %s23, %s39
    %p41 = scmp.eq.s32.totalorder %s15, 0
    %p42 = por %p40, %p41
    %s44 = sadd.s32 %s43, 1
    %p47 = scmp.eq.s32.totalorder %s9, 1
    %p48 = scmp.ne.s32.totalorder %s43, %s45
    %p49 = scmp.eq.s32.totalorder %s9, 0
    %p50 = por %p48, %p49
    %p51 = scmp.ne.s32.totalorder %s43, %s45
    %p52 = scmp.eq.s32.totalorder %s14, 1
    %p53 = por %p51, %p52
    %p54 = scmp.ne.s32.totalorder %s45, %s46
    %p55 = scmp.eq.s32.totalorder %s14, 0
    %p56 = por %p54, %p55
    %p57 = scmp.ne.s32.totalorder %s45, %s46
    %p58 = scmp.eq.s32.totalorder %s15, 1
    %p59 = por %p57, %p58
    %p61 = scmp.ne.s32.totalorder %s46, %s60
    %p62 = scmp.eq.s32.totalorder %s15, 0
    %p63 = por %p61, %p62
    %s65 = sadd.s32 %s64, 1
    %p68 = scmp.eq.s32.totalorder %s9, 1
    %p69 = scmp.ne.s32.totalorder %s64, %s66
    %p70 = scmp.eq.s32.totalorder %s9, 0
    %p71 = por %p69, %p70
    %p72 = scmp.ne.s32.totalorder %s64, %s66
    %p73 = scmp.eq.s32.totalorder %s14, 1
    %p74 = por %p72, %p73
    %p75 = scmp.ne.s32.totalorder %s66, %s67
    %p76 = scmp.eq.s32.totalorder %s14, 0
    %p77 = por %p75, %p76
    %p78 = scmp.ne.s32.totalorder %s66, %s67
    %p79 = scmp.eq.s32.totalorder %s15, 1
    %p80 = por %p78, %p79
    %p82 = scmp.ne.s32.totalorder %s67, %s81
    %p83 = scmp.eq.s32.totalorder %s15, 0
    %p84 = por %p82, %p83
    %s85 = ssub.s32 %s9, %s16
    %p86 = scmp.eq.s32.totalorder %s85, 0
    %s88 = sadd.s32 %s87, 1
    %s89 = scalar_select %p86, %s87, %s88
    %p92 = pneg %p86
    %p93 = scmp.eq.s32.totalorder %s9, 1
    %p94 = por %p92, %p93
    %p95 = scmp.ne.s32.totalorder %s87, %s90
    %p96 = scmp.eq.s32.totalorder %s9, 0
    %p97 = por %p95, %p96
    %p98 = scmp.ne.s32.totalorder %s87, %s90
    %p99 = scmp.eq.s32.totalorder %s14, 1
    %p100 = por %p98, %p99
    %p101 = scmp.ne.s32.totalorder %s90, %s91
    %p102 = scmp.eq.s32.totalorder %s14, 0
    %p103 = por %p101, %p102
    %p104 = scmp.ne.s32.totalorder %s90, %s91
    %p105 = scmp.eq.s32.totalorder %s15, 1
    %p106 = por %p104, %p105
    %p108 = scmp.ne.s32.totalorder %s91, %s107
    %p109 = scmp.eq.s32.totalorder %s15, 0
    %p110 = por %p108, %p109
    %p111 = scmp.le.s32.totalorder 1, %s9
    %p112 = scmp.lt.s32.totalorder %s9, 3
    %p113 = pnand %p111, %p112
    %p114 = pneg %p113
    // Predicated region
    $region9: #{up_block_forward.4} parent=5 // pred_check
      _
    $region10: #{up_block_forward.4} parent=5 // pred_check_branch
      %116 = sbr.rel (%p113) target = $region12
    $region11: #{up_block_forward.4} parent=5 // pred_region
      %s117 = ssub.s32 %s9, 1
      // Predicated region
      $region13: #{up_block_forward.4} parent=11 // pred_check
        %p118 = pneg %p56
      $region14: #{up_block_forward.4} parent=11 // pred_check_branch
        %120 = sbr.rel (%p118) target = $region16
      $region15: #{up_block_forward.4} parent=11 // pred_region
        _
      $region16: #{up_block_forward.4} parent=11 // pred_fallthru
        _
      // Predicated region
      $region17: #{up_block_forward.4} parent=11 // pred_check
        %p121 = pneg %p77
      $region18: #{up_block_forward.4} parent=11 // pred_check_branch
        %123 = sbr.rel (%p121) target = $region20
      $region19: #{up_block_forward.4} parent=11 // pred_region
        _
      $region20: #{up_block_forward.4} parent=11 // pred_fallthru
        _
    $region12: #{up_block_forward.4} parent=5 // pred_fallthru
      _
    %p124 = scmp.lt.s32.totalorder %s9, 2
    // Predicated region
    $region21: #{up_block_forward.4} parent=5 // pred_check
      %p125 = pneg %p124
    $region22: #{up_block_forward.4} parent=5 // pred_check_branch
      %127 = sbr.rel (%p125) target = $region24
    $region23: #{up_block_forward.4} parent=5 // pred_region
      // Predicated region
      $region25: #{up_block_forward.4} parent=23 // pred_check
        %p128 = pneg %p29
      $region26: #{up_block_forward.4} parent=23 // pred_check_branch
        %130 = sbr.rel (%p128) target = $region28
      $region27: #{up_block_forward.4} parent=23 // pred_region
        %p131 = scmp.lt.s32.totalorder %s9, 1
        %s132 = scalar_select %p131, %s9, 1
        %s133 = smul.addr %s132, 8
        %s134 = smul.addr %s133, 8
        %s135 = scalar_lea.vmem %s0, %s134
      $region28: #{up_block_forward.4} parent=23 // pred_fallthru
        _
    $region24: #{up_block_forward.4} parent=5 // pred_fallthru
      _
    %p136 = scmp.le.s32.totalorder 1, %s9
    %p137 = scmp.lt.s32.totalorder %s9, 3
    %p138 = pnand %p136, %p137
    %p139 = pneg %p138
    // Predicated region
    $region29: #{up_block_forward.4} parent=5 // pred_check
      _
    $region30: #{up_block_forward.4} parent=5 // pred_check_branch
      %141 = sbr.rel (%p138) target = $region32
    $region31: #{up_block_forward.4} parent=5 // pred_region
      %s142 = ssub.s32 %s9, 1
      %p143 = scmp.lt.s32.totalorder %s14, 1
      %s144 = scalar_select %p143, %s14, 1
      %s145 = smul.addr %s144, 8
      %s146 = smul.addr %s145, 8
      %s147 = scalar_lea.vmem %s0, %s146
      %p148 = pneg %p35
      %p149 = pneg %p32
      %p150 = pneg %p56
      %p151 = pneg %p53
      %p152 = pneg %p77
      %p153 = pneg %p74
      %p154 = pneg %p103
      %p155 = pneg %p100
      %p156 = scmp.lt.s32.totalorder %s14, 1
      %s157 = scalar_select %p156, %s14, 1
      %s158 = smul.addr %s157, 8
      %s159 = smul.addr %s158, 4
      %s160 = scalar_lea.vmem %s3, %s159
      %p161 = scmp.lt.s32.totalorder %s14, 1
      %s162 = scalar_select %p161, %s14, 1
      %s163 = smul.addr %s162, 8
      %s164 = smul.addr %s163, 8
      %s165 = scalar_lea.vmem %s0, %s164
      %p166 = scmp.lt.s32.totalorder %s14, 1
      %s167 = scalar_select %p166, %s14, 1
      %s168 = smul.addr %s167, 8
      %s169 = smul.addr %s168, 4
      %s170 = scalar_lea.vmem %s3, %s169
      %v172 = vld [vmem:[%s165] sm:$0xff]
      %v173 = vld [vmem:[%s165 + $0x8] sm:$0xff]
      %v174 = vld [vmem:[%s165 + $0x10] sm:$0xff]
      %v175 = vld [vmem:[%s165 + $0x18] sm:$0xff]
      %v176 = vld [vmem:[%s165 + $0x20] sm:$0xff]
      %v177 = vld [vmem:[%s165 + $0x28] sm:$0xff]
      %v178 = vld [vmem:[%s165 + $0x30] sm:$0xff]
      %v179 = vld [vmem:[%s165 + $0x38] sm:$0xff]
      %v180 = vpack.c.bf16 %v173, %v172
      %v181 = vpack.c.bf16 %v175, %v174
      %v182 = vpack.c.bf16 %v177, %v176
      %v183 = vpack.c.bf16 %v179, %v178
      %v184 = vld [vmem:[%s1] sm:$0xf]
      %v185 = vld [vmem:[%s2] sm:$0x1]
      %v187 = vlaneseq
      %v188 = vshrl.u32 %v187, 7
      %v189 = vsub.s32 0, %v188
      %v190 = vrot.slane %v185, %v189
      %vm192 = vcmask 64512
      %v194 = vsel %vm192, %v180, 0
      %v197 = vsel %vm192, %v181, 0
      %v200 = vsel %vm192, %v182, 0
      %v203 = vsel %vm192, %v183, 0
      %vm205 = vcmask 1043456
      %v207 = vsel %vm205, %v184, 0
      %209 = vmatprep.subr.bf16.mxu0 0
      %210 = vmatpush1.bf16.msra.mxu0 0
      %211 = vmatprep.subr.bf16.mxu0 0
      %212 = vmatpush1.bf16.msra.mxu0 0
      %213 = vmatprep.subr.bf16.mxu0 0
      %214 = vmatpush1.bf16.msra.mxu0 0
      %215 = vmatprep.subr.bf16.mxu0 0
      %216 = vmatpush1.bf16.msra.mxu0 0
      %217 = vmatprep.subr.bf16.mxu0 0
      %218 = vmatpush1.bf16.msra.mxu0 0
      %219 = vmatprep.subr.bf16.mxu0 0
      %220 = vmatpush1.bf16.msra.mxu0 0
      %221 = vmatprep.subr.bf16.mxu0 0
      %222 = vmatpush1.bf16.msra.mxu0 0
      %223 = vmatprep.subr.bf16.mxu0 0
      %224 = vmatpush1.bf16.msra.mxu0 %v207
      %225 = vmatprep.subr.bf16.mxu0 0
      %226 = vmatpush2.bf16.msra.mxu0 0
      %227 = vmatprep.subr.bf16.mxu0 0
      %228 = vmatpush2.bf16.msra.mxu0 0
      %229 = vmatprep.subr.bf16.mxu0 0
      %230 = vmatpush2.bf16.msra.mxu0 0
      %231 = vmatprep.subr.bf16.mxu0 0
      %232 = vmatpush2.bf16.msra.mxu0 0
      %233 = vmatprep.subr.bf16.mxu0 0
      %234 = vmatpush2.bf16.msra.mxu0 0
      %235 = vmatprep.subr.bf16.mxu0 0
      %236 = vmatpush2.bf16.msra.mxu0 0
      %237 = vmatprep.subr.bf16.mxu0 0
      %238 = vmatpush2.bf16.msra.mxu0 0
      %239 = vmatprep.subr.bf16.mxu0 0
      %240 = vmatpush2.bf16.msra.mxu0 0
      %241 = vmatprep.mubr.bf16.mxu0 0
      %242 = vmatmul.mubr.bf16.gmra.mxu0 %v194
      %v243 = vpop.f32.mrf.mxu0
      %v244 = vadd.f32 %v190, %v243
      %v245 = vpop.f32.mrf.mxu0
      %v246 = vpop.f32.mrf.mxu0
      %v247 = vadd.f32 %v190, %v246
      %v248 = vpop.f32.mrf.mxu0
      %249 = vmatprep.mubr.bf16.mxu0 0
      %250 = vmatmul.mubr.bf16.gmra.mxu0 %v197
      %v251 = vpop.f32.mrf.mxu0
      %v252 = vadd.f32 %v190, %v251
      %v253 = vpop.f32.mrf.mxu0
      %v254 = vpop.f32.mrf.mxu0
      %v255 = vadd.f32 %v190, %v254
      %v256 = vpop.f32.mrf.mxu0
      %257 = vmatprep.mubr.bf16.mxu0 0
      %258 = vmatmul.mubr.bf16.gmra.mxu0 %v200
      %v259 = vpop.f32.mrf.mxu0
      %v260 = vadd.f32 %v190, %v259
      %v261 = vpop.f32.mrf.mxu0
      %v262 = vpop.f32.mrf.mxu0
      %v263 = vadd.f32 %v190, %v262
      %v264 = vpop.f32.mrf.mxu0
      %265 = vmatprep.mubr.bf16.mxu0 0
      %266 = vmatmul.mubr.bf16.gmra.mxu0 %v203
      %v267 = vpop.f32.mrf.mxu0
      %v268 = vadd.f32 %v190, %v267
      %v269 = vpop.f32.mrf.mxu0
      %v270 = vpop.f32.mrf.mxu0
      %v271 = vadd.f32 %v190, %v270
      %v272 = vpop.f32.mrf.mxu0
      %273 = vdwg.mxu0
      %v274 = vpack.c.bf16 %v247, %v244
      %v275 = vpack.c.bf16 %v255, %v252
      %v276 = vpack.c.bf16 %v263, %v260
      %v277 = vpack.c.bf16 %v271, %v268
      %v282 = vunpack.c.l.b16 %v274
      %v283 = vunpack.c.h.b16 %v274
      %v284 = vunpack.c.l.b16 %v275
      %v285 = vunpack.c.h.b16 %v275
      %v286 = vunpack.c.l.b16 %v276
      %v287 = vunpack.c.h.b16 %v276
      %v288 = vunpack.c.l.b16 %v277
      %v289 = vunpack.c.h.b16 %v277
      %v290 = vpack.c.b16 %v282, %v282
      %v291 = vpack.c.b16 %v283, %v283
      %v292 = vpack.c.b16 %v284, %v284
      %v293 = vpack.c.b16 %v285, %v285
      %v294 = vpack.c.b16 %v286, %v286
      %v295 = vpack.c.b16 %v287, %v287
      %v296 = vpack.c.b16 %v288, %v288
      %v297 = vpack.c.b16 %v289, %v289
      %vm306 = vcmask 125952
      %307 = vst.msk [vmem:[%s170] sm:$0xf] %vm306, %v290
      %308 = vst.msk [vmem:[%s170 + $0x4] sm:$0xf] %vm306, %v291
      %309 = vst.msk [vmem:[%s170 + $0x8] sm:$0xf] %vm306, %v292
      %310 = vst.msk [vmem:[%s170 + $0xc] sm:$0xf] %vm306, %v293
      %311 = vst.msk [vmem:[%s170 + $0x10] sm:$0xf] %vm306, %v294
      %312 = vst.msk [vmem:[%s170 + $0x14] sm:$0xf] %vm306, %v295
      %313 = vst.msk [vmem:[%s170 + $0x18] sm:$0xf] %vm306, %v296
      %314 = vst.msk [vmem:[%s170 + $0x1c] sm:$0xf] %vm306, %v297
      %p315 = scmp.lt.s32.totalorder %s14, 1
      %s316 = scalar_select %p315, %s14, 1
      %s317 = smul.addr %s316, 8
      %s318 = smul.addr %s317, 4
      %s319 = scalar_lea.vmem %s3, %s318
      // Predicated region
      $region33: #{up_block_forward.4} parent=31 // pred_check
        %p320 = pneg %p100
      $region34: #{up_block_forward.4} parent=31 // pred_check_branch
        %322 = sbr.rel (%p320) target = $region36
      $region35: #{up_block_forward.4} parent=31 // pred_region
        _
      $region36: #{up_block_forward.4} parent=31 // pred_fallthru
        _
    $region32: #{up_block_forward.4} parent=5 // pred_fallthru
      _
    %p323 = scmp.le.s32.totalorder 2, %s9
    // Predicated region
    $region37: #{up_block_forward.4} parent=5 // pred_check
      %p324 = pneg %p323
    $region38: #{up_block_forward.4} parent=5 // pred_check_branch
      %326 = sbr.rel (%p324) target = $region40
    $region39: #{up_block_forward.4} parent=5 // pred_region
      %s327 = ssub.s32 %s9, 2
      // Predicated region
      $region41: #{up_block_forward.4} parent=39 // pred_check
        %p328 = pneg %p106
      $region42: #{up_block_forward.4} parent=39 // pred_check_branch
        %330 = sbr.rel (%p328) target = $region44
      $region43: #{up_block_forward.4} parent=39 // pred_region
        %p331 = scmp.lt.s32.totalorder %s15, 1
        %s332 = scalar_select %p331, %s15, 1
        %s333 = smul.addr %s332, 8
        %s334 = smul.addr %s333, 4
        %s335 = scalar_lea.vmem %s3, %s334
      $region44: #{up_block_forward.4} parent=39 // pred_fallthru
        _
    $region40: #{up_block_forward.4} parent=5 // pred_fallthru
      _
  $region6: #{up_block_forward.4} parent=0 // loop_footer
    %s13 = sadd.s32 1, %s9
  $region7: #{up_block_forward.4} parent=0 // loop_footer_branch
    %8 = sbr.rel target = $region3
  $region8: #{up_block_forward.4} parent=0 // loop_exit
    _

// kernel: up_block_forward.7
$region0: #{up_block_forward.7}
  #allocation0 [shape = 'u32[]', space=smem, size = 0x4, offset = 0x4, fixed_abs, tag = 'smem constant byte address 0x4 - core index']
  #allocation1 [shape = 'u32[144,128]{1,0:T(1,128)}', space=vmem, size = 0x12000, scoped, tag = 'internal scratch']
  %s0 = inlined_call_operand.vmem [shape: bf16[2,16,16,4], index: 0, kind: input, shape index: {}]
  %s1 = inlined_call_operand.vmem [shape: f32[1,4], index: 1, kind: input, shape index: {}]
  %s2 = inlined_call_operand.vmem [shape: f32[1,4], index: 2, kind: input, shape index: {}]
  %s3 = inlined_call_operand.vmem [shape: f32[2,16,16,4], index: 3, kind: output, shape index: {}]
  %s4 = sld [smem:[#allocation0]]
  $region45: #{up_block_forward.7} parent=0
    _
  %s6 = ssub.s32 1, %s4
  %s7 = scalar_select 0, %s6, %s4
  loop: start=0, step=1, limit=4
  $region2: #{up_block_forward.7} parent=0 // loop_pre_header
    _
  $region3: #{up_block_forward.7} parent=0 // loop_header
    %s9 = sphi 0, %s13
    %p10 = scmp.ge.s32.totalorder %s9, 4
    %s19 = sphi 0, %s21
    %s22 = sphi 0, %s19
    %s23 = sphi 0, %s22
    %s39 = sphi 0, %s23
    %s43 = sphi 0, %s43
    %s45 = sphi 0, %s43
    %s46 = sphi 0, %s45
    %s60 = sphi 0, %s46
    %s64 = sphi 0, %s64
    %s66 = sphi 0, %s64
    %s67 = sphi 0, %s66
    %s81 = sphi 0, %s67
    %s87 = sphi 0, %s89
    %s90 = sphi 0, %s87
    %s91 = sphi 0, %s90
    %s107 = sphi 0, %s91
  $region4: #{up_block_forward.7} parent=0 // loop_header_branch
    %12 = sbr.rel (%p10) target = $region8
  $region5: #{up_block_forward.7} parent=0 // loop_body
    %s14 = ssub.s32 %s9, 1
    %s15 = ssub.s32 %s9, 2
    %s16 = sadd.s32 %s9, 1
    %s17 = ssub.s32 %s9, %s16
    %p18 = scmp.eq.s32.totalorder %s17, 0
    %s20 = sadd.s32 %s19, 1
    %s21 = scalar_select %p18, %s19, %s20
    %p24 = pneg %p18
    %p25 = scmp.eq.s32.totalorder %s9, 1
    %p26 = por %p24, %p25
    %p27 = scmp.ne.s32.totalorder %s19, %s22
    %p28 = scmp.eq.s32.totalorder %s9, 0
    %p29 = por %p27, %p28
    %p30 = scmp.ne.s32.totalorder %s19, %s22
    %p31 = scmp.eq.s32.totalorder %s14, 1
    %p32 = por %p30, %p31
    %p33 = scmp.ne.s32.totalorder %s22, %s23
    %p34 = scmp.eq.s32.totalorder %s14, 0
    %p35 = por %p33, %p34
    %p36 = scmp.ne.s32.totalorder %s22, %s23
    %p37 = scmp.eq.s32.totalorder %s15, 1
    %p38 = por %p36, %p37
    %p40 = scmp.ne.s32.totalorder %s23, %s39
    %p41 = scmp.eq.s32.totalorder %s15, 0
    %p42 = por %p40, %p41
    %s44 = sadd.s32 %s43, 1
    %p47 = scmp.eq.s32.totalorder %s9, 1
    %p48 = scmp.ne.s32.totalorder %s43, %s45
    %p49 = scmp.eq.s32.totalorder %s9, 0
    %p50 = por %p48, %p49
    %p51 = scmp.ne.s32.totalorder %s43, %s45
    %p52 = scmp.eq.s32.totalorder %s14, 1
    %p53 = por %p51, %p52
    %p54 = scmp.ne.s32.totalorder %s45, %s46
    %p55 = scmp.eq.s32.totalorder %s14, 0
    %p56 = por %p54, %p55
    %p57 = scmp.ne.s32.totalorder %s45, %s46
    %p58 = scmp.eq.s32.totalorder %s15, 1
    %p59 = por %p57, %p58
    %p61 = scmp.ne.s32.totalorder %s46, %s60
    %p62 = scmp.eq.s32.totalorder %s15, 0
    %p63 = por %p61, %p62
    %s65 = sadd.s32 %s64, 1
    %p68 = scmp.eq.s32.totalorder %s9, 1
    %p69 = scmp.ne.s32.totalorder %s64, %s66
    %p70 = scmp.eq.s32.totalorder %s9, 0
    %p71 = por %p69, %p70
    %p72 = scmp.ne.s32.totalorder %s64, %s66
    %p73 = scmp.eq.s32.totalorder %s14, 1
    %p74 = por %p72, %p73
    %p75 = scmp.ne.s32.totalorder %s66, %s67
    %p76 = scmp.eq.s32.totalorder %s14, 0
    %p77 = por %p75, %p76
    %p78 = scmp.ne.s32.totalorder %s66, %s67
    %p79 = scmp.eq.s32.totalorder %s15, 1
    %p80 = por %p78, %p79
    %p82 = scmp.ne.s32.totalorder %s67, %s81
    %p83 = scmp.eq.s32.totalorder %s15, 0
    %p84 = por %p82, %p83
    %s85 = ssub.s32 %s9, %s16
    %p86 = scmp.eq.s32.totalorder %s85, 0
    %s88 = sadd.s32 %s87, 1
    %s89 = scalar_select %p86, %s87, %s88
    %p92 = pneg %p86
    %p93 = scmp.eq.s32.totalorder %s9, 1
    %p94 = por %p92, %p93
    %p95 = scmp.ne.s32.totalorder %s87, %s90
    %p96 = scmp.eq.s32.totalorder %s9, 0
    %p97 = por %p95, %p96
    %p98 = scmp.ne.s32.totalorder %s87, %s90
    %p99 = scmp.eq.s32.totalorder %s14, 1
    %p100 = por %p98, %p99
    %p101 = scmp.ne.s32.totalorder %s90, %s91
    %p102 = scmp.eq.s32.totalorder %s14, 0
    %p103 = por %p101, %p102
    %p104 = scmp.ne.s32.totalorder %s90, %s91
    %p105 = scmp.eq.s32.totalorder %s15, 1
    %p106 = por %p104, %p105
    %p108 = scmp.ne.s32.totalorder %s91, %s107
    %p109 = scmp.eq.s32.totalorder %s15, 0
    %p110 = por %p108, %p109
    %p111 = scmp.le.s32.totalorder 1, %s9
    %p112 = scmp.lt.s32.totalorder %s9, 3
    %p113 = pnand %p111, %p112
    %p114 = pneg %p113
    // Predicated region
    $region9: #{up_block_forward.7} parent=5 // pred_check
      _
    $region10: #{up_block_forward.7} parent=5 // pred_check_branch
      %116 = sbr.rel (%p113) target = $region12
    $region11: #{up_block_forward.7} parent=5 // pred_region
      %s117 = ssub.s32 %s9, 1
      // Predicated region
      $region13: #{up_block_forward.7} parent=11 // pred_check
        %p118 = pneg %p56
      $region14: #{up_block_forward.7} parent=11 // pred_check_branch
        %120 = sbr.rel (%p118) target = $region16
      $region15: #{up_block_forward.7} parent=11 // pred_region
        _
      $region16: #{up_block_forward.7} parent=11 // pred_fallthru
        _
      // Predicated region
      $region17: #{up_block_forward.7} parent=11 // pred_check
        %p121 = pneg %p77
      $region18: #{up_block_forward.7} parent=11 // pred_check_branch
        %123 = sbr.rel (%p121) target = $region20
      $region19: #{up_block_forward.7} parent=11 // pred_region
        _
      $region20: #{up_block_forward.7} parent=11 // pred_fallthru
        _
    $region12: #{up_block_forward.7} parent=5 // pred_fallthru
      _
    %p124 = scmp.lt.s32.totalorder %s9, 2
    // Predicated region
    $region21: #{up_block_forward.7} parent=5 // pred_check
      %p125 = pneg %p124
    $region22: #{up_block_forward.7} parent=5 // pred_check_branch
      %127 = sbr.rel (%p125) target = $region24
    $region23: #{up_block_forward.7} parent=5 // pred_region
      // Predicated region
      $region25: #{up_block_forward.7} parent=23 // pred_check
        %p128 = pneg %p29
      $region26: #{up_block_forward.7} parent=23 // pred_check_branch
        %130 = sbr.rel (%p128) target = $region28
      $region27: #{up_block_forward.7} parent=23 // pred_region
        %p131 = scmp.lt.s32.totalorder %s9, 1
        %s132 = scalar_select %p131, %s9, 1
        %s133 = smul.addr %s132, 32
        %s134 = smul.addr %s133, 4
        %s135 = scalar_lea.vmem %s0, %s134
      $region28: #{up_block_forward.7} parent=23 // pred_fallthru
        _
    $region24: #{up_block_forward.7} parent=5 // pred_fallthru
      _
    %p136 = scmp.le.s32.totalorder 1, %s9
    %p137 = scmp.lt.s32.totalorder %s9, 3
    %p138 = pnand %p136, %p137
    %p139 = pneg %p138
    // Predicated region
    $region29: #{up_block_forward.7} parent=5 // pred_check
      _
    $region30: #{up_block_forward.7} parent=5 // pred_check_branch
      %141 = sbr.rel (%p138) target = $region32
    $region31: #{up_block_forward.7} parent=5 // pred_region
      %s142 = ssub.s32 %s9, 1
      %p143 = scmp.lt.s32.totalorder %s14, 1
      %s144 = scalar_select %p143, %s14, 1
      %s145 = smul.addr %s144, 32
      %s146 = smul.addr %s145, 4
      %s147 = scalar_lea.vmem %s0, %s146
      %p148 = pneg %p35
      %p149 = pneg %p32
      %p150 = pneg %p56
      %p151 = pneg %p53
      %p152 = pneg %p77
      %p153 = pneg %p74
      %p154 = pneg %p103
      %p155 = pneg %p100
      %p156 = scmp.lt.s32.totalorder %s14, 1
      %s157 = scalar_select %p156, %s14, 1
      %s158 = smul.addr %s157, 32
      %s159 = smul.addr %s158, 8
      %s160 = scalar_lea.vmem %s3, %s159
      %p161 = scmp.lt.s32.totalorder %s14, 1
      %s162 = scalar_select %p161, %s14, 1
      %s163 = smul.addr %s162, 32
      %s164 = smul.addr %s163, 4
      %s165 = scalar_lea.vmem %s0, %s164
      %p166 = scmp.lt.s32.totalorder %s14, 1
      %s167 = scalar_select %p166, %s14, 1
      %s168 = smul.addr %s167, 32
      %s169 = smul.addr %s168, 8
      %s170 = scalar_lea.vmem %s3, %s169
      %v171 = vld [vmem:[%s165] sm:$0xf]
      %v172 = vld [vmem:[%s165 + $0x4] sm:$0xf]
      %v173 = vld [vmem:[%s165 + $0x8] sm:$0xf]
      %v174 = vld [vmem:[%s165 + $0xc] sm:$0xf]
      %v175 = vld [vmem:[%s165 + $0x10] sm:$0xf]
      %v176 = vld [vmem:[%s165 + $0x14] sm:$0xf]
      %v177 = vld [vmem:[%s165 + $0x18] sm:$0xf]
      %v178 = vld [vmem:[%s165 + $0x1c] sm:$0xf]
      %v179 = vld [vmem:[%s165 + $0x20] sm:$0xf]
      %v180 = vld [vmem:[%s165 + $0x24] sm:$0xf]
      %v181 = vld [vmem:[%s165 + $0x28] sm:$0xf]
      %v182 = vld [vmem:[%s165 + $0x2c] sm:$0xf]
      %v183 = vld [vmem:[%s165 + $0x30] sm:$0xf]
      %v184 = vld [vmem:[%s165 + $0x34] sm:$0xf]
      %v185 = vld [vmem:[%s165 + $0x38] sm:$0xf]
      %v186 = vld [vmem:[%s165 + $0x3c] sm:$0xf]
      %v187 = vld [vmem:[%s165 + $0x40] sm:$0xf]
      %v188 = vld [vmem:[%s165 + $0x44] sm:$0xf]
      %v189 = vld [vmem:[%s165 + $0x48] sm:$0xf]
      %v190 = vld [vmem:[%s165 + $0x4c] sm:$0xf]
      %v191 = vld [vmem:[%s165 + $0x50] sm:$0xf]
      %v192 = vld [vmem:[%s165 + $0x54] sm:$0xf]
      %v193 = vld [vmem:[%s165 + $0x58] sm:$0xf]
      %v194 = vld [vmem:[%s165 + $0x5c] sm:$0xf]
      %v195 = vld [vmem:[%s165 + $0x60] sm:$0xf]
      %v196 = vld [vmem:[%s165 + $0x64] sm:$0xf]
      %v197 = vld [vmem:[%s165 + $0x68] sm:$0xf]
      %v198 = vld [vmem:[%s165 + $0x6c] sm:$0xf]
      %v199 = vld [vmem:[%s165 + $0x70] sm:$0xf]
      %v200 = vld [vmem:[%s165 + $0x74] sm:$0xf]
      %v201 = vld [vmem:[%s165 + $0x78] sm:$0xf]
      %v202 = vld [vmem:[%s165 + $0x7c] sm:$0xf]
      %v203 = vunpack.c.l.bf16 %v171
      %v204 = vunpack.c.l.bf16 %v172
      %v205 = vunpack.c.l.bf16 %v173
      %v206 = vunpack.c.l.bf16 %v174
      %v207 = vunpack.c.l.bf16 %v175
      %v208 = vunpack.c.l.bf16 %v176
      %v209 = vunpack.c.l.bf16 %v177
      %v210 = vunpack.c.l.bf16 %v178
      %v211 = vunpack.c.l.bf16 %v179
      %v212 = vunpack.c.l.bf16 %v180
      %v213 = vunpack.c.l.bf16 %v181
      %v214 = vunpack.c.l.bf16 %v182
      %v215 = vunpack.c.l.bf16 %v183
      %v216 = vunpack.c.l.bf16 %v184
      %v217 = vunpack.c.l.bf16 %v185
      %v218 = vunpack.c.l.bf16 %v186
      %v219 = vunpack.c.l.bf16 %v187
      %v220 = vunpack.c.l.bf16 %v188
      %v221 = vunpack.c.l.bf16 %v189
      %v222 = vunpack.c.l.bf16 %v190
      %v223 = vunpack.c.l.bf16 %v191
      %v224 = vunpack.c.l.bf16 %v192
      %v225 = vunpack.c.l.bf16 %v193
      %v226 = vunpack.c.l.bf16 %v194
      %v227 = vunpack.c.l.bf16 %v195
      %v228 = vunpack.c.l.bf16 %v196
      %v229 = vunpack.c.l.bf16 %v197
      %v230 = vunpack.c.l.bf16 %v198
      %v231 = vunpack.c.l.bf16 %v199
      %v232 = vunpack.c.l.bf16 %v200
      %v233 = vunpack.c.l.bf16 %v201
      %v234 = vunpack.c.l.bf16 %v202
      %v235 = vld [vmem:[%s1] sm:$0x1]
      %v237 = vlaneseq
      %v238 = vshrl.u32 %v237, 7
      %v239 = vsub.s32 0, %v238
      %v240 = vrot.slane %v235, %v239
      %v242 = vmul.f32 %v203, %v240
      %v243 = vmul.f32 %v204, %v240
      %v244 = vmul.f32 %v205, %v240
      %v245 = vmul.f32 %v206, %v240
      %v246 = vmul.f32 %v207, %v240
      %v247 = vmul.f32 %v208, %v240
      %v248 = vmul.f32 %v209, %v240
      %v249 = vmul.f32 %v210, %v240
      %v250 = vmul.f32 %v211, %v240
      %v251 = vmul.f32 %v212, %v240
      %v252 = vmul.f32 %v213, %v240
      %v253 = vmul.f32 %v214, %v240
      %v254 = vmul.f32 %v215, %v240
      %v255 = vmul.f32 %v216, %v240
      %v256 = vmul.f32 %v217, %v240
      %v257 = vmul.f32 %v218, %v240
      %v258 = vmul.f32 %v219, %v240
      %v259 = vmul.f32 %v220, %v240
      %v260 = vmul.f32 %v221, %v240
      %v261 = vmul.f32 %v222, %v240
      %v262 = vmul.f32 %v223, %v240
      %v263 = vmul.f32 %v224, %v240
      %v264 = vmul.f32 %v225, %v240
      %v265 = vmul.f32 %v226, %v240
      %v266 = vmul.f32 %v227, %v240
      %v267 = vmul.f32 %v228, %v240
      %v268 = vmul.f32 %v229, %v240
      %v269 = vmul.f32 %v230, %v240
      %v270 = vmul.f32 %v231, %v240
      %v271 = vmul.f32 %v232, %v240
      %v272 = vmul.f32 %v233, %v240
      %v273 = vmul.f32 %v234, %v240
      %v274 = vld [vmem:[%s2] sm:$0x1]
      %v276 = vlaneseq
      %v277 = vshrl.u32 %v276, 7
      %v278 = vsub.s32 0, %v277
      %v279 = vrot.slane %v274, %v278
      %v281 = vadd.f32 %v242, %v279
      %v282 = vadd.f32 %v243, %v279
      %v283 = vadd.f32 %v244, %v279
      %v284 = vadd.f32 %v245, %v279
      %v285 = vadd.f32 %v246, %v279
      %v286 = vadd.f32 %v247, %v279
      %v287 = vadd.f32 %v248, %v279
      %v288 = vadd.f32 %v249, %v279
      %v289 = vadd.f32 %v250, %v279
      %v290 = vadd.f32 %v251, %v279
      %v291 = vadd.f32 %v252, %v279
      %v292 = vadd.f32 %v253, %v279
      %v293 = vadd.f32 %v254, %v279
      %v294 = vadd.f32 %v255, %v279
      %v295 = vadd.f32 %v256, %v279
      %v296 = vadd.f32 %v257, %v279
      %v297 = vadd.f32 %v258, %v279
      %v298 = vadd.f32 %v259, %v279
      %v299 = vadd.f32 %v260, %v279
      %v300 = vadd.f32 %v261, %v279
      %v301 = vadd.f32 %v262, %v279
      %v302 = vadd.f32 %v263, %v279
      %v303 = vadd.f32 %v264, %v279
      %v304 = vadd.f32 %v265, %v279
      %v305 = vadd.f32 %v266, %v279
      %v306 = vadd.f32 %v267, %v279
      %v307 = vadd.f32 %v268, %v279
      %v308 = vadd.f32 %v269, %v279
      %v309 = vadd.f32 %v270, %v279
      %v310 = vadd.f32 %v271, %v279
      %v311 = vadd.f32 %v272, %v279
      %v312 = vadd.f32 %v273, %v279
      %v313 = vmax.f32 %v281, 0.0
      %v314 = vmax.f32 %v282, 0.0
      %v315 = vmax.f32 %v283, 0.0
      %v316 = vmax.f32 %v284, 0.0
      %v317 = vmax.f32 %v285, 0.0
      %v318 = vmax.f32 %v286, 0.0
      %v319 = vmax.f32 %v287, 0.0
      %v320 = vmax.f32 %v288, 0.0
      %v321 = vmax.f32 %v289, 0.0
      %v322 = vmax.f32 %v290, 0.0
      %v323 = vmax.f32 %v291, 0.0
      %v324 = vmax.f32 %v292, 0.0
      %v325 = vmax.f32 %v293, 0.0
      %v326 = vmax.f32 %v294, 0.0
      %v327 = vmax.f32 %v295, 0.0
      %v328 = vmax.f32 %v296, 0.0
      %v329 = vmax.f32 %v297, 0.0
      %v330 = vmax.f32 %v298, 0.0
      %v331 = vmax.f32 %v299, 0.0
      %v332 = vmax.f32 %v300, 0.0
      %v333 = vmax.f32 %v301, 0.0
      %v334 = vmax.f32 %v302, 0.0
      %v335 = vmax.f32 %v303, 0.0
      %v336 = vmax.f32 %v304, 0.0
      %v337 = vmax.f32 %v305, 0.0
      %v338 = vmax.f32 %v306, 0.0
      %v339 = vmax.f32 %v307, 0.0
      %v340 = vmax.f32 %v308, 0.0
      %v341 = vmax.f32 %v309, 0.0
      %v342 = vmax.f32 %v310, 0.0
      %v343 = vmax.f32 %v311, 0.0
      %v344 = vmax.f32 %v312, 0.0
      %vm345 = vcmask 31744
      %346 = vst.msk [vmem:[%s170] sm:$0xff] %vm345, %v313
      %347 = vst.msk [vmem:[%s170 + $0x8] sm:$0xff] %vm345, %v314
      %348 = vst.msk [vmem:[%s170 + $0x10] sm:$0xff] %vm345, %v315
      %349 = vst.msk [vmem:[%s170 + $0x18] sm:$0xff] %vm345, %v316
      %350 = vst.msk [vmem:[%s170 + $0x20] sm:$0xff] %vm345, %v317
      %351 = vst.msk [vmem:[%s170 + $0x28] sm:$0xff] %vm345, %v318
      %352 = vst.msk [vmem:[%s170 + $0x30] sm:$0xff] %vm345, %v319
      %353 = vst.msk [vmem:[%s170 + $0x38] sm:$0xff] %vm345, %v320
      %354 = vst.msk [vmem:[%s170 + $0x40] sm:$0xff] %vm345, %v321
      %355 = vst.msk [vmem:[%s170 + $0x48] sm:$0xff] %vm345, %v322
      %356 = vst.msk [vmem:[%s170 + $0x50] sm:$0xff] %vm345, %v323
      %357 = vst.msk [vmem:[%s170 + $0x58] sm:$0xff] %vm345, %v324
      %358 = vst.msk [vmem:[%s170 + $0x60] sm:$0xff] %vm345, %v325
      %359 = vst.msk [vmem:[%s170 + $0x68] sm:$0xff] %vm345, %v326
      %360 = vst.msk [vmem:[%s170 + $0x70] sm:$0xff] %vm345, %v327
      %361 = vst.msk [vmem:[%s170 + $0x78] sm:$0xff] %vm345, %v328
      %362 = vst.msk [vmem:[%s170 + $0x80] sm:$0xff] %vm345, %v329
      %363 = vst.msk [vmem:[%s170 + $0x88] sm:$0xff] %vm345, %v330
      %364 = vst.msk [vmem:[%s170 + $0x90] sm:$0xff] %vm345, %v331
      %365 = vst.msk [vmem:[%s170 + $0x98] sm:$0xff] %vm345, %v332
      %366 = vst.msk [vmem:[%s170 + $0xa0] sm:$0xff] %vm345, %v333
      %367 = vst.msk [vmem:[%s170 + $0xa8] sm:$0xff] %vm345, %v334
      %368 = vst.msk [vmem:[%s170 + $0xb0] sm:$0xff] %vm345, %v335
      %369 = vst.msk [vmem:[%s170 + $0xb8] sm:$0xff] %vm345, %v336
      %370 = vst.msk [vmem:[%s170 + $0xc0] sm:$0xff] %vm345, %v337
      %371 = vst.msk [vmem:[%s170 + $0xc8] sm:$0xff] %vm345, %v338
      %372 = vst.msk [vmem:[%s170 + $0xd0] sm:$0xff] %vm345, %v339
      %373 = vst.msk [vmem:[%s170 + $0xd8] sm:$0xff] %vm345, %v340
      %374 = vst.msk [vmem:[%s170 + $0xe0] sm:$0xff] %vm345, %v341
      %375 = vst.msk [vmem:[%s170 + $0xe8] sm:$0xff] %vm345, %v342
      %376 = vst.msk [vmem:[%s170 + $0xf0] sm:$0xff] %vm345, %v343
      %377 = vst.msk [vmem:[%s170 + $0xf8] sm:$0xff] %vm345, %v344
      %p378 = scmp.lt.s32.totalorder %s14, 1
      %s379 = scalar_select %p378, %s14, 1
      %s380 = smul.addr %s379, 32
      %s381 = smul.addr %s380, 8
      %s382 = scalar_lea.vmem %s3, %s381
      // Predicated region
      $region33: #{up_block_forward.7} parent=31 // pred_check
        %p383 = pneg %p100
      $region34: #{up_block_forward.7} parent=31 // pred_check_branch
        %385 = sbr.rel (%p383) target = $region36
      $region35: #{up_block_forward.7} parent=31 // pred_region
        _
      $region36: #{up_block_forward.7} parent=31 // pred_fallthru
        _
    $region32: #{up_block_forward.7} parent=5 // pred_fallthru
      _
    %p386 = scmp.le.s32.totalorder 2, %s9
    // Predicated region
    $region37: #{up_block_forward.7} parent=5 // pred_check
      %p387 = pneg %p386
    $region38: #{up_block_forward.7} parent=5 // pred_check_branch
      %389 = sbr.rel (%p387) target = $region40
    $region39: #{up_block_forward.7} parent=5 // pred_region
      %s390 = ssub.s32 %s9, 2
      // Predicated region
      $region41: #{up_block_forward.7} parent=39 // pred_check
        %p391 = pneg %p106
      $region42: #{up_block_forward.7} parent=39 // pred_check_branch
        %393 = sbr.rel (%p391) target = $region44
      $region43: #{up_block_forward.7} parent=39 // pred_region
        %p394 = scmp.lt.s32.totalorder %s15, 1
        %s395 = scalar_select %p394, %s15, 1
        %s396 = smul.addr %s395, 32
        %s397 = smul.addr %s396, 8
        %s398 = scalar_lea.vmem %s3, %s397
      $region44: #{up_block_forward.7} parent=39 // pred_fallthru
        _
    $region40: #{up_block_forward.7} parent=5 // pred_fallthru
      _
  $region6: #{up_block_forward.7} parent=0 // loop_footer
    %s13 = sadd.s32 1, %s9
  $region7: #{up_block_forward.7} parent=0 // loop_footer_branch
    %8 = sbr.rel target = $region3
  $region8: #{up_block_forward.7} parent=0 // loop_exit
    _

// kernel: up_block_forward.6
$region0: #{up_block_forward.6}
  #allocation0 [shape = 'u32[]', space=smem, size = 0x4, offset = 0x4, fixed_abs, tag = 'smem constant byte address 0x4 - core index']
  #allocation1 [shape = 'u32[144,128]{1,0:T(1,128)}', space=vmem, size = 0x12000, scoped, tag = 'internal scratch']
  #allocation2 [shape = 'bf16[18,18,4]{2,1,0:T(8,128)(2,1)}', space=vmem, size = 0x1b000, scoped, tag = 'scratch operand']
  #allocation3 [shape = 'f32[256,4]{1,0:T(8,128)}', space=vmem, size = 0x20000, scoped, tag = 'scratch operand']
  %s0 = inlined_call_operand.vmem [shape: bf16[2,16,16,4], index: 0, kind: input, shape index: {}]
  %s1 = inlined_call_operand.vmem [shape: f32[1,4], index: 1, kind: input, shape index: {}]
  %s2 = inlined_call_operand.vmem [shape: f32[1,4], index: 2, kind: input, shape index: {}]
  %s3 = inlined_call_operand.vmem [shape: bf16[3,12,4], index: 3, kind: input, shape index: {}]
  %s4 = inlined_call_operand.vmem [shape: bf16[2,16,16,4], index: 4, kind: output, shape index: {0}]
  %s5 = inlined_call_operand.vmem [shape: f32[2,2,4], index: 5, kind: output, shape index: {1}]
  %6 = xla_tuple %s4, %s5
  %s7 = sld [smem:[#allocation0]]
  $region57: #{up_block_forward.6} parent=0
    _
  %s9 = ssub.s32 1, %s7
  %s10 = scalar_select 0, %s9, %s7
  loop: start=0, step=1, limit=4
  $region2: #{up_block_forward.6} parent=0 // loop_pre_header
    _
  $region3: #{up_block_forward.6} parent=0 // loop_header
    %s12 = sphi 0, %s16
    %p13 = scmp.ge.s32.totalorder %s12, 4
    %s22 = sphi 0, %s24
    %s25 = sphi 0, %s22
    %s26 = sphi 0, %s25
    %s42 = sphi 0, %s26
    %s46 = sphi 0, %s46
    %s48 = sphi 0, %s46
    %s49 = sphi 0, %s48
    %s63 = sphi 0, %s49
    %s67 = sphi 0, %s67
    %s69 = sphi 0, %s67
    %s70 = sphi 0, %s69
    %s84 = sphi 0, %s70
    %s88 = sphi 0, %s88
    %s90 = sphi 0, %s88
    %s91 = sphi 0, %s90
    %s105 = sphi 0, %s91
    %s111 = sphi 0, %s113
    %s114 = sphi 0, %s111
    %s115 = sphi 0, %s114
    %s131 = sphi 0, %s115
    %s137 = sphi 0, %s139
    %s140 = sphi 0, %s137
    %s141 = sphi 0, %s140
    %s157 = sphi 0, %s141
  $region4: #{up_block_forward.6} parent=0 // loop_header_branch
    %15 = sbr.rel (%p13) target = $region8
  $region5: #{up_block_forward.6} parent=0 // loop_body
    %s17 = ssub.s32 %s12, 1
    %s18 = ssub.s32 %s12, 2
    %s19 = sadd.s32 %s12, 1
    %s20 = ssub.s32 %s12, %s19
    %p21 = scmp.eq.s32.totalorder %s20, 0
    %s23 = sadd.s32 %s22, 1
    %s24 = scalar_select %p21, %s22, %s23
    %p27 = pneg %p21
    %p28 = scmp.eq.s32.totalorder %s12, 1
    %p29 = por %p27, %p28
    %p30 = scmp.ne.s32.totalorder %s22, %s25
    %p31 = scmp.eq.s32.totalorder %s12, 0
    %p32 = por %p30, %p31
    %p33 = scmp.ne.s32.totalorder %s22, %s25
    %p34 = scmp.eq.s32.totalorder %s17, 1
    %p35 = por %p33, %p34
    %p36 = scmp.ne.s32.totalorder %s25, %s26
    %p37 = scmp.eq.s32.totalorder %s17, 0
    %p38 = por %p36, %p37
    %p39 = scmp.ne.s32.totalorder %s25, %s26
    %p40 = scmp.eq.s32.totalorder %s18, 1
    %p41 = por %p39, %p40
    %p43 = scmp.ne.s32.totalorder %s26, %s42
    %p44 = scmp.eq.s32.totalorder %s18, 0
    %p45 = por %p43, %p44
    %s47 = sadd.s32 %s46, 1
    %p50 = scmp.eq.s32.totalorder %s12, 1
    %p51 = scmp.ne.s32.totalorder %s46, %s48
    %p52 = scmp.eq.s32.totalorder %s12, 0
    %p53 = por %p51, %p52
    %p54 = scmp.ne.s32.totalorder %s46, %s48
    %p55 = scmp.eq.s32.totalorder %s17, 1
    %p56 = por %p54, %p55
    %p57 = scmp.ne.s32.totalorder %s48, %s49
    %p58 = scmp.eq.s32.totalorder %s17, 0
    %p59 = por %p57, %p58
    %p60 = scmp.ne.s32.totalorder %s48, %s49
    %p61 = scmp.eq.s32.totalorder %s18, 1
    %p62 = por %p60, %p61
    %p64 = scmp.ne.s32.totalorder %s49, %s63
    %p65 = scmp.eq.s32.totalorder %s18, 0
    %p66 = por %p64, %p65
    %s68 = sadd.s32 %s67, 1
    %p71 = scmp.eq.s32.totalorder %s12, 1
    %p72 = scmp.ne.s32.totalorder %s67, %s69
    %p73 = scmp.eq.s32.totalorder %s12, 0
    %p74 = por %p72, %p73
    %p75 = scmp.ne.s32.totalorder %s67, %s69
    %p76 = scmp.eq.s32.totalorder %s17, 1
    %p77 = por %p75, %p76
    %p78 = scmp.ne.s32.totalorder %s69, %s70
    %p79 = scmp.eq.s32.totalorder %s17, 0
    %p80 = por %p78, %p79
    %p81 = scmp.ne.s32.totalorder %s69, %s70
    %p82 = scmp.eq.s32.totalorder %s18, 1
    %p83 = por %p81, %p82
    %p85 = scmp.ne.s32.totalorder %s70, %s84
    %p86 = scmp.eq.s32.totalorder %s18, 0
    %p87 = por %p85, %p86
    %s89 = sadd.s32 %s88, 1
    %p92 = scmp.eq.s32.totalorder %s12, 1
    %p93 = scmp.ne.s32.totalorder %s88, %s90
    %p94 = scmp.eq.s32.totalorder %s12, 0
    %p95 = por %p93, %p94
    %p96 = scmp.ne.s32.totalorder %s88, %s90
    %p97 = scmp.eq.s32.totalorder %s17, 1
    %p98 = por %p96, %p97
    %p99 = scmp.ne.s32.totalorder %s90, %s91
    %p100 = scmp.eq.s32.totalorder %s17, 0
    %p101 = por %p99, %p100
    %p102 = scmp.ne.s32.totalorder %s90, %s91
    %p103 = scmp.eq.s32.totalorder %s18, 1
    %p104 = por %p102, %p103
    %p106 = scmp.ne.s32.totalorder %s91, %s105
    %p107 = scmp.eq.s32.totalorder %s18, 0
    %p108 = por %p106, %p107
    %s109 = ssub.s32 %s12, %s19
    %p110 = scmp.eq.s32.totalorder %s109, 0
    %s112 = sadd.s32 %s111, 1
    %s113 = scalar_select %p110, %s111, %s112
    %p116 = pneg %p110
    %p117 = scmp.eq.s32.totalorder %s12, 1
    %p118 = por %p116, %p117
    %p119 = scmp.ne.s32.totalorder %s111, %s114
    %p120 = scmp.eq.s32.totalorder %s12, 0
    %p121 = por %p119, %p120
    %p122 = scmp.ne.s32.totalorder %s111, %s114
    %p123 = scmp.eq.s32.totalorder %s17, 1
    %p124 = por %p122, %p123
    %p125 = scmp.ne.s32.totalorder %s114, %s115
    %p126 = scmp.eq.s32.totalorder %s17, 0
    %p127 = por %p125, %p126
    %p128 = scmp.ne.s32.totalorder %s114, %s115
    %p129 = scmp.eq.s32.totalorder %s18, 1
    %p130 = por %p128, %p129
    %p132 = scmp.ne.s32.totalorder %s115, %s131
    %p133 = scmp.eq.s32.totalorder %s18, 0
    %p134 = por %p132, %p133
    %s135 = ssub.s32 %s12, %s19
    %p136 = scmp.eq.s32.totalorder %s135, 0
    %s138 = sadd.s32 %s137, 1
    %s139 = scalar_select %p136, %s137, %s138
    %p142 = pneg %p136
    %p143 = scmp.eq.s32.totalorder %s12, 1
    %p144 = por %p142, %p143
    %p145 = scmp.ne.s32.totalorder %s137, %s140
    %p146 = scmp.eq.s32.totalorder %s12, 0
    %p147 = por %p145, %p146
    %p148 = scmp.ne.s32.totalorder %s137, %s140
    %p149 = scmp.eq.s32.totalorder %s17, 1
    %p150 = por %p148, %p149
    %p151 = scmp.ne.s32.totalorder %s140, %s141
    %p152 = scmp.eq.s32.totalorder %s17, 0
    %p153 = por %p151, %p152
    %p154 = scmp.ne.s32.totalorder %s140, %s141
    %p155 = scmp.eq.s32.totalorder %s18, 1
    %p156 = por %p154, %p155
    %p158 = scmp.ne.s32.totalorder %s141, %s157
    %p159 = scmp.eq.s32.totalorder %s18, 0
    %p160 = por %p158, %p159
    %p161 = scmp.le.s32.totalorder 1, %s12
    %p162 = scmp.lt.s32.totalorder %s12, 3
    %p163 = pnand %p161, %p162
    %p164 = pneg %p163
    // Predicated region
    $region9: #{up_block_forward.6} parent=5 // pred_check
      _
    $region10: #{up_block_forward.6} parent=5 // pred_check_branch
      %166 = sbr.rel (%p163) target = $region12
    $region11: #{up_block_forward.6} parent=5 // pred_region
      %s167 = ssub.s32 %s12, 1
      // Predicated region
      $region13: #{up_block_forward.6} parent=11 // pred_check
        %p168 = pneg %p59
      $region14: #{up_block_forward.6} parent=11 // pred_check_branch
        %170 = sbr.rel (%p168) target = $region16
      $region15: #{up_block_forward.6} parent=11 // pred_region
        _
      $region16: #{up_block_forward.6} parent=11 // pred_fallthru
        _
      // Predicated region
      $region17: #{up_block_forward.6} parent=11 // pred_check
        %p171 = pneg %p80
      $region18: #{up_block_forward.6} parent=11 // pred_check_branch
        %173 = sbr.rel (%p171) target = $region20
      $region19: #{up_block_forward.6} parent=11 // pred_region
        _
      $region20: #{up_block_forward.6} parent=11 // pred_fallthru
        _
      // Predicated region
      $region21: #{up_block_forward.6} parent=11 // pred_check
        %p174 = pneg %p101
      $region22: #{up_block_forward.6} parent=11 // pred_check_branch
        %176 = sbr.rel (%p174) target = $region24
      $region23: #{up_block_forward.6} parent=11 // pred_region
        _
      $region24: #{up_block_forward.6} parent=11 // pred_fallthru
        _
    $region12: #{up_block_forward.6} parent=5 // pred_fallthru
      _
    %p177 = scmp.lt.s32.totalorder %s12, 2
    // Predicated region
    $region25: #{up_block_forward.6} parent=5 // pred_check
      %p178 = pneg %p177
    $region26: #{up_block_forward.6} parent=5 // pred_check_branch
      %180 = sbr.rel (%p178) target = $region28
    $region27: #{up_block_forward.6} parent=5 // pred_region
      // Predicated region
      $region29: #{up_block_forward.6} parent=27 // pred_check
        %p181 = pneg %p32
      $region30: #{up_block_forward.6} parent=27 // pred_check_branch
        %183 = sbr.rel (%p181) target = $region32
      $region31: #{up_block_forward.6} parent=27 // pred_region
        %p184 = scmp.lt.s32.totalorder %s12, 1
        %s185 = scalar_select %p184, %s12, 1
        %s186 = smul.addr %s185, 32
        %s187 = smul.addr %s186, 4
        %s188 = scalar_lea.vmem %s0, %s187
      $region32: #{up_block_forward.6} parent=27 // pred_fallthru
        _
    $region28: #{up_block_forward.6} parent=5 // pred_fallthru
      _
    %p189 = scmp.le.s32.totalorder 1, %s12
    %p190 = scmp.lt.s32.totalorder %s12, 3
    %p191 = pnand %p189, %p190
    %p192 = pneg %p191
    // Predicated region
    $region33: #{up_block_forward.6} parent=5 // pred_check
      _
    $region34: #{up_block_forward.6} parent=5 // pred_check_branch
      %194 = sbr.rel (%p191) target = $region36
    $region35: #{up_block_forward.6} parent=5 // pred_region
      %s195 = ssub.s32 %s12, 1
      %p196 = scmp.lt.s32.totalorder %s17, 1
      %s197 = scalar_select %p196, %s17, 1
      %s198 = smul.addr %s197, 32
      %s199 = smul.addr %s198, 4
      %s200 = scalar_lea.vmem %s0, %s199
      %p201 = pneg %p38
      %p202 = pneg %p35
      %p203 = pneg %p59
      %p204 = pneg %p56
      %p205 = pneg %p80
      %p206 = pneg %p77
      %p207 = pneg %p101
      %p208 = pneg %p98
      %p209 = pneg %p127
      %p210 = pneg %p124
      %p211 = scmp.lt.s32.totalorder %s17, 1
      %s212 = scalar_select %p211, %s17, 1
      %s213 = smul.addr %s212, 32
      %s214 = smul.addr %s213, 4
      %s215 = scalar_lea.vmem %s4, %s214
      %p216 = pneg %p153
      %p217 = pneg %p150
      %p218 = scmp.lt.s32.totalorder %s17, 1
      %s219 = scalar_select %p218, %s17, 1
      %s220 = smul.addr %s219, 2
      %s221 = scalar_lea.vmem %s5, %s220
      %p222 = scmp.lt.s32.totalorder %s17, 1
      %s223 = scalar_select %p222, %s17, 1
      %s224 = smul.addr %s223, 32
      %s225 = smul.addr %s224, 4
      %s226 = scalar_lea.vmem %s0, %s225
      %p227 = scmp.lt.s32.totalorder %s17, 1
      %s228 = scalar_select %p227, %s17, 1
      %s229 = smul.addr %s228, 32
      %s230 = smul.addr %s229, 4
      %s231 = scalar_lea.vmem %s4, %s230
      %p232 = scmp.lt.s32.totalorder %s17, 1
      %s233 = scalar_select %p232, %s17, 1
      %s234 = smul.addr %s233, 2
      %s235 = scalar_lea.vmem %s5, %s234
      %v237 = vld [vmem:[%s226] sm:$0xf]
      %v238 = vld [vmem:[%s226 + $0x4] sm:$0xf]
      %v239 = vld [vmem:[%s226 + $0x8] sm:$0xf]
      %v240 = vld [vmem:[%s226 + $0xc] sm:$0xf]
      %v241 = vld [vmem:[%s226 + $0x10] sm:$0xf]
      %v242 = vld [vmem:[%s226 + $0x14] sm:$0xf]
      %v243 = vld [vmem:[%s226 + $0x18] sm:$0xf]
      %v244 = vld [vmem:[%s226 + $0x1c] sm:$0xf]
      %v245 = vld [vmem:[%s226 + $0x20] sm:$0xf]
      %v246 = vld [vmem:[%s226 + $0x24] sm:$0xf]
      %v247 = vld [vmem:[%s226 + $0x28] sm:$0xf]
      %v248 = vld [vmem:[%s226 + $0x2c] sm:$0xf]
      %v249 = vld [vmem:[%s226 + $0x30] sm:$0xf]
      %v250 = vld [vmem:[%s226 + $0x34] sm:$0xf]
      %v251 = vld [vmem:[%s226 + $0x38] sm:$0xf]
      %v252 = vld [vmem:[%s226 + $0x3c] sm:$0xf]
      %v253 = vld [vmem:[%s226 + $0x40] sm:$0xf]
      %v254 = vld [vmem:[%s226 + $0x44] sm:$0xf]
      %v255 = vld [vmem:[%s226 + $0x48] sm:$0xf]
      %v256 = vld [vmem:[%s226 + $0x4c] sm:$0xf]
      %v257 = vld [vmem:[%s226 + $0x50] sm:$0xf]
      %v258 = vld [vmem:[%s226 + $0x54] sm:$0xf]
      %v259 = vld [vmem:[%s226 + $0x58] sm:$0xf]
      %v260 = vld [vmem:[%s226 + $0x5c] sm:$0xf]
      %v261 = vld [vmem:[%s226 + $0x60] sm:$0xf]
      %v262 = vld [vmem:[%s226 + $0x64] sm:$0xf]
      %v263 = vld [vmem:[%s226 + $0x68] sm:$0xf]
      %v264 = vld [vmem:[%s226 + $0x6c] sm:$0xf]
      %v265 = vld [vmem:[%s226 + $0x70] sm:$0xf]
      %v266 = vld [vmem:[%s226 + $0x74] sm:$0xf]
      %v267 = vld [vmem:[%s226 + $0x78] sm:$0xf]
      %v268 = vld [vmem:[%s226 + $0x7c] sm:$0xf]
      %v269 = vunpack.c.l.bf16 %v237
      %v270 = vunpack.c.l.bf16 %v238
      %v271 = vunpack.c.l.bf16 %v239
      %v272 = vunpack.c.l.bf16 %v240
      %v273 = vunpack.c.l.bf16 %v241
      %v274 = vunpack.c.l.bf16 %v242
      %v275 = vunpack.c.l.bf16 %v243
      %v276 = vunpack.c.l.bf16 %v244
      %v277 = vunpack.c.l.bf16 %v245
      %v278 = vunpack.c.l.bf16 %v246
      %v279 = vunpack.c.l.bf16 %v247
      %v280 = vunpack.c.l.bf16 %v248
      %v281 = vunpack.c.l.bf16 %v249
      %v282 = vunpack.c.l.bf16 %v250
      %v283 = vunpack.c.l.bf16 %v251
      %v284 = vunpack.c.l.bf16 %v252
      %v285 = vunpack.c.l.bf16 %v253
      %v286 = vunpack.c.l.bf16 %v254
      %v287 = vunpack.c.l.bf16 %v255
      %v288 = vunpack.c.l.bf16 %v256
      %v289 = vunpack.c.l.bf16 %v257
      %v290 = vunpack.c.l.bf16 %v258
      %v291 = vunpack.c.l.bf16 %v259
      %v292 = vunpack.c.l.bf16 %v260
      %v293 = vunpack.c.l.bf16 %v261
      %v294 = vunpack.c.l.bf16 %v262
      %v295 = vunpack.c.l.bf16 %v263
      %v296 = vunpack.c.l.bf16 %v264
      %v297 = vunpack.c.l.bf16 %v265
      %v298 = vunpack.c.l.bf16 %v266
      %v299 = vunpack.c.l.bf16 %v267
      %v300 = vunpack.c.l.bf16 %v268
      %v301 = vld [vmem:[%s1] sm:$0x1]
      %v303 = vlaneseq
      %v304 = vshrl.u32 %v303, 7
      %v305 = vsub.s32 0, %v304
      %v306 = vrot.slane %v301, %v305
      %v308 = vmul.f32 %v269, %v306
      %v309 = vmul.f32 %v270, %v306
      %v310 = vmul.f32 %v271, %v306
      %v311 = vmul.f32 %v272, %v306
      %v312 = vmul.f32 %v273, %v306
      %v313 = vmul.f32 %v274, %v306
      %v314 = vmul.f32 %v275, %v306
      %v315 = vmul.f32 %v276, %v306
      %v316 = vmul.f32 %v277, %v306
      %v317 = vmul.f32 %v278, %v306
      %v318 = vmul.f32 %v279, %v306
      %v319 = vmul.f32 %v280, %v306
      %v320 = vmul.f32 %v281, %v306
      %v321 = vmul.f32 %v282, %v306
      %v322 = vmul.f32 %v283, %v306
      %v323 = vmul.f32 %v284, %v306
      %v324 = vmul.f32 %v285, %v306
      %v325 = vmul.f32 %v286, %v306
      %v326 = vmul.f32 %v287, %v306
      %v327 = vmul.f32 %v288, %v306
      %v328 = vmul.f32 %v289, %v306
      %v329 = vmul.f32 %v290, %v306
      %v330 = vmul.f32 %v291, %v306
      %v331 = vmul.f32 %v292, %v306
      %v332 = vmul.f32 %v293, %v306
      %v333 = vmul.f32 %v294, %v306
      %v334 = vmul.f32 %v295, %v306
      %v335 = vmul.f32 %v296, %v306
      %v336 = vmul.f32 %v297, %v306
      %v337 = vmul.f32 %v298, %v306
      %v338 = vmul.f32 %v299, %v306
      %v339 = vmul.f32 %v300, %v306
      %v340 = vld [vmem:[%s2] sm:$0x1]
      %v342 = vlaneseq
      %v343 = vshrl.u32 %v342, 7
      %v344 = vsub.s32 0, %v343
      %v345 = vrot.slane %v340, %v344
      %v347 = vadd.f32 %v308, %v345
      %v348 = vadd.f32 %v309, %v345
      %v349 = vadd.f32 %v310, %v345
      %v350 = vadd.f32 %v311, %v345
      %v351 = vadd.f32 %v312, %v345
      %v352 = vadd.f32 %v313, %v345
      %v353 = vadd.f32 %v314, %v345
      %v354 = vadd.f32 %v315, %v345
      %v355 = vadd.f32 %v316, %v345
      %v356 = vadd.f32 %v317, %v345
      %v357 = vadd.f32 %v318, %v345
      %v358 = vadd.f32 %v319, %v345
      %v359 = vadd.f32 %v320, %v345
      %v360 = vadd.f32 %v321, %v345
      %v361 = vadd.f32 %v322, %v345
      %v362 = vadd.f32 %v323, %v345
      %v363 = vadd.f32 %v324, %v345
      %v364 = vadd.f32 %v325, %v345
      %v365 = vadd.f32 %v326, %v345
      %v366 = vadd.f32 %v327, %v345
      %v367 = vadd.f32 %v328, %v345
      %v368 = vadd.f32 %v329, %v345
      %v369 = vadd.f32 %v330, %v345
      %v370 = vadd.f32 %v331, %v345
      %v371 = vadd.f32 %v332, %v345
      %v372 = vadd.f32 %v333, %v345
      %v373 = vadd.f32 %v334, %v345
      %v374 = vadd.f32 %v335, %v345
      %v375 = vadd.f32 %v336, %v345
      %v376 = vadd.f32 %v337, %v345
      %v377 = vadd.f32 %v338, %v345
      %v378 = vadd.f32 %v339, %v345
      %v379 = vmax.f32 %v347, 0.0
      %v380 = vmax.f32 %v348, 0.0
      %v381 = vmax.f32 %v349, 0.0
      %v382 = vmax.f32 %v350, 0.0
      %v383 = vmax.f32 %v351, 0.0
      %v384 = vmax.f32 %v352, 0.0
      %v385 = vmax.f32 %v353, 0.0
      %v386 = vmax.f32 %v354, 0.0
      %v387 = vmax.f32 %v355, 0.0
      %v388 = vmax.f32 %v356, 0.0
      %v389 = vmax.f32 %v357, 0.0
      %v390 = vmax.f32 %v358, 0.0
      %v391 = vmax.f32 %v359, 0.0
      %v392 = vmax.f32 %v360, 0.0
      %v393 = vmax.f32 %v361, 0.0
      %v394 = vmax.f32 %v362, 0.0
      %v395 = vmax.f32 %v363, 0.0
      %v396 = vmax.f32 %v364, 0.0
      %v397 = vmax.f32 %v365, 0.0
      %v398 = vmax.f32 %v366, 0.0
      %v399 = vmax.f32 %v367, 0.0
      %v400 = vmax.f32 %v368, 0.0
      %v401 = vmax.f32 %v369, 0.0
      %v402 = vmax.f32 %v370, 0.0
      %v403 = vmax.f32 %v371, 0.0
      %v404 = vmax.f32 %v372, 0.0
      %v405 = vmax.f32 %v373, 0.0
      %v406 = vmax.f32 %v374, 0.0
      %v407 = vmax.f32 %v375, 0.0
      %v408 = vmax.f32 %v376, 0.0
      %v409 = vmax.f32 %v377, 0.0
      %v410 = vmax.f32 %v378, 0.0
      %v411 = vpack.c.bf16 %v380, %v379
      %v412 = vpack.c.bf16 %v382, %v381
      %v413 = vpack.c.bf16 %v384, %v383
      %v414 = vpack.c.bf16 %v386, %v385
      %v415 = vpack.c.bf16 %v388, %v387
      %v416 = vpack.c.bf16 %v390, %v389
      %v417 = vpack.c.bf16 %v392, %v391
      %v418 = vpack.c.bf16 %v394, %v393
      %v419 = vpack.c.bf16 %v396, %v395
      %v420 = vpack.c.bf16 %v398, %v397
      %v421 = vpack.c.bf16 %v400, %v399
      %v422 = vpack.c.bf16 %v402, %v401
      %v423 = vpack.c.bf16 %v404, %v403
      %v424 = vpack.c.bf16 %v406, %v405
      %v425 = vpack.c.bf16 %v408, %v407
      %v426 = vpack.c.bf16 %v410, %v409
      %v428 = vshrl.u32 %v411, 16
      %v430 = vrot.slane %v428, 7
      %v431 = vshll.u32 %v411, 16
      %v433 = vor.u32 %v430, %v431
      %v435 = vshrl.u32 %v412, 16
      %v437 = vrot.slane %v435, 7
      %v438 = vshll.u32 %v412, 16
      %v440 = vor.u32 %v437, %v438
      %v442 = vshrl.u32 %v413, 16
      %v444 = vrot.slane %v442, 7
      %v445 = vshll.u32 %v413, 16
      %v447 = vor.u32 %v444, %v445
      %v449 = vshrl.u32 %v414, 16
      %v451 = vrot.slane %v449, 7
      %v452 = vshll.u32 %v414, 16
      %v454 = vor.u32 %v451, %v452
      %v456 = vshrl.u32 %v415, 16
      %v458 = vrot.slane %v456, 7
      %v459 = vshll.u32 %v415, 16
      %v461 = vor.u32 %v458, %v459
      %v463 = vshrl.u32 %v416, 16
      %v465 = vrot.slane %v463, 7
      %v466 = vshll.u32 %v416, 16
      %v468 = vor.u32 %v465, %v466
      %v470 = vshrl.u32 %v417, 16
      %v472 = vrot.slane %v470, 7
      %v473 = vshll.u32 %v417, 16
      %v475 = vor.u32 %v472, %v473
      %v477 = vshrl.u32 %v418, 16
      %v479 = vrot.slane %v477, 7
      %v480 = vshll.u32 %v418, 16
      %v482 = vor.u32 %v479, %v480
      %v484 = vshrl.u32 %v419, 16
      %v486 = vrot.slane %v484, 7
      %v487 = vshll.u32 %v419, 16
      %v489 = vor.u32 %v486, %v487
      %v491 = vshrl.u32 %v420, 16
      %v493 = vrot.slane %v491, 7
      %v494 = vshll.u32 %v420, 16
      %v496 = vor.u32 %v493, %v494
      %v498 = vshrl.u32 %v421, 16
      %v500 = vrot.slane %v498, 7
      %v501 = vshll.u32 %v421, 16
      %v503 = vor.u32 %v500, %v501
      %v505 = vshrl.u32 %v422, 16
      %v507 = vrot.slane %v505, 7
      %v508 = vshll.u32 %v422, 16
      %v510 = vor.u32 %v507, %v508
      %v512 = vshrl.u32 %v423, 16
      %v514 = vrot.slane %v512, 7
      %v515 = vshll.u32 %v423, 16
      %v517 = vor.u32 %v514, %v515
      %v519 = vshrl.u32 %v424, 16
      %v521 = vrot.slane %v519, 7
      %v522 = vshll.u32 %v424, 16
      %v524 = vor.u32 %v521, %v522
      %v526 = vshrl.u32 %v425, 16
      %v528 = vrot.slane %v526, 7
      %v529 = vshll.u32 %v425, 16
      %v531 = vor.u32 %v528, %v529
      %v533 = vshrl.u32 %v426, 16
      %v535 = vrot.slane %v533, 7
      %v536 = vshll.u32 %v426, 16
      %v538 = vor.u32 %v535, %v536
      %vm571 = vcmask 1040384
      %vm572 = vsmask.f32 256
      %vm573 = vmand %vm571, %vm572
      %v574 = vsel %vm573, 0, %v433
      %v575 = vsel %vm573, 0, %v440
      %v576 = vsel %vm573, 0, %v447
      %v577 = vsel %vm573, 0, %v454
      %v578 = vsel %vm573, 0, %v461
      %v579 = vsel %vm573, 0, %v468
      %v580 = vsel %vm573, 0, %v475
      %v581 = vsel %vm573, 0, %v482
      %v582 = vsel %vm573, 0, %v489
      %v583 = vsel %vm573, 0, %v496
      %v584 = vsel %vm573, 0, %v503
      %v585 = vsel %vm573, 0, %v510
      %v586 = vsel %vm573, 0, %v517
      %v587 = vsel %vm573, 0, %v524
      %v588 = vsel %vm573, 0, %v531
      %v589 = vsel %vm573, 0, %v538
      %v590 = vsel %vm573, %v430, 0
      %v591 = vsel %vm573, %v437, 0
      %v592 = vsel %vm573, %v444, 0
      %v593 = vsel %vm573, %v451, 0
      %v594 = vsel %vm573, %v458, 0
      %v595 = vsel %vm573, %v465, 0
      %v596 = vsel %vm573, %v472, 0
      %v597 = vsel %vm573, %v479, 0
      %v598 = vsel %vm573, %v486, 0
      %v599 = vsel %vm573, %v493, 0
      %v600 = vsel %vm573, %v500, 0
      %v601 = vsel %vm573, %v507, 0
      %v602 = vsel %vm573, %v514, 0
      %v603 = vsel %vm573, %v521, 0
      %v604 = vsel %vm573, %v528, 0
      %v605 = vsel %vm573, %v535, 0
      %v638 = vunpack.c.l.b16 %v574
      %v639 = vunpack.c.h.b16 %v574
      %v640 = vunpack.c.l.b16 %v590
      %v641 = vunpack.c.l.b16 %v575
      %v642 = vunpack.c.h.b16 %v575
      %v643 = vunpack.c.l.b16 %v591
      %v644 = vunpack.c.l.b16 %v576
      %v645 = vunpack.c.h.b16 %v576
      %v646 = vunpack.c.l.b16 %v592
      %v647 = vunpack.c.l.b16 %v577
      %v648 = vunpack.c.h.b16 %v577
      %v649 = vunpack.c.l.b16 %v593
      %v650 = vunpack.c.l.b16 %v578
      %v651 = vunpack.c.h.b16 %v578
      %v652 = vunpack.c.l.b16 %v594
      %v653 = vunpack.c.l.b16 %v579
      %v654 = vunpack.c.h.b16 %v579
      %v655 = vunpack.c.l.b16 %v595
      %v656 = vunpack.c.l.b16 %v580
      %v657 = vunpack.c.h.b16 %v580
      %v658 = vunpack.c.l.b16 %v596
      %v659 = vunpack.c.l.b16 %v581
      %v660 = vunpack.c.h.b16 %v581
      %v661 = vunpack.c.l.b16 %v597
      %v662 = vunpack.c.l.b16 %v582
      %v663 = vunpack.c.h.b16 %v582
      %v664 = vunpack.c.l.b16 %v598
      %v665 = vunpack.c.l.b16 %v583
      %v666 = vunpack.c.h.b16 %v583
      %v667 = vunpack.c.l.b16 %v599
      %v668 = vunpack.c.l.b16 %v584
      %v669 = vunpack.c.h.b16 %v584
      %v670 = vunpack.c.l.b16 %v600
      %v671 = vunpack.c.l.b16 %v585
      %v672 = vunpack.c.h.b16 %v585
      %v673 = vunpack.c.l.b16 %v601
      %v674 = vunpack.c.l.b16 %v586
      %v675 = vunpack.c.h.b16 %v586
      %v676 = vunpack.c.l.b16 %v602
      %v677 = vunpack.c.l.b16 %v587
      %v678 = vunpack.c.h.b16 %v587
      %v679 = vunpack.c.l.b16 %v603
      %v680 = vunpack.c.l.b16 %v588
      %v681 = vunpack.c.h.b16 %v588
      %v682 = vunpack.c.l.b16 %v604
      %v683 = vunpack.c.l.b16 %v589
      %v684 = vunpack.c.h.b16 %v589
      %v685 = vunpack.c.l.b16 %v605
      %v686 = vpack.c.b16 %v638, %v638
      %v687 = vpack.c.b16 %v639, %v639
      %v688 = vpack.c.b16 %v640, %v640
      %v689 = vpack.c.b16 %v641, %v641
      %v690 = vpack.c.b16 %v642, %v642
      %v691 = vpack.c.b16 %v643, %v643
      %v692 = vpack.c.b16 %v644, %v644
      %v693 = vpack.c.b16 %v645, %v645
      %v694 = vpack.c.b16 %v646, %v646
      %v695 = vpack.c.b16 %v647, %v647
      %v696 = vpack.c.b16 %v648, %v648
      %v697 = vpack.c.b16 %v649, %v649
      %v698 = vpack.c.b16 %v650, %v650
      %v699 = vpack.c.b16 %v651, %v651
      %v700 = vpack.c.b16 %v652, %v652
      %v701 = vpack.c.b16 %v653, %v653
      %v702 = vpack.c.b16 %v654, %v654
      %v703 = vpack.c.b16 %v655, %v655
      %v704 = vpack.c.b16 %v656, %v656
      %v705 = vpack.c.b16 %v657, %v657
      %v706 = vpack.c.b16 %v658, %v658
      %v707 = vpack.c.b16 %v659, %v659
      %v708 = vpack.c.b16 %v660, %v660
      %v709 = vpack.c.b16 %v661, %v661
      %v710 = vpack.c.b16 %v662, %v662
      %v711 = vpack.c.b16 %v663, %v663
      %v712 = vpack.c.b16 %v664, %v664
      %v713 = vpack.c.b16 %v665, %v665
      %v714 = vpack.c.b16 %v666, %v666
      %v715 = vpack.c.b16 %v667, %v667
      %v716 = vpack.c.b16 %v668, %v668
      %v717 = vpack.c.b16 %v669, %v669
      %v718 = vpack.c.b16 %v670, %v670
      %v719 = vpack.c.b16 %v671, %v671
      %v720 = vpack.c.b16 %v672, %v672
      %v721 = vpack.c.b16 %v673, %v673
      %v722 = vpack.c.b16 %v674, %v674
      %v723 = vpack.c.b16 %v675, %v675
      %v724 = vpack.c.b16 %v676, %v676
      %v725 = vpack.c.b16 %v677, %v677
      %v726 = vpack.c.b16 %v678, %v678
      %v727 = vpack.c.b16 %v679, %v679
      %v728 = vpack.c.b16 %v680, %v680
      %v729 = vpack.c.b16 %v681, %v681
      %v730 = vpack.c.b16 %v682, %v682
      %v731 = vpack.c.b16 %v683, %v683
      %v732 = vpack.c.b16 %v684, %v684
      %v733 = vpack.c.b16 %v685, %v685
      %s782 = scalar_lea.vmem [#allocation2], 12
      %vm783 = vcmask 27648
      %784 = vst.msk [vmem:[%s782] sm:$0xf] %vm783, %v686
      %785 = vst.msk [vmem:[%s782 + $0x4] sm:$0xf] %vm783, %v687
      %vm786 = vcmask 24576
      %787 = vst.msk [vmem:[%s782 + $0x8] sm:$0x1] %vm786, %v688
      %788 = vst.msk [vmem:[%s782 + $0xc] sm:$0xf] %vm783, %v689
      %789 = vst.msk [vmem:[%s782 + $0x10] sm:$0xf] %vm783, %v690
      %790 = vst.msk [vmem:[%s782 + $0x14] sm:$0x1] %vm786, %v691
      %791 = vst.msk [vmem:[%s782 + $0x18] sm:$0xf] %vm783, %v692
      %792 = vst.msk [vmem:[%s782 + $0x1c] sm:$0xf] %vm783, %v693
      %793 = vst.msk [vmem:[%s782 + $0x20] sm:$0x1] %vm786, %v694
      %794 = vst.msk [vmem:[%s782 + $0x24] sm:$0xf] %vm783, %v695
      %795 = vst.msk [vmem:[%s782 + $0x28] sm:$0xf] %vm783, %v696
      %796 = vst.msk [vmem:[%s782 + $0x2c] sm:$0x1] %vm786, %v697
      %797 = vst.msk [vmem:[%s782 + $0x30] sm:$0xf] %vm783, %v698
      %798 = vst.msk [vmem:[%s782 + $0x34] sm:$0xf] %vm783, %v699
      %799 = vst.msk [vmem:[%s782 + $0x38] sm:$0x1] %vm786, %v700
      %800 = vst.msk [vmem:[%s782 + $0x3c] sm:$0xf] %vm783, %v701
      %801 = vst.msk [vmem:[%s782 + $0x40] sm:$0xf] %vm783, %v702
      %802 = vst.msk [vmem:[%s782 + $0x44] sm:$0x1] %vm786, %v703
      %803 = vst.msk [vmem:[%s782 + $0x48] sm:$0xf] %vm783, %v704
      %804 = vst.msk [vmem:[%s782 + $0x4c] sm:$0xf] %vm783, %v705
      %805 = vst.msk [vmem:[%s782 + $0x50] sm:$0x1] %vm786, %v706
      %806 = vst.msk [vmem:[%s782 + $0x54] sm:$0xf] %vm783, %v707
      %807 = vst.msk [vmem:[%s782 + $0x58] sm:$0xf] %vm783, %v708
      %808 = vst.msk [vmem:[%s782 + $0x5c] sm:$0x1] %vm786, %v709
      %809 = vst.msk [vmem:[%s782 + $0x60] sm:$0xf] %vm783, %v710
      %810 = vst.msk [vmem:[%s782 + $0x64] sm:$0xf] %vm783, %v711
      %811 = vst.msk [vmem:[%s782 + $0x68] sm:$0x1] %vm786, %v712
      %812 = vst.msk [vmem:[%s782 + $0x6c] sm:$0xf] %vm783, %v713
      %813 = vst.msk [vmem:[%s782 + $0x70] sm:$0xf] %vm783, %v714
      %814 = vst.msk [vmem:[%s782 + $0x74] sm:$0x1] %vm786, %v715
      %815 = vst.msk [vmem:[%s782 + $0x78] sm:$0xf] %vm783, %v716
      %816 = vst.msk [vmem:[%s782 + $0x7c] sm:$0xf] %vm783, %v717
      %817 = vst.msk [vmem:[%s782 + $0x80] sm:$0x1] %vm786, %v718
      %818 = vst.msk [vmem:[%s782 + $0x84] sm:$0xf] %vm783, %v719
      %819 = vst.msk [vmem:[%s782 + $0x88] sm:$0xf] %vm783, %v720
      %820 = vst.msk [vmem:[%s782 + $0x8c] sm:$0x1] %vm786, %v721
      %821 = vst.msk [vmem:[%s782 + $0x90] sm:$0xf] %vm783, %v722
      %822 = vst.msk [vmem:[%s782 + $0x94] sm:$0xf] %vm783, %v723
      %823 = vst.msk [vmem:[%s782 + $0x98] sm:$0x1] %vm786, %v724
      %824 = vst.msk [vmem:[%s782 + $0x9c] sm:$0xf] %vm783, %v725
      %825 = vst.msk [vmem:[%s782 + $0xa0] sm:$0xf] %vm783, %v726
      %826 = vst.msk [vmem:[%s782 + $0xa4] sm:$0x1] %vm786, %v727
      %827 = vst.msk [vmem:[%s782 + $0xa8] sm:$0xf] %vm783, %v728
      %828 = vst.msk [vmem:[%s782 + $0xac] sm:$0xf] %vm783, %v729
      %829 = vst.msk [vmem:[%s782 + $0xb0] sm:$0x1] %vm786, %v730
      %830 = vst.msk [vmem:[%s782 + $0xb4] sm:$0xf] %vm783, %v731
      %831 = vst.msk [vmem:[%s782 + $0xb8] sm:$0xf] %vm783, %v732
      %832 = vst.msk [vmem:[%s782 + $0xbc] sm:$0x1] %vm786, %v733
      %833 = vst.msk [vmem:[#allocation2] sm:$0xf] %vm783, 0
      %834 = vst.msk [vmem:[#allocation2 + $0x4] sm:$0xf] %vm783, 0
      %835 = vst.msk [vmem:[#allocation2 + $0x8] sm:$0x1] %vm786, 0
      %s836 = scalar_lea.vmem [#allocation2], 204
      %837 = vst.msk [vmem:[%s836] sm:$0xf] %vm783, 0
      %838 = vst.msk [vmem:[%s836 + $0x4] sm:$0xf] %vm783, 0
      %839 = vst.msk [vmem:[%s836 + $0x8] sm:$0x1] %vm786, 0
      %v840 = vld [vmem:[#allocation2] sm:$0xf]
      %v841 = vld [vmem:[#allocation2 + $0x4] sm:$0xf]
      %v842 = vld [vmem:[#allocation2 + $0xc] sm:$0xf]
      %v843 = vld [vmem:[#allocation2 + $0x10] sm:$0xf]
      %v844 = vld [vmem:[#allocation2 + $0x18] sm:$0xf]
      %v845 = vld [vmem:[#allocation2 + $0x1c] sm:$0xf]
      %v846 = vld [vmem:[#allocation2 + $0x24] sm:$0xf]
      %v847 = vld [vmem:[#allocation2 + $0x28] sm:$0xf]
      %v848 = vld [vmem:[#allocation2 + $0x30] sm:$0xf]
      %v849 = vld [vmem:[#allocation2 + $0x34] sm:$0xf]
      %v850 = vld [vmem:[#allocation2 + $0x3c] sm:$0xf]
      %v851 = vld [vmem:[#allocation2 + $0x40] sm:$0xf]
      %v852 = vld [vmem:[#allocation2 + $0x48] sm:$0xf]
      %v853 = vld [vmem:[#allocation2 + $0x4c] sm:$0xf]
      %v854 = vld [vmem:[#allocation2 + $0x54] sm:$0xf]
      %v855 = vld [vmem:[#allocation2 + $0x58] sm:$0xf]
      %v856 = vld [vmem:[#allocation2 + $0x60] sm:$0xf]
      %v857 = vld [vmem:[#allocation2 + $0x64] sm:$0xf]
      %v858 = vld [vmem:[#allocation2 + $0x6c] sm:$0xf]
      %v859 = vld [vmem:[#allocation2 + $0x70] sm:$0xf]
      %v860 = vld [vmem:[#allocation2 + $0x78] sm:$0xf]
      %v861 = vld [vmem:[#allocation2 + $0x7c] sm:$0xf]
      %v862 = vld [vmem:[#allocation2 + $0x84] sm:$0xf]
      %v863 = vld [vmem:[#allocation2 + $0x88] sm:$0xf]
      %v864 = vld [vmem:[#allocation2 + $0x90] sm:$0xf]
      %v865 = vld [vmem:[#allocation2 + $0x94] sm:$0xf]
      %v866 = vld [vmem:[#allocation2 + $0x9c] sm:$0xf]
      %v867 = vld [vmem:[#allocation2 + $0xa0] sm:$0xf]
      %v868 = vld [vmem:[#allocation2 + $0xa8] sm:$0xf]
      %v869 = vld [vmem:[#allocation2 + $0xac] sm:$0xf]
      %v870 = vld [vmem:[#allocation2 + $0xb4] sm:$0xf]
      %v871 = vld [vmem:[#allocation2 + $0xb8] sm:$0xf]
      %v872 = vld [vmem:[#allocation2 + $0x8] sm:$0x1]
      %v873 = vld [vmem:[#allocation2 + $0x14] sm:$0x1]
      %v874 = vld [vmem:[#allocation2 + $0x20] sm:$0x1]
      %v875 = vld [vmem:[#allocation2 + $0x2c] sm:$0x1]
      %v876 = vld [vmem:[#allocation2 + $0x38] sm:$0x1]
      %v877 = vld [vmem:[#allocation2 + $0x44] sm:$0x1]
      %v878 = vld [vmem:[#allocation2 + $0x50] sm:$0x1]
      %v879 = vld [vmem:[#allocation2 + $0x5c] sm:$0x1]
      %v880 = vld [vmem:[#allocation2 + $0x68] sm:$0x1]
      %v881 = vld [vmem:[#allocation2 + $0x74] sm:$0x1]
      %v882 = vld [vmem:[#allocation2 + $0x80] sm:$0x1]
      %v883 = vld [vmem:[#allocation2 + $0x8c] sm:$0x1]
      %v884 = vld [vmem:[#allocation2 + $0x98] sm:$0x1]
      %v885 = vld [vmem:[#allocation2 + $0xa4] sm:$0x1]
      %v886 = vld [vmem:[#allocation2 + $0xb0] sm:$0x1]
      %v887 = vld [vmem:[#allocation2 + $0xbc] sm:$0x1]
      %v888 = vld [vmem:[#allocation2] sm:$0xe]
      %v889 = vld [vmem:[#allocation2 + $0xc] sm:$0xe]
      %v890 = vld [vmem:[#allocation2 + $0x18] sm:$0xe]
      %v891 = vld [vmem:[#allocation2 + $0x24] sm:$0xe]
      %v892 = vld [vmem:[#allocation2 + $0x30] sm:$0xe]
      %v893 = vld [vmem:[#allocation2 + $0x3c] sm:$0xe]
      %v894 = vld [vmem:[#allocation2 + $0x48] sm:$0xe]
      %v895 = vld [vmem:[#allocation2 + $0x54] sm:$0xe]
      %v896 = vld [vmem:[#allocation2 + $0x60] sm:$0xe]
      %v897 = vld [vmem:[#allocation2 + $0x6c] sm:$0xe]
      %v898 = vld [vmem:[#allocation2 + $0x78] sm:$0xe]
      %v899 = vld [vmem:[#allocation2 + $0x84] sm:$0xe]
      %v900 = vld [vmem:[#allocation2 + $0x90] sm:$0xe]
      %v901 = vld [vmem:[#allocation2 + $0x9c] sm:$0xe]
      %v902 = vld [vmem:[#allocation2 + $0xa8] sm:$0xe]
      %v903 = vld [vmem:[#allocation2 + $0xb4] sm:$0xe]
      %v936 = vunpack.c.l.b16 %v840
      %v937 = vunpack.c.l.b16 %v841
      %v938 = vunpack.c.l.b16 %v842
      %v939 = vunpack.c.l.b16 %v843
      %v940 = vunpack.c.l.b16 %v844
      %v941 = vunpack.c.l.b16 %v845
      %v942 = vunpack.c.l.b16 %v846
      %v943 = vunpack.c.l.b16 %v847
      %v944 = vunpack.c.l.b16 %v848
      %v945 = vunpack.c.l.b16 %v849
      %v946 = vunpack.c.l.b16 %v850
      %v947 = vunpack.c.l.b16 %v851
      %v948 = vunpack.c.l.b16 %v852
      %v949 = vunpack.c.l.b16 %v853
      %v950 = vunpack.c.l.b16 %v854
      %v951 = vunpack.c.l.b16 %v855
      %v952 = vunpack.c.l.b16 %v856
      %v953 = vunpack.c.l.b16 %v857
      %v954 = vunpack.c.l.b16 %v858
      %v955 = vunpack.c.l.b16 %v859
      %v956 = vunpack.c.l.b16 %v860
      %v957 = vunpack.c.l.b16 %v861
      %v958 = vunpack.c.l.b16 %v862
      %v959 = vunpack.c.l.b16 %v863
      %v960 = vunpack.c.l.b16 %v864
      %v961 = vunpack.c.l.b16 %v865
      %v962 = vunpack.c.l.b16 %v866
      %v963 = vunpack.c.l.b16 %v867
      %v964 = vunpack.c.l.b16 %v868
      %v965 = vunpack.c.l.b16 %v869
      %v966 = vunpack.c.l.b16 %v870
      %v967 = vunpack.c.l.b16 %v871
      %v968 = vpack.c.b16 %v937, %v936
      %v969 = vpack.c.b16 %v939, %v938
      %v970 = vpack.c.b16 %v941, %v940
      %v971 = vpack.c.b16 %v943, %v942
      %v972 = vpack.c.b16 %v945, %v944
      %v973 = vpack.c.b16 %v947, %v946
      %v974 = vpack.c.b16 %v949, %v948
      %v975 = vpack.c.b16 %v951, %v950
      %v976 = vpack.c.b16 %v953, %v952
      %v977 = vpack.c.b16 %v955, %v954
      %v978 = vpack.c.b16 %v957, %v956
      %v979 = vpack.c.b16 %v959, %v958
      %v980 = vpack.c.b16 %v961, %v960
      %v981 = vpack.c.b16 %v963, %v962
      %v982 = vpack.c.b16 %v965, %v964
      %v983 = vpack.c.b16 %v967, %v966
      %v1000 = vunpack.c.l.b16 %v872
      %v1001 = vunpack.c.l.b16 %v873
      %v1002 = vunpack.c.l.b16 %v874
      %v1003 = vunpack.c.l.b16 %v875
      %v1004 = vunpack.c.l.b16 %v876
      %v1005 = vunpack.c.l.b16 %v877
      %v1006 = vunpack.c.l.b16 %v878
      %v1007 = vunpack.c.l.b16 %v879
      %v1008 = vunpack.c.l.b16 %v880
      %v1009 = vunpack.c.l.b16 %v881
      %v1010 = vunpack.c.l.b16 %v882
      %v1011 = vunpack.c.l.b16 %v883
      %v1012 = vunpack.c.l.b16 %v884
      %v1013 = vunpack.c.l.b16 %v885
      %v1014 = vunpack.c.l.b16 %v886
      %v1015 = vunpack.c.l.b16 %v887
      %v1016 = vpack.c.b16 %v1000, %v1000
      %v1017 = vpack.c.b16 %v1001, %v1001
      %v1018 = vpack.c.b16 %v1002, %v1002
      %v1019 = vpack.c.b16 %v1003, %v1003
      %v1020 = vpack.c.b16 %v1004, %v1004
      %v1021 = vpack.c.b16 %v1005, %v1005
      %v1022 = vpack.c.b16 %v1006, %v1006
      %v1023 = vpack.c.b16 %v1007, %v1007
      %v1024 = vpack.c.b16 %v1008, %v1008
      %v1025 = vpack.c.b16 %v1009, %v1009
      %v1026 = vpack.c.b16 %v1010, %v1010
      %v1027 = vpack.c.b16 %v1011, %v1011
      %v1028 = vpack.c.b16 %v1012, %v1012
      %v1029 = vpack.c.b16 %v1013, %v1013
      %v1030 = vpack.c.b16 %v1014, %v1014
      %v1031 = vpack.c.b16 %v1015, %v1015
      %vm1032 = vsmask.f32 7424
      %v1034 = vshrl.u32 %v968, 16
      %v1036 = vshll.u32 %v968, 16
      %v1038 = vrot.slane %v1036, 1
      %v1039 = vor.u32 %v1034, %v1038
      %v1041 = vshll.u32 %v1016, 16
      %v1043 = vrot.slane %v1041, 1
      %v1044 = vsel %vm1032, %v1039, %v1043
      %v1046 = vshrl.u32 %v969, 16
      %v1048 = vshll.u32 %v969, 16
      %v1050 = vrot.slane %v1048, 1
      %v1051 = vor.u32 %v1046, %v1050
      %v1053 = vshll.u32 %v1017, 16
      %v1055 = vrot.slane %v1053, 1
      %v1056 = vsel %vm1032, %v1051, %v1055
      %v1058 = vshrl.u32 %v970, 16
      %v1060 = vshll.u32 %v970, 16
      %v1062 = vrot.slane %v1060, 1
      %v1063 = vor.u32 %v1058, %v1062
      %v1065 = vshll.u32 %v1018, 16
      %v1067 = vrot.slane %v1065, 1
      %v1068 = vsel %vm1032, %v1063, %v1067
      %v1070 = vshrl.u32 %v971, 16
      %v1072 = vshll.u32 %v971, 16
      %v1074 = vrot.slane %v1072, 1
      %v1075 = vor.u32 %v1070, %v1074
      %v1077 = vshll.u32 %v1019, 16
      %v1079 = vrot.slane %v1077, 1
      %v1080 = vsel %vm1032, %v1075, %v1079
      %v1082 = vshrl.u32 %v972, 16
      %v1084 = vshll.u32 %v972, 16
      %v1086 = vrot.slane %v1084, 1
      %v1087 = vor.u32 %v1082, %v1086
      %v1089 = vshll.u32 %v1020, 16
      %v1091 = vrot.slane %v1089, 1
      %v1092 = vsel %vm1032, %v1087, %v1091
      %v1094 = vshrl.u32 %v973, 16
      %v1096 = vshll.u32 %v973, 16
      %v1098 = vrot.slane %v1096, 1
      %v1099 = vor.u32 %v1094, %v1098
      %v1101 = vshll.u32 %v1021, 16
      %v1103 = vrot.slane %v1101, 1
      %v1104 = vsel %vm1032, %v1099, %v1103
      %v1106 = vshrl.u32 %v974, 16
      %v1108 = vshll.u32 %v974, 16
      %v1110 = vrot.slane %v1108, 1
      %v1111 = vor.u32 %v1106, %v1110
      %v1113 = vshll.u32 %v1022, 16
      %v1115 = vrot.slane %v1113, 1
      %v1116 = vsel %vm1032, %v1111, %v1115
      %v1118 = vshrl.u32 %v975, 16
      %v1120 = vshll.u32 %v975, 16
      %v1122 = vrot.slane %v1120, 1
      %v1123 = vor.u32 %v1118, %v1122
      %v1125 = vshll.u32 %v1023, 16
      %v1127 = vrot.slane %v1125, 1
      %v1128 = vsel %vm1032, %v1123, %v1127
      %v1130 = vshrl.u32 %v976, 16
      %v1132 = vshll.u32 %v976, 16
      %v1134 = vrot.slane %v1132, 1
      %v1135 = vor.u32 %v1130, %v1134
      %v1137 = vshll.u32 %v1024, 16
      %v1139 = vrot.slane %v1137, 1
      %v1140 = vsel %vm1032, %v1135, %v1139
      %v1142 = vshrl.u32 %v977, 16
      %v1144 = vshll.u32 %v977, 16
      %v1146 = vrot.slane %v1144, 1
      %v1147 = vor.u32 %v1142, %v1146
      %v1149 = vshll.u32 %v1025, 16
      %v1151 = vrot.slane %v1149, 1
      %v1152 = vsel %vm1032, %v1147, %v1151
      %v1154 = vshrl.u32 %v978, 16
      %v1156 = vshll.u32 %v978, 16
      %v1158 = vrot.slane %v1156, 1
      %v1159 = vor.u32 %v1154, %v1158
      %v1161 = vshll.u32 %v1026, 16
      %v1163 = vrot.slane %v1161, 1
      %v1164 = vsel %vm1032, %v1159, %v1163
      %v1166 = vshrl.u32 %v979, 16
      %v1168 = vshll.u32 %v979, 16
      %v1170 = vrot.slane %v1168, 1
      %v1171 = vor.u32 %v1166, %v1170
      %v1173 = vshll.u32 %v1027, 16
      %v1175 = vrot.slane %v1173, 1
      %v1176 = vsel %vm1032, %v1171, %v1175
      %v1178 = vshrl.u32 %v980, 16
      %v1180 = vshll.u32 %v980, 16
      %v1182 = vrot.slane %v1180, 1
      %v1183 = vor.u32 %v1178, %v1182
      %v1185 = vshll.u32 %v1028, 16
      %v1187 = vrot.slane %v1185, 1
      %v1188 = vsel %vm1032, %v1183, %v1187
      %v1190 = vshrl.u32 %v981, 16
      %v1192 = vshll.u32 %v981, 16
      %v1194 = vrot.slane %v1192, 1
      %v1195 = vor.u32 %v1190, %v1194
      %v1197 = vshll.u32 %v1029, 16
      %v1199 = vrot.slane %v1197, 1
      %v1200 = vsel %vm1032, %v1195, %v1199
      %v1202 = vshrl.u32 %v982, 16
      %v1204 = vshll.u32 %v982, 16
      %v1206 = vrot.slane %v1204, 1
      %v1207 = vor.u32 %v1202, %v1206
      %v1209 = vshll.u32 %v1030, 16
      %v1211 = vrot.slane %v1209, 1
      %v1212 = vsel %vm1032, %v1207, %v1211
      %v1214 = vshrl.u32 %v983, 16
      %v1216 = vshll.u32 %v983, 16
      %v1218 = vrot.slane %v1216, 1
      %v1219 = vor.u32 %v1214, %v1218
      %v1221 = vshll.u32 %v1031, 16
      %v1223 = vrot.slane %v1221, 1
      %v1224 = vsel %vm1032, %v1219, %v1223
      %1225 = vrot.lane.b32.xlu0 %v1044, 4
      %v1226 = vpop.permute.xlu0 %1225
      %1227 = vrot.lane.b32.xlu0 %v1056, 4
      %v1228 = vpop.permute.xlu0 %1227
      %1229 = vrot.lane.b32.xlu0 %v1068, 4
      %v1230 = vpop.permute.xlu0 %1229
      %1231 = vrot.lane.b32.xlu0 %v1080, 4
      %v1232 = vpop.permute.xlu0 %1231
      %1233 = vrot.lane.b32.xlu0 %v1092, 4
      %v1234 = vpop.permute.xlu0 %1233
      %1235 = vrot.lane.b32.xlu0 %v1104, 4
      %v1236 = vpop.permute.xlu0 %1235
      %1237 = vrot.lane.b32.xlu0 %v1116, 4
      %v1238 = vpop.permute.xlu0 %1237
      %1239 = vrot.lane.b32.xlu0 %v1128, 4
      %v1240 = vpop.permute.xlu0 %1239
      %1241 = vrot.lane.b32.xlu0 %v1140, 4
      %v1242 = vpop.permute.xlu0 %1241
      %1243 = vrot.lane.b32.xlu0 %v1152, 4
      %v1244 = vpop.permute.xlu0 %1243
      %1245 = vrot.lane.b32.xlu0 %v1164, 4
      %v1246 = vpop.permute.xlu0 %1245
      %1247 = vrot.lane.b32.xlu0 %v1176, 4
      %v1248 = vpop.permute.xlu0 %1247
      %1249 = vrot.lane.b32.xlu0 %v1188, 4
      %v1250 = vpop.permute.xlu0 %1249
      %1251 = vrot.lane.b32.xlu0 %v1200, 4
      %v1252 = vpop.permute.xlu0 %1251
      %1253 = vrot.lane.b32.xlu0 %v1212, 4
      %v1254 = vpop.permute.xlu0 %1253
      %1255 = vrot.lane.b32.xlu0 %v1224, 4
      %v1256 = vpop.permute.xlu0 %1255
      %v1273 = vunpack.c.l.b16 %v888
      %v1274 = vunpack.c.l.b16 %v889
      %v1275 = vunpack.c.l.b16 %v890
      %v1276 = vunpack.c.l.b16 %v891
      %v1277 = vunpack.c.l.b16 %v892
      %v1278 = vunpack.c.l.b16 %v893
      %v1279 = vunpack.c.l.b16 %v894
      %v1280 = vunpack.c.l.b16 %v895
      %v1281 = vunpack.c.l.b16 %v896
      %v1282 = vunpack.c.l.b16 %v897
      %v1283 = vunpack.c.l.b16 %v898
      %v1284 = vunpack.c.l.b16 %v899
      %v1285 = vunpack.c.l.b16 %v900
      %v1286 = vunpack.c.l.b16 %v901
      %v1287 = vunpack.c.l.b16 %v902
      %v1288 = vunpack.c.l.b16 %v903
      %v1289 = vpack.c.b16 %v937, %v1273
      %v1290 = vpack.c.b16 %v939, %v1274
      %v1291 = vpack.c.b16 %v941, %v1275
      %v1292 = vpack.c.b16 %v943, %v1276
      %v1293 = vpack.c.b16 %v945, %v1277
      %v1294 = vpack.c.b16 %v947, %v1278
      %v1295 = vpack.c.b16 %v949, %v1279
      %v1296 = vpack.c.b16 %v951, %v1280
      %v1297 = vpack.c.b16 %v953, %v1281
      %v1298 = vpack.c.b16 %v955, %v1282
      %v1299 = vpack.c.b16 %v957, %v1283
      %v1300 = vpack.c.b16 %v959, %v1284
      %v1301 = vpack.c.b16 %v961, %v1285
      %v1302 = vpack.c.b16 %v963, %v1286
      %v1303 = vpack.c.b16 %v965, %v1287
      %v1304 = vpack.c.b16 %v967, %v1288
      %vm1305 = vcmask 1046528
      %v1306 = vrot.slane %v1289, 1
      %v1307 = vrot.slane %v1016, 1
      %v1308 = vsel %vm1305, %v1306, %v1307
      %v1309 = vrot.slane %v1290, 1
      %v1310 = vrot.slane %v1017, 1
      %v1311 = vsel %vm1305, %v1309, %v1310
      %v1312 = vrot.slane %v1291, 1
      %v1313 = vrot.slane %v1018, 1
      %v1314 = vsel %vm1305, %v1312, %v1313
      %v1315 = vrot.slane %v1292, 1
      %v1316 = vrot.slane %v1019, 1
      %v1317 = vsel %vm1305, %v1315, %v1316
      %v1318 = vrot.slane %v1293, 1
      %v1319 = vrot.slane %v1020, 1
      %v1320 = vsel %vm1305, %v1318, %v1319
      %v1321 = vrot.slane %v1294, 1
      %v1322 = vrot.slane %v1021, 1
      %v1323 = vsel %vm1305, %v1321, %v1322
      %v1324 = vrot.slane %v1295, 1
      %v1325 = vrot.slane %v1022, 1
      %v1326 = vsel %vm1305, %v1324, %v1325
      %v1327 = vrot.slane %v1296, 1
      %v1328 = vrot.slane %v1023, 1
      %v1329 = vsel %vm1305, %v1327, %v1328
      %v1330 = vrot.slane %v1297, 1
      %v1331 = vrot.slane %v1024, 1
      %v1332 = vsel %vm1305, %v1330, %v1331
      %v1333 = vrot.slane %v1298, 1
      %v1334 = vrot.slane %v1025, 1
      %v1335 = vsel %vm1305, %v1333, %v1334
      %v1336 = vrot.slane %v1299, 1
      %v1337 = vrot.slane %v1026, 1
      %v1338 = vsel %vm1305, %v1336, %v1337
      %v1339 = vrot.slane %v1300, 1
      %v1340 = vrot.slane %v1027, 1
      %v1341 = vsel %vm1305, %v1339, %v1340
      %v1342 = vrot.slane %v1301, 1
      %v1343 = vrot.slane %v1028, 1
      %v1344 = vsel %vm1305, %v1342, %v1343
      %v1345 = vrot.slane %v1302, 1
      %v1346 = vrot.slane %v1029, 1
      %v1347 = vsel %vm1305, %v1345, %v1346
      %v1348 = vrot.slane %v1303, 1
      %v1349 = vrot.slane %v1030, 1
      %v1350 = vsel %vm1305, %v1348, %v1349
      %v1351 = vrot.slane %v1304, 1
      %v1352 = vrot.slane %v1031, 1
      %v1353 = vsel %vm1305, %v1351, %v1352
      %1354 = vrot.lane.b32.xlu0 %v1308, 8
      %v1355 = vpop.permute.xlu0 %1354
      %1356 = vrot.lane.b32.xlu0 %v1311, 8
      %v1357 = vpop.permute.xlu0 %1356
      %1358 = vrot.lane.b32.xlu0 %v1314, 8
      %v1359 = vpop.permute.xlu0 %1358
      %1360 = vrot.lane.b32.xlu0 %v1317, 8
      %v1361 = vpop.permute.xlu0 %1360
      %1362 = vrot.lane.b32.xlu0 %v1320, 8
      %v1363 = vpop.permute.xlu0 %1362
      %1364 = vrot.lane.b32.xlu0 %v1323, 8
      %v1365 = vpop.permute.xlu0 %1364
      %1366 = vrot.lane.b32.xlu0 %v1326, 8
      %v1367 = vpop.permute.xlu0 %1366
      %1368 = vrot.lane.b32.xlu0 %v1329, 8
      %v1369 = vpop.permute.xlu0 %1368
      %1370 = vrot.lane.b32.xlu0 %v1332, 8
      %v1371 = vpop.permute.xlu0 %1370
      %1372 = vrot.lane.b32.xlu0 %v1335, 8
      %v1373 = vpop.permute.xlu0 %1372
      %1374 = vrot.lane.b32.xlu0 %v1338, 8
      %v1375 = vpop.permute.xlu0 %1374
      %1376 = vrot.lane.b32.xlu0 %v1341, 8
      %v1377 = vpop.permute.xlu0 %1376
      %1378 = vrot.lane.b32.xlu0 %v1344, 8
      %v1379 = vpop.permute.xlu0 %1378
      %1380 = vrot.lane.b32.xlu0 %v1347, 8
      %v1381 = vpop.permute.xlu0 %1380
      %1382 = vrot.lane.b32.xlu0 %v1350, 8
      %v1383 = vpop.permute.xlu0 %1382
      %1384 = vrot.lane.b32.xlu0 %v1353, 8
      %v1385 = vpop.permute.xlu0 %1384
      %vm1386 = vcmask 31744
      %v1388 = vsel %vm1386, %v968, %v1226
      %v1390 = vsel %vm1386, %v969, %v1228
      %v1392 = vsel %vm1386, %v970, %v1230
      %v1394 = vsel %vm1386, %v971, %v1232
      %v1396 = vsel %vm1386, %v972, %v1234
      %v1398 = vsel %vm1386, %v973, %v1236
      %v1400 = vsel %vm1386, %v974, %v1238
      %v1402 = vsel %vm1386, %v975, %v1240
      %v1404 = vsel %vm1386, %v976, %v1242
      %v1406 = vsel %vm1386, %v977, %v1244
      %v1408 = vsel %vm1386, %v978, %v1246
      %v1410 = vsel %vm1386, %v979, %v1248
      %v1412 = vsel %vm1386, %v980, %v1250
      %v1414 = vsel %vm1386, %v981, %v1252
      %v1416 = vsel %vm1386, %v982, %v1254
      %v1418 = vsel %vm1386, %v983, %v1256
      %vm1419 = vcmask 64512
      %v1421 = vsel %vm1419, %v1388, %v1355
      %v1423 = vsel %vm1419, %v1390, %v1357
      %v1425 = vsel %vm1419, %v1392, %v1359
      %v1427 = vsel %vm1419, %v1394, %v1361
      %v1429 = vsel %vm1419, %v1396, %v1363
      %v1431 = vsel %vm1419, %v1398, %v1365
      %v1433 = vsel %vm1419, %v1400, %v1367
      %v1435 = vsel %vm1419, %v1402, %v1369
      %v1437 = vsel %vm1419, %v1404, %v1371
      %v1439 = vsel %vm1419, %v1406, %v1373
      %v1441 = vsel %vm1419, %v1408, %v1375
      %v1443 = vsel %vm1419, %v1410, %v1377
      %v1445 = vsel %vm1419, %v1412, %v1379
      %v1447 = vsel %vm1419, %v1414, %v1381
      %v1449 = vsel %vm1419, %v1416, %v1383
      %v1451 = vsel %vm1419, %v1418, %v1385
      %v1452 = vld [vmem:[%s3] sm:$0xf]
      %v1453 = vld [vmem:[%s3 + $0x4] sm:$0x3]
      %v1456 = vunpack.c.l.b16 %v1452
      %v1457 = vunpack.c.l.b16 %v1453
      %v1458 = vpack.c.b16 %v1457, %v1456
      %vm1459 = vcmask 97280
      %v1460 = vsel %vm1459, %v1421, 0
      %v1462 = vsel %vm1459, %v1423, 0
      %v1464 = vsel %vm1459, %v1425, 0
      %v1466 = vsel %vm1459, %v1427, 0
      %v1468 = vsel %vm1459, %v1429, 0
      %v1470 = vsel %vm1459, %v1431, 0
      %v1472 = vsel %vm1459, %v1433, 0
      %v1474 = vsel %vm1459, %v1435, 0
      %v1476 = vsel %vm1459, %v1437, 0
      %v1478 = vsel %vm1459, %v1439, 0
      %v1480 = vsel %vm1459, %v1441, 0
      %v1482 = vsel %vm1459, %v1443, 0
      %v1484 = vsel %vm1459, %v1445, 0
      %v1486 = vsel %vm1459, %v1447, 0
      %v1488 = vsel %vm1459, %v1449, 0
      %v1490 = vsel %vm1459, %v1451, 0
      %vm1492 = vcmask 1045504
      %v1494 = vsel %vm1492, %v1458, 0
      %1496 = vmatprep.subr.bf16.mxu0 0
      %1497 = vmatpush1.bf16.msra.mxu0 0
      %1498 = vmatprep.subr.bf16.mxu0 0
      %1499 = vmatpush1.bf16.msra.mxu0 0
      %1500 = vmatprep.subr.bf16.mxu0 0
      %1501 = vmatpush1.bf16.msra.mxu0 0
      %1502 = vmatprep.subr.bf16.mxu0 0
      %1503 = vmatpush1.bf16.msra.mxu0 0
      %1504 = vmatprep.subr.bf16.mxu0 0
      %1505 = vmatpush1.bf16.msra.mxu0 0
      %1506 = vmatprep.subr.bf16.mxu0 0
      %1507 = vmatpush1.bf16.msra.mxu0 0
      %1508 = vmatprep.subr.bf16.mxu0 0
      %1509 = vmatpush1.bf16.msra.mxu0 0
      %1510 = vmatprep.subr.bf16.mxu0 0
      %1511 = vmatpush1.bf16.msra.mxu0 %v1494
      %1512 = vmatprep.subr.bf16.mxu0 0
      %1513 = vmatpush2.bf16.msra.mxu0 0
      %1514 = vmatprep.subr.bf16.mxu0 0
      %1515 = vmatpush2.bf16.msra.mxu0 0
      %1516 = vmatprep.subr.bf16.mxu0 0
      %1517 = vmatpush2.bf16.msra.mxu0 0
      %1518 = vmatprep.subr.bf16.mxu0 0
      %1519 = vmatpush2.bf16.msra.mxu0 0
      %1520 = vmatprep.subr.bf16.mxu0 0
      %1521 = vmatpush2.bf16.msra.mxu0 0
      %1522 = vmatprep.subr.bf16.mxu0 0
      %1523 = vmatpush2.bf16.msra.mxu0 0
      %1524 = vmatprep.subr.bf16.mxu0 0
      %1525 = vmatpush2.bf16.msra.mxu0 0
      %1526 = vmatprep.subr.bf16.mxu0 0
      %1527 = vmatpush2.bf16.msra.mxu0 0
      %1528 = vmatprep.mubr.bf16.mxu0 0
      %1529 = vmatmul.mubr.bf16.gmra.mxu0 %v1460
      %v1530 = vpop.f32.mrf.mxu0
      %v1531 = vadd.f32 0.0, %v1530
      %v1532 = vpop.f32.mrf.mxu0
      %v1533 = vpop.f32.mrf.mxu0
      %v1534 = vadd.f32 0.0, %v1533
      %v1535 = vpop.f32.mrf.mxu0
      %1536 = vmatprep.mubr.bf16.mxu0 0
      %1537 = vmatmul.mubr.bf16.gmra.mxu0 %v1462
      %v1538 = vpop.f32.mrf.mxu0
      %v1539 = vadd.f32 0.0, %v1538
      %v1540 = vpop.f32.mrf.mxu0
      %v1541 = vpop.f32.mrf.mxu0
      %v1542 = vadd.f32 0.0, %v1541
      %v1543 = vpop.f32.mrf.mxu0
      %1544 = vmatprep.mubr.bf16.mxu0 0
      %1545 = vmatmul.mubr.bf16.gmra.mxu0 %v1464
      %v1546 = vpop.f32.mrf.mxu0
      %v1547 = vadd.f32 0.0, %v1546
      %v1548 = vpop.f32.mrf.mxu0
      %v1549 = vpop.f32.mrf.mxu0
      %v1550 = vadd.f32 0.0, %v1549
      %v1551 = vpop.f32.mrf.mxu0
      %1552 = vmatprep.mubr.bf16.mxu0 0
      %1553 = vmatmul.mubr.bf16.gmra.mxu0 %v1466
      %v1554 = vpop.f32.mrf.mxu0
      %v1555 = vadd.f32 0.0, %v1554
      %v1556 = vpop.f32.mrf.mxu0
      %v1557 = vpop.f32.mrf.mxu0
      %v1558 = vadd.f32 0.0, %v1557
      %v1559 = vpop.f32.mrf.mxu0
      %1560 = vmatprep.mubr.bf16.mxu0 0
      %1561 = vmatmul.mubr.bf16.gmra.mxu0 %v1468
      %v1562 = vpop.f32.mrf.mxu0
      %v1563 = vadd.f32 0.0, %v1562
      %v1564 = vpop.f32.mrf.mxu0
      %v1565 = vpop.f32.mrf.mxu0
      %v1566 = vadd.f32 0.0, %v1565
      %v1567 = vpop.f32.mrf.mxu0
      %1568 = vmatprep.mubr.bf16.mxu0 0
      %1569 = vmatmul.mubr.bf16.gmra.mxu0 %v1470
      %v1570 = vpop.f32.mrf.mxu0
      %v1571 = vadd.f32 0.0, %v1570
      %v1572 = vpop.f32.mrf.mxu0
      %v1573 = vpop.f32.mrf.mxu0
      %v1574 = vadd.f32 0.0, %v1573
      %v1575 = vpop.f32.mrf.mxu0
      %1576 = vmatprep.mubr.bf16.mxu0 0
      %1577 = vmatmul.mubr.bf16.gmra.mxu0 %v1472
      %v1578 = vpop.f32.mrf.mxu0
      %v1579 = vadd.f32 0.0, %v1578
      %v1580 = vpop.f32.mrf.mxu0
      %v1581 = vpop.f32.mrf.mxu0
      %v1582 = vadd.f32 0.0, %v1581
      %v1583 = vpop.f32.mrf.mxu0
      %1584 = vmatprep.mubr.bf16.mxu0 0
      %1585 = vmatmul.mubr.bf16.gmra.mxu0 %v1474
      %v1586 = vpop.f32.mrf.mxu0
      %v1587 = vadd.f32 0.0, %v1586
      %v1588 = vpop.f32.mrf.mxu0
      %v1589 = vpop.f32.mrf.mxu0
      %v1590 = vadd.f32 0.0, %v1589
      %v1591 = vpop.f32.mrf.mxu0
      %1592 = vmatprep.mubr.bf16.mxu0 0
      %1593 = vmatmul.mubr.bf16.gmra.mxu0 %v1476
      %v1594 = vpop.f32.mrf.mxu0
      %v1595 = vadd.f32 0.0, %v1594
      %v1596 = vpop.f32.mrf.mxu0
      %v1597 = vpop.f32.mrf.mxu0
      %v1598 = vadd.f32 0.0, %v1597
      %v1599 = vpop.f32.mrf.mxu0
      %1600 = vmatprep.mubr.bf16.mxu0 0
      %1601 = vmatmul.mubr.bf16.gmra.mxu0 %v1478
      %v1602 = vpop.f32.mrf.mxu0
      %v1603 = vadd.f32 0.0, %v1602
      %v1604 = vpop.f32.mrf.mxu0
      %v1605 = vpop.f32.mrf.mxu0
      %v1606 = vadd.f32 0.0, %v1605
      %v1607 = vpop.f32.mrf.mxu0
      %1608 = vmatprep.mubr.bf16.mxu0 0
      %1609 = vmatmul.mubr.bf16.gmra.mxu0 %v1480
      %v1610 = vpop.f32.mrf.mxu0
      %v1611 = vadd.f32 0.0, %v1610
      %v1612 = vpop.f32.mrf.mxu0
      %v1613 = vpop.f32.mrf.mxu0
      %v1614 = vadd.f32 0.0, %v1613
      %v1615 = vpop.f32.mrf.mxu0
      %1616 = vmatprep.mubr.bf16.mxu0 0
      %1617 = vmatmul.mubr.bf16.gmra.mxu0 %v1482
      %v1618 = vpop.f32.mrf.mxu0
      %v1619 = vadd.f32 0.0, %v1618
      %v1620 = vpop.f32.mrf.mxu0
      %v1621 = vpop.f32.mrf.mxu0
      %v1622 = vadd.f32 0.0, %v1621
      %v1623 = vpop.f32.mrf.mxu0
      %1624 = vmatprep.mubr.bf16.mxu0 0
      %1625 = vmatmul.mubr.bf16.gmra.mxu0 %v1484
      %v1626 = vpop.f32.mrf.mxu0
      %v1627 = vadd.f32 0.0, %v1626
      %v1628 = vpop.f32.mrf.mxu0
      %v1629 = vpop.f32.mrf.mxu0
      %v1630 = vadd.f32 0.0, %v1629
      %v1631 = vpop.f32.mrf.mxu0
      %1632 = vmatprep.mubr.bf16.mxu0 0
      %1633 = vmatmul.mubr.bf16.gmra.mxu0 %v1486
      %v1634 = vpop.f32.mrf.mxu0
      %v1635 = vadd.f32 0.0, %v1634
      %v1636 = vpop.f32.mrf.mxu0
      %v1637 = vpop.f32.mrf.mxu0
      %v1638 = vadd.f32 0.0, %v1637
      %v1639 = vpop.f32.mrf.mxu0
      %1640 = vmatprep.mubr.bf16.mxu0 0
      %1641 = vmatmul.mubr.bf16.gmra.mxu0 %v1488
      %v1642 = vpop.f32.mrf.mxu0
      %v1643 = vadd.f32 0.0, %v1642
      %v1644 = vpop.f32.mrf.mxu0
      %v1645 = vpop.f32.mrf.mxu0
      %v1646 = vadd.f32 0.0, %v1645
      %v1647 = vpop.f32.mrf.mxu0
      %1648 = vmatprep.mubr.bf16.mxu0 0
      %1649 = vmatmul.mubr.bf16.gmra.mxu0 %v1490
      %v1650 = vpop.f32.mrf.mxu0
      %v1651 = vadd.f32 0.0, %v1650
      %v1652 = vpop.f32.mrf.mxu0
      %v1653 = vpop.f32.mrf.mxu0
      %v1654 = vadd.f32 0.0, %v1653
      %v1655 = vpop.f32.mrf.mxu0
      %1656 = vdwg.mxu0
      %1657 = vst.msk [vmem:[#allocation3] sm:$0xff] %vm1386, %v1531
      %1658 = vst.msk [vmem:[#allocation3 + $0x8] sm:$0xff] %vm1386, %v1534
      %1659 = vst.msk [vmem:[#allocation3 + $0x10] sm:$0xff] %vm1386, %v1539
      %1660 = vst.msk [vmem:[#allocation3 + $0x18] sm:$0xff] %vm1386, %v1542
      %1661 = vst.msk [vmem:[#allocation3 + $0x20] sm:$0xff] %vm1386, %v1547
      %1662 = vst.msk [vmem:[#allocation3 + $0x28] sm:$0xff] %vm1386, %v1550
      %1663 = vst.msk [vmem:[#allocation3 + $0x30] sm:$0xff] %vm1386, %v1555
      %1664 = vst.msk [vmem:[#allocation3 + $0x38] sm:$0xff] %vm1386, %v1558
      %1665 = vst.msk [vmem:[#allocation3 + $0x40] sm:$0xff] %vm1386, %v1563
      %1666 = vst.msk [vmem:[#allocation3 + $0x48] sm:$0xff] %vm1386, %v1566
      %1667 = vst.msk [vmem:[#allocation3 + $0x50] sm:$0xff] %vm1386, %v1571
      %1668 = vst.msk [vmem:[#allocation3 + $0x58] sm:$0xff] %vm1386, %v1574
      %1669 = vst.msk [vmem:[#allocation3 + $0x60] sm:$0xff] %vm1386, %v1579
      %1670 = vst.msk [vmem:[#allocation3 + $0x68] sm:$0xff] %vm1386, %v1582
      %1671 = vst.msk [vmem:[#allocation3 + $0x70] sm:$0xff] %vm1386, %v1587
      %1672 = vst.msk [vmem:[#allocation3 + $0x78] sm:$0xff] %vm1386, %v1590
      %1673 = vst.msk [vmem:[#allocation3 + $0x80] sm:$0xff] %vm1386, %v1595
      %1674 = vst.msk [vmem:[#allocation3 + $0x88] sm:$0xff] %vm1386, %v1598
      %1675 = vst.msk [vmem:[#allocation3 + $0x90] sm:$0xff] %vm1386, %v1603
      %1676 = vst.msk [vmem:[#allocation3 + $0x98] sm:$0xff] %vm1386, %v1606
      %1677 = vst.msk [vmem:[#allocation3 + $0xa0] sm:$0xff] %vm1386, %v1611
      %1678 = vst.msk [vmem:[#allocation3 + $0xa8] sm:$0xff] %vm1386, %v1614
      %1679 = vst.msk [vmem:[#allocation3 + $0xb0] sm:$0xff] %vm1386, %v1619
      %1680 = vst.msk [vmem:[#allocation3 + $0xb8] sm:$0xff] %vm1386, %v1622
      %1681 = vst.msk [vmem:[#allocation3 + $0xc0] sm:$0xff] %vm1386, %v1627
      %1682 = vst.msk [vmem:[#allocation3 + $0xc8] sm:$0xff] %vm1386, %v1630
      %1683 = vst.msk [vmem:[#allocation3 + $0xd0] sm:$0xff] %vm1386, %v1635
      %1684 = vst.msk [vmem:[#allocation3 + $0xd8] sm:$0xff] %vm1386, %v1638
      %1685 = vst.msk [vmem:[#allocation3 + $0xe0] sm:$0xff] %vm1386, %v1643
      %1686 = vst.msk [vmem:[#allocation3 + $0xe8] sm:$0xff] %vm1386, %v1646
      %1687 = vst.msk [vmem:[#allocation3 + $0xf0] sm:$0xff] %vm1386, %v1651
      %1688 = vst.msk [vmem:[#allocation3 + $0xf8] sm:$0xff] %vm1386, %v1654
      %v1689 = vld [vmem:[%s782] sm:$0xf]
      %v1690 = vld [vmem:[%s782 + $0x4] sm:$0xf]
      %v1691 = vld [vmem:[%s782 + $0xc] sm:$0xf]
      %v1692 = vld [vmem:[%s782 + $0x10] sm:$0xf]
      %v1693 = vld [vmem:[%s782 + $0x18] sm:$0xf]
      %v1694 = vld [vmem:[%s782 + $0x1c] sm:$0xf]
      %v1695 = vld [vmem:[%s782 + $0x24] sm:$0xf]
      %v1696 = vld [vmem:[%s782 + $0x28] sm:$0xf]
      %v1697 = vld [vmem:[%s782 + $0x30] sm:$0xf]
      %v1698 = vld [vmem:[%s782 + $0x34] sm:$0xf]
      %v1699 = vld [vmem:[%s782 + $0x3c] sm:$0xf]
      %v1700 = vld [vmem:[%s782 + $0x40] sm:$0xf]
      %v1701 = vld [vmem:[%s782 + $0x48] sm:$0xf]
      %v1702 = vld [vmem:[%s782 + $0x4c] sm:$0xf]
      %v1703 = vld [vmem:[%s782 + $0x54] sm:$0xf]
      %v1704 = vld [vmem:[%s782 + $0x58] sm:$0xf]
      %v1705 = vld [vmem:[%s782 + $0x60] sm:$0xf]
      %v1706 = vld [vmem:[%s782 + $0x64] sm:$0xf]
      %v1707 = vld [vmem:[%s782 + $0x6c] sm:$0xf]
      %v1708 = vld [vmem:[%s782 + $0x70] sm:$0xf]
      %v1709 = vld [vmem:[%s782 + $0x78] sm:$0xf]
      %v1710 = vld [vmem:[%s782 + $0x7c] sm:$0xf]
      %v1711 = vld [vmem:[%s782 + $0x84] sm:$0xf]
      %v1712 = vld [vmem:[%s782 + $0x88] sm:$0xf]
      %v1713 = vld [vmem:[%s782 + $0x90] sm:$0xf]
      %v1714 = vld [vmem:[%s782 + $0x94] sm:$0xf]
      %v1715 = vld [vmem:[%s782 + $0x9c] sm:$0xf]
      %v1716 = vld [vmem:[%s782 + $0xa0] sm:$0xf]
      %v1717 = vld [vmem:[%s782 + $0xa8] sm:$0xf]
      %v1718 = vld [vmem:[%s782 + $0xac] sm:$0xf]
      %v1719 = vld [vmem:[%s782 + $0xb4] sm:$0xf]
      %v1720 = vld [vmem:[%s782 + $0xb8] sm:$0xf]
      %v1721 = vld [vmem:[%s782 + $0x8] sm:$0x1]
      %v1722 = vld [vmem:[%s782 + $0x14] sm:$0x1]
      %v1723 = vld [vmem:[%s782 + $0x20] sm:$0x1]
      %v1724 = vld [vmem:[%s782 + $0x2c] sm:$0x1]
      %v1725 = vld [vmem:[%s782 + $0x38] sm:$0x1]
      %v1726 = vld [vmem:[%s782 + $0x44] sm:$0x1]
      %v1727 = vld [vmem:[%s782 + $0x50] sm:$0x1]
      %v1728 = vld [vmem:[%s782 + $0x5c] sm:$0x1]
      %v1729 = vld [vmem:[%s782 + $0x68] sm:$0x1]
      %v1730 = vld [vmem:[%s782 + $0x74] sm:$0x1]
      %v1731 = vld [vmem:[%s782 + $0x80] sm:$0x1]
      %v1732 = vld [vmem:[%s782 + $0x8c] sm:$0x1]
      %v1733 = vld [vmem:[%s782 + $0x98] sm:$0x1]
      %v1734 = vld [vmem:[%s782 + $0xa4] sm:$0x1]
      %v1735 = vld [vmem:[%s782 + $0xb0] sm:$0x1]
      %v1736 = vld [vmem:[%s782 + $0xbc] sm:$0x1]
      %v1737 = vld [vmem:[%s782] sm:$0xe]
      %v1738 = vld [vmem:[%s782 + $0xc] sm:$0xe]
      %v1739 = vld [vmem:[%s782 + $0x18] sm:$0xe]
      %v1740 = vld [vmem:[%s782 + $0x24] sm:$0xe]
      %v1741 = vld [vmem:[%s782 + $0x30] sm:$0xe]
      %v1742 = vld [vmem:[%s782 + $0x3c] sm:$0xe]
      %v1743 = vld [vmem:[%s782 + $0x48] sm:$0xe]
      %v1744 = vld [vmem:[%s782 + $0x54] sm:$0xe]
      %v1745 = vld [vmem:[%s782 + $0x60] sm:$0xe]
      %v1746 = vld [vmem:[%s782 + $0x6c] sm:$0xe]
      %v1747 = vld [vmem:[%s782 + $0x78] sm:$0xe]
      %v1748 = vld [vmem:[%s782 + $0x84] sm:$0xe]
      %v1749 = vld [vmem:[%s782 + $0x90] sm:$0xe]
      %v1750 = vld [vmem:[%s782 + $0x9c] sm:$0xe]
      %v1751 = vld [vmem:[%s782 + $0xa8] sm:$0xe]
      %v1752 = vld [vmem:[%s782 + $0xb4] sm:$0xe]
      %v1785 = vunpack.c.l.b16 %v1689
      %v1786 = vunpack.c.l.b16 %v1690
      %v1787 = vunpack.c.l.b16 %v1691
      %v1788 = vunpack.c.l.b16 %v1692
      %v1789 = vunpack.c.l.b16 %v1693
      %v1790 = vunpack.c.l.b16 %v1694
      %v1791 = vunpack.c.l.b16 %v1695
      %v1792 = vunpack.c.l.b16 %v1696
      %v1793 = vunpack.c.l.b16 %v1697
      %v1794 = vunpack.c.l.b16 %v1698
      %v1795 = vunpack.c.l.b16 %v1699
      %v1796 = vunpack.c.l.b16 %v1700
      %v1797 = vunpack.c.l.b16 %v1701
      %v1798 = vunpack.c.l.b16 %v1702
      %v1799 = vunpack.c.l.b16 %v1703
      %v1800 = vunpack.c.l.b16 %v1704
      %v1801 = vunpack.c.l.b16 %v1705
      %v1802 = vunpack.c.l.b16 %v1706
      %v1803 = vunpack.c.l.b16 %v1707
      %v1804 = vunpack.c.l.b16 %v1708
      %v1805 = vunpack.c.l.b16 %v1709
      %v1806 = vunpack.c.l.b16 %v1710
      %v1807 = vunpack.c.l.b16 %v1711
      %v1808 = vunpack.c.l.b16 %v1712
      %v1809 = vunpack.c.l.b16 %v1713
      %v1810 = vunpack.c.l.b16 %v1714
      %v1811 = vunpack.c.l.b16 %v1715
      %v1812 = vunpack.c.l.b16 %v1716
      %v1813 = vunpack.c.l.b16 %v1717
      %v1814 = vunpack.c.l.b16 %v1718
      %v1815 = vunpack.c.l.b16 %v1719
      %v1816 = vunpack.c.l.b16 %v1720
      %v1817 = vpack.c.b16 %v1786, %v1785
      %v1818 = vpack.c.b16 %v1788, %v1787
      %v1819 = vpack.c.b16 %v1790, %v1789
      %v1820 = vpack.c.b16 %v1792, %v1791
      %v1821 = vpack.c.b16 %v1794, %v1793
      %v1822 = vpack.c.b16 %v1796, %v1795
      %v1823 = vpack.c.b16 %v1798, %v1797
      %v1824 = vpack.c.b16 %v1800, %v1799
      %v1825 = vpack.c.b16 %v1802, %v1801
      %v1826 = vpack.c.b16 %v1804, %v1803
      %v1827 = vpack.c.b16 %v1806, %v1805
      %v1828 = vpack.c.b16 %v1808, %v1807
      %v1829 = vpack.c.b16 %v1810, %v1809
      %v1830 = vpack.c.b16 %v1812, %v1811
      %v1831 = vpack.c.b16 %v1814, %v1813
      %v1832 = vpack.c.b16 %v1816, %v1815
      %v1849 = vunpack.c.l.b16 %v1721
      %v1850 = vunpack.c.l.b16 %v1722
      %v1851 = vunpack.c.l.b16 %v1723
      %v1852 = vunpack.c.l.b16 %v1724
      %v1853 = vunpack.c.l.b16 %v1725
      %v1854 = vunpack.c.l.b16 %v1726
      %v1855 = vunpack.c.l.b16 %v1727
      %v1856 = vunpack.c.l.b16 %v1728
      %v1857 = vunpack.c.l.b16 %v1729
      %v1858 = vunpack.c.l.b16 %v1730
      %v1859 = vunpack.c.l.b16 %v1731
      %v1860 = vunpack.c.l.b16 %v1732
      %v1861 = vunpack.c.l.b16 %v1733
      %v1862 = vunpack.c.l.b16 %v1734
      %v1863 = vunpack.c.l.b16 %v1735
      %v1864 = vunpack.c.l.b16 %v1736
      %v1865 = vpack.c.b16 %v1849, %v1849
      %v1866 = vpack.c.b16 %v1850, %v1850
      %v1867 = vpack.c.b16 %v1851, %v1851
      %v1868 = vpack.c.b16 %v1852, %v1852
      %v1869 = vpack.c.b16 %v1853, %v1853
      %v1870 = vpack.c.b16 %v1854, %v1854
      %v1871 = vpack.c.b16 %v1855, %v1855
      %v1872 = vpack.c.b16 %v1856, %v1856
      %v1873 = vpack.c.b16 %v1857, %v1857
      %v1874 = vpack.c.b16 %v1858, %v1858
      %v1875 = vpack.c.b16 %v1859, %v1859
      %v1876 = vpack.c.b16 %v1860, %v1860
      %v1877 = vpack.c.b16 %v1861, %v1861
      %v1878 = vpack.c.b16 %v1862, %v1862
      %v1879 = vpack.c.b16 %v1863, %v1863
      %v1880 = vpack.c.b16 %v1864, %v1864
      %v1882 = vshrl.u32 %v1817, 16
      %v1884 = vshll.u32 %v1817, 16
      %v1886 = vrot.slane %v1884, 1
      %v1887 = vor.u32 %v1882, %v1886
      %v1889 = vshll.u32 %v1865, 16
      %v1891 = vrot.slane %v1889, 1
      %v1892 = vsel %vm1032, %v1887, %v1891
      %v1894 = vshrl.u32 %v1818, 16
      %v1896 = vshll.u32 %v1818, 16
      %v1898 = vrot.slane %v1896, 1
      %v1899 = vor.u32 %v1894, %v1898
      %v1901 = vshll.u32 %v1866, 16
      %v1903 = vrot.slane %v1901, 1
      %v1904 = vsel %vm1032, %v1899, %v1903
      %v1906 = vshrl.u32 %v1819, 16
      %v1908 = vshll.u32 %v1819, 16
      %v1910 = vrot.slane %v1908, 1
      %v1911 = vor.u32 %v1906, %v1910
      %v1913 = vshll.u32 %v1867, 16
      %v1915 = vrot.slane %v1913, 1
      %v1916 = vsel %vm1032, %v1911, %v1915
      %v1918 = vshrl.u32 %v1820, 16
      %v1920 = vshll.u32 %v1820, 16
      %v1922 = vrot.slane %v1920, 1
      %v1923 = vor.u32 %v1918, %v1922
      %v1925 = vshll.u32 %v1868, 16
      %v1927 = vrot.slane %v1925, 1
      %v1928 = vsel %vm1032, %v1923, %v1927
      %v1930 = vshrl.u32 %v1821, 16
      %v1932 = vshll.u32 %v1821, 16
      %v1934 = vrot.slane %v1932, 1
      %v1935 = vor.u32 %v1930, %v1934
      %v1937 = vshll.u32 %v1869, 16
      %v1939 = vrot.slane %v1937, 1
      %v1940 = vsel %vm1032, %v1935, %v1939
      %v1942 = vshrl.u32 %v1822, 16
      %v1944 = vshll.u32 %v1822, 16
      %v1946 = vrot.slane %v1944, 1
      %v1947 = vor.u32 %v1942, %v1946
      %v1949 = vshll.u32 %v1870, 16
      %v1951 = vrot.slane %v1949, 1
      %v1952 = vsel %vm1032, %v1947, %v1951
      %v1954 = vshrl.u32 %v1823, 16
      %v1956 = vshll.u32 %v1823, 16
      %v1958 = vrot.slane %v1956, 1
      %v1959 = vor.u32 %v1954, %v1958
      %v1961 = vshll.u32 %v1871, 16
      %v1963 = vrot.slane %v1961, 1
      %v1964 = vsel %vm1032, %v1959, %v1963
      %v1966 = vshrl.u32 %v1824, 16
      %v1968 = vshll.u32 %v1824, 16
      %v1970 = vrot.slane %v1968, 1
      %v1971 = vor.u32 %v1966, %v1970
      %v1973 = vshll.u32 %v1872, 16
      %v1975 = vrot.slane %v1973, 1
      %v1976 = vsel %vm1032, %v1971, %v1975
      %v1978 = vshrl.u32 %v1825, 16
      %v1980 = vshll.u32 %v1825, 16
      %v1982 = vrot.slane %v1980, 1
      %v1983 = vor.u32 %v1978, %v1982
      %v1985 = vshll.u32 %v1873, 16
      %v1987 = vrot.slane %v1985, 1
      %v1988 = vsel %vm1032, %v1983, %v1987
      %v1990 = vshrl.u32 %v1826, 16
      %v1992 = vshll.u32 %v1826, 16
      %v1994 = vrot.slane %v1992, 1
      %v1995 = vor.u32 %v1990, %v1994
      %v1997 = vshll.u32 %v1874, 16
      %v1999 = vrot.slane %v1997, 1
      %v2000 = vsel %vm1032, %v1995, %v1999
      %v2002 = vshrl.u32 %v1827, 16
      %v2004 = vshll.u32 %v1827, 16
      %v2006 = vrot.slane %v2004, 1
      %v2007 = vor.u32 %v2002, %v2006
      %v2009 = vshll.u32 %v1875, 16
      %v2011 = vrot.slane %v2009, 1
      %v2012 = vsel %vm1032, %v2007, %v2011
      %v2014 = vshrl.u32 %v1828, 16
      %v2016 = vshll.u32 %v1828, 16
      %v2018 = vrot.slane %v2016, 1
      %v2019 = vor.u32 %v2014, %v2018
      %v2021 = vshll.u32 %v1876, 16
      %v2023 = vrot.slane %v2021, 1
      %v2024 = vsel %vm1032, %v2019, %v2023
      %v2026 = vshrl.u32 %v1829, 16
      %v2028 = vshll.u32 %v1829, 16
      %v2030 = vrot.slane %v2028, 1
      %v2031 = vor.u32 %v2026, %v2030
      %v2033 = vshll.u32 %v1877, 16
      %v2035 = vrot.slane %v2033, 1
      %v2036 = vsel %vm1032, %v2031, %v2035
      %v2038 = vshrl.u32 %v1830, 16
      %v2040 = vshll.u32 %v1830, 16
      %v2042 = vrot.slane %v2040, 1
      %v2043 = vor.u32 %v2038, %v2042
      %v2045 = vshll.u32 %v1878, 16
      %v2047 = vrot.slane %v2045, 1
      %v2048 = vsel %vm1032, %v2043, %v2047
      %v2050 = vshrl.u32 %v1831, 16
      %v2052 = vshll.u32 %v1831, 16
      %v2054 = vrot.slane %v2052, 1
      %v2055 = vor.u32 %v2050, %v2054
      %v2057 = vshll.u32 %v1879, 16
      %v2059 = vrot.slane %v2057, 1
      %v2060 = vsel %vm1032, %v2055, %v2059
      %v2062 = vshrl.u32 %v1832, 16
      %v2064 = vshll.u32 %v1832, 16
      %v2066 = vrot.slane %v2064, 1
      %v2067 = vor.u32 %v2062, %v2066
      %v2069 = vshll.u32 %v1880, 16
      %v2071 = vrot.slane %v2069, 1
      %v2072 = vsel %vm1032, %v2067, %v2071
      %2073 = vrot.lane.b32.xlu0 %v1892, 4
      %v2074 = vpop.permute.xlu0 %2073
      %2075 = vrot.lane.b32.xlu0 %v1904, 4
      %v2076 = vpop.permute.xlu0 %2075
      %2077 = vrot.lane.b32.xlu0 %v1916, 4
      %v2078 = vpop.permute.xlu0 %2077
      %2079 = vrot.lane.b32.xlu0 %v1928, 4
      %v2080 = vpop.permute.xlu0 %2079
      %2081 = vrot.lane.b32.xlu0 %v1940, 4
      %v2082 = vpop.permute.xlu0 %2081
      %2083 = vrot.lane.b32.xlu0 %v1952, 4
      %v2084 = vpop.permute.xlu0 %2083
      %2085 = vrot.lane.b32.xlu0 %v1964, 4
      %v2086 = vpop.permute.xlu0 %2085
      %2087 = vrot.lane.b32.xlu0 %v1976, 4
      %v2088 = vpop.permute.xlu0 %2087
      %2089 = vrot.lane.b32.xlu0 %v1988, 4
      %v2090 = vpop.permute.xlu0 %2089
      %2091 = vrot.lane.b32.xlu0 %v2000, 4
      %v2092 = vpop.permute.xlu0 %2091
      %2093 = vrot.lane.b32.xlu0 %v2012, 4
      %v2094 = vpop.permute.xlu0 %2093
      %2095 = vrot.lane.b32.xlu0 %v2024, 4
      %v2096 = vpop.permute.xlu0 %2095
      %2097 = vrot.lane.b32.xlu0 %v2036, 4
      %v2098 = vpop.permute.xlu0 %2097
      %2099 = vrot.lane.b32.xlu0 %v2048, 4
      %v2100 = vpop.permute.xlu0 %2099
      %2101 = vrot.lane.b32.xlu0 %v2060, 4
      %v2102 = vpop.permute.xlu0 %2101
      %2103 = vrot.lane.b32.xlu0 %v2072, 4
      %v2104 = vpop.permute.xlu0 %2103
      %v2121 = vunpack.c.l.b16 %v1737
      %v2122 = vunpack.c.l.b16 %v1738
      %v2123 = vunpack.c.l.b16 %v1739
      %v2124 = vunpack.c.l.b16 %v1740
      %v2125 = vunpack.c.l.b16 %v1741
      %v2126 = vunpack.c.l.b16 %v1742
      %v2127 = vunpack.c.l.b16 %v1743
      %v2128 = vunpack.c.l.b16 %v1744
      %v2129 = vunpack.c.l.b16 %v1745
      %v2130 = vunpack.c.l.b16 %v1746
      %v2131 = vunpack.c.l.b16 %v1747
      %v2132 = vunpack.c.l.b16 %v1748
      %v2133 = vunpack.c.l.b16 %v1749
      %v2134 = vunpack.c.l.b16 %v1750
      %v2135 = vunpack.c.l.b16 %v1751
      %v2136 = vunpack.c.l.b16 %v1752
      %v2137 = vpack.c.b16 %v1786, %v2121
      %v2138 = vpack.c.b16 %v1788, %v2122
      %v2139 = vpack.c.b16 %v1790, %v2123
      %v2140 = vpack.c.b16 %v1792, %v2124
      %v2141 = vpack.c.b16 %v1794, %v2125
      %v2142 = vpack.c.b16 %v1796, %v2126
      %v2143 = vpack.c.b16 %v1798, %v2127
      %v2144 = vpack.c.b16 %v1800, %v2128
      %v2145 = vpack.c.b16 %v1802, %v2129
      %v2146 = vpack.c.b16 %v1804, %v2130
      %v2147 = vpack.c.b16 %v1806, %v2131
      %v2148 = vpack.c.b16 %v1808, %v2132
      %v2149 = vpack.c.b16 %v1810, %v2133
      %v2150 = vpack.c.b16 %v1812, %v2134
      %v2151 = vpack.c.b16 %v1814, %v2135
      %v2152 = vpack.c.b16 %v1816, %v2136
      %v2153 = vrot.slane %v2137, 1
      %v2154 = vrot.slane %v1865, 1
      %v2155 = vsel %vm1305, %v2153, %v2154
      %v2156 = vrot.slane %v2138, 1
      %v2157 = vrot.slane %v1866, 1
      %v2158 = vsel %vm1305, %v2156, %v2157
      %v2159 = vrot.slane %v2139, 1
      %v2160 = vrot.slane %v1867, 1
      %v2161 = vsel %vm1305, %v2159, %v2160
      %v2162 = vrot.slane %v2140, 1
      %v2163 = vrot.slane %v1868, 1
      %v2164 = vsel %vm1305, %v2162, %v2163
      %v2165 = vrot.slane %v2141, 1
      %v2166 = vrot.slane %v1869, 1
      %v2167 = vsel %vm1305, %v2165, %v2166
      %v2168 = vrot.slane %v2142, 1
      %v2169 = vrot.slane %v1870, 1
      %v2170 = vsel %vm1305, %v2168, %v2169
      %v2171 = vrot.slane %v2143, 1
      %v2172 = vrot.slane %v1871, 1
      %v2173 = vsel %vm1305, %v2171, %v2172
      %v2174 = vrot.slane %v2144, 1
      %v2175 = vrot.slane %v1872, 1
      %v2176 = vsel %vm1305, %v2174, %v2175
      %v2177 = vrot.slane %v2145, 1
      %v2178 = vrot.slane %v1873, 1
      %v2179 = vsel %vm1305, %v2177, %v2178
      %v2180 = vrot.slane %v2146, 1
      %v2181 = vrot.slane %v1874, 1
      %v2182 = vsel %vm1305, %v2180, %v2181
      %v2183 = vrot.slane %v2147, 1
      %v2184 = vrot.slane %v1875, 1
      %v2185 = vsel %vm1305, %v2183, %v2184
      %v2186 = vrot.slane %v2148, 1
      %v2187 = vrot.slane %v1876, 1
      %v2188 = vsel %vm1305, %v2186, %v2187
      %v2189 = vrot.slane %v2149, 1
      %v2190 = vrot.slane %v1877, 1
      %v2191 = vsel %vm1305, %v2189, %v2190
      %v2192 = vrot.slane %v2150, 1
      %v2193 = vrot.slane %v1878, 1
      %v2194 = vsel %vm1305, %v2192, %v2193
      %v2195 = vrot.slane %v2151, 1
      %v2196 = vrot.slane %v1879, 1
      %v2197 = vsel %vm1305, %v2195, %v2196
      %v2198 = vrot.slane %v2152, 1
      %v2199 = vrot.slane %v1880, 1
      %v2200 = vsel %vm1305, %v2198, %v2199
      %2201 = vrot.lane.b32.xlu0 %v2155, 8
      %v2202 = vpop.permute.xlu0 %2201
      %2203 = vrot.lane.b32.xlu0 %v2158, 8
      %v2204 = vpop.permute.xlu0 %2203
      %2205 = vrot.lane.b32.xlu0 %v2161, 8
      %v2206 = vpop.permute.xlu0 %2205
      %2207 = vrot.lane.b32.xlu0 %v2164, 8
      %v2208 = vpop.permute.xlu0 %2207
      %2209 = vrot.lane.b32.xlu0 %v2167, 8
      %v2210 = vpop.permute.xlu0 %2209
      %2211 = vrot.lane.b32.xlu0 %v2170, 8
      %v2212 = vpop.permute.xlu0 %2211
      %2213 = vrot.lane.b32.xlu0 %v2173, 8
      %v2214 = vpop.permute.xlu0 %2213
      %2215 = vrot.lane.b32.xlu0 %v2176, 8
      %v2216 = vpop.permute.xlu0 %2215
      %2217 = vrot.lane.b32.xlu0 %v2179, 8
      %v2218 = vpop.permute.xlu0 %2217
      %2219 = vrot.lane.b32.xlu0 %v2182, 8
      %v2220 = vpop.permute.xlu0 %2219
      %2221 = vrot.lane.b32.xlu0 %v2185, 8
      %v2222 = vpop.permute.xlu0 %2221
      %2223 = vrot.lane.b32.xlu0 %v2188, 8
      %v2224 = vpop.permute.xlu0 %2223
      %2225 = vrot.lane.b32.xlu0 %v2191, 8
      %v2226 = vpop.permute.xlu0 %2225
      %2227 = vrot.lane.b32.xlu0 %v2194, 8
      %v2228 = vpop.permute.xlu0 %2227
      %2229 = vrot.lane.b32.xlu0 %v2197, 8
      %v2230 = vpop.permute.xlu0 %2229
      %2231 = vrot.lane.b32.xlu0 %v2200, 8
      %v2232 = vpop.permute.xlu0 %2231
      %v2234 = vsel %vm1386, %v1817, %v2074
      %v2236 = vsel %vm1386, %v1818, %v2076
      %v2238 = vsel %vm1386, %v1819, %v2078
      %v2240 = vsel %vm1386, %v1820, %v2080
      %v2242 = vsel %vm1386, %v1821, %v2082
      %v2244 = vsel %vm1386, %v1822, %v2084
      %v2246 = vsel %vm1386, %v1823, %v2086
      %v2248 = vsel %vm1386, %v1824, %v2088
      %v2250 = vsel %vm1386, %v1825, %v2090
      %v2252 = vsel %vm1386, %v1826, %v2092
      %v2254 = vsel %vm1386, %v1827, %v2094
      %v2256 = vsel %vm1386, %v1828, %v2096
      %v2258 = vsel %vm1386, %v1829, %v2098
      %v2260 = vsel %vm1386, %v1830, %v2100
      %v2262 = vsel %vm1386, %v1831, %v2102
      %v2264 = vsel %vm1386, %v1832, %v2104
      %v2266 = vsel %vm1419, %v2234, %v2202
      %v2268 = vsel %vm1419, %v2236, %v2204
      %v2270 = vsel %vm1419, %v2238, %v2206
      %v2272 = vsel %vm1419, %v2240, %v2208
      %v2274 = vsel %vm1419, %v2242, %v2210
      %v2276 = vsel %vm1419, %v2244, %v2212
      %v2278 = vsel %vm1419, %v2246, %v2214
      %v2280 = vsel %vm1419, %v2248, %v2216
      %v2282 = vsel %vm1419, %v2250, %v2218
      %v2284 = vsel %vm1419, %v2252, %v2220
      %v2286 = vsel %vm1419, %v2254, %v2222
      %v2288 = vsel %vm1419, %v2256, %v2224
      %v2290 = vsel %vm1419, %v2258, %v2226
      %v2292 = vsel %vm1419, %v2260, %v2228
      %v2294 = vsel %vm1419, %v2262, %v2230
      %v2296 = vsel %vm1419, %v2264, %v2232
      %s2297 = scalar_lea.vmem %s3, 8
      %v2298 = vld [vmem:[%s2297] sm:$0xf]
      %v2299 = vld [vmem:[%s2297 + $0x4] sm:$0x3]
      %v2302 = vunpack.c.l.b16 %v2298
      %v2303 = vunpack.c.l.b16 %v2299
      %v2304 = vpack.c.b16 %v2303, %v2302
      %v2305 = vsel %vm1459, %v2266, 0
      %v2307 = vsel %vm1459, %v2268, 0
      %v2309 = vsel %vm1459, %v2270, 0
      %v2311 = vsel %vm1459, %v2272, 0
      %v2313 = vsel %vm1459, %v2274, 0
      %v2315 = vsel %vm1459, %v2276, 0
      %v2317 = vsel %vm1459, %v2278, 0
      %v2319 = vsel %vm1459, %v2280, 0
      %v2321 = vsel %vm1459, %v2282, 0
      %v2323 = vsel %vm1459, %v2284, 0
      %v2325 = vsel %vm1459, %v2286, 0
      %v2327 = vsel %vm1459, %v2288, 0
      %v2329 = vsel %vm1459, %v2290, 0
      %v2331 = vsel %vm1459, %v2292, 0
      %v2333 = vsel %vm1459, %v2294, 0
      %v2335 = vsel %vm1459, %v2296, 0
      %v2338 = vsel %vm1492, %v2304, 0
      %2340 = vmatprep.subr.bf16.mxu0 0
      %2341 = vmatpush1.bf16.msra.mxu0 0
      %2342 = vmatprep.subr.bf16.mxu0 0
      %2343 = vmatpush1.bf16.msra.mxu0 0
      %2344 = vmatprep.subr.bf16.mxu0 0
      %2345 = vmatpush1.bf16.msra.mxu0 0
      %2346 = vmatprep.subr.bf16.mxu0 0
      %2347 = vmatpush1.bf16.msra.mxu0 0
      %2348 = vmatprep.subr.bf16.mxu0 0
      %2349 = vmatpush1.bf16.msra.mxu0 0
      %2350 = vmatprep.subr.bf16.mxu0 0
      %2351 = vmatpush1.bf16.msra.mxu0 0
      %2352 = vmatprep.subr.bf16.mxu0 0
      %2353 = vmatpush1.bf16.msra.mxu0 0
      %2354 = vmatprep.subr.bf16.mxu0 0
      %2355 = vmatpush1.bf16.msra.mxu0 %v2338
      %2356 = vmatprep.subr.bf16.mxu0 0
      %2357 = vmatpush2.bf16.msra.mxu0 0
      %2358 = vmatprep.subr.bf16.mxu0 0
      %2359 = vmatpush2.bf16.msra.mxu0 0
      %2360 = vmatprep.subr.bf16.mxu0 0
      %2361 = vmatpush2.bf16.msra.mxu0 0
      %2362 = vmatprep.subr.bf16.mxu0 0
      %2363 = vmatpush2.bf16.msra.mxu0 0
      %2364 = vmatprep.subr.bf16.mxu0 0
      %2365 = vmatpush2.bf16.msra.mxu0 0
      %2366 = vmatprep.subr.bf16.mxu0 0
      %2367 = vmatpush2.bf16.msra.mxu0 0
      %2368 = vmatprep.subr.bf16.mxu0 0
      %2369 = vmatpush2.bf16.msra.mxu0 0
      %2370 = vmatprep.subr.bf16.mxu0 0
      %2371 = vmatpush2.bf16.msra.mxu0 0
      %2372 = vmatprep.mubr.bf16.mxu0 0
      %2373 = vmatmul.mubr.bf16.gmra.mxu0 %v2305
      %v2374 = vpop.f32.mrf.mxu0
      %v2375 = vadd.f32 0.0, %v2374
      %v2376 = vpop.f32.mrf.mxu0
      %v2377 = vpop.f32.mrf.mxu0
      %v2378 = vadd.f32 0.0, %v2377
      %v2379 = vpop.f32.mrf.mxu0
      %2380 = vmatprep.mubr.bf16.mxu0 0
      %2381 = vmatmul.mubr.bf16.gmra.mxu0 %v2307
      %v2382 = vpop.f32.mrf.mxu0
      %v2383 = vadd.f32 0.0, %v2382
      %v2384 = vpop.f32.mrf.mxu0
      %v2385 = vpop.f32.mrf.mxu0
      %v2386 = vadd.f32 0.0, %v2385
      %v2387 = vpop.f32.mrf.mxu0
      %2388 = vmatprep.mubr.bf16.mxu0 0
      %2389 = vmatmul.mubr.bf16.gmra.mxu0 %v2309
      %v2390 = vpop.f32.mrf.mxu0
      %v2391 = vadd.f32 0.0, %v2390
      %v2392 = vpop.f32.mrf.mxu0
      %v2393 = vpop.f32.mrf.mxu0
      %v2394 = vadd.f32 0.0, %v2393
      %v2395 = vpop.f32.mrf.mxu0
      %2396 = vmatprep.mubr.bf16.mxu0 0
      %2397 = vmatmul.mubr.bf16.gmra.mxu0 %v2311
      %v2398 = vpop.f32.mrf.mxu0
      %v2399 = vadd.f32 0.0, %v2398
      %v2400 = vpop.f32.mrf.mxu0
      %v2401 = vpop.f32.mrf.mxu0
      %v2402 = vadd.f32 0.0, %v2401
      %v2403 = vpop.f32.mrf.mxu0
      %2404 = vmatprep.mubr.bf16.mxu0 0
      %2405 = vmatmul.mubr.bf16.gmra.mxu0 %v2313
      %v2406 = vpop.f32.mrf.mxu0
      %v2407 = vadd.f32 0.0, %v2406
      %v2408 = vpop.f32.mrf.mxu0
      %v2409 = vpop.f32.mrf.mxu0
      %v2410 = vadd.f32 0.0, %v2409
      %v2411 = vpop.f32.mrf.mxu0
      %2412 = vmatprep.mubr.bf16.mxu0 0
      %2413 = vmatmul.mubr.bf16.gmra.mxu0 %v2315
      %v2414 = vpop.f32.mrf.mxu0
      %v2415 = vadd.f32 0.0, %v2414
      %v2416 = vpop.f32.mrf.mxu0
      %v2417 = vpop.f32.mrf.mxu0
      %v2418 = vadd.f32 0.0, %v2417
      %v2419 = vpop.f32.mrf.mxu0
      %2420 = vmatprep.mubr.bf16.mxu0 0
      %2421 = vmatmul.mubr.bf16.gmra.mxu0 %v2317
      %v2422 = vpop.f32.mrf.mxu0
      %v2423 = vadd.f32 0.0, %v2422
      %v2424 = vpop.f32.mrf.mxu0
      %v2425 = vpop.f32.mrf.mxu0
      %v2426 = vadd.f32 0.0, %v2425
      %v2427 = vpop.f32.mrf.mxu0
      %2428 = vmatprep.mubr.bf16.mxu0 0
      %2429 = vmatmul.mubr.bf16.gmra.mxu0 %v2319
      %v2430 = vpop.f32.mrf.mxu0
      %v2431 = vadd.f32 0.0, %v2430
      %v2432 = vpop.f32.mrf.mxu0
      %v2433 = vpop.f32.mrf.mxu0
      %v2434 = vadd.f32 0.0, %v2433
      %v2435 = vpop.f32.mrf.mxu0
      %2436 = vmatprep.mubr.bf16.mxu0 0
      %2437 = vmatmul.mubr.bf16.gmra.mxu0 %v2321
      %v2438 = vpop.f32.mrf.mxu0
      %v2439 = vadd.f32 0.0, %v2438
      %v2440 = vpop.f32.mrf.mxu0
      %v2441 = vpop.f32.mrf.mxu0
      %v2442 = vadd.f32 0.0, %v2441
      %v2443 = vpop.f32.mrf.mxu0
      %2444 = vmatprep.mubr.bf16.mxu0 0
      %2445 = vmatmul.mubr.bf16.gmra.mxu0 %v2323
      %v2446 = vpop.f32.mrf.mxu0
      %v2447 = vadd.f32 0.0, %v2446
      %v2448 = vpop.f32.mrf.mxu0
      %v2449 = vpop.f32.mrf.mxu0
      %v2450 = vadd.f32 0.0, %v2449
      %v2451 = vpop.f32.mrf.mxu0
      %2452 = vmatprep.mubr.bf16.mxu0 0
      %2453 = vmatmul.mubr.bf16.gmra.mxu0 %v2325
      %v2454 = vpop.f32.mrf.mxu0
      %v2455 = vadd.f32 0.0, %v2454
      %v2456 = vpop.f32.mrf.mxu0
      %v2457 = vpop.f32.mrf.mxu0
      %v2458 = vadd.f32 0.0, %v2457
      %v2459 = vpop.f32.mrf.mxu0
      %2460 = vmatprep.mubr.bf16.mxu0 0
      %2461 = vmatmul.mubr.bf16.gmra.mxu0 %v2327
      %v2462 = vpop.f32.mrf.mxu0
      %v2463 = vadd.f32 0.0, %v2462
      %v2464 = vpop.f32.mrf.mxu0
      %v2465 = vpop.f32.mrf.mxu0
      %v2466 = vadd.f32 0.0, %v2465
      %v2467 = vpop.f32.mrf.mxu0
      %2468 = vmatprep.mubr.bf16.mxu0 0
      %2469 = vmatmul.mubr.bf16.gmra.mxu0 %v2329
      %v2470 = vpop.f32.mrf.mxu0
      %v2471 = vadd.f32 0.0, %v2470
      %v2472 = vpop.f32.mrf.mxu0
      %v2473 = vpop.f32.mrf.mxu0
      %v2474 = vadd.f32 0.0, %v2473
      %v2475 = vpop.f32.mrf.mxu0
      %2476 = vmatprep.mubr.bf16.mxu0 0
      %2477 = vmatmul.mubr.bf16.gmra.mxu0 %v2331
      %v2478 = vpop.f32.mrf.mxu0
      %v2479 = vadd.f32 0.0, %v2478
      %v2480 = vpop.f32.mrf.mxu0
      %v2481 = vpop.f32.mrf.mxu0
      %v2482 = vadd.f32 0.0, %v2481
      %v2483 = vpop.f32.mrf.mxu0
      %2484 = vmatprep.mubr.bf16.mxu0 0
      %2485 = vmatmul.mubr.bf16.gmra.mxu0 %v2333
      %v2486 = vpop.f32.mrf.mxu0
      %v2487 = vadd.f32 0.0, %v2486
      %v2488 = vpop.f32.mrf.mxu0
      %v2489 = vpop.f32.mrf.mxu0
      %v2490 = vadd.f32 0.0, %v2489
      %v2491 = vpop.f32.mrf.mxu0
      %2492 = vmatprep.mubr.bf16.mxu0 0
      %2493 = vmatmul.mubr.bf16.gmra.mxu0 %v2335
      %v2494 = vpop.f32.mrf.mxu0
      %v2495 = vadd.f32 0.0, %v2494
      %v2496 = vpop.f32.mrf.mxu0
      %v2497 = vpop.f32.mrf.mxu0
      %v2498 = vadd.f32 0.0, %v2497
      %v2499 = vpop.f32.mrf.mxu0
      %2500 = vdwg.mxu0
      %v2501 = vld [vmem:[#allocation3] sm:$0xff]
      %v2502 = vld [vmem:[#allocation3 + $0x8] sm:$0xff]
      %v2503 = vld [vmem:[#allocation3 + $0x10] sm:$0xff]
      %v2504 = vld [vmem:[#allocation3 + $0x18] sm:$0xff]
      %v2505 = vld [vmem:[#allocation3 + $0x20] sm:$0xff]
      %v2506 = vld [vmem:[#allocation3 + $0x28] sm:$0xff]
      %v2507 = vld [vmem:[#allocation3 + $0x30] sm:$0xff]
      %v2508 = vld [vmem:[#allocation3 + $0x38] sm:$0xff]
      %v2509 = vld [vmem:[#allocation3 + $0x40] sm:$0xff]
      %v2510 = vld [vmem:[#allocation3 + $0x48] sm:$0xff]
      %v2511 = vld [vmem:[#allocation3 + $0x50] sm:$0xff]
      %v2512 = vld [vmem:[#allocation3 + $0x58] sm:$0xff]
      %v2513 = vld [vmem:[#allocation3 + $0x60] sm:$0xff]
      %v2514 = vld [vmem:[#allocation3 + $0x68] sm:$0xff]
      %v2515 = vld [vmem:[#allocation3 + $0x70] sm:$0xff]
      %v2516 = vld [vmem:[#allocation3 + $0x78] sm:$0xff]
      %v2517 = vld [vmem:[#allocation3 + $0x80] sm:$0xff]
      %v2518 = vld [vmem:[#allocation3 + $0x88] sm:$0xff]
      %v2519 = vld [vmem:[#allocation3 + $0x90] sm:$0xff]
      %v2520 = vld [vmem:[#allocation3 + $0x98] sm:$0xff]
      %v2521 = vld [vmem:[#allocation3 + $0xa0] sm:$0xff]
      %v2522 = vld [vmem:[#allocation3 + $0xa8] sm:$0xff]
      %v2523 = vld [vmem:[#allocation3 + $0xb0] sm:$0xff]
      %v2524 = vld [vmem:[#allocation3 + $0xb8] sm:$0xff]
      %v2525 = vld [vmem:[#allocation3 + $0xc0] sm:$0xff]
      %v2526 = vld [vmem:[#allocation3 + $0xc8] sm:$0xff]
      %v2527 = vld [vmem:[#allocation3 + $0xd0] sm:$0xff]
      %v2528 = vld [vmem:[#allocation3 + $0xd8] sm:$0xff]
      %v2529 = vld [vmem:[#allocation3 + $0xe0] sm:$0xff]
      %v2530 = vld [vmem:[#allocation3 + $0xe8] sm:$0xff]
      %v2531 = vld [vmem:[#allocation3 + $0xf0] sm:$0xff]
      %v2532 = vld [vmem:[#allocation3 + $0xf8] sm:$0xff]
      %v2533 = vadd.f32 %v2501, %v2375
      %v2534 = vadd.f32 %v2502, %v2378
      %v2535 = vadd.f32 %v2503, %v2383
      %v2536 = vadd.f32 %v2504, %v2386
      %v2537 = vadd.f32 %v2505, %v2391
      %v2538 = vadd.f32 %v2506, %v2394
      %v2539 = vadd.f32 %v2507, %v2399
      %v2540 = vadd.f32 %v2508, %v2402
      %v2541 = vadd.f32 %v2509, %v2407
      %v2542 = vadd.f32 %v2510, %v2410
      %v2543 = vadd.f32 %v2511, %v2415
      %v2544 = vadd.f32 %v2512, %v2418
      %v2545 = vadd.f32 %v2513, %v2423
      %v2546 = vadd.f32 %v2514, %v2426
      %v2547 = vadd.f32 %v2515, %v2431
      %v2548 = vadd.f32 %v2516, %v2434
      %v2549 = vadd.f32 %v2517, %v2439
      %v2550 = vadd.f32 %v2518, %v2442
      %v2551 = vadd.f32 %v2519, %v2447
      %v2552 = vadd.f32 %v2520, %v2450
      %v2553 = vadd.f32 %v2521, %v2455
      %v2554 = vadd.f32 %v2522, %v2458
      %v2555 = vadd.f32 %v2523, %v2463
      %v2556 = vadd.f32 %v2524, %v2466
      %v2557 = vadd.f32 %v2525, %v2471
      %v2558 = vadd.f32 %v2526, %v2474
      %v2559 = vadd.f32 %v2527, %v2479
      %v2560 = vadd.f32 %v2528, %v2482
      %v2561 = vadd.f32 %v2529, %v2487
      %v2562 = vadd.f32 %v2530, %v2490
      %v2563 = vadd.f32 %v2531, %v2495
      %v2564 = vadd.f32 %v2532, %v2498
      %2565 = vst.msk [vmem:[#allocation3] sm:$0xff] %vm1386, %v2533
      %2566 = vst.msk [vmem:[#allocation3 + $0x8] sm:$0xff] %vm1386, %v2534
      %2567 = vst.msk [vmem:[#allocation3 + $0x10] sm:$0xff] %vm1386, %v2535
      %2568 = vst.msk [vmem:[#allocation3 + $0x18] sm:$0xff] %vm1386, %v2536
      %2569 = vst.msk [vmem:[#allocation3 + $0x20] sm:$0xff] %vm1386, %v2537
      %2570 = vst.msk [vmem:[#allocation3 + $0x28] sm:$0xff] %vm1386, %v2538
      %2571 = vst.msk [vmem:[#allocation3 + $0x30] sm:$0xff] %vm1386, %v2539
      %2572 = vst.msk [vmem:[#allocation3 + $0x38] sm:$0xff] %vm1386, %v2540
      %2573 = vst.msk [vmem:[#allocation3 + $0x40] sm:$0xff] %vm1386, %v2541
      %2574 = vst.msk [vmem:[#allocation3 + $0x48] sm:$0xff] %vm1386, %v2542
      %2575 = vst.msk [vmem:[#allocation3 + $0x50] sm:$0xff] %vm1386, %v2543
      %2576 = vst.msk [vmem:[#allocation3 + $0x58] sm:$0xff] %vm1386, %v2544
      %2577 = vst.msk [vmem:[#allocation3 + $0x60] sm:$0xff] %vm1386, %v2545
      %2578 = vst.msk [vmem:[#allocation3 + $0x68] sm:$0xff] %vm1386, %v2546
      %2579 = vst.msk [vmem:[#allocation3 + $0x70] sm:$0xff] %vm1386, %v2547
      %2580 = vst.msk [vmem:[#allocation3 + $0x78] sm:$0xff] %vm1386, %v2548
      %2581 = vst.msk [vmem:[#allocation3 + $0x80] sm:$0xff] %vm1386, %v2549
      %2582 = vst.msk [vmem:[#allocation3 + $0x88] sm:$0xff] %vm1386, %v2550
      %2583 = vst.msk [vmem:[#allocation3 + $0x90] sm:$0xff] %vm1386, %v2551
      %2584 = vst.msk [vmem:[#allocation3 + $0x98] sm:$0xff] %vm1386, %v2552
      %2585 = vst.msk [vmem:[#allocation3 + $0xa0] sm:$0xff] %vm1386, %v2553
      %2586 = vst.msk [vmem:[#allocation3 + $0xa8] sm:$0xff] %vm1386, %v2554
      %2587 = vst.msk [vmem:[#allocation3 + $0xb0] sm:$0xff] %vm1386, %v2555
      %2588 = vst.msk [vmem:[#allocation3 + $0xb8] sm:$0xff] %vm1386, %v2556
      %2589 = vst.msk [vmem:[#allocation3 + $0xc0] sm:$0xff] %vm1386, %v2557
      %2590 = vst.msk [vmem:[#allocation3 + $0xc8] sm:$0xff] %vm1386, %v2558
      %2591 = vst.msk [vmem:[#allocation3 + $0xd0] sm:$0xff] %vm1386, %v2559
      %2592 = vst.msk [vmem:[#allocation3 + $0xd8] sm:$0xff] %vm1386, %v2560
      %2593 = vst.msk [vmem:[#allocation3 + $0xe0] sm:$0xff] %vm1386, %v2561
      %2594 = vst.msk [vmem:[#allocation3 + $0xe8] sm:$0xff] %vm1386, %v2562
      %2595 = vst.msk [vmem:[#allocation3 + $0xf0] sm:$0xff] %vm1386, %v2563
      %2596 = vst.msk [vmem:[#allocation3 + $0xf8] sm:$0xff] %vm1386, %v2564
      %s2597 = scalar_lea.vmem [#allocation2], 24
      %v2598 = vld [vmem:[%s2597] sm:$0xf]
      %v2599 = vld [vmem:[%s2597 + $0x4] sm:$0xf]
      %v2600 = vld [vmem:[%s2597 + $0xc] sm:$0xf]
      %v2601 = vld [vmem:[%s2597 + $0x10] sm:$0xf]
      %v2602 = vld [vmem:[%s2597 + $0x18] sm:$0xf]
      %v2603 = vld [vmem:[%s2597 + $0x1c] sm:$0xf]
      %v2604 = vld [vmem:[%s2597 + $0x24] sm:$0xf]
      %v2605 = vld [vmem:[%s2597 + $0x28] sm:$0xf]
      %v2606 = vld [vmem:[%s2597 + $0x30] sm:$0xf]
      %v2607 = vld [vmem:[%s2597 + $0x34] sm:$0xf]
      %v2608 = vld [vmem:[%s2597 + $0x3c] sm:$0xf]
      %v2609 = vld [vmem:[%s2597 + $0x40] sm:$0xf]
      %v2610 = vld [vmem:[%s2597 + $0x48] sm:$0xf]
      %v2611 = vld [vmem:[%s2597 + $0x4c] sm:$0xf]
      %v2612 = vld [vmem:[%s2597 + $0x54] sm:$0xf]
      %v2613 = vld [vmem:[%s2597 + $0x58] sm:$0xf]
      %v2614 = vld [vmem:[%s2597 + $0x60] sm:$0xf]
      %v2615 = vld [vmem:[%s2597 + $0x64] sm:$0xf]
      %v2616 = vld [vmem:[%s2597 + $0x6c] sm:$0xf]
      %v2617 = vld [vmem:[%s2597 + $0x70] sm:$0xf]
      %v2618 = vld [vmem:[%s2597 + $0x78] sm:$0xf]
      %v2619 = vld [vmem:[%s2597 + $0x7c] sm:$0xf]
      %v2620 = vld [vmem:[%s2597 + $0x84] sm:$0xf]
      %v2621 = vld [vmem:[%s2597 + $0x88] sm:$0xf]
      %v2622 = vld [vmem:[%s2597 + $0x90] sm:$0xf]
      %v2623 = vld [vmem:[%s2597 + $0x94] sm:$0xf]
      %v2624 = vld [vmem:[%s2597 + $0x9c] sm:$0xf]
      %v2625 = vld [vmem:[%s2597 + $0xa0] sm:$0xf]
      %v2626 = vld [vmem:[%s2597 + $0xa8] sm:$0xf]
      %v2627 = vld [vmem:[%s2597 + $0xac] sm:$0xf]
      %v2628 = vld [vmem:[%s2597 + $0xb4] sm:$0xf]
      %v2629 = vld [vmem:[%s2597 + $0xb8] sm:$0xf]
      %v2630 = vld [vmem:[%s2597 + $0x8] sm:$0x1]
      %v2631 = vld [vmem:[%s2597 + $0x14] sm:$0x1]
      %v2632 = vld [vmem:[%s2597 + $0x20] sm:$0x1]
      %v2633 = vld [vmem:[%s2597 + $0x2c] sm:$0x1]
      %v2634 = vld [vmem:[%s2597 + $0x38] sm:$0x1]
      %v2635 = vld [vmem:[%s2597 + $0x44] sm:$0x1]
      %v2636 = vld [vmem:[%s2597 + $0x50] sm:$0x1]
      %v2637 = vld [vmem:[%s2597 + $0x5c] sm:$0x1]
      %v2638 = vld [vmem:[%s2597 + $0x68] sm:$0x1]
      %v2639 = vld [vmem:[%s2597 + $0x74] sm:$0x1]
      %v2640 = vld [vmem:[%s2597 + $0x80] sm:$0x1]
      %v2641 = vld [vmem:[%s2597 + $0x8c] sm:$0x1]
      %v2642 = vld [vmem:[%s2597 + $0x98] sm:$0x1]
      %v2643 = vld [vmem:[%s2597 + $0xa4] sm:$0x1]
      %v2644 = vld [vmem:[%s2597 + $0xb0] sm:$0x1]
      %v2645 = vld [vmem:[%s2597 + $0xbc] sm:$0x1]
      %v2646 = vld [vmem:[%s2597] sm:$0xe]
      %v2647 = vld [vmem:[%s2597 + $0xc] sm:$0xe]
      %v2648 = vld [vmem:[%s2597 + $0x18] sm:$0xe]
      %v2649 = vld [vmem:[%s2597 + $0x24] sm:$0xe]
      %v2650 = vld [vmem:[%s2597 + $0x30] sm:$0xe]
      %v2651 = vld [vmem:[%s2597 + $0x3c] sm:$0xe]
      %v2652 = vld [vmem:[%s2597 + $0x48] sm:$0xe]
      %v2653 = vld [vmem:[%s2597 + $0x54] sm:$0xe]
      %v2654 = vld [vmem:[%s2597 + $0x60] sm:$0xe]
      %v2655 = vld [vmem:[%s2597 + $0x6c] sm:$0xe]
      %v2656 = vld [vmem:[%s2597 + $0x78] sm:$0xe]
      %v2657 = vld [vmem:[%s2597 + $0x84] sm:$0xe]
      %v2658 = vld [vmem:[%s2597 + $0x90] sm:$0xe]
      %v2659 = vld [vmem:[%s2597 + $0x9c] sm:$0xe]
      %v2660 = vld [vmem:[%s2597 + $0xa8] sm:$0xe]
      %v2661 = vld [vmem:[%s2597 + $0xb4] sm:$0xe]
      %v2694 = vunpack.c.l.b16 %v2598
      %v2695 = vunpack.c.l.b16 %v2599
      %v2696 = vunpack.c.l.b16 %v2600
      %v2697 = vunpack.c.l.b16 %v2601
      %v2698 = vunpack.c.l.b16 %v2602
      %v2699 = vunpack.c.l.b16 %v2603
      %v2700 = vunpack.c.l.b16 %v2604
      %v2701 = vunpack.c.l.b16 %v2605
      %v2702 = vunpack.c.l.b16 %v2606
      %v2703 = vunpack.c.l.b16 %v2607
      %v2704 = vunpack.c.l.b16 %v2608
      %v2705 = vunpack.c.l.b16 %v2609
      %v2706 = vunpack.c.l.b16 %v2610
      %v2707 = vunpack.c.l.b16 %v2611
      %v2708 = vunpack.c.l.b16 %v2612
      %v2709 = vunpack.c.l.b16 %v2613
      %v2710 = vunpack.c.l.b16 %v2614
      %v2711 = vunpack.c.l.b16 %v2615
      %v2712 = vunpack.c.l.b16 %v2616
      %v2713 = vunpack.c.l.b16 %v2617
      %v2714 = vunpack.c.l.b16 %v2618
      %v2715 = vunpack.c.l.b16 %v2619
      %v2716 = vunpack.c.l.b16 %v2620
      %v2717 = vunpack.c.l.b16 %v2621
      %v2718 = vunpack.c.l.b16 %v2622
      %v2719 = vunpack.c.l.b16 %v2623
      %v2720 = vunpack.c.l.b16 %v2624
      %v2721 = vunpack.c.l.b16 %v2625
      %v2722 = vunpack.c.l.b16 %v2626
      %v2723 = vunpack.c.l.b16 %v2627
      %v2724 = vunpack.c.l.b16 %v2628
      %v2725 = vunpack.c.l.b16 %v2629
      %v2726 = vpack.c.b16 %v2695, %v2694
      %v2727 = vpack.c.b16 %v2697, %v2696
      %v2728 = vpack.c.b16 %v2699, %v2698
      %v2729 = vpack.c.b16 %v2701, %v2700
      %v2730 = vpack.c.b16 %v2703, %v2702
      %v2731 = vpack.c.b16 %v2705, %v2704
      %v2732 = vpack.c.b16 %v2707, %v2706
      %v2733 = vpack.c.b16 %v2709, %v2708
      %v2734 = vpack.c.b16 %v2711, %v2710
      %v2735 = vpack.c.b16 %v2713, %v2712
      %v2736 = vpack.c.b16 %v2715, %v2714
      %v2737 = vpack.c.b16 %v2717, %v2716
      %v2738 = vpack.c.b16 %v2719, %v2718
      %v2739 = vpack.c.b16 %v2721, %v2720
      %v2740 = vpack.c.b16 %v2723, %v2722
      %v2741 = vpack.c.b16 %v2725, %v2724
      %v2758 = vunpack.c.l.b16 %v2630
      %v2759 = vunpack.c.l.b16 %v2631
      %v2760 = vunpack.c.l.b16 %v2632
      %v2761 = vunpack.c.l.b16 %v2633
      %v2762 = vunpack.c.l.b16 %v2634
      %v2763 = vunpack.c.l.b16 %v2635
      %v2764 = vunpack.c.l.b16 %v2636
      %v2765 = vunpack.c.l.b16 %v2637
      %v2766 = vunpack.c.l.b16 %v2638
      %v2767 = vunpack.c.l.b16 %v2639
      %v2768 = vunpack.c.l.b16 %v2640
      %v2769 = vunpack.c.l.b16 %v2641
      %v2770 = vunpack.c.l.b16 %v2642
      %v2771 = vunpack.c.l.b16 %v2643
      %v2772 = vunpack.c.l.b16 %v2644
      %v2773 = vunpack.c.l.b16 %v2645
      %v2774 = vpack.c.b16 %v2758, %v2758
      %v2775 = vpack.c.b16 %v2759, %v2759
      %v2776 = vpack.c.b16 %v2760, %v2760
      %v2777 = vpack.c.b16 %v2761, %v2761
      %v2778 = vpack.c.b16 %v2762, %v2762
      %v2779 = vpack.c.b16 %v2763, %v2763
      %v2780 = vpack.c.b16 %v2764, %v2764
      %v2781 = vpack.c.b16 %v2765, %v2765
      %v2782 = vpack.c.b16 %v2766, %v2766
      %v2783 = vpack.c.b16 %v2767, %v2767
      %v2784 = vpack.c.b16 %v2768, %v2768
      %v2785 = vpack.c.b16 %v2769, %v2769
      %v2786 = vpack.c.b16 %v2770, %v2770
      %v2787 = vpack.c.b16 %v2771, %v2771
      %v2788 = vpack.c.b16 %v2772, %v2772
      %v2789 = vpack.c.b16 %v2773, %v2773
      %v2791 = vshrl.u32 %v2726, 16
      %v2793 = vshll.u32 %v2726, 16
      %v2795 = vrot.slane %v2793, 1
      %v2796 = vor.u32 %v2791, %v2795
      %v2798 = vshll.u32 %v2774, 16
      %v2800 = vrot.slane %v2798, 1
      %v2801 = vsel %vm1032, %v2796, %v2800
      %v2803 = vshrl.u32 %v2727, 16
      %v2805 = vshll.u32 %v2727, 16
      %v2807 = vrot.slane %v2805, 1
      %v2808 = vor.u32 %v2803, %v2807
      %v2810 = vshll.u32 %v2775, 16
      %v2812 = vrot.slane %v2810, 1
      %v2813 = vsel %vm1032, %v2808, %v2812
      %v2815 = vshrl.u32 %v2728, 16
      %v2817 = vshll.u32 %v2728, 16
      %v2819 = vrot.slane %v2817, 1
      %v2820 = vor.u32 %v2815, %v2819
      %v2822 = vshll.u32 %v2776, 16
      %v2824 = vrot.slane %v2822, 1
      %v2825 = vsel %vm1032, %v2820, %v2824
      %v2827 = vshrl.u32 %v2729, 16
      %v2829 = vshll.u32 %v2729, 16
      %v2831 = vrot.slane %v2829, 1
      %v2832 = vor.u32 %v2827, %v2831
      %v2834 = vshll.u32 %v2777, 16
      %v2836 = vrot.slane %v2834, 1
      %v2837 = vsel %vm1032, %v2832, %v2836
      %v2839 = vshrl.u32 %v2730, 16
      %v2841 = vshll.u32 %v2730, 16
      %v2843 = vrot.slane %v2841, 1
      %v2844 = vor.u32 %v2839, %v2843
      %v2846 = vshll.u32 %v2778, 16
      %v2848 = vrot.slane %v2846, 1
      %v2849 = vsel %vm1032, %v2844, %v2848
      %v2851 = vshrl.u32 %v2731, 16
      %v2853 = vshll.u32 %v2731, 16
      %v2855 = vrot.slane %v2853, 1
      %v2856 = vor.u32 %v2851, %v2855
      %v2858 = vshll.u32 %v2779, 16
      %v2860 = vrot.slane %v2858, 1
      %v2861 = vsel %vm1032, %v2856, %v2860
      %v2863 = vshrl.u32 %v2732, 16
      %v2865 = vshll.u32 %v2732, 16
      %v2867 = vrot.slane %v2865, 1
      %v2868 = vor.u32 %v2863, %v2867
      %v2870 = vshll.u32 %v2780, 16
      %v2872 = vrot.slane %v2870, 1
      %v2873 = vsel %vm1032, %v2868, %v2872
      %v2875 = vshrl.u32 %v2733, 16
      %v2877 = vshll.u32 %v2733, 16
      %v2879 = vrot.slane %v2877, 1
      %v2880 = vor.u32 %v2875, %v2879
      %v2882 = vshll.u32 %v2781, 16
      %v2884 = vrot.slane %v2882, 1
      %v2885 = vsel %vm1032, %v2880, %v2884
      %v2887 = vshrl.u32 %v2734, 16
      %v2889 = vshll.u32 %v2734, 16
      %v2891 = vrot.slane %v2889, 1
      %v2892 = vor.u32 %v2887, %v2891
      %v2894 = vshll.u32 %v2782, 16
      %v2896 = vrot.slane %v2894, 1
      %v2897 = vsel %vm1032, %v2892, %v2896
      %v2899 = vshrl.u32 %v2735, 16
      %v2901 = vshll.u32 %v2735, 16
      %v2903 = vrot.slane %v2901, 1
      %v2904 = vor.u32 %v2899, %v2903
      %v2906 = vshll.u32 %v2783, 16
      %v2908 = vrot.slane %v2906, 1
      %v2909 = vsel %vm1032, %v2904, %v2908
      %v2911 = vshrl.u32 %v2736, 16
      %v2913 = vshll.u32 %v2736, 16
      %v2915 = vrot.slane %v2913, 1
      %v2916 = vor.u32 %v2911, %v2915
      %v2918 = vshll.u32 %v2784, 16
      %v2920 = vrot.slane %v2918, 1
      %v2921 = vsel %vm1032, %v2916, %v2920
      %v2923 = vshrl.u32 %v2737, 16
      %v2925 = vshll.u32 %v2737, 16
      %v2927 = vrot.slane %v2925, 1
      %v2928 = vor.u32 %v2923, %v2927
      %v2930 = vshll.u32 %v2785, 16
      %v2932 = vrot.slane %v2930, 1
      %v2933 = vsel %vm1032, %v2928, %v2932
      %v2935 = vshrl.u32 %v2738, 16
      %v2937 = vshll.u32 %v2738, 16
      %v2939 = vrot.slane %v2937, 1
      %v2940 = vor.u32 %v2935, %v2939
      %v2942 = vshll.u32 %v2786, 16
      %v2944 = vrot.slane %v2942, 1
      %v2945 = vsel %vm1032, %v2940, %v2944
      %v2947 = vshrl.u32 %v2739, 16
      %v2949 = vshll.u32 %v2739, 16
      %v2951 = vrot.slane %v2949, 1
      %v2952 = vor.u32 %v2947, %v2951
      %v2954 = vshll.u32 %v2787, 16
      %v2956 = vrot.slane %v2954, 1
      %v2957 = vsel %vm1032, %v2952, %v2956
      %v2959 = vshrl.u32 %v2740, 16
      %v2961 = vshll.u32 %v2740, 16
      %v2963 = vrot.slane %v2961, 1
      %v2964 = vor.u32 %v2959, %v2963
      %v2966 = vshll.u32 %v2788, 16
      %v2968 = vrot.slane %v2966, 1
      %v2969 = vsel %vm1032, %v2964, %v2968
      %v2971 = vshrl.u32 %v2741, 16
      %v2973 = vshll.u32 %v2741, 16
      %v2975 = vrot.slane %v2973, 1
      %v2976 = vor.u32 %v2971, %v2975
      %v2978 = vshll.u32 %v2789, 16
      %v2980 = vrot.slane %v2978, 1
      %v2981 = vsel %vm1032, %v2976, %v2980
      %2982 = vrot.lane.b32.xlu0 %v2801, 4
      %v2983 = vpop.permute.xlu0 %2982
      %2984 = vrot.lane.b32.xlu0 %v2813, 4
      %v2985 = vpop.permute.xlu0 %2984
      %2986 = vrot.lane.b32.xlu0 %v2825, 4
      %v2987 = vpop.permute.xlu0 %2986
      %2988 = vrot.lane.b32.xlu0 %v2837, 4
      %v2989 = vpop.permute.xlu0 %2988
      %2990 = vrot.lane.b32.xlu0 %v2849, 4
      %v2991 = vpop.permute.xlu0 %2990
      %2992 = vrot.lane.b32.xlu0 %v2861, 4
      %v2993 = vpop.permute.xlu0 %2992
      %2994 = vrot.lane.b32.xlu0 %v2873, 4
      %v2995 = vpop.permute.xlu0 %2994
      %2996 = vrot.lane.b32.xlu0 %v2885, 4
      %v2997 = vpop.permute.xlu0 %2996
      %2998 = vrot.lane.b32.xlu0 %v2897, 4
      %v2999 = vpop.permute.xlu0 %2998
      %3000 = vrot.lane.b32.xlu0 %v2909, 4
      %v3001 = vpop.permute.xlu0 %3000
      %3002 = vrot.lane.b32.xlu0 %v2921, 4
      %v3003 = vpop.permute.xlu0 %3002
      %3004 = vrot.lane.b32.xlu0 %v2933, 4
      %v3005 = vpop.permute.xlu0 %3004
      %3006 = vrot.lane.b32.xlu0 %v2945, 4
      %v3007 = vpop.permute.xlu0 %3006
      %3008 = vrot.lane.b32.xlu0 %v2957, 4
      %v3009 = vpop.permute.xlu0 %3008
      %3010 = vrot.lane.b32.xlu0 %v2969, 4
      %v3011 = vpop.permute.xlu0 %3010
      %3012 = vrot.lane.b32.xlu0 %v2981, 4
      %v3013 = vpop.permute.xlu0 %3012
      %v3030 = vunpack.c.l.b16 %v2646
      %v3031 = vunpack.c.l.b16 %v2647
      %v3032 = vunpack.c.l.b16 %v2648
      %v3033 = vunpack.c.l.b16 %v2649
      %v3034 = vunpack.c.l.b16 %v2650
      %v3035 = vunpack.c.l.b16 %v2651
      %v3036 = vunpack.c.l.b16 %v2652
      %v3037 = vunpack.c.l.b16 %v2653
      %v3038 = vunpack.c.l.b16 %v2654
      %v3039 = vunpack.c.l.b16 %v2655
      %v3040 = vunpack.c.l.b16 %v2656
      %v3041 = vunpack.c.l.b16 %v2657
      %v3042 = vunpack.c.l.b16 %v2658
      %v3043 = vunpack.c.l.b16 %v2659
      %v3044 = vunpack.c.l.b16 %v2660
      %v3045 = vunpack.c.l.b16 %v2661
      %v3046 = vpack.c.b16 %v2695, %v3030
      %v3047 = vpack.c.b16 %v2697, %v3031
      %v3048 = vpack.c.b16 %v2699, %v3032
      %v3049 = vpack.c.b16 %v2701, %v3033
      %v3050 = vpack.c.b16 %v2703, %v3034
      %v3051 = vpack.c.b16 %v2705, %v3035
      %v3052 = vpack.c.b16 %v2707, %v3036
      %v3053 = vpack.c.b16 %v2709, %v3037
      %v3054 = vpack.c.b16 %v2711, %v3038
      %v3055 = vpack.c.b16 %v2713, %v3039
      %v3056 = vpack.c.b16 %v2715, %v3040
      %v3057 = vpack.c.b16 %v2717, %v3041
      %v3058 = vpack.c.b16 %v2719, %v3042
      %v3059 = vpack.c.b16 %v2721, %v3043
      %v3060 = vpack.c.b16 %v2723, %v3044
      %v3061 = vpack.c.b16 %v2725, %v3045
      %v3062 = vrot.slane %v3046, 1
      %v3063 = vrot.slane %v2774, 1
      %v3064 = vsel %vm1305, %v3062, %v3063
      %v3065 = vrot.slane %v3047, 1
      %v3066 = vrot.slane %v2775, 1
      %v3067 = vsel %vm1305, %v3065, %v3066
      %v3068 = vrot.slane %v3048, 1
      %v3069 = vrot.slane %v2776, 1
      %v3070 = vsel %vm1305, %v3068, %v3069
      %v3071 = vrot.slane %v3049, 1
      %v3072 = vrot.slane %v2777, 1
      %v3073 = vsel %vm1305, %v3071, %v3072
      %v3074 = vrot.slane %v3050, 1
      %v3075 = vrot.slane %v2778, 1
      %v3076 = vsel %vm1305, %v3074, %v3075
      %v3077 = vrot.slane %v3051, 1
      %v3078 = vrot.slane %v2779, 1
      %v3079 = vsel %vm1305, %v3077, %v3078
      %v3080 = vrot.slane %v3052, 1
      %v3081 = vrot.slane %v2780, 1
      %v3082 = vsel %vm1305, %v3080, %v3081
      %v3083 = vrot.slane %v3053, 1
      %v3084 = vrot.slane %v2781, 1
      %v3085 = vsel %vm1305, %v3083, %v3084
      %v3086 = vrot.slane %v3054, 1
      %v3087 = vrot.slane %v2782, 1
      %v3088 = vsel %vm1305, %v3086, %v3087
      %v3089 = vrot.slane %v3055, 1
      %v3090 = vrot.slane %v2783, 1
      %v3091 = vsel %vm1305, %v3089, %v3090
      %v3092 = vrot.slane %v3056, 1
      %v3093 = vrot.slane %v2784, 1
      %v3094 = vsel %vm1305, %v3092, %v3093
      %v3095 = vrot.slane %v3057, 1
      %v3096 = vrot.slane %v2785, 1
      %v3097 = vsel %vm1305, %v3095, %v3096
      %v3098 = vrot.slane %v3058, 1
      %v3099 = vrot.slane %v2786, 1
      %v3100 = vsel %vm1305, %v3098, %v3099
      %v3101 = vrot.slane %v3059, 1
      %v3102 = vrot.slane %v2787, 1
      %v3103 = vsel %vm1305, %v3101, %v3102
      %v3104 = vrot.slane %v3060, 1
      %v3105 = vrot.slane %v2788, 1
      %v3106 = vsel %vm1305, %v3104, %v3105
      %v3107 = vrot.slane %v3061, 1
      %v3108 = vrot.slane %v2789, 1
      %v3109 = vsel %vm1305, %v3107, %v3108
      %3110 = vrot.lane.b32.xlu0 %v3064, 8
      %v3111 = vpop.permute.xlu0 %3110
      %3112 = vrot.lane.b32.xlu0 %v3067, 8
      %v3113 = vpop.permute.xlu0 %3112
      %3114 = vrot.lane.b32.xlu0 %v3070, 8
      %v3115 = vpop.permute.xlu0 %3114
      %3116 = vrot.lane.b32.xlu0 %v3073, 8
      %v3117 = vpop.permute.xlu0 %3116
      %3118 = vrot.lane.b32.xlu0 %v3076, 8
      %v3119 = vpop.permute.xlu0 %3118
      %3120 = vrot.lane.b32.xlu0 %v3079, 8
      %v3121 = vpop.permute.xlu0 %3120
      %3122 = vrot.lane.b32.xlu0 %v3082, 8
      %v3123 = vpop.permute.xlu0 %3122
      %3124 = vrot.lane.b32.xlu0 %v3085, 8
      %v3125 = vpop.permute.xlu0 %3124
      %3126 = vrot.lane.b32.xlu0 %v3088, 8
      %v3127 = vpop.permute.xlu0 %3126
      %3128 = vrot.lane.b32.xlu0 %v3091, 8
      %v3129 = vpop.permute.xlu0 %3128
      %3130 = vrot.lane.b32.xlu0 %v3094, 8
      %v3131 = vpop.permute.xlu0 %3130
      %3132 = vrot.lane.b32.xlu0 %v3097, 8
      %v3133 = vpop.permute.xlu0 %3132
      %3134 = vrot.lane.b32.xlu0 %v3100, 8
      %v3135 = vpop.permute.xlu0 %3134
      %3136 = vrot.lane.b32.xlu0 %v3103, 8
      %v3137 = vpop.permute.xlu0 %3136
      %3138 = vrot.lane.b32.xlu0 %v3106, 8
      %v3139 = vpop.permute.xlu0 %3138
      %3140 = vrot.lane.b32.xlu0 %v3109, 8
      %v3141 = vpop.permute.xlu0 %3140
      %v3143 = vsel %vm1386, %v2726, %v2983
      %v3145 = vsel %vm1386, %v2727, %v2985
      %v3147 = vsel %vm1386, %v2728, %v2987
      %v3149 = vsel %vm1386, %v2729, %v2989
      %v3151 = vsel %vm1386, %v2730, %v2991
      %v3153 = vsel %vm1386, %v2731, %v2993
      %v3155 = vsel %vm1386, %v2732, %v2995
      %v3157 = vsel %vm1386, %v2733, %v2997
      %v3159 = vsel %vm1386, %v2734, %v2999
      %v3161 = vsel %vm1386, %v2735, %v3001
      %v3163 = vsel %vm1386, %v2736, %v3003
      %v3165 = vsel %vm1386, %v2737, %v3005
      %v3167 = vsel %vm1386, %v2738, %v3007
      %v3169 = vsel %vm1386, %v2739, %v3009
      %v3171 = vsel %vm1386, %v2740, %v3011
      %v3173 = vsel %vm1386, %v2741, %v3013
      %v3175 = vsel %vm1419, %v3143, %v3111
      %v3177 = vsel %vm1419, %v3145, %v3113
      %v3179 = vsel %vm1419, %v3147, %v3115
      %v3181 = vsel %vm1419, %v3149, %v3117
      %v3183 = vsel %vm1419, %v3151, %v3119
      %v3185 = vsel %vm1419, %v3153, %v3121
      %v3187 = vsel %vm1419, %v3155, %v3123
      %v3189 = vsel %vm1419, %v3157, %v3125
      %v3191 = vsel %vm1419, %v3159, %v3127
      %v3193 = vsel %vm1419, %v3161, %v3129
      %v3195 = vsel %vm1419, %v3163, %v3131
      %v3197 = vsel %vm1419, %v3165, %v3133
      %v3199 = vsel %vm1419, %v3167, %v3135
      %v3201 = vsel %vm1419, %v3169, %v3137
      %v3203 = vsel %vm1419, %v3171, %v3139
      %v3205 = vsel %vm1419, %v3173, %v3141
      %s3206 = scalar_lea.vmem %s3, 16
      %v3207 = vld [vmem:[%s3206] sm:$0xf]
      %v3208 = vld [vmem:[%s3206 + $0x4] sm:$0x3]
      %v3211 = vunpack.c.l.b16 %v3207
      %v3212 = vunpack.c.l.b16 %v3208
      %v3213 = vpack.c.b16 %v3212, %v3211
      %v3214 = vsel %vm1459, %v3175, 0
      %v3216 = vsel %vm1459, %v3177, 0
      %v3218 = vsel %vm1459, %v3179, 0
      %v3220 = vsel %vm1459, %v3181, 0
      %v3222 = vsel %vm1459, %v3183, 0
      %v3224 = vsel %vm1459, %v3185, 0
      %v3226 = vsel %vm1459, %v3187, 0
      %v3228 = vsel %vm1459, %v3189, 0
      %v3230 = vsel %vm1459, %v3191, 0
      %v3232 = vsel %vm1459, %v3193, 0
      %v3234 = vsel %vm1459, %v3195, 0
      %v3236 = vsel %vm1459, %v3197, 0
      %v3238 = vsel %vm1459, %v3199, 0
      %v3240 = vsel %vm1459, %v3201, 0
      %v3242 = vsel %vm1459, %v3203, 0
      %v3244 = vsel %vm1459, %v3205, 0
      %v3247 = vsel %vm1492, %v3213, 0
      %3249 = vmatprep.subr.bf16.mxu0 0
      %3250 = vmatpush1.bf16.msra.mxu0 0
      %3251 = vmatprep.subr.bf16.mxu0 0
      %3252 = vmatpush1.bf16.msra.mxu0 0
      %3253 = vmatprep.subr.bf16.mxu0 0
      %3254 = vmatpush1.bf16.msra.mxu0 0
      %3255 = vmatprep.subr.bf16.mxu0 0
      %3256 = vmatpush1.bf16.msra.mxu0 0
      %3257 = vmatprep.subr.bf16.mxu0 0
      %3258 = vmatpush1.bf16.msra.mxu0 0
      %3259 = vmatprep.subr.bf16.mxu0 0
      %3260 = vmatpush1.bf16.msra.mxu0 0
      %3261 = vmatprep.subr.bf16.mxu0 0
      %3262 = vmatpush1.bf16.msra.mxu0 0
      %3263 = vmatprep.subr.bf16.mxu0 0
      %3264 = vmatpush1.bf16.msra.mxu0 %v3247
      %3265 = vmatprep.subr.bf16.mxu0 0
      %3266 = vmatpush2.bf16.msra.mxu0 0
      %3267 = vmatprep.subr.bf16.mxu0 0
      %3268 = vmatpush2.bf16.msra.mxu0 0
      %3269 = vmatprep.subr.bf16.mxu0 0
      %3270 = vmatpush2.bf16.msra.mxu0 0
      %3271 = vmatprep.subr.bf16.mxu0 0
      %3272 = vmatpush2.bf16.msra.mxu0 0
      %3273 = vmatprep.subr.bf16.mxu0 0
      %3274 = vmatpush2.bf16.msra.mxu0 0
      %3275 = vmatprep.subr.bf16.mxu0 0
      %3276 = vmatpush2.bf16.msra.mxu0 0
      %3277 = vmatprep.subr.bf16.mxu0 0
      %3278 = vmatpush2.bf16.msra.mxu0 0
      %3279 = vmatprep.subr.bf16.mxu0 0
      %3280 = vmatpush2.bf16.msra.mxu0 0
      %3281 = vmatprep.mubr.bf16.mxu0 0
      %3282 = vmatmul.mubr.bf16.gmra.mxu0 %v3214
      %v3283 = vpop.f32.mrf.mxu0
      %v3284 = vadd.f32 0.0, %v3283
      %v3285 = vpop.f32.mrf.mxu0
      %v3286 = vpop.f32.mrf.mxu0
      %v3287 = vadd.f32 0.0, %v3286
      %v3288 = vpop.f32.mrf.mxu0
      %3289 = vmatprep.mubr.bf16.mxu0 0
      %3290 = vmatmul.mubr.bf16.gmra.mxu0 %v3216
      %v3291 = vpop.f32.mrf.mxu0
      %v3292 = vadd.f32 0.0, %v3291
      %v3293 = vpop.f32.mrf.mxu0
      %v3294 = vpop.f32.mrf.mxu0
      %v3295 = vadd.f32 0.0, %v3294
      %v3296 = vpop.f32.mrf.mxu0
      %3297 = vmatprep.mubr.bf16.mxu0 0
      %3298 = vmatmul.mubr.bf16.gmra.mxu0 %v3218
      %v3299 = vpop.f32.mrf.mxu0
      %v3300 = vadd.f32 0.0, %v3299
      %v3301 = vpop.f32.mrf.mxu0
      %v3302 = vpop.f32.mrf.mxu0
      %v3303 = vadd.f32 0.0, %v3302
      %v3304 = vpop.f32.mrf.mxu0
      %3305 = vmatprep.mubr.bf16.mxu0 0
      %3306 = vmatmul.mubr.bf16.gmra.mxu0 %v3220
      %v3307 = vpop.f32.mrf.mxu0
      %v3308 = vadd.f32 0.0, %v3307
      %v3309 = vpop.f32.mrf.mxu0
      %v3310 = vpop.f32.mrf.mxu0
      %v3311 = vadd.f32 0.0, %v3310
      %v3312 = vpop.f32.mrf.mxu0
      %3313 = vmatprep.mubr.bf16.mxu0 0
      %3314 = vmatmul.mubr.bf16.gmra.mxu0 %v3222
      %v3315 = vpop.f32.mrf.mxu0
      %v3316 = vadd.f32 0.0, %v3315
      %v3317 = vpop.f32.mrf.mxu0
      %v3318 = vpop.f32.mrf.mxu0
      %v3319 = vadd.f32 0.0, %v3318
      %v3320 = vpop.f32.mrf.mxu0
      %3321 = vmatprep.mubr.bf16.mxu0 0
      %3322 = vmatmul.mubr.bf16.gmra.mxu0 %v3224
      %v3323 = vpop.f32.mrf.mxu0
      %v3324 = vadd.f32 0.0, %v3323
      %v3325 = vpop.f32.mrf.mxu0
      %v3326 = vpop.f32.mrf.mxu0
      %v3327 = vadd.f32 0.0, %v3326
      %v3328 = vpop.f32.mrf.mxu0
      %3329 = vmatprep.mubr.bf16.mxu0 0
      %3330 = vmatmul.mubr.bf16.gmra.mxu0 %v3226
      %v3331 = vpop.f32.mrf.mxu0
      %v3332 = vadd.f32 0.0, %v3331
      %v3333 = vpop.f32.mrf.mxu0
      %v3334 = vpop.f32.mrf.mxu0
      %v3335 = vadd.f32 0.0, %v3334
      %v3336 = vpop.f32.mrf.mxu0
      %3337 = vmatprep.mubr.bf16.mxu0 0
      %3338 = vmatmul.mubr.bf16.gmra.mxu0 %v3228
      %v3339 = vpop.f32.mrf.mxu0
      %v3340 = vadd.f32 0.0, %v3339
      %v3341 = vpop.f32.mrf.mxu0
      %v3342 = vpop.f32.mrf.mxu0
      %v3343 = vadd.f32 0.0, %v3342
      %v3344 = vpop.f32.mrf.mxu0
      %3345 = vmatprep.mubr.bf16.mxu0 0
      %3346 = vmatmul.mubr.bf16.gmra.mxu0 %v3230
      %v3347 = vpop.f32.mrf.mxu0
      %v3348 = vadd.f32 0.0, %v3347
      %v3349 = vpop.f32.mrf.mxu0
      %v3350 = vpop.f32.mrf.mxu0
      %v3351 = vadd.f32 0.0, %v3350
      %v3352 = vpop.f32.mrf.mxu0
      %3353 = vmatprep.mubr.bf16.mxu0 0
      %3354 = vmatmul.mubr.bf16.gmra.mxu0 %v3232
      %v3355 = vpop.f32.mrf.mxu0
      %v3356 = vadd.f32 0.0, %v3355
      %v3357 = vpop.f32.mrf.mxu0
      %v3358 = vpop.f32.mrf.mxu0
      %v3359 = vadd.f32 0.0, %v3358
      %v3360 = vpop.f32.mrf.mxu0
      %3361 = vmatprep.mubr.bf16.mxu0 0
      %3362 = vmatmul.mubr.bf16.gmra.mxu0 %v3234
      %v3363 = vpop.f32.mrf.mxu0
      %v3364 = vadd.f32 0.0, %v3363
      %v3365 = vpop.f32.mrf.mxu0
      %v3366 = vpop.f32.mrf.mxu0
      %v3367 = vadd.f32 0.0, %v3366
      %v3368 = vpop.f32.mrf.mxu0
      %3369 = vmatprep.mubr.bf16.mxu0 0
      %3370 = vmatmul.mubr.bf16.gmra.mxu0 %v3236
      %v3371 = vpop.f32.mrf.mxu0
      %v3372 = vadd.f32 0.0, %v3371
      %v3373 = vpop.f32.mrf.mxu0
      %v3374 = vpop.f32.mrf.mxu0
      %v3375 = vadd.f32 0.0, %v3374
      %v3376 = vpop.f32.mrf.mxu0
      %3377 = vmatprep.mubr.bf16.mxu0 0
      %3378 = vmatmul.mubr.bf16.gmra.mxu0 %v3238
      %v3379 = vpop.f32.mrf.mxu0
      %v3380 = vadd.f32 0.0, %v3379
      %v3381 = vpop.f32.mrf.mxu0
      %v3382 = vpop.f32.mrf.mxu0
      %v3383 = vadd.f32 0.0, %v3382
      %v3384 = vpop.f32.mrf.mxu0
      %3385 = vmatprep.mubr.bf16.mxu0 0
      %3386 = vmatmul.mubr.bf16.gmra.mxu0 %v3240
      %v3387 = vpop.f32.mrf.mxu0
      %v3388 = vadd.f32 0.0, %v3387
      %v3389 = vpop.f32.mrf.mxu0
      %v3390 = vpop.f32.mrf.mxu0
      %v3391 = vadd.f32 0.0, %v3390
      %v3392 = vpop.f32.mrf.mxu0
      %3393 = vmatprep.mubr.bf16.mxu0 0
      %3394 = vmatmul.mubr.bf16.gmra.mxu0 %v3242
      %v3395 = vpop.f32.mrf.mxu0
      %v3396 = vadd.f32 0.0, %v3395
      %v3397 = vpop.f32.mrf.mxu0
      %v3398 = vpop.f32.mrf.mxu0
      %v3399 = vadd.f32 0.0, %v3398
      %v3400 = vpop.f32.mrf.mxu0
      %3401 = vmatprep.mubr.bf16.mxu0 0
      %3402 = vmatmul.mubr.bf16.gmra.mxu0 %v3244
      %v3403 = vpop.f32.mrf.mxu0
      %v3404 = vadd.f32 0.0, %v3403
      %v3405 = vpop.f32.mrf.mxu0
      %v3406 = vpop.f32.mrf.mxu0
      %v3407 = vadd.f32 0.0, %v3406
      %v3408 = vpop.f32.mrf.mxu0
      %3409 = vdwg.mxu0
      %v3410 = vld [vmem:[#allocation3] sm:$0xff]
      %v3411 = vld [vmem:[#allocation3 + $0x8] sm:$0xff]
      %v3412 = vld [vmem:[#allocation3 + $0x10] sm:$0xff]
      %v3413 = vld [vmem:[#allocation3 + $0x18] sm:$0xff]
      %v3414 = vld [vmem:[#allocation3 + $0x20] sm:$0xff]
      %v3415 = vld [vmem:[#allocation3 + $0x28] sm:$0xff]
      %v3416 = vld [vmem:[#allocation3 + $0x30] sm:$0xff]
      %v3417 = vld [vmem:[#allocation3 + $0x38] sm:$0xff]
      %v3418 = vld [vmem:[#allocation3 + $0x40] sm:$0xff]
      %v3419 = vld [vmem:[#allocation3 + $0x48] sm:$0xff]
      %v3420 = vld [vmem:[#allocation3 + $0x50] sm:$0xff]
      %v3421 = vld [vmem:[#allocation3 + $0x58] sm:$0xff]
      %v3422 = vld [vmem:[#allocation3 + $0x60] sm:$0xff]
      %v3423 = vld [vmem:[#allocation3 + $0x68] sm:$0xff]
      %v3424 = vld [vmem:[#allocation3 + $0x70] sm:$0xff]
      %v3425 = vld [vmem:[#allocation3 + $0x78] sm:$0xff]
      %v3426 = vld [vmem:[#allocation3 + $0x80] sm:$0xff]
      %v3427 = vld [vmem:[#allocation3 + $0x88] sm:$0xff]
      %v3428 = vld [vmem:[#allocation3 + $0x90] sm:$0xff]
      %v3429 = vld [vmem:[#allocation3 + $0x98] sm:$0xff]
      %v3430 = vld [vmem:[#allocation3 + $0xa0] sm:$0xff]
      %v3431 = vld [vmem:[#allocation3 + $0xa8] sm:$0xff]
      %v3432 = vld [vmem:[#allocation3 + $0xb0] sm:$0xff]
      %v3433 = vld [vmem:[#allocation3 + $0xb8] sm:$0xff]
      %v3434 = vld [vmem:[#allocation3 + $0xc0] sm:$0xff]
      %v3435 = vld [vmem:[#allocation3 + $0xc8] sm:$0xff]
      %v3436 = vld [vmem:[#allocation3 + $0xd0] sm:$0xff]
      %v3437 = vld [vmem:[#allocation3 + $0xd8] sm:$0xff]
      %v3438 = vld [vmem:[#allocation3 + $0xe0] sm:$0xff]
      %v3439 = vld [vmem:[#allocation3 + $0xe8] sm:$0xff]
      %v3440 = vld [vmem:[#allocation3 + $0xf0] sm:$0xff]
      %v3441 = vld [vmem:[#allocation3 + $0xf8] sm:$0xff]
      %v3442 = vadd.f32 %v3410, %v3284
      %v3443 = vadd.f32 %v3411, %v3287
      %v3444 = vadd.f32 %v3412, %v3292
      %v3445 = vadd.f32 %v3413, %v3295
      %v3446 = vadd.f32 %v3414, %v3300
      %v3447 = vadd.f32 %v3415, %v3303
      %v3448 = vadd.f32 %v3416, %v3308
      %v3449 = vadd.f32 %v3417, %v3311
      %v3450 = vadd.f32 %v3418, %v3316
      %v3451 = vadd.f32 %v3419, %v3319
      %v3452 = vadd.f32 %v3420, %v3324
      %v3453 = vadd.f32 %v3421, %v3327
      %v3454 = vadd.f32 %v3422, %v3332
      %v3455 = vadd.f32 %v3423, %v3335
      %v3456 = vadd.f32 %v3424, %v3340
      %v3457 = vadd.f32 %v3425, %v3343
      %v3458 = vadd.f32 %v3426, %v3348
      %v3459 = vadd.f32 %v3427, %v3351
      %v3460 = vadd.f32 %v3428, %v3356
      %v3461 = vadd.f32 %v3429, %v3359
      %v3462 = vadd.f32 %v3430, %v3364
      %v3463 = vadd.f32 %v3431, %v3367
      %v3464 = vadd.f32 %v3432, %v3372
      %v3465 = vadd.f32 %v3433, %v3375
      %v3466 = vadd.f32 %v3434, %v3380
      %v3467 = vadd.f32 %v3435, %v3383
      %v3468 = vadd.f32 %v3436, %v3388
      %v3469 = vadd.f32 %v3437, %v3391
      %v3470 = vadd.f32 %v3438, %v3396
      %v3471 = vadd.f32 %v3439, %v3399
      %v3472 = vadd.f32 %v3440, %v3404
      %v3473 = vadd.f32 %v3441, %v3407
      %3474 = vst.msk [vmem:[#allocation3] sm:$0xff] %vm1386, %v3442
      %3475 = vst.msk [vmem:[#allocation3 + $0x8] sm:$0xff] %vm1386, %v3443
      %3476 = vst.msk [vmem:[#allocation3 + $0x10] sm:$0xff] %vm1386, %v3444
      %3477 = vst.msk [vmem:[#allocation3 + $0x18] sm:$0xff] %vm1386, %v3445
      %3478 = vst.msk [vmem:[#allocation3 + $0x20] sm:$0xff] %vm1386, %v3446
      %3479 = vst.msk [vmem:[#allocation3 + $0x28] sm:$0xff] %vm1386, %v3447
      %3480 = vst.msk [vmem:[#allocation3 + $0x30] sm:$0xff] %vm1386, %v3448
      %3481 = vst.msk [vmem:[#allocation3 + $0x38] sm:$0xff] %vm1386, %v3449
      %3482 = vst.msk [vmem:[#allocation3 + $0x40] sm:$0xff] %vm1386, %v3450
      %3483 = vst.msk [vmem:[#allocation3 + $0x48] sm:$0xff] %vm1386, %v3451
      %3484 = vst.msk [vmem:[#allocation3 + $0x50] sm:$0xff] %vm1386, %v3452
      %3485 = vst.msk [vmem:[#allocation3 + $0x58] sm:$0xff] %vm1386, %v3453
      %3486 = vst.msk [vmem:[#allocation3 + $0x60] sm:$0xff] %vm1386, %v3454
      %3487 = vst.msk [vmem:[#allocation3 + $0x68] sm:$0xff] %vm1386, %v3455
      %3488 = vst.msk [vmem:[#allocation3 + $0x70] sm:$0xff] %vm1386, %v3456
      %3489 = vst.msk [vmem:[#allocation3 + $0x78] sm:$0xff] %vm1386, %v3457
      %3490 = vst.msk [vmem:[#allocation3 + $0x80] sm:$0xff] %vm1386, %v3458
      %3491 = vst.msk [vmem:[#allocation3 + $0x88] sm:$0xff] %vm1386, %v3459
      %3492 = vst.msk [vmem:[#allocation3 + $0x90] sm:$0xff] %vm1386, %v3460
      %3493 = vst.msk [vmem:[#allocation3 + $0x98] sm:$0xff] %vm1386, %v3461
      %3494 = vst.msk [vmem:[#allocation3 + $0xa0] sm:$0xff] %vm1386, %v3462
      %3495 = vst.msk [vmem:[#allocation3 + $0xa8] sm:$0xff] %vm1386, %v3463
      %3496 = vst.msk [vmem:[#allocation3 + $0xb0] sm:$0xff] %vm1386, %v3464
      %3497 = vst.msk [vmem:[#allocation3 + $0xb8] sm:$0xff] %vm1386, %v3465
      %3498 = vst.msk [vmem:[#allocation3 + $0xc0] sm:$0xff] %vm1386, %v3466
      %3499 = vst.msk [vmem:[#allocation3 + $0xc8] sm:$0xff] %vm1386, %v3467
      %3500 = vst.msk [vmem:[#allocation3 + $0xd0] sm:$0xff] %vm1386, %v3468
      %3501 = vst.msk [vmem:[#allocation3 + $0xd8] sm:$0xff] %vm1386, %v3469
      %3502 = vst.msk [vmem:[#allocation3 + $0xe0] sm:$0xff] %vm1386, %v3470
      %3503 = vst.msk [vmem:[#allocation3 + $0xe8] sm:$0xff] %vm1386, %v3471
      %3504 = vst.msk [vmem:[#allocation3 + $0xf0] sm:$0xff] %vm1386, %v3472
      %3505 = vst.msk [vmem:[#allocation3 + $0xf8] sm:$0xff] %vm1386, %v3473
      %v3506 = vld [vmem:[#allocation3] sm:$0xff]
      %v3507 = vld [vmem:[#allocation3 + $0x8] sm:$0xff]
      %v3508 = vld [vmem:[#allocation3 + $0x10] sm:$0xff]
      %v3509 = vld [vmem:[#allocation3 + $0x18] sm:$0xff]
      %v3510 = vld [vmem:[#allocation3 + $0x20] sm:$0xff]
      %v3511 = vld [vmem:[#allocation3 + $0x28] sm:$0xff]
      %v3512 = vld [vmem:[#allocation3 + $0x30] sm:$0xff]
      %v3513 = vld [vmem:[#allocation3 + $0x38] sm:$0xff]
      %v3514 = vld [vmem:[#allocation3 + $0x40] sm:$0xff]
      %v3515 = vld [vmem:[#allocation3 + $0x48] sm:$0xff]
      %v3516 = vld [vmem:[#allocation3 + $0x50] sm:$0xff]
      %v3517 = vld [vmem:[#allocation3 + $0x58] sm:$0xff]
      %v3518 = vld [vmem:[#allocation3 + $0x60] sm:$0xff]
      %v3519 = vld [vmem:[#allocation3 + $0x68] sm:$0xff]
      %v3520 = vld [vmem:[#allocation3 + $0x70] sm:$0xff]
      %v3521 = vld [vmem:[#allocation3 + $0x78] sm:$0xff]
      %v3522 = vld [vmem:[#allocation3 + $0x80] sm:$0xff]
      %v3523 = vld [vmem:[#allocation3 + $0x88] sm:$0xff]
      %v3524 = vld [vmem:[#allocation3 + $0x90] sm:$0xff]
      %v3525 = vld [vmem:[#allocation3 + $0x98] sm:$0xff]
      %v3526 = vld [vmem:[#allocation3 + $0xa0] sm:$0xff]
      %v3527 = vld [vmem:[#allocation3 + $0xa8] sm:$0xff]
      %v3528 = vld [vmem:[#allocation3 + $0xb0] sm:$0xff]
      %v3529 = vld [vmem:[#allocation3 + $0xb8] sm:$0xff]
      %v3530 = vld [vmem:[#allocation3 + $0xc0] sm:$0xff]
      %v3531 = vld [vmem:[#allocation3 + $0xc8] sm:$0xff]
      %v3532 = vld [vmem:[#allocation3 + $0xd0] sm:$0xff]
      %v3533 = vld [vmem:[#allocation3 + $0xd8] sm:$0xff]
      %v3534 = vld [vmem:[#allocation3 + $0xe0] sm:$0xff]
      %v3535 = vld [vmem:[#allocation3 + $0xe8] sm:$0xff]
      %v3536 = vld [vmem:[#allocation3 + $0xf0] sm:$0xff]
      %v3537 = vld [vmem:[#allocation3 + $0xf8] sm:$0xff]
      %v3538 = vpack.c.bf16 %v3507, %v3506
      %v3539 = vpack.c.bf16 %v3509, %v3508
      %v3540 = vpack.c.bf16 %v3511, %v3510
      %v3541 = vpack.c.bf16 %v3513, %v3512
      %v3542 = vpack.c.bf16 %v3515, %v3514
      %v3543 = vpack.c.bf16 %v3517, %v3516
      %v3544 = vpack.c.bf16 %v3519, %v3518
      %v3545 = vpack.c.bf16 %v3521, %v3520
      %v3546 = vpack.c.bf16 %v3523, %v3522
      %v3547 = vpack.c.bf16 %v3525, %v3524
      %v3548 = vpack.c.bf16 %v3527, %v3526
      %v3549 = vpack.c.bf16 %v3529, %v3528
      %v3550 = vpack.c.bf16 %v3531, %v3530
      %v3551 = vpack.c.bf16 %v3533, %v3532
      %v3552 = vpack.c.bf16 %v3535, %v3534
      %v3553 = vpack.c.bf16 %v3537, %v3536
      %v3570 = vunpack.c.l.b16 %v3538
      %v3571 = vunpack.c.h.b16 %v3538
      %v3572 = vunpack.c.l.b16 %v3539
      %v3573 = vunpack.c.h.b16 %v3539
      %v3574 = vunpack.c.l.b16 %v3540
      %v3575 = vunpack.c.h.b16 %v3540
      %v3576 = vunpack.c.l.b16 %v3541
      %v3577 = vunpack.c.h.b16 %v3541
      %v3578 = vunpack.c.l.b16 %v3542
      %v3579 = vunpack.c.h.b16 %v3542
      %v3580 = vunpack.c.l.b16 %v3543
      %v3581 = vunpack.c.h.b16 %v3543
      %v3582 = vunpack.c.l.b16 %v3544
      %v3583 = vunpack.c.h.b16 %v3544
      %v3584 = vunpack.c.l.b16 %v3545
      %v3585 = vunpack.c.h.b16 %v3545
      %v3586 = vunpack.c.l.b16 %v3546
      %v3587 = vunpack.c.h.b16 %v3546
      %v3588 = vunpack.c.l.b16 %v3547
      %v3589 = vunpack.c.h.b16 %v3547
      %v3590 = vunpack.c.l.b16 %v3548
      %v3591 = vunpack.c.h.b16 %v3548
      %v3592 = vunpack.c.l.b16 %v3549
      %v3593 = vunpack.c.h.b16 %v3549
      %v3594 = vunpack.c.l.b16 %v3550
      %v3595 = vunpack.c.h.b16 %v3550
      %v3596 = vunpack.c.l.b16 %v3551
      %v3597 = vunpack.c.h.b16 %v3551
      %v3598 = vunpack.c.l.b16 %v3552
      %v3599 = vunpack.c.h.b16 %v3552
      %v3600 = vunpack.c.l.b16 %v3553
      %v3601 = vunpack.c.h.b16 %v3553
      %v3602 = vpack.c.b16 %v3570, %v3570
      %v3603 = vpack.c.b16 %v3571, %v3571
      %v3604 = vpack.c.b16 %v3572, %v3572
      %v3605 = vpack.c.b16 %v3573, %v3573
      %v3606 = vpack.c.b16 %v3574, %v3574
      %v3607 = vpack.c.b16 %v3575, %v3575
      %v3608 = vpack.c.b16 %v3576, %v3576
      %v3609 = vpack.c.b16 %v3577, %v3577
      %v3610 = vpack.c.b16 %v3578, %v3578
      %v3611 = vpack.c.b16 %v3579, %v3579
      %v3612 = vpack.c.b16 %v3580, %v3580
      %v3613 = vpack.c.b16 %v3581, %v3581
      %v3614 = vpack.c.b16 %v3582, %v3582
      %v3615 = vpack.c.b16 %v3583, %v3583
      %v3616 = vpack.c.b16 %v3584, %v3584
      %v3617 = vpack.c.b16 %v3585, %v3585
      %v3618 = vpack.c.b16 %v3586, %v3586
      %v3619 = vpack.c.b16 %v3587, %v3587
      %v3620 = vpack.c.b16 %v3588, %v3588
      %v3621 = vpack.c.b16 %v3589, %v3589
      %v3622 = vpack.c.b16 %v3590, %v3590
      %v3623 = vpack.c.b16 %v3591, %v3591
      %v3624 = vpack.c.b16 %v3592, %v3592
      %v3625 = vpack.c.b16 %v3593, %v3593
      %v3626 = vpack.c.b16 %v3594, %v3594
      %v3627 = vpack.c.b16 %v3595, %v3595
      %v3628 = vpack.c.b16 %v3596, %v3596
      %v3629 = vpack.c.b16 %v3597, %v3597
      %v3630 = vpack.c.b16 %v3598, %v3598
      %v3631 = vpack.c.b16 %v3599, %v3599
      %v3632 = vpack.c.b16 %v3600, %v3600
      %v3633 = vpack.c.b16 %v3601, %v3601
      %3666 = vst.msk [vmem:[%s231] sm:$0xf] %vm783, %v3602
      %3667 = vst.msk [vmem:[%s231 + $0x4] sm:$0xf] %vm783, %v3603
      %3668 = vst.msk [vmem:[%s231 + $0x8] sm:$0xf] %vm783, %v3604
      %3669 = vst.msk [vmem:[%s231 + $0xc] sm:$0xf] %vm783, %v3605
      %3670 = vst.msk [vmem:[%s231 + $0x10] sm:$0xf] %vm783, %v3606
      %3671 = vst.msk [vmem:[%s231 + $0x14] sm:$0xf] %vm783, %v3607
      %3672 = vst.msk [vmem:[%s231 + $0x18] sm:$0xf] %vm783, %v3608
      %3673 = vst.msk [vmem:[%s231 + $0x1c] sm:$0xf] %vm783, %v3609
      %3674 = vst.msk [vmem:[%s231 + $0x20] sm:$0xf] %vm783, %v3610
      %3675 = vst.msk [vmem:[%s231 + $0x24] sm:$0xf] %vm783, %v3611
      %3676 = vst.msk [vmem:[%s231 + $0x28] sm:$0xf] %vm783, %v3612
      %3677 = vst.msk [vmem:[%s231 + $0x2c] sm:$0xf] %vm783, %v3613
      %3678 = vst.msk [vmem:[%s231 + $0x30] sm:$0xf] %vm783, %v3614
      %3679 = vst.msk [vmem:[%s231 + $0x34] sm:$0xf] %vm783, %v3615
      %3680 = vst.msk [vmem:[%s231 + $0x38] sm:$0xf] %vm783, %v3616
      %3681 = vst.msk [vmem:[%s231 + $0x3c] sm:$0xf] %vm783, %v3617
      %3682 = vst.msk [vmem:[%s231 + $0x40] sm:$0xf] %vm783, %v3618
      %3683 = vst.msk [vmem:[%s231 + $0x44] sm:$0xf] %vm783, %v3619
      %3684 = vst.msk [vmem:[%s231 + $0x48] sm:$0xf] %vm783, %v3620
      %3685 = vst.msk [vmem:[%s231 + $0x4c] sm:$0xf] %vm783, %v3621
      %3686 = vst.msk [vmem:[%s231 + $0x50] sm:$0xf] %vm783, %v3622
      %3687 = vst.msk [vmem:[%s231 + $0x54] sm:$0xf] %vm783, %v3623
      %3688 = vst.msk [vmem:[%s231 + $0x58] sm:$0xf] %vm783, %v3624
      %3689 = vst.msk [vmem:[%s231 + $0x5c] sm:$0xf] %vm783, %v3625
      %3690 = vst.msk [vmem:[%s231 + $0x60] sm:$0xf] %vm783, %v3626
      %3691 = vst.msk [vmem:[%s231 + $0x64] sm:$0xf] %vm783, %v3627
      %3692 = vst.msk [vmem:[%s231 + $0x68] sm:$0xf] %vm783, %v3628
      %3693 = vst.msk [vmem:[%s231 + $0x6c] sm:$0xf] %vm783, %v3629
      %3694 = vst.msk [vmem:[%s231 + $0x70] sm:$0xf] %vm783, %v3630
      %3695 = vst.msk [vmem:[%s231 + $0x74] sm:$0xf] %vm783, %v3631
      %3696 = vst.msk [vmem:[%s231 + $0x78] sm:$0xf] %vm783, %v3632
      %3697 = vst.msk [vmem:[%s231 + $0x7c] sm:$0xf] %vm783, %v3633
      %v3698 = vsel %vm1386, %v3506, 0.0
      %v3699 = vsel %vm1386, %v3507, 0.0
      %v3700 = vadd.f32 %v3698, %v3699
      %v3701 = vsel %vm1386, %v3508, 0.0
      %v3702 = vadd.f32 %v3700, %v3701
      %v3703 = vsel %vm1386, %v3509, 0.0
      %v3704 = vadd.f32 %v3702, %v3703
      %v3705 = vsel %vm1386, %v3510, 0.0
      %v3706 = vadd.f32 %v3704, %v3705
      %v3707 = vsel %vm1386, %v3511, 0.0
      %v3708 = vadd.f32 %v3706, %v3707
      %v3709 = vsel %vm1386, %v3512, 0.0
      %v3710 = vadd.f32 %v3708, %v3709
      %v3711 = vsel %vm1386, %v3513, 0.0
      %v3712 = vadd.f32 %v3710, %v3711
      %v3713 = vsel %vm1386, %v3514, 0.0
      %v3714 = vadd.f32 %v3712, %v3713
      %v3715 = vsel %vm1386, %v3515, 0.0
      %v3716 = vadd.f32 %v3714, %v3715
      %v3717 = vsel %vm1386, %v3516, 0.0
      %v3718 = vadd.f32 %v3716, %v3717
      %v3719 = vsel %vm1386, %v3517, 0.0
      %v3720 = vadd.f32 %v3718, %v3719
      %v3721 = vsel %vm1386, %v3518, 0.0
      %v3722 = vadd.f32 %v3720, %v3721
      %v3723 = vsel %vm1386, %v3519, 0.0
      %v3724 = vadd.f32 %v3722, %v3723
      %v3725 = vsel %vm1386, %v3520, 0.0
      %v3726 = vadd.f32 %v3724, %v3725
      %v3727 = vsel %vm1386, %v3521, 0.0
      %v3728 = vadd.f32 %v3726, %v3727
      %v3729 = vsel %vm1386, %v3522, 0.0
      %v3730 = vadd.f32 %v3728, %v3729
      %v3731 = vsel %vm1386, %v3523, 0.0
      %v3732 = vadd.f32 %v3730, %v3731
      %v3733 = vsel %vm1386, %v3524, 0.0
      %v3734 = vadd.f32 %v3732, %v3733
      %v3735 = vsel %vm1386, %v3525, 0.0
      %v3736 = vadd.f32 %v3734, %v3735
      %v3737 = vsel %vm1386, %v3526, 0.0
      %v3738 = vadd.f32 %v3736, %v3737
      %v3739 = vsel %vm1386, %v3527, 0.0
      %v3740 = vadd.f32 %v3738, %v3739
      %v3741 = vsel %vm1386, %v3528, 0.0
      %v3742 = vadd.f32 %v3740, %v3741
      %v3743 = vsel %vm1386, %v3529, 0.0
      %v3744 = vadd.f32 %v3742, %v3743
      %v3745 = vsel %vm1386, %v3530, 0.0
      %v3746 = vadd.f32 %v3744, %v3745
      %v3747 = vsel %vm1386, %v3531, 0.0
      %v3748 = vadd.f32 %v3746, %v3747
      %v3749 = vsel %vm1386, %v3532, 0.0
      %v3750 = vadd.f32 %v3748, %v3749
      %v3751 = vsel %vm1386, %v3533, 0.0
      %v3752 = vadd.f32 %v3750, %v3751
      %v3753 = vsel %vm1386, %v3534, 0.0
      %v3754 = vadd.f32 %v3752, %v3753
      %v3755 = vsel %vm1386, %v3535, 0.0
      %v3756 = vadd.f32 %v3754, %v3755
      %v3757 = vsel %vm1386, %v3536, 0.0
      %v3758 = vadd.f32 %v3756, %v3757
      %v3759 = vsel %vm1386, %v3537, 0.0
      %v3760 = vadd.f32 %v3758, %v3759
      %v3761 = vrot.slane %v3760, 4
      %v3762 = vadd.f32 %v3760, %v3761
      %v3763 = vrot.slane %v3762, 2
      %v3764 = vadd.f32 %v3762, %v3763
      %v3765 = vrot.slane %v3764, 1
      %v3766 = vadd.f32 %v3764, %v3765
      %v3767 = vmul.f32 %v3506, %v3506
      %v3768 = vmul.f32 %v3507, %v3507
      %v3769 = vmul.f32 %v3508, %v3508
      %v3770 = vmul.f32 %v3509, %v3509
      %v3771 = vmul.f32 %v3510, %v3510
      %v3772 = vmul.f32 %v3511, %v3511
      %v3773 = vmul.f32 %v3512, %v3512
      %v3774 = vmul.f32 %v3513, %v3513
      %v3775 = vmul.f32 %v3514, %v3514
      %v3776 = vmul.f32 %v3515, %v3515
      %v3777 = vmul.f32 %v3516, %v3516
      %v3778 = vmul.f32 %v3517, %v3517
      %v3779 = vmul.f32 %v3518, %v3518
      %v3780 = vmul.f32 %v3519, %v3519
      %v3781 = vmul.f32 %v3520, %v3520
      %v3782 = vmul.f32 %v3521, %v3521
      %v3783 = vmul.f32 %v3522, %v3522
      %v3784 = vmul.f32 %v3523, %v3523
      %v3785 = vmul.f32 %v3524, %v3524
      %v3786 = vmul.f32 %v3525, %v3525
      %v3787 = vmul.f32 %v3526, %v3526
      %v3788 = vmul.f32 %v3527, %v3527
      %v3789 = vmul.f32 %v3528, %v3528
      %v3790 = vmul.f32 %v3529, %v3529
      %v3791 = vmul.f32 %v3530, %v3530
      %v3792 = vmul.f32 %v3531, %v3531
      %v3793 = vmul.f32 %v3532, %v3532
      %v3794 = vmul.f32 %v3533, %v3533
      %v3795 = vmul.f32 %v3534, %v3534
      %v3796 = vmul.f32 %v3535, %v3535
      %v3797 = vmul.f32 %v3536, %v3536
      %v3798 = vmul.f32 %v3537, %v3537
      %v3799 = vsel %vm1386, %v3767, 0.0
      %v3800 = vsel %vm1386, %v3768, 0.0
      %v3801 = vadd.f32 %v3799, %v3800
      %v3802 = vsel %vm1386, %v3769, 0.0
      %v3803 = vadd.f32 %v3801, %v3802
      %v3804 = vsel %vm1386, %v3770, 0.0
      %v3805 = vadd.f32 %v3803, %v3804
      %v3806 = vsel %vm1386, %v3771, 0.0
      %v3807 = vadd.f32 %v3805, %v3806
      %v3808 = vsel %vm1386, %v3772, 0.0
      %v3809 = vadd.f32 %v3807, %v3808
      %v3810 = vsel %vm1386, %v3773, 0.0
      %v3811 = vadd.f32 %v3809, %v3810
      %v3812 = vsel %vm1386, %v3774, 0.0
      %v3813 = vadd.f32 %v3811, %v3812
      %v3814 = vsel %vm1386, %v3775, 0.0
      %v3815 = vadd.f32 %v3813, %v3814
      %v3816 = vsel %vm1386, %v3776, 0.0
      %v3817 = vadd.f32 %v3815, %v3816
      %v3818 = vsel %vm1386, %v3777, 0.0
      %v3819 = vadd.f32 %v3817, %v3818
      %v3820 = vsel %vm1386, %v3778, 0.0
      %v3821 = vadd.f32 %v3819, %v3820
      %v3822 = vsel %vm1386, %v3779, 0.0
      %v3823 = vadd.f32 %v3821, %v3822
      %v3824 = vsel %vm1386, %v3780, 0.0
      %v3825 = vadd.f32 %v3823, %v3824
      %v3826 = vsel %vm1386, %v3781, 0.0
      %v3827 = vadd.f32 %v3825, %v3826
      %v3828 = vsel %vm1386, %v3782, 0.0
      %v3829 = vadd.f32 %v3827, %v3828
      %v3830 = vsel %vm1386, %v3783, 0.0
      %v3831 = vadd.f32 %v3829, %v3830
      %v3832 = vsel %vm1386, %v3784, 0.0
      %v3833 = vadd.f32 %v3831, %v3832
      %v3834 = vsel %vm1386, %v3785, 0.0
      %v3835 = vadd.f32 %v3833, %v3834
      %v3836 = vsel %vm1386, %v3786, 0.0
      %v3837 = vadd.f32 %v3835, %v3836
      %v3838 = vsel %vm1386, %v3787, 0.0
      %v3839 = vadd.f32 %v3837, %v3838
      %v3840 = vsel %vm1386, %v3788, 0.0
      %v3841 = vadd.f32 %v3839, %v3840
      %v3842 = vsel %vm1386, %v3789, 0.0
      %v3843 = vadd.f32 %v3841, %v3842
      %v3844 = vsel %vm1386, %v3790, 0.0
      %v3845 = vadd.f32 %v3843, %v3844
      %v3846 = vsel %vm1386, %v3791, 0.0
      %v3847 = vadd.f32 %v3845, %v3846
      %v3848 = vsel %vm1386, %v3792, 0.0
      %v3849 = vadd.f32 %v3847, %v3848
      %v3850 = vsel %vm1386, %v3793, 0.0
      %v3851 = vadd.f32 %v3849, %v3850
      %v3852 = vsel %vm1386, %v3794, 0.0
      %v3853 = vadd.f32 %v3851, %v3852
      %v3854 = vsel %vm1386, %v3795, 0.0
      %v3855 = vadd.f32 %v3853, %v3854
      %v3856 = vsel %vm1386, %v3796, 0.0
      %v3857 = vadd.f32 %v3855, %v3856
      %v3858 = vsel %vm1386, %v3797, 0.0
      %v3859 = vadd.f32 %v3857, %v3858
      %v3860 = vsel %vm1386, %v3798, 0.0
      %v3861 = vadd.f32 %v3859, %v3860
      %v3862 = vrot.slane %v3861, 4
      %v3863 = vadd.f32 %v3861, %v3862
      %v3864 = vrot.slane %v3863, 2
      %v3865 = vadd.f32 %v3863, %v3864
      %v3866 = vrot.slane %v3865, 1
      %v3867 = vadd.f32 %v3865, %v3866
      %vm3868 = vcmask 1040384
      %v3869 = vsel %vm3868, %v3766, %v3867
      %vm3870 = vcmask 25600
      %3871 = vst.msk [vmem:[%s235] sm:$0x3] %vm3870, %v3869
      %p3872 = scmp.lt.s32.totalorder %s17, 1
      %s3873 = scalar_select %p3872, %s17, 1
      %s3874 = smul.addr %s3873, 32
      %s3875 = smul.addr %s3874, 4
      %s3876 = scalar_lea.vmem %s4, %s3875
      %p3877 = scmp.lt.s32.totalorder %s17, 1
      %s3878 = scalar_select %p3877, %s17, 1
      %s3879 = smul.addr %s3878, 2
      %s3880 = scalar_lea.vmem %s5, %s3879
      // Predicated region
      $region37: #{up_block_forward.6} parent=35 // pred_check
        %p3881 = pneg %p124
      $region38: #{up_block_forward.6} parent=35 // pred_check_branch
        %3883 = sbr.rel (%p3881) target = $region40
      $region39: #{up_block_forward.6} parent=35 // pred_region
        _
      $region40: #{up_block_forward.6} parent=35 // pred_fallthru
        _
      // Predicated region
      $region41: #{up_block_forward.6} parent=35 // pred_check
        %p3884 = pneg %p150
      $region42: #{up_block_forward.6} parent=35 // pred_check_branch
        %3886 = sbr.rel (%p3884) target = $region44
      $region43: #{up_block_forward.6} parent=35 // pred_region
        _
      $region44: #{up_block_forward.6} parent=35 // pred_fallthru
        _
    $region36: #{up_block_forward.6} parent=5 // pred_fallthru
      _
    %p3887 = scmp.le.s32.totalorder 2, %s12
    // Predicated region
    $region45: #{up_block_forward.6} parent=5 // pred_check
      %p3888 = pneg %p3887
    $region46: #{up_block_forward.6} parent=5 // pred_check_branch
      %3890 = sbr.rel (%p3888) target = $region48
    $region47: #{up_block_forward.6} parent=5 // pred_region
      %s3891 = ssub.s32 %s12, 2
      // Predicated region
      $region49: #{up_block_forward.6} parent=47 // pred_check
        %p3892 = pneg %p130
      $region50: #{up_block_forward.6} parent=47 // pred_check_branch
        %3894 = sbr.rel (%p3892) target = $region52
      $region51: #{up_block_forward.6} parent=47 // pred_region
        %p3895 = scmp.lt.s32.totalorder %s18, 1
        %s3896 = scalar_select %p3895, %s18, 1
        %s3897 = smul.addr %s3896, 32
        %s3898 = smul.addr %s3897, 4
        %s3899 = scalar_lea.vmem %s4, %s3898
      $region52: #{up_block_forward.6} parent=47 // pred_fallthru
        _
      // Predicated region
      $region53: #{up_block_forward.6} parent=47 // pred_check
        %p3900 = pneg %p156
      $region54: #{up_block_forward.6} parent=47 // pred_check_branch
        %3902 = sbr.rel (%p3900) target = $region56
      $region55: #{up_block_forward.6} parent=47 // pred_region
        %p3903 = scmp.lt.s32.totalorder %s18, 1
        %s3904 = scalar_select %p3903, %s18, 1
        %s3905 = smul.addr %s3904, 2
        %s3906 = scalar_lea.vmem %s5, %s3905
      $region56: #{up_block_forward.6} parent=47 // pred_fallthru
        _
    $region48: #{up_block_forward.6} parent=5 // pred_fallthru
      _
  $region6: #{up_block_forward.6} parent=0 // loop_footer
    %s16 = sadd.s32 1, %s12
  $region7: #{up_block_forward.6} parent=0 // loop_footer_branch
    %11 = sbr.rel target = $region3
  $region8: #{up_block_forward.6} parent=0 // loop_exit
    _

// kernel: up_block_forward.5
$region0: #{up_block_forward.5}
  #allocation0 [shape = 'u32[]', space=smem, size = 0x4, offset = 0x4, fixed_abs, tag = 'smem constant byte address 0x4 - core index']
  #allocation1 [shape = 'u32[144,128]{1,0:T(1,128)}', space=vmem, size = 0x12000, scoped, tag = 'internal scratch']
  #allocation2 [shape = 'bf16[18,18,4]{2,1,0:T(8,128)(2,1)}', space=vmem, size = 0x1b000, scoped, tag = 'scratch operand']
  #allocation3 [shape = 'bf16[18,18,4]{2,1,0:T(8,128)(2,1)}', space=vmem, size = 0x1b000, scoped, tag = 'scratch operand']
  #allocation4 [shape = 'f32[256,4]{1,0:T(8,128)}', space=vmem, size = 0x20000, scoped, tag = 'scratch operand']
  %s0 = inlined_call_operand.vmem [shape: bf16[2,16,16,4], index: 0, kind: input, shape index: {}]
  %s1 = inlined_call_operand.vmem [shape: f32[2,16,16,4], index: 1, kind: input, shape index: {}]
  %s2 = inlined_call_operand.vmem [shape: bf16[3,12,4], index: 2, kind: input, shape index: {}]
  %s3 = inlined_call_operand.vmem [shape: bf16[3,12,4], index: 3, kind: input, shape index: {}]
  %s4 = inlined_call_operand.vmem [shape: bf16[2,16,16,4], index: 4, kind: output, shape index: {0}]
  %s5 = inlined_call_operand.vmem [shape: f32[2,2,4], index: 5, kind: output, shape index: {1}]
  %6 = xla_tuple %s4, %s5
  %s7 = sld [smem:[#allocation0]]
  $region57: #{up_block_forward.5} parent=0
    _
  %s9 = ssub.s32 1, %s7
  %s10 = scalar_select 0, %s9, %s7
  loop: start=0, step=1, limit=4
  $region2: #{up_block_forward.5} parent=0 // loop_pre_header
    _
  $region3: #{up_block_forward.5} parent=0 // loop_header
    %s12 = sphi 0, %s16
    %p13 = scmp.ge.s32.totalorder %s12, 4
    %s22 = sphi 0, %s24
    %s25 = sphi 0, %s22
    %s26 = sphi 0, %s25
    %s42 = sphi 0, %s26
    %s48 = sphi 0, %s50
    %s51 = sphi 0, %s48
    %s52 = sphi 0, %s51
    %s68 = sphi 0, %s52
    %s72 = sphi 0, %s72
    %s74 = sphi 0, %s72
    %s75 = sphi 0, %s74
    %s89 = sphi 0, %s75
    %s93 = sphi 0, %s93
    %s95 = sphi 0, %s93
    %s96 = sphi 0, %s95
    %s110 = sphi 0, %s96
    %s116 = sphi 0, %s118
    %s119 = sphi 0, %s116
    %s120 = sphi 0, %s119
    %s136 = sphi 0, %s120
    %s142 = sphi 0, %s144
    %s145 = sphi 0, %s142
    %s146 = sphi 0, %s145
    %s162 = sphi 0, %s146
  $region4: #{up_block_forward.5} parent=0 // loop_header_branch
    %15 = sbr.rel (%p13) target = $region8
  $region5: #{up_block_forward.5} parent=0 // loop_body
    %s17 = ssub.s32 %s12, 1
    %s18 = ssub.s32 %s12, 2
    %s19 = sadd.s32 %s12, 1
    %s20 = ssub.s32 %s12, %s19
    %p21 = scmp.eq.s32.totalorder %s20, 0
    %s23 = sadd.s32 %s22, 1
    %s24 = scalar_select %p21, %s22, %s23
    %p27 = pneg %p21
    %p28 = scmp.eq.s32.totalorder %s12, 1
    %p29 = por %p27, %p28
    %p30 = scmp.ne.s32.totalorder %s22, %s25
    %p31 = scmp.eq.s32.totalorder %s12, 0
    %p32 = por %p30, %p31
    %p33 = scmp.ne.s32.totalorder %s22, %s25
    %p34 = scmp.eq.s32.totalorder %s17, 1
    %p35 = por %p33, %p34
    %p36 = scmp.ne.s32.totalorder %s25, %s26
    %p37 = scmp.eq.s32.totalorder %s17, 0
    %p38 = por %p36, %p37
    %p39 = scmp.ne.s32.totalorder %s25, %s26
    %p40 = scmp.eq.s32.totalorder %s18, 1
    %p41 = por %p39, %p40
    %p43 = scmp.ne.s32.totalorder %s26, %s42
    %p44 = scmp.eq.s32.totalorder %s18, 0
    %p45 = por %p43, %p44
    %s46 = ssub.s32 %s12, %s19
    %p47 = scmp.eq.s32.totalorder %s46, 0
    %s49 = sadd.s32 %s48, 1
    %s50 = scalar_select %p47, %s48, %s49
    %p53 = pneg %p47
    %p54 = scmp.eq.s32.totalorder %s12, 1
    %p55 = por %p53, %p54
    %p56 = scmp.ne.s32.totalorder %s48, %s51
    %p57 = scmp.eq.s32.totalorder %s12, 0
    %p58 = por %p56, %p57
    %p59 = scmp.ne.s32.totalorder %s48, %s51
    %p60 = scmp.eq.s32.totalorder %s17, 1
    %p61 = por %p59, %p60
    %p62 = scmp.ne.s32.totalorder %s51, %s52
    %p63 = scmp.eq.s32.totalorder %s17, 0
    %p64 = por %p62, %p63
    %p65 = scmp.ne.s32.totalorder %s51, %s52
    %p66 = scmp.eq.s32.totalorder %s18, 1
    %p67 = por %p65, %p66
    %p69 = scmp.ne.s32.totalorder %s52, %s68
    %p70 = scmp.eq.s32.totalorder %s18, 0
    %p71 = por %p69, %p70
    %s73 = sadd.s32 %s72, 1
    %p76 = scmp.eq.s32.totalorder %s12, 1
    %p77 = scmp.ne.s32.totalorder %s72, %s74
    %p78 = scmp.eq.s32.totalorder %s12, 0
    %p79 = por %p77, %p78
    %p80 = scmp.ne.s32.totalorder %s72, %s74
    %p81 = scmp.eq.s32.totalorder %s17, 1
    %p82 = por %p80, %p81
    %p83 = scmp.ne.s32.totalorder %s74, %s75
    %p84 = scmp.eq.s32.totalorder %s17, 0
    %p85 = por %p83, %p84
    %p86 = scmp.ne.s32.totalorder %s74, %s75
    %p87 = scmp.eq.s32.totalorder %s18, 1
    %p88 = por %p86, %p87
    %p90 = scmp.ne.s32.totalorder %s75, %s89
    %p91 = scmp.eq.s32.totalorder %s18, 0
    %p92 = por %p90, %p91
    %s94 = sadd.s32 %s93, 1
    %p97 = scmp.eq.s32.totalorder %s12, 1
    %p98 = scmp.ne.s32.totalorder %s93, %s95
    %p99 = scmp.eq.s32.totalorder %s12, 0
    %p100 = por %p98, %p99
    %p101 = scmp.ne.s32.totalorder %s93, %s95
    %p102 = scmp.eq.s32.totalorder %s17, 1
    %p103 = por %p101, %p102
    %p104 = scmp.ne.s32.totalorder %s95, %s96
    %p105 = scmp.eq.s32.totalorder %s17, 0
    %p106 = por %p104, %p105
    %p107 = scmp.ne.s32.totalorder %s95, %s96
    %p108 = scmp.eq.s32.totalorder %s18, 1
    %p109 = por %p107, %p108
    %p111 = scmp.ne.s32.totalorder %s96, %s110
    %p112 = scmp.eq.s32.totalorder %s18, 0
    %p113 = por %p111, %p112
    %s114 = ssub.s32 %s12, %s19
    %p115 = scmp.eq.s32.totalorder %s114, 0
    %s117 = sadd.s32 %s116, 1
    %s118 = scalar_select %p115, %s116, %s117
    %p121 = pneg %p115
    %p122 = scmp.eq.s32.totalorder %s12, 1
    %p123 = por %p121, %p122
    %p124 = scmp.ne.s32.totalorder %s116, %s119
    %p125 = scmp.eq.s32.totalorder %s12, 0
    %p126 = por %p124, %p125
    %p127 = scmp.ne.s32.totalorder %s116, %s119
    %p128 = scmp.eq.s32.totalorder %s17, 1
    %p129 = por %p127, %p128
    %p130 = scmp.ne.s32.totalorder %s119, %s120
    %p131 = scmp.eq.s32.totalorder %s17, 0
    %p132 = por %p130, %p131
    %p133 = scmp.ne.s32.totalorder %s119, %s120
    %p134 = scmp.eq.s32.totalorder %s18, 1
    %p135 = por %p133, %p134
    %p137 = scmp.ne.s32.totalorder %s120, %s136
    %p138 = scmp.eq.s32.totalorder %s18, 0
    %p139 = por %p137, %p138
    %s140 = ssub.s32 %s12, %s19
    %p141 = scmp.eq.s32.totalorder %s140, 0
    %s143 = sadd.s32 %s142, 1
    %s144 = scalar_select %p141, %s142, %s143
    %p147 = pneg %p141
    %p148 = scmp.eq.s32.totalorder %s12, 1
    %p149 = por %p147, %p148
    %p150 = scmp.ne.s32.totalorder %s142, %s145
    %p151 = scmp.eq.s32.totalorder %s12, 0
    %p152 = por %p150, %p151
    %p153 = scmp.ne.s32.totalorder %s142, %s145
    %p154 = scmp.eq.s32.totalorder %s17, 1
    %p155 = por %p153, %p154
    %p156 = scmp.ne.s32.totalorder %s145, %s146
    %p157 = scmp.eq.s32.totalorder %s17, 0
    %p158 = por %p156, %p157
    %p159 = scmp.ne.s32.totalorder %s145, %s146
    %p160 = scmp.eq.s32.totalorder %s18, 1
    %p161 = por %p159, %p160
    %p163 = scmp.ne.s32.totalorder %s146, %s162
    %p164 = scmp.eq.s32.totalorder %s18, 0
    %p165 = por %p163, %p164
    %p166 = scmp.le.s32.totalorder 1, %s12
    %p167 = scmp.lt.s32.totalorder %s12, 3
    %p168 = pnand %p166, %p167
    %p169 = pneg %p168
    // Predicated region
    $region9: #{up_block_forward.5} parent=5 // pred_check
      _
    $region10: #{up_block_forward.5} parent=5 // pred_check_branch
      %171 = sbr.rel (%p168) target = $region12
    $region11: #{up_block_forward.5} parent=5 // pred_region
      %s172 = ssub.s32 %s12, 1
      // Predicated region
      $region13: #{up_block_forward.5} parent=11 // pred_check
        %p173 = pneg %p85
      $region14: #{up_block_forward.5} parent=11 // pred_check_branch
        %175 = sbr.rel (%p173) target = $region16
      $region15: #{up_block_forward.5} parent=11 // pred_region
        _
      $region16: #{up_block_forward.5} parent=11 // pred_fallthru
        _
      // Predicated region
      $region17: #{up_block_forward.5} parent=11 // pred_check
        %p176 = pneg %p106
      $region18: #{up_block_forward.5} parent=11 // pred_check_branch
        %178 = sbr.rel (%p176) target = $region20
      $region19: #{up_block_forward.5} parent=11 // pred_region
        _
      $region20: #{up_block_forward.5} parent=11 // pred_fallthru
        _
    $region12: #{up_block_forward.5} parent=5 // pred_fallthru
      _
    %p179 = scmp.lt.s32.totalorder %s12, 2
    // Predicated region
    $region21: #{up_block_forward.5} parent=5 // pred_check
      %p180 = pneg %p179
    $region22: #{up_block_forward.5} parent=5 // pred_check_branch
      %182 = sbr.rel (%p180) target = $region24
    $region23: #{up_block_forward.5} parent=5 // pred_region
      // Predicated region
      $region25: #{up_block_forward.5} parent=23 // pred_check
        %p183 = pneg %p32
      $region26: #{up_block_forward.5} parent=23 // pred_check_branch
        %185 = sbr.rel (%p183) target = $region28
      $region27: #{up_block_forward.5} parent=23 // pred_region
        %p186 = scmp.lt.s32.totalorder %s12, 1
        %s187 = scalar_select %p186, %s12, 1
        %s188 = smul.addr %s187, 32
        %s189 = smul.addr %s188, 4
        %s190 = scalar_lea.vmem %s0, %s189
      $region28: #{up_block_forward.5} parent=23 // pred_fallthru
        _
      // Predicated region
      $region29: #{up_block_forward.5} parent=23 // pred_check
        %p191 = pneg %p58
      $region30: #{up_block_forward.5} parent=23 // pred_check_branch
        %193 = sbr.rel (%p191) target = $region32
      $region31: #{up_block_forward.5} parent=23 // pred_region
        %p194 = scmp.lt.s32.totalorder %s12, 1
        %s195 = scalar_select %p194, %s12, 1
        %s196 = smul.addr %s195, 32
        %s197 = smul.addr %s196, 8
        %s198 = scalar_lea.vmem %s1, %s197
      $region32: #{up_block_forward.5} parent=23 // pred_fallthru
        _
    $region24: #{up_block_forward.5} parent=5 // pred_fallthru
      _
    %p199 = scmp.le.s32.totalorder 1, %s12
    %p200 = scmp.lt.s32.totalorder %s12, 3
    %p201 = pnand %p199, %p200
    %p202 = pneg %p201
    // Predicated region
    $region33: #{up_block_forward.5} parent=5 // pred_check
      _
    $region34: #{up_block_forward.5} parent=5 // pred_check_branch
      %204 = sbr.rel (%p201) target = $region36
    $region35: #{up_block_forward.5} parent=5 // pred_region
      %s205 = ssub.s32 %s12, 1
      %p206 = scmp.lt.s32.totalorder %s17, 1
      %s207 = scalar_select %p206, %s17, 1
      %s208 = smul.addr %s207, 32
      %s209 = smul.addr %s208, 4
      %s210 = scalar_lea.vmem %s0, %s209
      %p211 = pneg %p38
      %p212 = pneg %p35
      %p213 = scmp.lt.s32.totalorder %s17, 1
      %s214 = scalar_select %p213, %s17, 1
      %s215 = smul.addr %s214, 32
      %s216 = smul.addr %s215, 8
      %s217 = scalar_lea.vmem %s1, %s216
      %p218 = pneg %p64
      %p219 = pneg %p61
      %p220 = pneg %p85
      %p221 = pneg %p82
      %p222 = pneg %p106
      %p223 = pneg %p103
      %p224 = pneg %p132
      %p225 = pneg %p129
      %p226 = scmp.lt.s32.totalorder %s17, 1
      %s227 = scalar_select %p226, %s17, 1
      %s228 = smul.addr %s227, 32
      %s229 = smul.addr %s228, 4
      %s230 = scalar_lea.vmem %s4, %s229
      %p231 = pneg %p158
      %p232 = pneg %p155
      %p233 = scmp.lt.s32.totalorder %s17, 1
      %s234 = scalar_select %p233, %s17, 1
      %s235 = smul.addr %s234, 2
      %s236 = scalar_lea.vmem %s5, %s235
      %p237 = scmp.lt.s32.totalorder %s17, 1
      %s238 = scalar_select %p237, %s17, 1
      %s239 = smul.addr %s238, 32
      %s240 = smul.addr %s239, 4
      %s241 = scalar_lea.vmem %s0, %s240
      %p242 = scmp.lt.s32.totalorder %s17, 1
      %s243 = scalar_select %p242, %s17, 1
      %s244 = smul.addr %s243, 32
      %s245 = smul.addr %s244, 8
      %s246 = scalar_lea.vmem %s1, %s245
      %p247 = scmp.lt.s32.totalorder %s17, 1
      %s248 = scalar_select %p247, %s17, 1
      %s249 = smul.addr %s248, 32
      %s250 = smul.addr %s249, 4
      %s251 = scalar_lea.vmem %s4, %s250
      %p252 = scmp.lt.s32.totalorder %s17, 1
      %s253 = scalar_select %p252, %s17, 1
      %s254 = smul.addr %s253, 2
      %s255 = scalar_lea.vmem %s5, %s254
      %v257 = vld [vmem:[%s241] sm:$0xf]
      %v258 = vld [vmem:[%s241 + $0x4] sm:$0xf]
      %v259 = vld [vmem:[%s241 + $0x8] sm:$0xf]
      %v260 = vld [vmem:[%s241 + $0xc] sm:$0xf]
      %v261 = vld [vmem:[%s241 + $0x10] sm:$0xf]
      %v262 = vld [vmem:[%s241 + $0x14] sm:$0xf]
      %v263 = vld [vmem:[%s241 + $0x18] sm:$0xf]
      %v264 = vld [vmem:[%s241 + $0x1c] sm:$0xf]
      %v265 = vld [vmem:[%s241 + $0x20] sm:$0xf]
      %v266 = vld [vmem:[%s241 + $0x24] sm:$0xf]
      %v267 = vld [vmem:[%s241 + $0x28] sm:$0xf]
      %v268 = vld [vmem:[%s241 + $0x2c] sm:$0xf]
      %v269 = vld [vmem:[%s241 + $0x30] sm:$0xf]
      %v270 = vld [vmem:[%s241 + $0x34] sm:$0xf]
      %v271 = vld [vmem:[%s241 + $0x38] sm:$0xf]
      %v272 = vld [vmem:[%s241 + $0x3c] sm:$0xf]
      %v273 = vld [vmem:[%s241 + $0x40] sm:$0xf]
      %v274 = vld [vmem:[%s241 + $0x44] sm:$0xf]
      %v275 = vld [vmem:[%s241 + $0x48] sm:$0xf]
      %v276 = vld [vmem:[%s241 + $0x4c] sm:$0xf]
      %v277 = vld [vmem:[%s241 + $0x50] sm:$0xf]
      %v278 = vld [vmem:[%s241 + $0x54] sm:$0xf]
      %v279 = vld [vmem:[%s241 + $0x58] sm:$0xf]
      %v280 = vld [vmem:[%s241 + $0x5c] sm:$0xf]
      %v281 = vld [vmem:[%s241 + $0x60] sm:$0xf]
      %v282 = vld [vmem:[%s241 + $0x64] sm:$0xf]
      %v283 = vld [vmem:[%s241 + $0x68] sm:$0xf]
      %v284 = vld [vmem:[%s241 + $0x6c] sm:$0xf]
      %v285 = vld [vmem:[%s241 + $0x70] sm:$0xf]
      %v286 = vld [vmem:[%s241 + $0x74] sm:$0xf]
      %v287 = vld [vmem:[%s241 + $0x78] sm:$0xf]
      %v288 = vld [vmem:[%s241 + $0x7c] sm:$0xf]
      %v321 = vunpack.c.l.b16 %v257
      %v322 = vunpack.c.l.b16 %v258
      %v323 = vunpack.c.l.b16 %v259
      %v324 = vunpack.c.l.b16 %v260
      %v325 = vunpack.c.l.b16 %v261
      %v326 = vunpack.c.l.b16 %v262
      %v327 = vunpack.c.l.b16 %v263
      %v328 = vunpack.c.l.b16 %v264
      %v329 = vunpack.c.l.b16 %v265
      %v330 = vunpack.c.l.b16 %v266
      %v331 = vunpack.c.l.b16 %v267
      %v332 = vunpack.c.l.b16 %v268
      %v333 = vunpack.c.l.b16 %v269
      %v334 = vunpack.c.l.b16 %v270
      %v335 = vunpack.c.l.b16 %v271
      %v336 = vunpack.c.l.b16 %v272
      %v337 = vunpack.c.l.b16 %v273
      %v338 = vunpack.c.l.b16 %v274
      %v339 = vunpack.c.l.b16 %v275
      %v340 = vunpack.c.l.b16 %v276
      %v341 = vunpack.c.l.b16 %v277
      %v342 = vunpack.c.l.b16 %v278
      %v343 = vunpack.c.l.b16 %v279
      %v344 = vunpack.c.l.b16 %v280
      %v345 = vunpack.c.l.b16 %v281
      %v346 = vunpack.c.l.b16 %v282
      %v347 = vunpack.c.l.b16 %v283
      %v348 = vunpack.c.l.b16 %v284
      %v349 = vunpack.c.l.b16 %v285
      %v350 = vunpack.c.l.b16 %v286
      %v351 = vunpack.c.l.b16 %v287
      %v352 = vunpack.c.l.b16 %v288
      %v353 = vpack.c.b16 %v322, %v321
      %v354 = vpack.c.b16 %v324, %v323
      %v355 = vpack.c.b16 %v326, %v325
      %v356 = vpack.c.b16 %v328, %v327
      %v357 = vpack.c.b16 %v330, %v329
      %v358 = vpack.c.b16 %v332, %v331
      %v359 = vpack.c.b16 %v334, %v333
      %v360 = vpack.c.b16 %v336, %v335
      %v361 = vpack.c.b16 %v338, %v337
      %v362 = vpack.c.b16 %v340, %v339
      %v363 = vpack.c.b16 %v342, %v341
      %v364 = vpack.c.b16 %v344, %v343
      %v365 = vpack.c.b16 %v346, %v345
      %v366 = vpack.c.b16 %v348, %v347
      %v367 = vpack.c.b16 %v350, %v349
      %v368 = vpack.c.b16 %v352, %v351
      %v370 = vshrl.u32 %v353, 16
      %v372 = vrot.slane %v370, 7
      %v373 = vshll.u32 %v353, 16
      %v375 = vor.u32 %v372, %v373
      %v377 = vshrl.u32 %v354, 16
      %v379 = vrot.slane %v377, 7
      %v380 = vshll.u32 %v354, 16
      %v382 = vor.u32 %v379, %v380
      %v384 = vshrl.u32 %v355, 16
      %v386 = vrot.slane %v384, 7
      %v387 = vshll.u32 %v355, 16
      %v389 = vor.u32 %v386, %v387
      %v391 = vshrl.u32 %v356, 16
      %v393 = vrot.slane %v391, 7
      %v394 = vshll.u32 %v356, 16
      %v396 = vor.u32 %v393, %v394
      %v398 = vshrl.u32 %v357, 16
      %v400 = vrot.slane %v398, 7
      %v401 = vshll.u32 %v357, 16
      %v403 = vor.u32 %v400, %v401
      %v405 = vshrl.u32 %v358, 16
      %v407 = vrot.slane %v405, 7
      %v408 = vshll.u32 %v358, 16
      %v410 = vor.u32 %v407, %v408
      %v412 = vshrl.u32 %v359, 16
      %v414 = vrot.slane %v412, 7
      %v415 = vshll.u32 %v359, 16
      %v417 = vor.u32 %v414, %v415
      %v419 = vshrl.u32 %v360, 16
      %v421 = vrot.slane %v419, 7
      %v422 = vshll.u32 %v360, 16
      %v424 = vor.u32 %v421, %v422
      %v426 = vshrl.u32 %v361, 16
      %v428 = vrot.slane %v426, 7
      %v429 = vshll.u32 %v361, 16
      %v431 = vor.u32 %v428, %v429
      %v433 = vshrl.u32 %v362, 16
      %v435 = vrot.slane %v433, 7
      %v436 = vshll.u32 %v362, 16
      %v438 = vor.u32 %v435, %v436
      %v440 = vshrl.u32 %v363, 16
      %v442 = vrot.slane %v440, 7
      %v443 = vshll.u32 %v363, 16
      %v445 = vor.u32 %v442, %v443
      %v447 = vshrl.u32 %v364, 16
      %v449 = vrot.slane %v447, 7
      %v450 = vshll.u32 %v364, 16
      %v452 = vor.u32 %v449, %v450
      %v454 = vshrl.u32 %v365, 16
      %v456 = vrot.slane %v454, 7
      %v457 = vshll.u32 %v365, 16
      %v459 = vor.u32 %v456, %v457
      %v461 = vshrl.u32 %v366, 16
      %v463 = vrot.slane %v461, 7
      %v464 = vshll.u32 %v366, 16
      %v466 = vor.u32 %v463, %v464
      %v468 = vshrl.u32 %v367, 16
      %v470 = vrot.slane %v468, 7
      %v471 = vshll.u32 %v367, 16
      %v473 = vor.u32 %v470, %v471
      %v475 = vshrl.u32 %v368, 16
      %v477 = vrot.slane %v475, 7
      %v478 = vshll.u32 %v368, 16
      %v480 = vor.u32 %v477, %v478
      %vm513 = vcmask 1040384
      %vm514 = vsmask.f32 256
      %vm515 = vmand %vm513, %vm514
      %v516 = vsel %vm515, 0, %v375
      %v517 = vsel %vm515, 0, %v382
      %v518 = vsel %vm515, 0, %v389
      %v519 = vsel %vm515, 0, %v396
      %v520 = vsel %vm515, 0, %v403
      %v521 = vsel %vm515, 0, %v410
      %v522 = vsel %vm515, 0, %v417
      %v523 = vsel %vm515, 0, %v424
      %v524 = vsel %vm515, 0, %v431
      %v525 = vsel %vm515, 0, %v438
      %v526 = vsel %vm515, 0, %v445
      %v527 = vsel %vm515, 0, %v452
      %v528 = vsel %vm515, 0, %v459
      %v529 = vsel %vm515, 0, %v466
      %v530 = vsel %vm515, 0, %v473
      %v531 = vsel %vm515, 0, %v480
      %v532 = vsel %vm515, %v372, 0
      %v533 = vsel %vm515, %v379, 0
      %v534 = vsel %vm515, %v386, 0
      %v535 = vsel %vm515, %v393, 0
      %v536 = vsel %vm515, %v400, 0
      %v537 = vsel %vm515, %v407, 0
      %v538 = vsel %vm515, %v414, 0
      %v539 = vsel %vm515, %v421, 0
      %v540 = vsel %vm515, %v428, 0
      %v541 = vsel %vm515, %v435, 0
      %v542 = vsel %vm515, %v442, 0
      %v543 = vsel %vm515, %v449, 0
      %v544 = vsel %vm515, %v456, 0
      %v545 = vsel %vm515, %v463, 0
      %v546 = vsel %vm515, %v470, 0
      %v547 = vsel %vm515, %v477, 0
      %v580 = vunpack.c.l.b16 %v516
      %v581 = vunpack.c.h.b16 %v516
      %v582 = vunpack.c.l.b16 %v532
      %v583 = vunpack.c.l.b16 %v517
      %v584 = vunpack.c.h.b16 %v517
      %v585 = vunpack.c.l.b16 %v533
      %v586 = vunpack.c.l.b16 %v518
      %v587 = vunpack.c.h.b16 %v518
      %v588 = vunpack.c.l.b16 %v534
      %v589 = vunpack.c.l.b16 %v519
      %v590 = vunpack.c.h.b16 %v519
      %v591 = vunpack.c.l.b16 %v535
      %v592 = vunpack.c.l.b16 %v520
      %v593 = vunpack.c.h.b16 %v520
      %v594 = vunpack.c.l.b16 %v536
      %v595 = vunpack.c.l.b16 %v521
      %v596 = vunpack.c.h.b16 %v521
      %v597 = vunpack.c.l.b16 %v537
      %v598 = vunpack.c.l.b16 %v522
      %v599 = vunpack.c.h.b16 %v522
      %v600 = vunpack.c.l.b16 %v538
      %v601 = vunpack.c.l.b16 %v523
      %v602 = vunpack.c.h.b16 %v523
      %v603 = vunpack.c.l.b16 %v539
      %v604 = vunpack.c.l.b16 %v524
      %v605 = vunpack.c.h.b16 %v524
      %v606 = vunpack.c.l.b16 %v540
      %v607 = vunpack.c.l.b16 %v525
      %v608 = vunpack.c.h.b16 %v525
      %v609 = vunpack.c.l.b16 %v541
      %v610 = vunpack.c.l.b16 %v526
      %v611 = vunpack.c.h.b16 %v526
      %v612 = vunpack.c.l.b16 %v542
      %v613 = vunpack.c.l.b16 %v527
      %v614 = vunpack.c.h.b16 %v527
      %v615 = vunpack.c.l.b16 %v543
      %v616 = vunpack.c.l.b16 %v528
      %v617 = vunpack.c.h.b16 %v528
      %v618 = vunpack.c.l.b16 %v544
      %v619 = vunpack.c.l.b16 %v529
      %v620 = vunpack.c.h.b16 %v529
      %v621 = vunpack.c.l.b16 %v545
      %v622 = vunpack.c.l.b16 %v530
      %v623 = vunpack.c.h.b16 %v530
      %v624 = vunpack.c.l.b16 %v546
      %v625 = vunpack.c.l.b16 %v531
      %v626 = vunpack.c.h.b16 %v531
      %v627 = vunpack.c.l.b16 %v547
      %v628 = vpack.c.b16 %v580, %v580
      %v629 = vpack.c.b16 %v581, %v581
      %v630 = vpack.c.b16 %v582, %v582
      %v631 = vpack.c.b16 %v583, %v583
      %v632 = vpack.c.b16 %v584, %v584
      %v633 = vpack.c.b16 %v585, %v585
      %v634 = vpack.c.b16 %v586, %v586
      %v635 = vpack.c.b16 %v587, %v587
      %v636 = vpack.c.b16 %v588, %v588
      %v637 = vpack.c.b16 %v589, %v589
      %v638 = vpack.c.b16 %v590, %v590
      %v639 = vpack.c.b16 %v591, %v591
      %v640 = vpack.c.b16 %v592, %v592
      %v641 = vpack.c.b16 %v593, %v593
      %v642 = vpack.c.b16 %v594, %v594
      %v643 = vpack.c.b16 %v595, %v595
      %v644 = vpack.c.b16 %v596, %v596
      %v645 = vpack.c.b16 %v597, %v597
      %v646 = vpack.c.b16 %v598, %v598
      %v647 = vpack.c.b16 %v599, %v599
      %v648 = vpack.c.b16 %v600, %v600
      %v649 = vpack.c.b16 %v601, %v601
      %v650 = vpack.c.b16 %v602, %v602
      %v651 = vpack.c.b16 %v603, %v603
      %v652 = vpack.c.b16 %v604, %v604
      %v653 = vpack.c.b16 %v605, %v605
      %v654 = vpack.c.b16 %v606, %v606
      %v655 = vpack.c.b16 %v607, %v607
      %v656 = vpack.c.b16 %v608, %v608
      %v657 = vpack.c.b16 %v609, %v609
      %v658 = vpack.c.b16 %v610, %v610
      %v659 = vpack.c.b16 %v611, %v611
      %v660 = vpack.c.b16 %v612, %v612
      %v661 = vpack.c.b16 %v613, %v613
      %v662 = vpack.c.b16 %v614, %v614
      %v663 = vpack.c.b16 %v615, %v615
      %v664 = vpack.c.b16 %v616, %v616
      %v665 = vpack.c.b16 %v617, %v617
      %v666 = vpack.c.b16 %v618, %v618
      %v667 = vpack.c.b16 %v619, %v619
      %v668 = vpack.c.b16 %v620, %v620
      %v669 = vpack.c.b16 %v621, %v621
      %v670 = vpack.c.b16 %v622, %v622
      %v671 = vpack.c.b16 %v623, %v623
      %v672 = vpack.c.b16 %v624, %v624
      %v673 = vpack.c.b16 %v625, %v625
      %v674 = vpack.c.b16 %v626, %v626
      %v675 = vpack.c.b16 %v627, %v627
      %s724 = scalar_lea.vmem [#allocation2], 12
      %vm725 = vcmask 27648
      %726 = vst.msk [vmem:[%s724] sm:$0xf] %vm725, %v628
      %727 = vst.msk [vmem:[%s724 + $0x4] sm:$0xf] %vm725, %v629
      %vm728 = vcmask 24576
      %729 = vst.msk [vmem:[%s724 + $0x8] sm:$0x1] %vm728, %v630
      %730 = vst.msk [vmem:[%s724 + $0xc] sm:$0xf] %vm725, %v631
      %731 = vst.msk [vmem:[%s724 + $0x10] sm:$0xf] %vm725, %v632
      %732 = vst.msk [vmem:[%s724 + $0x14] sm:$0x1] %vm728, %v633
      %733 = vst.msk [vmem:[%s724 + $0x18] sm:$0xf] %vm725, %v634
      %734 = vst.msk [vmem:[%s724 + $0x1c] sm:$0xf] %vm725, %v635
      %735 = vst.msk [vmem:[%s724 + $0x20] sm:$0x1] %vm728, %v636
      %736 = vst.msk [vmem:[%s724 + $0x24] sm:$0xf] %vm725, %v637
      %737 = vst.msk [vmem:[%s724 + $0x28] sm:$0xf] %vm725, %v638
      %738 = vst.msk [vmem:[%s724 + $0x2c] sm:$0x1] %vm728, %v639
      %739 = vst.msk [vmem:[%s724 + $0x30] sm:$0xf] %vm725, %v640
      %740 = vst.msk [vmem:[%s724 + $0x34] sm:$0xf] %vm725, %v641
      %741 = vst.msk [vmem:[%s724 + $0x38] sm:$0x1] %vm728, %v642
      %742 = vst.msk [vmem:[%s724 + $0x3c] sm:$0xf] %vm725, %v643
      %743 = vst.msk [vmem:[%s724 + $0x40] sm:$0xf] %vm725, %v644
      %744 = vst.msk [vmem:[%s724 + $0x44] sm:$0x1] %vm728, %v645
      %745 = vst.msk [vmem:[%s724 + $0x48] sm:$0xf] %vm725, %v646
      %746 = vst.msk [vmem:[%s724 + $0x4c] sm:$0xf] %vm725, %v647
      %747 = vst.msk [vmem:[%s724 + $0x50] sm:$0x1] %vm728, %v648
      %748 = vst.msk [vmem:[%s724 + $0x54] sm:$0xf] %vm725, %v649
      %749 = vst.msk [vmem:[%s724 + $0x58] sm:$0xf] %vm725, %v650
      %750 = vst.msk [vmem:[%s724 + $0x5c] sm:$0x1] %vm728, %v651
      %751 = vst.msk [vmem:[%s724 + $0x60] sm:$0xf] %vm725, %v652
      %752 = vst.msk [vmem:[%s724 + $0x64] sm:$0xf] %vm725, %v653
      %753 = vst.msk [vmem:[%s724 + $0x68] sm:$0x1] %vm728, %v654
      %754 = vst.msk [vmem:[%s724 + $0x6c] sm:$0xf] %vm725, %v655
      %755 = vst.msk [vmem:[%s724 + $0x70] sm:$0xf] %vm725, %v656
      %756 = vst.msk [vmem:[%s724 + $0x74] sm:$0x1] %vm728, %v657
      %757 = vst.msk [vmem:[%s724 + $0x78] sm:$0xf] %vm725, %v658
      %758 = vst.msk [vmem:[%s724 + $0x7c] sm:$0xf] %vm725, %v659
      %759 = vst.msk [vmem:[%s724 + $0x80] sm:$0x1] %vm728, %v660
      %760 = vst.msk [vmem:[%s724 + $0x84] sm:$0xf] %vm725, %v661
      %761 = vst.msk [vmem:[%s724 + $0x88] sm:$0xf] %vm725, %v662
      %762 = vst.msk [vmem:[%s724 + $0x8c] sm:$0x1] %vm728, %v663
      %763 = vst.msk [vmem:[%s724 + $0x90] sm:$0xf] %vm725, %v664
      %764 = vst.msk [vmem:[%s724 + $0x94] sm:$0xf] %vm725, %v665
      %765 = vst.msk [vmem:[%s724 + $0x98] sm:$0x1] %vm728, %v666
      %766 = vst.msk [vmem:[%s724 + $0x9c] sm:$0xf] %vm725, %v667
      %767 = vst.msk [vmem:[%s724 + $0xa0] sm:$0xf] %vm725, %v668
      %768 = vst.msk [vmem:[%s724 + $0xa4] sm:$0x1] %vm728, %v669
      %769 = vst.msk [vmem:[%s724 + $0xa8] sm:$0xf] %vm725, %v670
      %770 = vst.msk [vmem:[%s724 + $0xac] sm:$0xf] %vm725, %v671
      %771 = vst.msk [vmem:[%s724 + $0xb0] sm:$0x1] %vm728, %v672
      %772 = vst.msk [vmem:[%s724 + $0xb4] sm:$0xf] %vm725, %v673
      %773 = vst.msk [vmem:[%s724 + $0xb8] sm:$0xf] %vm725, %v674
      %774 = vst.msk [vmem:[%s724 + $0xbc] sm:$0x1] %vm728, %v675
      %775 = vst.msk [vmem:[#allocation2] sm:$0xf] %vm725, 0
      %776 = vst.msk [vmem:[#allocation2 + $0x4] sm:$0xf] %vm725, 0
      %777 = vst.msk [vmem:[#allocation2 + $0x8] sm:$0x1] %vm728, 0
      %s778 = scalar_lea.vmem [#allocation2], 204
      %779 = vst.msk [vmem:[%s778] sm:$0xf] %vm725, 0
      %780 = vst.msk [vmem:[%s778 + $0x4] sm:$0xf] %vm725, 0
      %781 = vst.msk [vmem:[%s778 + $0x8] sm:$0x1] %vm728, 0
      %v782 = vld [vmem:[%s246] sm:$0xff]
      %v783 = vld [vmem:[%s246 + $0x8] sm:$0xff]
      %v784 = vld [vmem:[%s246 + $0x10] sm:$0xff]
      %v785 = vld [vmem:[%s246 + $0x18] sm:$0xff]
      %v786 = vld [vmem:[%s246 + $0x20] sm:$0xff]
      %v787 = vld [vmem:[%s246 + $0x28] sm:$0xff]
      %v788 = vld [vmem:[%s246 + $0x30] sm:$0xff]
      %v789 = vld [vmem:[%s246 + $0x38] sm:$0xff]
      %v790 = vld [vmem:[%s246 + $0x40] sm:$0xff]
      %v791 = vld [vmem:[%s246 + $0x48] sm:$0xff]
      %v792 = vld [vmem:[%s246 + $0x50] sm:$0xff]
      %v793 = vld [vmem:[%s246 + $0x58] sm:$0xff]
      %v794 = vld [vmem:[%s246 + $0x60] sm:$0xff]
      %v795 = vld [vmem:[%s246 + $0x68] sm:$0xff]
      %v796 = vld [vmem:[%s246 + $0x70] sm:$0xff]
      %v797 = vld [vmem:[%s246 + $0x78] sm:$0xff]
      %v798 = vld [vmem:[%s246 + $0x80] sm:$0xff]
      %v799 = vld [vmem:[%s246 + $0x88] sm:$0xff]
      %v800 = vld [vmem:[%s246 + $0x90] sm:$0xff]
      %v801 = vld [vmem:[%s246 + $0x98] sm:$0xff]
      %v802 = vld [vmem:[%s246 + $0xa0] sm:$0xff]
      %v803 = vld [vmem:[%s246 + $0xa8] sm:$0xff]
      %v804 = vld [vmem:[%s246 + $0xb0] sm:$0xff]
      %v805 = vld [vmem:[%s246 + $0xb8] sm:$0xff]
      %v806 = vld [vmem:[%s246 + $0xc0] sm:$0xff]
      %v807 = vld [vmem:[%s246 + $0xc8] sm:$0xff]
      %v808 = vld [vmem:[%s246 + $0xd0] sm:$0xff]
      %v809 = vld [vmem:[%s246 + $0xd8] sm:$0xff]
      %v810 = vld [vmem:[%s246 + $0xe0] sm:$0xff]
      %v811 = vld [vmem:[%s246 + $0xe8] sm:$0xff]
      %v812 = vld [vmem:[%s246 + $0xf0] sm:$0xff]
      %v813 = vld [vmem:[%s246 + $0xf8] sm:$0xff]
      %v814 = vpack.c.bf16 %v783, %v782
      %v815 = vpack.c.bf16 %v785, %v784
      %v816 = vpack.c.bf16 %v787, %v786
      %v817 = vpack.c.bf16 %v789, %v788
      %v818 = vpack.c.bf16 %v791, %v790
      %v819 = vpack.c.bf16 %v793, %v792
      %v820 = vpack.c.bf16 %v795, %v794
      %v821 = vpack.c.bf16 %v797, %v796
      %v822 = vpack.c.bf16 %v799, %v798
      %v823 = vpack.c.bf16 %v801, %v800
      %v824 = vpack.c.bf16 %v803, %v802
      %v825 = vpack.c.bf16 %v805, %v804
      %v826 = vpack.c.bf16 %v807, %v806
      %v827 = vpack.c.bf16 %v809, %v808
      %v828 = vpack.c.bf16 %v811, %v810
      %v829 = vpack.c.bf16 %v813, %v812
      %v831 = vshrl.u32 %v814, 16
      %v833 = vrot.slane %v831, 7
      %v834 = vshll.u32 %v814, 16
      %v836 = vor.u32 %v833, %v834
      %v838 = vshrl.u32 %v815, 16
      %v840 = vrot.slane %v838, 7
      %v841 = vshll.u32 %v815, 16
      %v843 = vor.u32 %v840, %v841
      %v845 = vshrl.u32 %v816, 16
      %v847 = vrot.slane %v845, 7
      %v848 = vshll.u32 %v816, 16
      %v850 = vor.u32 %v847, %v848
      %v852 = vshrl.u32 %v817, 16
      %v854 = vrot.slane %v852, 7
      %v855 = vshll.u32 %v817, 16
      %v857 = vor.u32 %v854, %v855
      %v859 = vshrl.u32 %v818, 16
      %v861 = vrot.slane %v859, 7
      %v862 = vshll.u32 %v818, 16
      %v864 = vor.u32 %v861, %v862
      %v866 = vshrl.u32 %v819, 16
      %v868 = vrot.slane %v866, 7
      %v869 = vshll.u32 %v819, 16
      %v871 = vor.u32 %v868, %v869
      %v873 = vshrl.u32 %v820, 16
      %v875 = vrot.slane %v873, 7
      %v876 = vshll.u32 %v820, 16
      %v878 = vor.u32 %v875, %v876
      %v880 = vshrl.u32 %v821, 16
      %v882 = vrot.slane %v880, 7
      %v883 = vshll.u32 %v821, 16
      %v885 = vor.u32 %v882, %v883
      %v887 = vshrl.u32 %v822, 16
      %v889 = vrot.slane %v887, 7
      %v890 = vshll.u32 %v822, 16
      %v892 = vor.u32 %v889, %v890
      %v894 = vshrl.u32 %v823, 16
      %v896 = vrot.slane %v894, 7
      %v897 = vshll.u32 %v823, 16
      %v899 = vor.u32 %v896, %v897
      %v901 = vshrl.u32 %v824, 16
      %v903 = vrot.slane %v901, 7
      %v904 = vshll.u32 %v824, 16
      %v906 = vor.u32 %v903, %v904
      %v908 = vshrl.u32 %v825, 16
      %v910 = vrot.slane %v908, 7
      %v911 = vshll.u32 %v825, 16
      %v913 = vor.u32 %v910, %v911
      %v915 = vshrl.u32 %v826, 16
      %v917 = vrot.slane %v915, 7
      %v918 = vshll.u32 %v826, 16
      %v920 = vor.u32 %v917, %v918
      %v922 = vshrl.u32 %v827, 16
      %v924 = vrot.slane %v922, 7
      %v925 = vshll.u32 %v827, 16
      %v927 = vor.u32 %v924, %v925
      %v929 = vshrl.u32 %v828, 16
      %v931 = vrot.slane %v929, 7
      %v932 = vshll.u32 %v828, 16
      %v934 = vor.u32 %v931, %v932
      %v936 = vshrl.u32 %v829, 16
      %v938 = vrot.slane %v936, 7
      %v939 = vshll.u32 %v829, 16
      %v941 = vor.u32 %v938, %v939
      %v974 = vsel %vm515, 0, %v836
      %v975 = vsel %vm515, 0, %v843
      %v976 = vsel %vm515, 0, %v850
      %v977 = vsel %vm515, 0, %v857
      %v978 = vsel %vm515, 0, %v864
      %v979 = vsel %vm515, 0, %v871
      %v980 = vsel %vm515, 0, %v878
      %v981 = vsel %vm515, 0, %v885
      %v982 = vsel %vm515, 0, %v892
      %v983 = vsel %vm515, 0, %v899
      %v984 = vsel %vm515, 0, %v906
      %v985 = vsel %vm515, 0, %v913
      %v986 = vsel %vm515, 0, %v920
      %v987 = vsel %vm515, 0, %v927
      %v988 = vsel %vm515, 0, %v934
      %v989 = vsel %vm515, 0, %v941
      %v990 = vsel %vm515, %v833, 0
      %v991 = vsel %vm515, %v840, 0
      %v992 = vsel %vm515, %v847, 0
      %v993 = vsel %vm515, %v854, 0
      %v994 = vsel %vm515, %v861, 0
      %v995 = vsel %vm515, %v868, 0
      %v996 = vsel %vm515, %v875, 0
      %v997 = vsel %vm515, %v882, 0
      %v998 = vsel %vm515, %v889, 0
      %v999 = vsel %vm515, %v896, 0
      %v1000 = vsel %vm515, %v903, 0
      %v1001 = vsel %vm515, %v910, 0
      %v1002 = vsel %vm515, %v917, 0
      %v1003 = vsel %vm515, %v924, 0
      %v1004 = vsel %vm515, %v931, 0
      %v1005 = vsel %vm515, %v938, 0
      %v1038 = vunpack.c.l.b16 %v974
      %v1039 = vunpack.c.h.b16 %v974
      %v1040 = vunpack.c.l.b16 %v990
      %v1041 = vunpack.c.l.b16 %v975
      %v1042 = vunpack.c.h.b16 %v975
      %v1043 = vunpack.c.l.b16 %v991
      %v1044 = vunpack.c.l.b16 %v976
      %v1045 = vunpack.c.h.b16 %v976
      %v1046 = vunpack.c.l.b16 %v992
      %v1047 = vunpack.c.l.b16 %v977
      %v1048 = vunpack.c.h.b16 %v977
      %v1049 = vunpack.c.l.b16 %v993
      %v1050 = vunpack.c.l.b16 %v978
      %v1051 = vunpack.c.h.b16 %v978
      %v1052 = vunpack.c.l.b16 %v994
      %v1053 = vunpack.c.l.b16 %v979
      %v1054 = vunpack.c.h.b16 %v979
      %v1055 = vunpack.c.l.b16 %v995
      %v1056 = vunpack.c.l.b16 %v980
      %v1057 = vunpack.c.h.b16 %v980
      %v1058 = vunpack.c.l.b16 %v996
      %v1059 = vunpack.c.l.b16 %v981
      %v1060 = vunpack.c.h.b16 %v981
      %v1061 = vunpack.c.l.b16 %v997
      %v1062 = vunpack.c.l.b16 %v982
      %v1063 = vunpack.c.h.b16 %v982
      %v1064 = vunpack.c.l.b16 %v998
      %v1065 = vunpack.c.l.b16 %v983
      %v1066 = vunpack.c.h.b16 %v983
      %v1067 = vunpack.c.l.b16 %v999
      %v1068 = vunpack.c.l.b16 %v984
      %v1069 = vunpack.c.h.b16 %v984
      %v1070 = vunpack.c.l.b16 %v1000
      %v1071 = vunpack.c.l.b16 %v985
      %v1072 = vunpack.c.h.b16 %v985
      %v1073 = vunpack.c.l.b16 %v1001
      %v1074 = vunpack.c.l.b16 %v986
      %v1075 = vunpack.c.h.b16 %v986
      %v1076 = vunpack.c.l.b16 %v1002
      %v1077 = vunpack.c.l.b16 %v987
      %v1078 = vunpack.c.h.b16 %v987
      %v1079 = vunpack.c.l.b16 %v1003
      %v1080 = vunpack.c.l.b16 %v988
      %v1081 = vunpack.c.h.b16 %v988
      %v1082 = vunpack.c.l.b16 %v1004
      %v1083 = vunpack.c.l.b16 %v989
      %v1084 = vunpack.c.h.b16 %v989
      %v1085 = vunpack.c.l.b16 %v1005
      %v1086 = vpack.c.b16 %v1038, %v1038
      %v1087 = vpack.c.b16 %v1039, %v1039
      %v1088 = vpack.c.b16 %v1040, %v1040
      %v1089 = vpack.c.b16 %v1041, %v1041
      %v1090 = vpack.c.b16 %v1042, %v1042
      %v1091 = vpack.c.b16 %v1043, %v1043
      %v1092 = vpack.c.b16 %v1044, %v1044
      %v1093 = vpack.c.b16 %v1045, %v1045
      %v1094 = vpack.c.b16 %v1046, %v1046
      %v1095 = vpack.c.b16 %v1047, %v1047
      %v1096 = vpack.c.b16 %v1048, %v1048
      %v1097 = vpack.c.b16 %v1049, %v1049
      %v1098 = vpack.c.b16 %v1050, %v1050
      %v1099 = vpack.c.b16 %v1051, %v1051
      %v1100 = vpack.c.b16 %v1052, %v1052
      %v1101 = vpack.c.b16 %v1053, %v1053
      %v1102 = vpack.c.b16 %v1054, %v1054
      %v1103 = vpack.c.b16 %v1055, %v1055
      %v1104 = vpack.c.b16 %v1056, %v1056
      %v1105 = vpack.c.b16 %v1057, %v1057
      %v1106 = vpack.c.b16 %v1058, %v1058
      %v1107 = vpack.c.b16 %v1059, %v1059
      %v1108 = vpack.c.b16 %v1060, %v1060
      %v1109 = vpack.c.b16 %v1061, %v1061
      %v1110 = vpack.c.b16 %v1062, %v1062
      %v1111 = vpack.c.b16 %v1063, %v1063
      %v1112 = vpack.c.b16 %v1064, %v1064
      %v1113 = vpack.c.b16 %v1065, %v1065
      %v1114 = vpack.c.b16 %v1066, %v1066
      %v1115 = vpack.c.b16 %v1067, %v1067
      %v1116 = vpack.c.b16 %v1068, %v1068
      %v1117 = vpack.c.b16 %v1069, %v1069
      %v1118 = vpack.c.b16 %v1070, %v1070
      %v1119 = vpack.c.b16 %v1071, %v1071
      %v1120 = vpack.c.b16 %v1072, %v1072
      %v1121 = vpack.c.b16 %v1073, %v1073
      %v1122 = vpack.c.b16 %v1074, %v1074
      %v1123 = vpack.c.b16 %v1075, %v1075
      %v1124 = vpack.c.b16 %v1076, %v1076
      %v1125 = vpack.c.b16 %v1077, %v1077
      %v1126 = vpack.c.b16 %v1078, %v1078
      %v1127 = vpack.c.b16 %v1079, %v1079
      %v1128 = vpack.c.b16 %v1080, %v1080
      %v1129 = vpack.c.b16 %v1081, %v1081
      %v1130 = vpack.c.b16 %v1082, %v1082
      %v1131 = vpack.c.b16 %v1083, %v1083
      %v1132 = vpack.c.b16 %v1084, %v1084
      %v1133 = vpack.c.b16 %v1085, %v1085
      %s1182 = scalar_lea.vmem [#allocation3], 12
      %1183 = vst.msk [vmem:[%s1182] sm:$0xf] %vm725, %v1086
      %1184 = vst.msk [vmem:[%s1182 + $0x4] sm:$0xf] %vm725, %v1087
      %1185 = vst.msk [vmem:[%s1182 + $0x8] sm:$0x1] %vm728, %v1088
      %1186 = vst.msk [vmem:[%s1182 + $0xc] sm:$0xf] %vm725, %v1089
      %1187 = vst.msk [vmem:[%s1182 + $0x10] sm:$0xf] %vm725, %v1090
      %1188 = vst.msk [vmem:[%s1182 + $0x14] sm:$0x1] %vm728, %v1091
      %1189 = vst.msk [vmem:[%s1182 + $0x18] sm:$0xf] %vm725, %v1092
      %1190 = vst.msk [vmem:[%s1182 + $0x1c] sm:$0xf] %vm725, %v1093
      %1191 = vst.msk [vmem:[%s1182 + $0x20] sm:$0x1] %vm728, %v1094
      %1192 = vst.msk [vmem:[%s1182 + $0x24] sm:$0xf] %vm725, %v1095
      %1193 = vst.msk [vmem:[%s1182 + $0x28] sm:$0xf] %vm725, %v1096
      %1194 = vst.msk [vmem:[%s1182 + $0x2c] sm:$0x1] %vm728, %v1097
      %1195 = vst.msk [vmem:[%s1182 + $0x30] sm:$0xf] %vm725, %v1098
      %1196 = vst.msk [vmem:[%s1182 + $0x34] sm:$0xf] %vm725, %v1099
      %1197 = vst.msk [vmem:[%s1182 + $0x38] sm:$0x1] %vm728, %v1100
      %1198 = vst.msk [vmem:[%s1182 + $0x3c] sm:$0xf] %vm725, %v1101
      %1199 = vst.msk [vmem:[%s1182 + $0x40] sm:$0xf] %vm725, %v1102
      %1200 = vst.msk [vmem:[%s1182 + $0x44] sm:$0x1] %vm728, %v1103
      %1201 = vst.msk [vmem:[%s1182 + $0x48] sm:$0xf] %vm725, %v1104
      %1202 = vst.msk [vmem:[%s1182 + $0x4c] sm:$0xf] %vm725, %v1105
      %1203 = vst.msk [vmem:[%s1182 + $0x50] sm:$0x1] %vm728, %v1106
      %1204 = vst.msk [vmem:[%s1182 + $0x54] sm:$0xf] %vm725, %v1107
      %1205 = vst.msk [vmem:[%s1182 + $0x58] sm:$0xf] %vm725, %v1108
      %1206 = vst.msk [vmem:[%s1182 + $0x5c] sm:$0x1] %vm728, %v1109
      %1207 = vst.msk [vmem:[%s1182 + $0x60] sm:$0xf] %vm725, %v1110
      %1208 = vst.msk [vmem:[%s1182 + $0x64] sm:$0xf] %vm725, %v1111
      %1209 = vst.msk [vmem:[%s1182 + $0x68] sm:$0x1] %vm728, %v1112
      %1210 = vst.msk [vmem:[%s1182 + $0x6c] sm:$0xf] %vm725, %v1113
      %1211 = vst.msk [vmem:[%s1182 + $0x70] sm:$0xf] %vm725, %v1114
      %1212 = vst.msk [vmem:[%s1182 + $0x74] sm:$0x1] %vm728, %v1115
      %1213 = vst.msk [vmem:[%s1182 + $0x78] sm:$0xf] %vm725, %v1116
      %1214 = vst.msk [vmem:[%s1182 + $0x7c] sm:$0xf] %vm725, %v1117
      %1215 = vst.msk [vmem:[%s1182 + $0x80] sm:$0x1] %vm728, %v1118
      %1216 = vst.msk [vmem:[%s1182 + $0x84] sm:$0xf] %vm725, %v1119
      %1217 = vst.msk [vmem:[%s1182 + $0x88] sm:$0xf] %vm725, %v1120
      %1218 = vst.msk [vmem:[%s1182 + $0x8c] sm:$0x1] %vm728, %v1121
      %1219 = vst.msk [vmem:[%s1182 + $0x90] sm:$0xf] %vm725, %v1122
      %1220 = vst.msk [vmem:[%s1182 + $0x94] sm:$0xf] %vm725, %v1123
      %1221 = vst.msk [vmem:[%s1182 + $0x98] sm:$0x1] %vm728, %v1124
      %1222 = vst.msk [vmem:[%s1182 + $0x9c] sm:$0xf] %vm725, %v1125
      %1223 = vst.msk [vmem:[%s1182 + $0xa0] sm:$0xf] %vm725, %v1126
      %1224 = vst.msk [vmem:[%s1182 + $0xa4] sm:$0x1] %vm728, %v1127
      %1225 = vst.msk [vmem:[%s1182 + $0xa8] sm:$0xf] %vm725, %v1128
      %1226 = vst.msk [vmem:[%s1182 + $0xac] sm:$0xf] %vm725, %v1129
      %1227 = vst.msk [vmem:[%s1182 + $0xb0] sm:$0x1] %vm728, %v1130
      %1228 = vst.msk [vmem:[%s1182 + $0xb4] sm:$0xf] %vm725, %v1131
      %1229 = vst.msk [vmem:[%s1182 + $0xb8] sm:$0xf] %vm725, %v1132
      %1230 = vst.msk [vmem:[%s1182 + $0xbc] sm:$0x1] %vm728, %v1133
      %1231 = vst.msk [vmem:[#allocation3] sm:$0xf] %vm725, 0
      %1232 = vst.msk [vmem:[#allocation3 + $0x4] sm:$0xf] %vm725, 0
      %1233 = vst.msk [vmem:[#allocation3 + $0x8] sm:$0x1] %vm728, 0
      %s1234 = scalar_lea.vmem [#allocation3], 204
      %1235 = vst.msk [vmem:[%s1234] sm:$0xf] %vm725, 0
      %1236 = vst.msk [vmem:[%s1234 + $0x4] sm:$0xf] %vm725, 0
      %1237 = vst.msk [vmem:[%s1234 + $0x8] sm:$0x1] %vm728, 0
      %v1238 = vld [vmem:[#allocation2] sm:$0xf]
      %v1239 = vld [vmem:[#allocation2 + $0x4] sm:$0xf]
      %v1240 = vld [vmem:[#allocation2 + $0xc] sm:$0xf]
      %v1241 = vld [vmem:[#allocation2 + $0x10] sm:$0xf]
      %v1242 = vld [vmem:[#allocation2 + $0x18] sm:$0xf]
      %v1243 = vld [vmem:[#allocation2 + $0x1c] sm:$0xf]
      %v1244 = vld [vmem:[#allocation2 + $0x24] sm:$0xf]
      %v1245 = vld [vmem:[#allocation2 + $0x28] sm:$0xf]
      %v1246 = vld [vmem:[#allocation2 + $0x30] sm:$0xf]
      %v1247 = vld [vmem:[#allocation2 + $0x34] sm:$0xf]
      %v1248 = vld [vmem:[#allocation2 + $0x3c] sm:$0xf]
      %v1249 = vld [vmem:[#allocation2 + $0x40] sm:$0xf]
      %v1250 = vld [vmem:[#allocation2 + $0x48] sm:$0xf]
      %v1251 = vld [vmem:[#allocation2 + $0x4c] sm:$0xf]
      %v1252 = vld [vmem:[#allocation2 + $0x54] sm:$0xf]
      %v1253 = vld [vmem:[#allocation2 + $0x58] sm:$0xf]
      %v1254 = vld [vmem:[#allocation2 + $0x60] sm:$0xf]
      %v1255 = vld [vmem:[#allocation2 + $0x64] sm:$0xf]
      %v1256 = vld [vmem:[#allocation2 + $0x6c] sm:$0xf]
      %v1257 = vld [vmem:[#allocation2 + $0x70] sm:$0xf]
      %v1258 = vld [vmem:[#allocation2 + $0x78] sm:$0xf]
      %v1259 = vld [vmem:[#allocation2 + $0x7c] sm:$0xf]
      %v1260 = vld [vmem:[#allocation2 + $0x84] sm:$0xf]
      %v1261 = vld [vmem:[#allocation2 + $0x88] sm:$0xf]
      %v1262 = vld [vmem:[#allocation2 + $0x90] sm:$0xf]
      %v1263 = vld [vmem:[#allocation2 + $0x94] sm:$0xf]
      %v1264 = vld [vmem:[#allocation2 + $0x9c] sm:$0xf]
      %v1265 = vld [vmem:[#allocation2 + $0xa0] sm:$0xf]
      %v1266 = vld [vmem:[#allocation2 + $0xa8] sm:$0xf]
      %v1267 = vld [vmem:[#allocation2 + $0xac] sm:$0xf]
      %v1268 = vld [vmem:[#allocation2 + $0xb4] sm:$0xf]
      %v1269 = vld [vmem:[#allocation2 + $0xb8] sm:$0xf]
      %v1270 = vld [vmem:[#allocation2 + $0x8] sm:$0x1]
      %v1271 = vld [vmem:[#allocation2 + $0x14] sm:$0x1]
      %v1272 = vld [vmem:[#allocation2 + $0x20] sm:$0x1]
      %v1273 = vld [vmem:[#allocation2 + $0x2c] sm:$0x1]
      %v1274 = vld [vmem:[#allocation2 + $0x38] sm:$0x1]
      %v1275 = vld [vmem:[#allocation2 + $0x44] sm:$0x1]
      %v1276 = vld [vmem:[#allocation2 + $0x50] sm:$0x1]
      %v1277 = vld [vmem:[#allocation2 + $0x5c] sm:$0x1]
      %v1278 = vld [vmem:[#allocation2 + $0x68] sm:$0x1]
      %v1279 = vld [vmem:[#allocation2 + $0x74] sm:$0x1]
      %v1280 = vld [vmem:[#allocation2 + $0x80] sm:$0x1]
      %v1281 = vld [vmem:[#allocation2 + $0x8c] sm:$0x1]
      %v1282 = vld [vmem:[#allocation2 + $0x98] sm:$0x1]
      %v1283 = vld [vmem:[#allocation2 + $0xa4] sm:$0x1]
      %v1284 = vld [vmem:[#allocation2 + $0xb0] sm:$0x1]
      %v1285 = vld [vmem:[#allocation2 + $0xbc] sm:$0x1]
      %v1286 = vld [vmem:[#allocation2] sm:$0xe]
      %v1287 = vld [vmem:[#allocation2 + $0xc] sm:$0xe]
      %v1288 = vld [vmem:[#allocation2 + $0x18] sm:$0xe]
      %v1289 = vld [vmem:[#allocation2 + $0x24] sm:$0xe]
      %v1290 = vld [vmem:[#allocation2 + $0x30] sm:$0xe]
      %v1291 = vld [vmem:[#allocation2 + $0x3c] sm:$0xe]
      %v1292 = vld [vmem:[#allocation2 + $0x48] sm:$0xe]
      %v1293 = vld [vmem:[#allocation2 + $0x54] sm:$0xe]
      %v1294 = vld [vmem:[#allocation2 + $0x60] sm:$0xe]
      %v1295 = vld [vmem:[#allocation2 + $0x6c] sm:$0xe]
      %v1296 = vld [vmem:[#allocation2 + $0x78] sm:$0xe]
      %v1297 = vld [vmem:[#allocation2 + $0x84] sm:$0xe]
      %v1298 = vld [vmem:[#allocation2 + $0x90] sm:$0xe]
      %v1299 = vld [vmem:[#allocation2 + $0x9c] sm:$0xe]
      %v1300 = vld [vmem:[#allocation2 + $0xa8] sm:$0xe]
      %v1301 = vld [vmem:[#allocation2 + $0xb4] sm:$0xe]
      %v1334 = vunpack.c.l.b16 %v1238
      %v1335 = vunpack.c.l.b16 %v1239
      %v1336 = vunpack.c.l.b16 %v1240
      %v1337 = vunpack.c.l.b16 %v1241
      %v1338 = vunpack.c.l.b16 %v1242
      %v1339 = vunpack.c.l.b16 %v1243
      %v1340 = vunpack.c.l.b16 %v1244
      %v1341 = vunpack.c.l.b16 %v1245
      %v1342 = vunpack.c.l.b16 %v1246
      %v1343 = vunpack.c.l.b16 %v1247
      %v1344 = vunpack.c.l.b16 %v1248
      %v1345 = vunpack.c.l.b16 %v1249
      %v1346 = vunpack.c.l.b16 %v1250
      %v1347 = vunpack.c.l.b16 %v1251
      %v1348 = vunpack.c.l.b16 %v1252
      %v1349 = vunpack.c.l.b16 %v1253
      %v1350 = vunpack.c.l.b16 %v1254
      %v1351 = vunpack.c.l.b16 %v1255
      %v1352 = vunpack.c.l.b16 %v1256
      %v1353 = vunpack.c.l.b16 %v1257
      %v1354 = vunpack.c.l.b16 %v1258
      %v1355 = vunpack.c.l.b16 %v1259
      %v1356 = vunpack.c.l.b16 %v1260
      %v1357 = vunpack.c.l.b16 %v1261
      %v1358 = vunpack.c.l.b16 %v1262
      %v1359 = vunpack.c.l.b16 %v1263
      %v1360 = vunpack.c.l.b16 %v1264
      %v1361 = vunpack.c.l.b16 %v1265
      %v1362 = vunpack.c.l.b16 %v1266
      %v1363 = vunpack.c.l.b16 %v1267
      %v1364 = vunpack.c.l.b16 %v1268
      %v1365 = vunpack.c.l.b16 %v1269
      %v1366 = vpack.c.b16 %v1335, %v1334
      %v1367 = vpack.c.b16 %v1337, %v1336
      %v1368 = vpack.c.b16 %v1339, %v1338
      %v1369 = vpack.c.b16 %v1341, %v1340
      %v1370 = vpack.c.b16 %v1343, %v1342
      %v1371 = vpack.c.b16 %v1345, %v1344
      %v1372 = vpack.c.b16 %v1347, %v1346
      %v1373 = vpack.c.b16 %v1349, %v1348
      %v1374 = vpack.c.b16 %v1351, %v1350
      %v1375 = vpack.c.b16 %v1353, %v1352
      %v1376 = vpack.c.b16 %v1355, %v1354
      %v1377 = vpack.c.b16 %v1357, %v1356
      %v1378 = vpack.c.b16 %v1359, %v1358
      %v1379 = vpack.c.b16 %v1361, %v1360
      %v1380 = vpack.c.b16 %v1363, %v1362
      %v1381 = vpack.c.b16 %v1365, %v1364
      %v1398 = vunpack.c.l.b16 %v1270
      %v1399 = vunpack.c.l.b16 %v1271
      %v1400 = vunpack.c.l.b16 %v1272
      %v1401 = vunpack.c.l.b16 %v1273
      %v1402 = vunpack.c.l.b16 %v1274
      %v1403 = vunpack.c.l.b16 %v1275
      %v1404 = vunpack.c.l.b16 %v1276
      %v1405 = vunpack.c.l.b16 %v1277
      %v1406 = vunpack.c.l.b16 %v1278
      %v1407 = vunpack.c.l.b16 %v1279
      %v1408 = vunpack.c.l.b16 %v1280
      %v1409 = vunpack.c.l.b16 %v1281
      %v1410 = vunpack.c.l.b16 %v1282
      %v1411 = vunpack.c.l.b16 %v1283
      %v1412 = vunpack.c.l.b16 %v1284
      %v1413 = vunpack.c.l.b16 %v1285
      %v1414 = vpack.c.b16 %v1398, %v1398
      %v1415 = vpack.c.b16 %v1399, %v1399
      %v1416 = vpack.c.b16 %v1400, %v1400
      %v1417 = vpack.c.b16 %v1401, %v1401
      %v1418 = vpack.c.b16 %v1402, %v1402
      %v1419 = vpack.c.b16 %v1403, %v1403
      %v1420 = vpack.c.b16 %v1404, %v1404
      %v1421 = vpack.c.b16 %v1405, %v1405
      %v1422 = vpack.c.b16 %v1406, %v1406
      %v1423 = vpack.c.b16 %v1407, %v1407
      %v1424 = vpack.c.b16 %v1408, %v1408
      %v1425 = vpack.c.b16 %v1409, %v1409
      %v1426 = vpack.c.b16 %v1410, %v1410
      %v1427 = vpack.c.b16 %v1411, %v1411
      %v1428 = vpack.c.b16 %v1412, %v1412
      %v1429 = vpack.c.b16 %v1413, %v1413
      %vm1430 = vsmask.f32 7424
      %v1432 = vshrl.u32 %v1366, 16
      %v1434 = vshll.u32 %v1366, 16
      %v1436 = vrot.slane %v1434, 1
      %v1437 = vor.u32 %v1432, %v1436
      %v1439 = vshll.u32 %v1414, 16
      %v1441 = vrot.slane %v1439, 1
      %v1442 = vsel %vm1430, %v1437, %v1441
      %v1444 = vshrl.u32 %v1367, 16
      %v1446 = vshll.u32 %v1367, 16
      %v1448 = vrot.slane %v1446, 1
      %v1449 = vor.u32 %v1444, %v1448
      %v1451 = vshll.u32 %v1415, 16
      %v1453 = vrot.slane %v1451, 1
      %v1454 = vsel %vm1430, %v1449, %v1453
      %v1456 = vshrl.u32 %v1368, 16
      %v1458 = vshll.u32 %v1368, 16
      %v1460 = vrot.slane %v1458, 1
      %v1461 = vor.u32 %v1456, %v1460
      %v1463 = vshll.u32 %v1416, 16
      %v1465 = vrot.slane %v1463, 1
      %v1466 = vsel %vm1430, %v1461, %v1465
      %v1468 = vshrl.u32 %v1369, 16
      %v1470 = vshll.u32 %v1369, 16
      %v1472 = vrot.slane %v1470, 1
      %v1473 = vor.u32 %v1468, %v1472
      %v1475 = vshll.u32 %v1417, 16
      %v1477 = vrot.slane %v1475, 1
      %v1478 = vsel %vm1430, %v1473, %v1477
      %v1480 = vshrl.u32 %v1370, 16
      %v1482 = vshll.u32 %v1370, 16
      %v1484 = vrot.slane %v1482, 1
      %v1485 = vor.u32 %v1480, %v1484
      %v1487 = vshll.u32 %v1418, 16
      %v1489 = vrot.slane %v1487, 1
      %v1490 = vsel %vm1430, %v1485, %v1489
      %v1492 = vshrl.u32 %v1371, 16
      %v1494 = vshll.u32 %v1371, 16
      %v1496 = vrot.slane %v1494, 1
      %v1497 = vor.u32 %v1492, %v1496
      %v1499 = vshll.u32 %v1419, 16
      %v1501 = vrot.slane %v1499, 1
      %v1502 = vsel %vm1430, %v1497, %v1501
      %v1504 = vshrl.u32 %v1372, 16
      %v1506 = vshll.u32 %v1372, 16
      %v1508 = vrot.slane %v1506, 1
      %v1509 = vor.u32 %v1504, %v1508
      %v1511 = vshll.u32 %v1420, 16
      %v1513 = vrot.slane %v1511, 1
      %v1514 = vsel %vm1430, %v1509, %v1513
      %v1516 = vshrl.u32 %v1373, 16
      %v1518 = vshll.u32 %v1373, 16
      %v1520 = vrot.slane %v1518, 1
      %v1521 = vor.u32 %v1516, %v1520
      %v1523 = vshll.u32 %v1421, 16
      %v1525 = vrot.slane %v1523, 1
      %v1526 = vsel %vm1430, %v1521, %v1525
      %v1528 = vshrl.u32 %v1374, 16
      %v1530 = vshll.u32 %v1374, 16
      %v1532 = vrot.slane %v1530, 1
      %v1533 = vor.u32 %v1528, %v1532
      %v1535 = vshll.u32 %v1422, 16
      %v1537 = vrot.slane %v1535, 1
      %v1538 = vsel %vm1430, %v1533, %v1537
      %v1540 = vshrl.u32 %v1375, 16
      %v1542 = vshll.u32 %v1375, 16
      %v1544 = vrot.slane %v1542, 1
      %v1545 = vor.u32 %v1540, %v1544
      %v1547 = vshll.u32 %v1423, 16
      %v1549 = vrot.slane %v1547, 1
      %v1550 = vsel %vm1430, %v1545, %v1549
      %v1552 = vshrl.u32 %v1376, 16
      %v1554 = vshll.u32 %v1376, 16
      %v1556 = vrot.slane %v1554, 1
      %v1557 = vor.u32 %v1552, %v1556
      %v1559 = vshll.u32 %v1424, 16
      %v1561 = vrot.slane %v1559, 1
      %v1562 = vsel %vm1430, %v1557, %v1561
      %v1564 = vshrl.u32 %v1377, 16
      %v1566 = vshll.u32 %v1377, 16
      %v1568 = vrot.slane %v1566, 1
      %v1569 = vor.u32 %v1564, %v1568
      %v1571 = vshll.u32 %v1425, 16
      %v1573 = vrot.slane %v1571, 1
      %v1574 = vsel %vm1430, %v1569, %v1573
      %v1576 = vshrl.u32 %v1378, 16
      %v1578 = vshll.u32 %v1378, 16
      %v1580 = vrot.slane %v1578, 1
      %v1581 = vor.u32 %v1576, %v1580
      %v1583 = vshll.u32 %v1426, 16
      %v1585 = vrot.slane %v1583, 1
      %v1586 = vsel %vm1430, %v1581, %v1585
      %v1588 = vshrl.u32 %v1379, 16
      %v1590 = vshll.u32 %v1379, 16
      %v1592 = vrot.slane %v1590, 1
      %v1593 = vor.u32 %v1588, %v1592
      %v1595 = vshll.u32 %v1427, 16
      %v1597 = vrot.slane %v1595, 1
      %v1598 = vsel %vm1430, %v1593, %v1597
      %v1600 = vshrl.u32 %v1380, 16
      %v1602 = vshll.u32 %v1380, 16
      %v1604 = vrot.slane %v1602, 1
      %v1605 = vor.u32 %v1600, %v1604
      %v1607 = vshll.u32 %v1428, 16
      %v1609 = vrot.slane %v1607, 1
      %v1610 = vsel %vm1430, %v1605, %v1609
      %v1612 = vshrl.u32 %v1381, 16
      %v1614 = vshll.u32 %v1381, 16
      %v1616 = vrot.slane %v1614, 1
      %v1617 = vor.u32 %v1612, %v1616
      %v1619 = vshll.u32 %v1429, 16
      %v1621 = vrot.slane %v1619, 1
      %v1622 = vsel %vm1430, %v1617, %v1621
      %1623 = vrot.lane.b32.xlu0 %v1442, 4
      %v1624 = vpop.permute.xlu0 %1623
      %1625 = vrot.lane.b32.xlu0 %v1454, 4
      %v1626 = vpop.permute.xlu0 %1625
      %1627 = vrot.lane.b32.xlu0 %v1466, 4
      %v1628 = vpop.permute.xlu0 %1627
      %1629 = vrot.lane.b32.xlu0 %v1478, 4
      %v1630 = vpop.permute.xlu0 %1629
      %1631 = vrot.lane.b32.xlu0 %v1490, 4
      %v1632 = vpop.permute.xlu0 %1631
      %1633 = vrot.lane.b32.xlu0 %v1502, 4
      %v1634 = vpop.permute.xlu0 %1633
      %1635 = vrot.lane.b32.xlu0 %v1514, 4
      %v1636 = vpop.permute.xlu0 %1635
      %1637 = vrot.lane.b32.xlu0 %v1526, 4
      %v1638 = vpop.permute.xlu0 %1637
      %1639 = vrot.lane.b32.xlu0 %v1538, 4
      %v1640 = vpop.permute.xlu0 %1639
      %1641 = vrot.lane.b32.xlu0 %v1550, 4
      %v1642 = vpop.permute.xlu0 %1641
      %1643 = vrot.lane.b32.xlu0 %v1562, 4
      %v1644 = vpop.permute.xlu0 %1643
      %1645 = vrot.lane.b32.xlu0 %v1574, 4
      %v1646 = vpop.permute.xlu0 %1645
      %1647 = vrot.lane.b32.xlu0 %v1586, 4
      %v1648 = vpop.permute.xlu0 %1647
      %1649 = vrot.lane.b32.xlu0 %v1598, 4
      %v1650 = vpop.permute.xlu0 %1649
      %1651 = vrot.lane.b32.xlu0 %v1610, 4
      %v1652 = vpop.permute.xlu0 %1651
      %1653 = vrot.lane.b32.xlu0 %v1622, 4
      %v1654 = vpop.permute.xlu0 %1653
      %v1671 = vunpack.c.l.b16 %v1286
      %v1672 = vunpack.c.l.b16 %v1287
      %v1673 = vunpack.c.l.b16 %v1288
      %v1674 = vunpack.c.l.b16 %v1289
      %v1675 = vunpack.c.l.b16 %v1290
      %v1676 = vunpack.c.l.b16 %v1291
      %v1677 = vunpack.c.l.b16 %v1292
      %v1678 = vunpack.c.l.b16 %v1293
      %v1679 = vunpack.c.l.b16 %v1294
      %v1680 = vunpack.c.l.b16 %v1295
      %v1681 = vunpack.c.l.b16 %v1296
      %v1682 = vunpack.c.l.b16 %v1297
      %v1683 = vunpack.c.l.b16 %v1298
      %v1684 = vunpack.c.l.b16 %v1299
      %v1685 = vunpack.c.l.b16 %v1300
      %v1686 = vunpack.c.l.b16 %v1301
      %v1687 = vpack.c.b16 %v1335, %v1671
      %v1688 = vpack.c.b16 %v1337, %v1672
      %v1689 = vpack.c.b16 %v1339, %v1673
      %v1690 = vpack.c.b16 %v1341, %v1674
      %v1691 = vpack.c.b16 %v1343, %v1675
      %v1692 = vpack.c.b16 %v1345, %v1676
      %v1693 = vpack.c.b16 %v1347, %v1677
      %v1694 = vpack.c.b16 %v1349, %v1678
      %v1695 = vpack.c.b16 %v1351, %v1679
      %v1696 = vpack.c.b16 %v1353, %v1680
      %v1697 = vpack.c.b16 %v1355, %v1681
      %v1698 = vpack.c.b16 %v1357, %v1682
      %v1699 = vpack.c.b16 %v1359, %v1683
      %v1700 = vpack.c.b16 %v1361, %v1684
      %v1701 = vpack.c.b16 %v1363, %v1685
      %v1702 = vpack.c.b16 %v1365, %v1686
      %vm1703 = vcmask 1046528
      %v1704 = vrot.slane %v1687, 1
      %v1705 = vrot.slane %v1414, 1
      %v1706 = vsel %vm1703, %v1704, %v1705
      %v1707 = vrot.slane %v1688, 1
      %v1708 = vrot.slane %v1415, 1
      %v1709 = vsel %vm1703, %v1707, %v1708
      %v1710 = vrot.slane %v1689, 1
      %v1711 = vrot.slane %v1416, 1
      %v1712 = vsel %vm1703, %v1710, %v1711
      %v1713 = vrot.slane %v1690, 1
      %v1714 = vrot.slane %v1417, 1
      %v1715 = vsel %vm1703, %v1713, %v1714
      %v1716 = vrot.slane %v1691, 1
      %v1717 = vrot.slane %v1418, 1
      %v1718 = vsel %vm1703, %v1716, %v1717
      %v1719 = vrot.slane %v1692, 1
      %v1720 = vrot.slane %v1419, 1
      %v1721 = vsel %vm1703, %v1719, %v1720
      %v1722 = vrot.slane %v1693, 1
      %v1723 = vrot.slane %v1420, 1
      %v1724 = vsel %vm1703, %v1722, %v1723
      %v1725 = vrot.slane %v1694, 1
      %v1726 = vrot.slane %v1421, 1
      %v1727 = vsel %vm1703, %v1725, %v1726
      %v1728 = vrot.slane %v1695, 1
      %v1729 = vrot.slane %v1422, 1
      %v1730 = vsel %vm1703, %v1728, %v1729
      %v1731 = vrot.slane %v1696, 1
      %v1732 = vrot.slane %v1423, 1
      %v1733 = vsel %vm1703, %v1731, %v1732
      %v1734 = vrot.slane %v1697, 1
      %v1735 = vrot.slane %v1424, 1
      %v1736 = vsel %vm1703, %v1734, %v1735
      %v1737 = vrot.slane %v1698, 1
      %v1738 = vrot.slane %v1425, 1
      %v1739 = vsel %vm1703, %v1737, %v1738
      %v1740 = vrot.slane %v1699, 1
      %v1741 = vrot.slane %v1426, 1
      %v1742 = vsel %vm1703, %v1740, %v1741
      %v1743 = vrot.slane %v1700, 1
      %v1744 = vrot.slane %v1427, 1
      %v1745 = vsel %vm1703, %v1743, %v1744
      %v1746 = vrot.slane %v1701, 1
      %v1747 = vrot.slane %v1428, 1
      %v1748 = vsel %vm1703, %v1746, %v1747
      %v1749 = vrot.slane %v1702, 1
      %v1750 = vrot.slane %v1429, 1
      %v1751 = vsel %vm1703, %v1749, %v1750
      %1752 = vrot.lane.b32.xlu0 %v1706, 8
      %v1753 = vpop.permute.xlu0 %1752
      %1754 = vrot.lane.b32.xlu0 %v1709, 8
      %v1755 = vpop.permute.xlu0 %1754
      %1756 = vrot.lane.b32.xlu0 %v1712, 8
      %v1757 = vpop.permute.xlu0 %1756
      %1758 = vrot.lane.b32.xlu0 %v1715, 8
      %v1759 = vpop.permute.xlu0 %1758
      %1760 = vrot.lane.b32.xlu0 %v1718, 8
      %v1761 = vpop.permute.xlu0 %1760
      %1762 = vrot.lane.b32.xlu0 %v1721, 8
      %v1763 = vpop.permute.xlu0 %1762
      %1764 = vrot.lane.b32.xlu0 %v1724, 8
      %v1765 = vpop.permute.xlu0 %1764
      %1766 = vrot.lane.b32.xlu0 %v1727, 8
      %v1767 = vpop.permute.xlu0 %1766
      %1768 = vrot.lane.b32.xlu0 %v1730, 8
      %v1769 = vpop.permute.xlu0 %1768
      %1770 = vrot.lane.b32.xlu0 %v1733, 8
      %v1771 = vpop.permute.xlu0 %1770
      %1772 = vrot.lane.b32.xlu0 %v1736, 8
      %v1773 = vpop.permute.xlu0 %1772
      %1774 = vrot.lane.b32.xlu0 %v1739, 8
      %v1775 = vpop.permute.xlu0 %1774
      %1776 = vrot.lane.b32.xlu0 %v1742, 8
      %v1777 = vpop.permute.xlu0 %1776
      %1778 = vrot.lane.b32.xlu0 %v1745, 8
      %v1779 = vpop.permute.xlu0 %1778
      %1780 = vrot.lane.b32.xlu0 %v1748, 8
      %v1781 = vpop.permute.xlu0 %1780
      %1782 = vrot.lane.b32.xlu0 %v1751, 8
      %v1783 = vpop.permute.xlu0 %1782
      %vm1784 = vcmask 31744
      %v1786 = vsel %vm1784, %v1366, %v1624
      %v1788 = vsel %vm1784, %v1367, %v1626
      %v1790 = vsel %vm1784, %v1368, %v1628
      %v1792 = vsel %vm1784, %v1369, %v1630
      %v1794 = vsel %vm1784, %v1370, %v1632
      %v1796 = vsel %vm1784, %v1371, %v1634
      %v1798 = vsel %vm1784, %v1372, %v1636
      %v1800 = vsel %vm1784, %v1373, %v1638
      %v1802 = vsel %vm1784, %v1374, %v1640
      %v1804 = vsel %vm1784, %v1375, %v1642
      %v1806 = vsel %vm1784, %v1376, %v1644
      %v1808 = vsel %vm1784, %v1377, %v1646
      %v1810 = vsel %vm1784, %v1378, %v1648
      %v1812 = vsel %vm1784, %v1379, %v1650
      %v1814 = vsel %vm1784, %v1380, %v1652
      %v1816 = vsel %vm1784, %v1381, %v1654
      %vm1817 = vcmask 64512
      %v1819 = vsel %vm1817, %v1786, %v1753
      %v1821 = vsel %vm1817, %v1788, %v1755
      %v1823 = vsel %vm1817, %v1790, %v1757
      %v1825 = vsel %vm1817, %v1792, %v1759
      %v1827 = vsel %vm1817, %v1794, %v1761
      %v1829 = vsel %vm1817, %v1796, %v1763
      %v1831 = vsel %vm1817, %v1798, %v1765
      %v1833 = vsel %vm1817, %v1800, %v1767
      %v1835 = vsel %vm1817, %v1802, %v1769
      %v1837 = vsel %vm1817, %v1804, %v1771
      %v1839 = vsel %vm1817, %v1806, %v1773
      %v1841 = vsel %vm1817, %v1808, %v1775
      %v1843 = vsel %vm1817, %v1810, %v1777
      %v1845 = vsel %vm1817, %v1812, %v1779
      %v1847 = vsel %vm1817, %v1814, %v1781
      %v1849 = vsel %vm1817, %v1816, %v1783
      %v1850 = vld [vmem:[%s2] sm:$0xf]
      %v1851 = vld [vmem:[%s2 + $0x4] sm:$0x3]
      %v1854 = vunpack.c.l.b16 %v1850
      %v1855 = vunpack.c.l.b16 %v1851
      %v1856 = vpack.c.b16 %v1855, %v1854
      %vm1857 = vcmask 97280
      %v1858 = vsel %vm1857, %v1819, 0
      %v1860 = vsel %vm1857, %v1821, 0
      %v1862 = vsel %vm1857, %v1823, 0
      %v1864 = vsel %vm1857, %v1825, 0
      %v1866 = vsel %vm1857, %v1827, 0
      %v1868 = vsel %vm1857, %v1829, 0
      %v1870 = vsel %vm1857, %v1831, 0
      %v1872 = vsel %vm1857, %v1833, 0
      %v1874 = vsel %vm1857, %v1835, 0
      %v1876 = vsel %vm1857, %v1837, 0
      %v1878 = vsel %vm1857, %v1839, 0
      %v1880 = vsel %vm1857, %v1841, 0
      %v1882 = vsel %vm1857, %v1843, 0
      %v1884 = vsel %vm1857, %v1845, 0
      %v1886 = vsel %vm1857, %v1847, 0
      %v1888 = vsel %vm1857, %v1849, 0
      %vm1890 = vcmask 1045504
      %v1892 = vsel %vm1890, %v1856, 0
      %1894 = vmatprep.subr.bf16.mxu0 0
      %1895 = vmatpush1.bf16.msra.mxu0 0
      %1896 = vmatprep.subr.bf16.mxu0 0
      %1897 = vmatpush1.bf16.msra.mxu0 0
      %1898 = vmatprep.subr.bf16.mxu0 0
      %1899 = vmatpush1.bf16.msra.mxu0 0
      %1900 = vmatprep.subr.bf16.mxu0 0
      %1901 = vmatpush1.bf16.msra.mxu0 0
      %1902 = vmatprep.subr.bf16.mxu0 0
      %1903 = vmatpush1.bf16.msra.mxu0 0
      %1904 = vmatprep.subr.bf16.mxu0 0
      %1905 = vmatpush1.bf16.msra.mxu0 0
      %1906 = vmatprep.subr.bf16.mxu0 0
      %1907 = vmatpush1.bf16.msra.mxu0 0
      %1908 = vmatprep.subr.bf16.mxu0 0
      %1909 = vmatpush1.bf16.msra.mxu0 %v1892
      %1910 = vmatprep.subr.bf16.mxu0 0
      %1911 = vmatpush2.bf16.msra.mxu0 0
      %1912 = vmatprep.subr.bf16.mxu0 0
      %1913 = vmatpush2.bf16.msra.mxu0 0
      %1914 = vmatprep.subr.bf16.mxu0 0
      %1915 = vmatpush2.bf16.msra.mxu0 0
      %1916 = vmatprep.subr.bf16.mxu0 0
      %1917 = vmatpush2.bf16.msra.mxu0 0
      %1918 = vmatprep.subr.bf16.mxu0 0
      %1919 = vmatpush2.bf16.msra.mxu0 0
      %1920 = vmatprep.subr.bf16.mxu0 0
      %1921 = vmatpush2.bf16.msra.mxu0 0
      %1922 = vmatprep.subr.bf16.mxu0 0
      %1923 = vmatpush2.bf16.msra.mxu0 0
      %1924 = vmatprep.subr.bf16.mxu0 0
      %1925 = vmatpush2.bf16.msra.mxu0 0
      %1926 = vmatprep.mubr.bf16.mxu0 0
      %1927 = vmatmul.mubr.bf16.gmra.mxu0 %v1858
      %v1928 = vpop.f32.mrf.mxu0
      %v1929 = vadd.f32 0.0, %v1928
      %v1930 = vpop.f32.mrf.mxu0
      %v1931 = vpop.f32.mrf.mxu0
      %v1932 = vadd.f32 0.0, %v1931
      %v1933 = vpop.f32.mrf.mxu0
      %1934 = vmatprep.mubr.bf16.mxu0 0
      %1935 = vmatmul.mubr.bf16.gmra.mxu0 %v1860
      %v1936 = vpop.f32.mrf.mxu0
      %v1937 = vadd.f32 0.0, %v1936
      %v1938 = vpop.f32.mrf.mxu0
      %v1939 = vpop.f32.mrf.mxu0
      %v1940 = vadd.f32 0.0, %v1939
      %v1941 = vpop.f32.mrf.mxu0
      %1942 = vmatprep.mubr.bf16.mxu0 0
      %1943 = vmatmul.mubr.bf16.gmra.mxu0 %v1862
      %v1944 = vpop.f32.mrf.mxu0
      %v1945 = vadd.f32 0.0, %v1944
      %v1946 = vpop.f32.mrf.mxu0
      %v1947 = vpop.f32.mrf.mxu0
      %v1948 = vadd.f32 0.0, %v1947
      %v1949 = vpop.f32.mrf.mxu0
      %1950 = vmatprep.mubr.bf16.mxu0 0
      %1951 = vmatmul.mubr.bf16.gmra.mxu0 %v1864
      %v1952 = vpop.f32.mrf.mxu0
      %v1953 = vadd.f32 0.0, %v1952
      %v1954 = vpop.f32.mrf.mxu0
      %v1955 = vpop.f32.mrf.mxu0
      %v1956 = vadd.f32 0.0, %v1955
      %v1957 = vpop.f32.mrf.mxu0
      %1958 = vmatprep.mubr.bf16.mxu0 0
      %1959 = vmatmul.mubr.bf16.gmra.mxu0 %v1866
      %v1960 = vpop.f32.mrf.mxu0
      %v1961 = vadd.f32 0.0, %v1960
      %v1962 = vpop.f32.mrf.mxu0
      %v1963 = vpop.f32.mrf.mxu0
      %v1964 = vadd.f32 0.0, %v1963
      %v1965 = vpop.f32.mrf.mxu0
      %1966 = vmatprep.mubr.bf16.mxu0 0
      %1967 = vmatmul.mubr.bf16.gmra.mxu0 %v1868
      %v1968 = vpop.f32.mrf.mxu0
      %v1969 = vadd.f32 0.0, %v1968
      %v1970 = vpop.f32.mrf.mxu0
      %v1971 = vpop.f32.mrf.mxu0
      %v1972 = vadd.f32 0.0, %v1971
      %v1973 = vpop.f32.mrf.mxu0
      %1974 = vmatprep.mubr.bf16.mxu0 0
      %1975 = vmatmul.mubr.bf16.gmra.mxu0 %v1870
      %v1976 = vpop.f32.mrf.mxu0
      %v1977 = vadd.f32 0.0, %v1976
      %v1978 = vpop.f32.mrf.mxu0
      %v1979 = vpop.f32.mrf.mxu0
      %v1980 = vadd.f32 0.0, %v1979
      %v1981 = vpop.f32.mrf.mxu0
      %1982 = vmatprep.mubr.bf16.mxu0 0
      %1983 = vmatmul.mubr.bf16.gmra.mxu0 %v1872
      %v1984 = vpop.f32.mrf.mxu0
      %v1985 = vadd.f32 0.0, %v1984
      %v1986 = vpop.f32.mrf.mxu0
      %v1987 = vpop.f32.mrf.mxu0
      %v1988 = vadd.f32 0.0, %v1987
      %v1989 = vpop.f32.mrf.mxu0
      %1990 = vmatprep.mubr.bf16.mxu0 0
      %1991 = vmatmul.mubr.bf16.gmra.mxu0 %v1874
      %v1992 = vpop.f32.mrf.mxu0
      %v1993 = vadd.f32 0.0, %v1992
      %v1994 = vpop.f32.mrf.mxu0
      %v1995 = vpop.f32.mrf.mxu0
      %v1996 = vadd.f32 0.0, %v1995
      %v1997 = vpop.f32.mrf.mxu0
      %1998 = vmatprep.mubr.bf16.mxu0 0
      %1999 = vmatmul.mubr.bf16.gmra.mxu0 %v1876
      %v2000 = vpop.f32.mrf.mxu0
      %v2001 = vadd.f32 0.0, %v2000
      %v2002 = vpop.f32.mrf.mxu0
      %v2003 = vpop.f32.mrf.mxu0
      %v2004 = vadd.f32 0.0, %v2003
      %v2005 = vpop.f32.mrf.mxu0
      %2006 = vmatprep.mubr.bf16.mxu0 0
      %2007 = vmatmul.mubr.bf16.gmra.mxu0 %v1878
      %v2008 = vpop.f32.mrf.mxu0
      %v2009 = vadd.f32 0.0, %v2008
      %v2010 = vpop.f32.mrf.mxu0
      %v2011 = vpop.f32.mrf.mxu0
      %v2012 = vadd.f32 0.0, %v2011
      %v2013 = vpop.f32.mrf.mxu0
      %2014 = vmatprep.mubr.bf16.mxu0 0
      %2015 = vmatmul.mubr.bf16.gmra.mxu0 %v1880
      %v2016 = vpop.f32.mrf.mxu0
      %v2017 = vadd.f32 0.0, %v2016
      %v2018 = vpop.f32.mrf.mxu0
      %v2019 = vpop.f32.mrf.mxu0
      %v2020 = vadd.f32 0.0, %v2019
      %v2021 = vpop.f32.mrf.mxu0
      %2022 = vmatprep.mubr.bf16.mxu0 0
      %2023 = vmatmul.mubr.bf16.gmra.mxu0 %v1882
      %v2024 = vpop.f32.mrf.mxu0
      %v2025 = vadd.f32 0.0, %v2024
      %v2026 = vpop.f32.mrf.mxu0
      %v2027 = vpop.f32.mrf.mxu0
      %v2028 = vadd.f32 0.0, %v2027
      %v2029 = vpop.f32.mrf.mxu0
      %2030 = vmatprep.mubr.bf16.mxu0 0
      %2031 = vmatmul.mubr.bf16.gmra.mxu0 %v1884
      %v2032 = vpop.f32.mrf.mxu0
      %v2033 = vadd.f32 0.0, %v2032
      %v2034 = vpop.f32.mrf.mxu0
      %v2035 = vpop.f32.mrf.mxu0
      %v2036 = vadd.f32 0.0, %v2035
      %v2037 = vpop.f32.mrf.mxu0
      %2038 = vmatprep.mubr.bf16.mxu0 0
      %2039 = vmatmul.mubr.bf16.gmra.mxu0 %v1886
      %v2040 = vpop.f32.mrf.mxu0
      %v2041 = vadd.f32 0.0, %v2040
      %v2042 = vpop.f32.mrf.mxu0
      %v2043 = vpop.f32.mrf.mxu0
      %v2044 = vadd.f32 0.0, %v2043
      %v2045 = vpop.f32.mrf.mxu0
      %2046 = vmatprep.mubr.bf16.mxu0 0
      %2047 = vmatmul.mubr.bf16.gmra.mxu0 %v1888
      %v2048 = vpop.f32.mrf.mxu0
      %v2049 = vadd.f32 0.0, %v2048
      %v2050 = vpop.f32.mrf.mxu0
      %v2051 = vpop.f32.mrf.mxu0
      %v2052 = vadd.f32 0.0, %v2051
      %v2053 = vpop.f32.mrf.mxu0
      %2054 = vdwg.mxu0
      %2055 = vst.msk [vmem:[#allocation4] sm:$0xff] %vm1784, %v1929
      %2056 = vst.msk [vmem:[#allocation4 + $0x8] sm:$0xff] %vm1784, %v1932
      %2057 = vst.msk [vmem:[#allocation4 + $0x10] sm:$0xff] %vm1784, %v1937
      %2058 = vst.msk [vmem:[#allocation4 + $0x18] sm:$0xff] %vm1784, %v1940
      %2059 = vst.msk [vmem:[#allocation4 + $0x20] sm:$0xff] %vm1784, %v1945
      %2060 = vst.msk [vmem:[#allocation4 + $0x28] sm:$0xff] %vm1784, %v1948
      %2061 = vst.msk [vmem:[#allocation4 + $0x30] sm:$0xff] %vm1784, %v1953
      %2062 = vst.msk [vmem:[#allocation4 + $0x38] sm:$0xff] %vm1784, %v1956
      %2063 = vst.msk [vmem:[#allocation4 + $0x40] sm:$0xff] %vm1784, %v1961
      %2064 = vst.msk [vmem:[#allocation4 + $0x48] sm:$0xff] %vm1784, %v1964
      %2065 = vst.msk [vmem:[#allocation4 + $0x50] sm:$0xff] %vm1784, %v1969
      %2066 = vst.msk [vmem:[#allocation4 + $0x58] sm:$0xff] %vm1784, %v1972
      %2067 = vst.msk [vmem:[#allocation4 + $0x60] sm:$0xff] %vm1784, %v1977
      %2068 = vst.msk [vmem:[#allocation4 + $0x68] sm:$0xff] %vm1784, %v1980
      %2069 = vst.msk [vmem:[#allocation4 + $0x70] sm:$0xff] %vm1784, %v1985
      %2070 = vst.msk [vmem:[#allocation4 + $0x78] sm:$0xff] %vm1784, %v1988
      %2071 = vst.msk [vmem:[#allocation4 + $0x80] sm:$0xff] %vm1784, %v1993
      %2072 = vst.msk [vmem:[#allocation4 + $0x88] sm:$0xff] %vm1784, %v1996
      %2073 = vst.msk [vmem:[#allocation4 + $0x90] sm:$0xff] %vm1784, %v2001
      %2074 = vst.msk [vmem:[#allocation4 + $0x98] sm:$0xff] %vm1784, %v2004
      %2075 = vst.msk [vmem:[#allocation4 + $0xa0] sm:$0xff] %vm1784, %v2009
      %2076 = vst.msk [vmem:[#allocation4 + $0xa8] sm:$0xff] %vm1784, %v2012
      %2077 = vst.msk [vmem:[#allocation4 + $0xb0] sm:$0xff] %vm1784, %v2017
      %2078 = vst.msk [vmem:[#allocation4 + $0xb8] sm:$0xff] %vm1784, %v2020
      %2079 = vst.msk [vmem:[#allocation4 + $0xc0] sm:$0xff] %vm1784, %v2025
      %2080 = vst.msk [vmem:[#allocation4 + $0xc8] sm:$0xff] %vm1784, %v2028
      %2081 = vst.msk [vmem:[#allocation4 + $0xd0] sm:$0xff] %vm1784, %v2033
      %2082 = vst.msk [vmem:[#allocation4 + $0xd8] sm:$0xff] %vm1784, %v2036
      %2083 = vst.msk [vmem:[#allocation4 + $0xe0] sm:$0xff] %vm1784, %v2041
      %2084 = vst.msk [vmem:[#allocation4 + $0xe8] sm:$0xff] %vm1784, %v2044
      %2085 = vst.msk [vmem:[#allocation4 + $0xf0] sm:$0xff] %vm1784, %v2049
      %2086 = vst.msk [vmem:[#allocation4 + $0xf8] sm:$0xff] %vm1784, %v2052
      %v2087 = vld [vmem:[%s724] sm:$0xf]
      %v2088 = vld [vmem:[%s724 + $0x4] sm:$0xf]
      %v2089 = vld [vmem:[%s724 + $0xc] sm:$0xf]
      %v2090 = vld [vmem:[%s724 + $0x10] sm:$0xf]
      %v2091 = vld [vmem:[%s724 + $0x18] sm:$0xf]
      %v2092 = vld [vmem:[%s724 + $0x1c] sm:$0xf]
      %v2093 = vld [vmem:[%s724 + $0x24] sm:$0xf]
      %v2094 = vld [vmem:[%s724 + $0x28] sm:$0xf]
      %v2095 = vld [vmem:[%s724 + $0x30] sm:$0xf]
      %v2096 = vld [vmem:[%s724 + $0x34] sm:$0xf]
      %v2097 = vld [vmem:[%s724 + $0x3c] sm:$0xf]
      %v2098 = vld [vmem:[%s724 + $0x40] sm:$0xf]
      %v2099 = vld [vmem:[%s724 + $0x48] sm:$0xf]
      %v2100 = vld [vmem:[%s724 + $0x4c] sm:$0xf]
      %v2101 = vld [vmem:[%s724 + $0x54] sm:$0xf]
      %v2102 = vld [vmem:[%s724 + $0x58] sm:$0xf]
      %v2103 = vld [vmem:[%s724 + $0x60] sm:$0xf]
      %v2104 = vld [vmem:[%s724 + $0x64] sm:$0xf]
      %v2105 = vld [vmem:[%s724 + $0x6c] sm:$0xf]
      %v2106 = vld [vmem:[%s724 + $0x70] sm:$0xf]
      %v2107 = vld [vmem:[%s724 + $0x78] sm:$0xf]
      %v2108 = vld [vmem:[%s724 + $0x7c] sm:$0xf]
      %v2109 = vld [vmem:[%s724 + $0x84] sm:$0xf]
      %v2110 = vld [vmem:[%s724 + $0x88] sm:$0xf]
      %v2111 = vld [vmem:[%s724 + $0x90] sm:$0xf]
      %v2112 = vld [vmem:[%s724 + $0x94] sm:$0xf]
      %v2113 = vld [vmem:[%s724 + $0x9c] sm:$0xf]
      %v2114 = vld [vmem:[%s724 + $0xa0] sm:$0xf]
      %v2115 = vld [vmem:[%s724 + $0xa8] sm:$0xf]
      %v2116 = vld [vmem:[%s724 + $0xac] sm:$0xf]
      %v2117 = vld [vmem:[%s724 + $0xb4] sm:$0xf]
      %v2118 = vld [vmem:[%s724 + $0xb8] sm:$0xf]
      %v2119 = vld [vmem:[%s724 + $0x8] sm:$0x1]
      %v2120 = vld [vmem:[%s724 + $0x14] sm:$0x1]
      %v2121 = vld [vmem:[%s724 + $0x20] sm:$0x1]
      %v2122 = vld [vmem:[%s724 + $0x2c] sm:$0x1]
      %v2123 = vld [vmem:[%s724 + $0x38] sm:$0x1]
      %v2124 = vld [vmem:[%s724 + $0x44] sm:$0x1]
      %v2125 = vld [vmem:[%s724 + $0x50] sm:$0x1]
      %v2126 = vld [vmem:[%s724 + $0x5c] sm:$0x1]
      %v2127 = vld [vmem:[%s724 + $0x68] sm:$0x1]
      %v2128 = vld [vmem:[%s724 + $0x74] sm:$0x1]
      %v2129 = vld [vmem:[%s724 + $0x80] sm:$0x1]
      %v2130 = vld [vmem:[%s724 + $0x8c] sm:$0x1]
      %v2131 = vld [vmem:[%s724 + $0x98] sm:$0x1]
      %v2132 = vld [vmem:[%s724 + $0xa4] sm:$0x1]
      %v2133 = vld [vmem:[%s724 + $0xb0] sm:$0x1]
      %v2134 = vld [vmem:[%s724 + $0xbc] sm:$0x1]
      %v2135 = vld [vmem:[%s724] sm:$0xe]
      %v2136 = vld [vmem:[%s724 + $0xc] sm:$0xe]
      %v2137 = vld [vmem:[%s724 + $0x18] sm:$0xe]
      %v2138 = vld [vmem:[%s724 + $0x24] sm:$0xe]
      %v2139 = vld [vmem:[%s724 + $0x30] sm:$0xe]
      %v2140 = vld [vmem:[%s724 + $0x3c] sm:$0xe]
      %v2141 = vld [vmem:[%s724 + $0x48] sm:$0xe]
      %v2142 = vld [vmem:[%s724 + $0x54] sm:$0xe]
      %v2143 = vld [vmem:[%s724 + $0x60] sm:$0xe]
      %v2144 = vld [vmem:[%s724 + $0x6c] sm:$0xe]
      %v2145 = vld [vmem:[%s724 + $0x78] sm:$0xe]
      %v2146 = vld [vmem:[%s724 + $0x84] sm:$0xe]
      %v2147 = vld [vmem:[%s724 + $0x90] sm:$0xe]
      %v2148 = vld [vmem:[%s724 + $0x9c] sm:$0xe]
      %v2149 = vld [vmem:[%s724 + $0xa8] sm:$0xe]
      %v2150 = vld [vmem:[%s724 + $0xb4] sm:$0xe]
      %v2183 = vunpack.c.l.b16 %v2087
      %v2184 = vunpack.c.l.b16 %v2088
      %v2185 = vunpack.c.l.b16 %v2089
      %v2186 = vunpack.c.l.b16 %v2090
      %v2187 = vunpack.c.l.b16 %v2091
      %v2188 = vunpack.c.l.b16 %v2092
      %v2189 = vunpack.c.l.b16 %v2093
      %v2190 = vunpack.c.l.b16 %v2094
      %v2191 = vunpack.c.l.b16 %v2095
      %v2192 = vunpack.c.l.b16 %v2096
      %v2193 = vunpack.c.l.b16 %v2097
      %v2194 = vunpack.c.l.b16 %v2098
      %v2195 = vunpack.c.l.b16 %v2099
      %v2196 = vunpack.c.l.b16 %v2100
      %v2197 = vunpack.c.l.b16 %v2101
      %v2198 = vunpack.c.l.b16 %v2102
      %v2199 = vunpack.c.l.b16 %v2103
      %v2200 = vunpack.c.l.b16 %v2104
      %v2201 = vunpack.c.l.b16 %v2105
      %v2202 = vunpack.c.l.b16 %v2106
      %v2203 = vunpack.c.l.b16 %v2107
      %v2204 = vunpack.c.l.b16 %v2108
      %v2205 = vunpack.c.l.b16 %v2109
      %v2206 = vunpack.c.l.b16 %v2110
      %v2207 = vunpack.c.l.b16 %v2111
      %v2208 = vunpack.c.l.b16 %v2112
      %v2209 = vunpack.c.l.b16 %v2113
      %v2210 = vunpack.c.l.b16 %v2114
      %v2211 = vunpack.c.l.b16 %v2115
      %v2212 = vunpack.c.l.b16 %v2116
      %v2213 = vunpack.c.l.b16 %v2117
      %v2214 = vunpack.c.l.b16 %v2118
      %v2215 = vpack.c.b16 %v2184, %v2183
      %v2216 = vpack.c.b16 %v2186, %v2185
      %v2217 = vpack.c.b16 %v2188, %v2187
      %v2218 = vpack.c.b16 %v2190, %v2189
      %v2219 = vpack.c.b16 %v2192, %v2191
      %v2220 = vpack.c.b16 %v2194, %v2193
      %v2221 = vpack.c.b16 %v2196, %v2195
      %v2222 = vpack.c.b16 %v2198, %v2197
      %v2223 = vpack.c.b16 %v2200, %v2199
      %v2224 = vpack.c.b16 %v2202, %v2201
      %v2225 = vpack.c.b16 %v2204, %v2203
      %v2226 = vpack.c.b16 %v2206, %v2205
      %v2227 = vpack.c.b16 %v2208, %v2207
      %v2228 = vpack.c.b16 %v2210, %v2209
      %v2229 = vpack.c.b16 %v2212, %v2211
      %v2230 = vpack.c.b16 %v2214, %v2213
      %v2247 = vunpack.c.l.b16 %v2119
      %v2248 = vunpack.c.l.b16 %v2120
      %v2249 = vunpack.c.l.b16 %v2121
      %v2250 = vunpack.c.l.b16 %v2122
      %v2251 = vunpack.c.l.b16 %v2123
      %v2252 = vunpack.c.l.b16 %v2124
      %v2253 = vunpack.c.l.b16 %v2125
      %v2254 = vunpack.c.l.b16 %v2126
      %v2255 = vunpack.c.l.b16 %v2127
      %v2256 = vunpack.c.l.b16 %v2128
      %v2257 = vunpack.c.l.b16 %v2129
      %v2258 = vunpack.c.l.b16 %v2130
      %v2259 = vunpack.c.l.b16 %v2131
      %v2260 = vunpack.c.l.b16 %v2132
      %v2261 = vunpack.c.l.b16 %v2133
      %v2262 = vunpack.c.l.b16 %v2134
      %v2263 = vpack.c.b16 %v2247, %v2247
      %v2264 = vpack.c.b16 %v2248, %v2248
      %v2265 = vpack.c.b16 %v2249, %v2249
      %v2266 = vpack.c.b16 %v2250, %v2250
      %v2267 = vpack.c.b16 %v2251, %v2251
      %v2268 = vpack.c.b16 %v2252, %v2252
      %v2269 = vpack.c.b16 %v2253, %v2253
      %v2270 = vpack.c.b16 %v2254, %v2254
      %v2271 = vpack.c.b16 %v2255, %v2255
      %v2272 = vpack.c.b16 %v2256, %v2256
      %v2273 = vpack.c.b16 %v2257, %v2257
      %v2274 = vpack.c.b16 %v2258, %v2258
      %v2275 = vpack.c.b16 %v2259, %v2259
      %v2276 = vpack.c.b16 %v2260, %v2260
      %v2277 = vpack.c.b16 %v2261, %v2261
      %v2278 = vpack.c.b16 %v2262, %v2262
      %v2280 = vshrl.u32 %v2215, 16
      %v2282 = vshll.u32 %v2215, 16
      %v2284 = vrot.slane %v2282, 1
      %v2285 = vor.u32 %v2280, %v2284
      %v2287 = vshll.u32 %v2263, 16
      %v2289 = vrot.slane %v2287, 1
      %v2290 = vsel %vm1430, %v2285, %v2289
      %v2292 = vshrl.u32 %v2216, 16
      %v2294 = vshll.u32 %v2216, 16
      %v2296 = vrot.slane %v2294, 1
      %v2297 = vor.u32 %v2292, %v2296
      %v2299 = vshll.u32 %v2264, 16
      %v2301 = vrot.slane %v2299, 1
      %v2302 = vsel %vm1430, %v2297, %v2301
      %v2304 = vshrl.u32 %v2217, 16
      %v2306 = vshll.u32 %v2217, 16
      %v2308 = vrot.slane %v2306, 1
      %v2309 = vor.u32 %v2304, %v2308
      %v2311 = vshll.u32 %v2265, 16
      %v2313 = vrot.slane %v2311, 1
      %v2314 = vsel %vm1430, %v2309, %v2313
      %v2316 = vshrl.u32 %v2218, 16
      %v2318 = vshll.u32 %v2218, 16
      %v2320 = vrot.slane %v2318, 1
      %v2321 = vor.u32 %v2316, %v2320
      %v2323 = vshll.u32 %v2266, 16
      %v2325 = vrot.slane %v2323, 1
      %v2326 = vsel %vm1430, %v2321, %v2325
      %v2328 = vshrl.u32 %v2219, 16
      %v2330 = vshll.u32 %v2219, 16
      %v2332 = vrot.slane %v2330, 1
      %v2333 = vor.u32 %v2328, %v2332
      %v2335 = vshll.u32 %v2267, 16
      %v2337 = vrot.slane %v2335, 1
      %v2338 = vsel %vm1430, %v2333, %v2337
      %v2340 = vshrl.u32 %v2220, 16
      %v2342 = vshll.u32 %v2220, 16
      %v2344 = vrot.slane %v2342, 1
      %v2345 = vor.u32 %v2340, %v2344
      %v2347 = vshll.u32 %v2268, 16
      %v2349 = vrot.slane %v2347, 1
      %v2350 = vsel %vm1430, %v2345, %v2349
      %v2352 = vshrl.u32 %v2221, 16
      %v2354 = vshll.u32 %v2221, 16
      %v2356 = vrot.slane %v2354, 1
      %v2357 = vor.u32 %v2352, %v2356
      %v2359 = vshll.u32 %v2269, 16
      %v2361 = vrot.slane %v2359, 1
      %v2362 = vsel %vm1430, %v2357, %v2361
      %v2364 = vshrl.u32 %v2222, 16
      %v2366 = vshll.u32 %v2222, 16
      %v2368 = vrot.slane %v2366, 1
      %v2369 = vor.u32 %v2364, %v2368
      %v2371 = vshll.u32 %v2270, 16
      %v2373 = vrot.slane %v2371, 1
      %v2374 = vsel %vm1430, %v2369, %v2373
      %v2376 = vshrl.u32 %v2223, 16
      %v2378 = vshll.u32 %v2223, 16
      %v2380 = vrot.slane %v2378, 1
      %v2381 = vor.u32 %v2376, %v2380
      %v2383 = vshll.u32 %v2271, 16
      %v2385 = vrot.slane %v2383, 1
      %v2386 = vsel %vm1430, %v2381, %v2385
      %v2388 = vshrl.u32 %v2224, 16
      %v2390 = vshll.u32 %v2224, 16
      %v2392 = vrot.slane %v2390, 1
      %v2393 = vor.u32 %v2388, %v2392
      %v2395 = vshll.u32 %v2272, 16
      %v2397 = vrot.slane %v2395, 1
      %v2398 = vsel %vm1430, %v2393, %v2397
      %v2400 = vshrl.u32 %v2225, 16
      %v2402 = vshll.u32 %v2225, 16
      %v2404 = vrot.slane %v2402, 1
      %v2405 = vor.u32 %v2400, %v2404
      %v2407 = vshll.u32 %v2273, 16
      %v2409 = vrot.slane %v2407, 1
      %v2410 = vsel %vm1430, %v2405, %v2409
      %v2412 = vshrl.u32 %v2226, 16
      %v2414 = vshll.u32 %v2226, 16
      %v2416 = vrot.slane %v2414, 1
      %v2417 = vor.u32 %v2412, %v2416
      %v2419 = vshll.u32 %v2274, 16
      %v2421 = vrot.slane %v2419, 1
      %v2422 = vsel %vm1430, %v2417, %v2421
      %v2424 = vshrl.u32 %v2227, 16
      %v2426 = vshll.u32 %v2227, 16
      %v2428 = vrot.slane %v2426, 1
      %v2429 = vor.u32 %v2424, %v2428
      %v2431 = vshll.u32 %v2275, 16
      %v2433 = vrot.slane %v2431, 1
      %v2434 = vsel %vm1430, %v2429, %v2433
      %v2436 = vshrl.u32 %v2228, 16
      %v2438 = vshll.u32 %v2228, 16
      %v2440 = vrot.slane %v2438, 1
      %v2441 = vor.u32 %v2436, %v2440
      %v2443 = vshll.u32 %v2276, 16
      %v2445 = vrot.slane %v2443, 1
      %v2446 = vsel %vm1430, %v2441, %v2445
      %v2448 = vshrl.u32 %v2229, 16
      %v2450 = vshll.u32 %v2229, 16
      %v2452 = vrot.slane %v2450, 1
      %v2453 = vor.u32 %v2448, %v2452
      %v2455 = vshll.u32 %v2277, 16
      %v2457 = vrot.slane %v2455, 1
      %v2458 = vsel %vm1430, %v2453, %v2457
      %v2460 = vshrl.u32 %v2230, 16
      %v2462 = vshll.u32 %v2230, 16
      %v2464 = vrot.slane %v2462, 1
      %v2465 = vor.u32 %v2460, %v2464
      %v2467 = vshll.u32 %v2278, 16
      %v2469 = vrot.slane %v2467, 1
      %v2470 = vsel %vm1430, %v2465, %v2469
      %2471 = vrot.lane.b32.xlu0 %v2290, 4
      %v2472 = vpop.permute.xlu0 %2471
      %2473 = vrot.lane.b32.xlu0 %v2302, 4
      %v2474 = vpop.permute.xlu0 %2473
      %2475 = vrot.lane.b32.xlu0 %v2314, 4
      %v2476 = vpop.permute.xlu0 %2475
      %2477 = vrot.lane.b32.xlu0 %v2326, 4
      %v2478 = vpop.permute.xlu0 %2477
      %2479 = vrot.lane.b32.xlu0 %v2338, 4
      %v2480 = vpop.permute.xlu0 %2479
      %2481 = vrot.lane.b32.xlu0 %v2350, 4
      %v2482 = vpop.permute.xlu0 %2481
      %2483 = vrot.lane.b32.xlu0 %v2362, 4
      %v2484 = vpop.permute.xlu0 %2483
      %2485 = vrot.lane.b32.xlu0 %v2374, 4
      %v2486 = vpop.permute.xlu0 %2485
      %2487 = vrot.lane.b32.xlu0 %v2386, 4
      %v2488 = vpop.permute.xlu0 %2487
      %2489 = vrot.lane.b32.xlu0 %v2398, 4
      %v2490 = vpop.permute.xlu0 %2489
      %2491 = vrot.lane.b32.xlu0 %v2410, 4
      %v2492 = vpop.permute.xlu0 %2491
      %2493 = vrot.lane.b32.xlu0 %v2422, 4
      %v2494 = vpop.permute.xlu0 %2493
      %2495 = vrot.lane.b32.xlu0 %v2434, 4
      %v2496 = vpop.permute.xlu0 %2495
      %2497 = vrot.lane.b32.xlu0 %v2446, 4
      %v2498 = vpop.permute.xlu0 %2497
      %2499 = vrot.lane.b32.xlu0 %v2458, 4
      %v2500 = vpop.permute.xlu0 %2499
      %2501 = vrot.lane.b32.xlu0 %v2470, 4
      %v2502 = vpop.permute.xlu0 %2501
      %v2519 = vunpack.c.l.b16 %v2135
      %v2520 = vunpack.c.l.b16 %v2136
      %v2521 = vunpack.c.l.b16 %v2137
      %v2522 = vunpack.c.l.b16 %v2138
      %v2523 = vunpack.c.l.b16 %v2139
      %v2524 = vunpack.c.l.b16 %v2140
      %v2525 = vunpack.c.l.b16 %v2141
      %v2526 = vunpack.c.l.b16 %v2142
      %v2527 = vunpack.c.l.b16 %v2143
      %v2528 = vunpack.c.l.b16 %v2144
      %v2529 = vunpack.c.l.b16 %v2145
      %v2530 = vunpack.c.l.b16 %v2146
      %v2531 = vunpack.c.l.b16 %v2147
      %v2532 = vunpack.c.l.b16 %v2148
      %v2533 = vunpack.c.l.b16 %v2149
      %v2534 = vunpack.c.l.b16 %v2150
      %v2535 = vpack.c.b16 %v2184, %v2519
      %v2536 = vpack.c.b16 %v2186, %v2520
      %v2537 = vpack.c.b16 %v2188, %v2521
      %v2538 = vpack.c.b16 %v2190, %v2522
      %v2539 = vpack.c.b16 %v2192, %v2523
      %v2540 = vpack.c.b16 %v2194, %v2524
      %v2541 = vpack.c.b16 %v2196, %v2525
      %v2542 = vpack.c.b16 %v2198, %v2526
      %v2543 = vpack.c.b16 %v2200, %v2527
      %v2544 = vpack.c.b16 %v2202, %v2528
      %v2545 = vpack.c.b16 %v2204, %v2529
      %v2546 = vpack.c.b16 %v2206, %v2530
      %v2547 = vpack.c.b16 %v2208, %v2531
      %v2548 = vpack.c.b16 %v2210, %v2532
      %v2549 = vpack.c.b16 %v2212, %v2533
      %v2550 = vpack.c.b16 %v2214, %v2534
      %v2551 = vrot.slane %v2535, 1
      %v2552 = vrot.slane %v2263, 1
      %v2553 = vsel %vm1703, %v2551, %v2552
      %v2554 = vrot.slane %v2536, 1
      %v2555 = vrot.slane %v2264, 1
      %v2556 = vsel %vm1703, %v2554, %v2555
      %v2557 = vrot.slane %v2537, 1
      %v2558 = vrot.slane %v2265, 1
      %v2559 = vsel %vm1703, %v2557, %v2558
      %v2560 = vrot.slane %v2538, 1
      %v2561 = vrot.slane %v2266, 1
      %v2562 = vsel %vm1703, %v2560, %v2561
      %v2563 = vrot.slane %v2539, 1
      %v2564 = vrot.slane %v2267, 1
      %v2565 = vsel %vm1703, %v2563, %v2564
      %v2566 = vrot.slane %v2540, 1
      %v2567 = vrot.slane %v2268, 1
      %v2568 = vsel %vm1703, %v2566, %v2567
      %v2569 = vrot.slane %v2541, 1
      %v2570 = vrot.slane %v2269, 1
      %v2571 = vsel %vm1703, %v2569, %v2570
      %v2572 = vrot.slane %v2542, 1
      %v2573 = vrot.slane %v2270, 1
      %v2574 = vsel %vm1703, %v2572, %v2573
      %v2575 = vrot.slane %v2543, 1
      %v2576 = vrot.slane %v2271, 1
      %v2577 = vsel %vm1703, %v2575, %v2576
      %v2578 = vrot.slane %v2544, 1
      %v2579 = vrot.slane %v2272, 1
      %v2580 = vsel %vm1703, %v2578, %v2579
      %v2581 = vrot.slane %v2545, 1
      %v2582 = vrot.slane %v2273, 1
      %v2583 = vsel %vm1703, %v2581, %v2582
      %v2584 = vrot.slane %v2546, 1
      %v2585 = vrot.slane %v2274, 1
      %v2586 = vsel %vm1703, %v2584, %v2585
      %v2587 = vrot.slane %v2547, 1
      %v2588 = vrot.slane %v2275, 1
      %v2589 = vsel %vm1703, %v2587, %v2588
      %v2590 = vrot.slane %v2548, 1
      %v2591 = vrot.slane %v2276, 1
      %v2592 = vsel %vm1703, %v2590, %v2591
      %v2593 = vrot.slane %v2549, 1
      %v2594 = vrot.slane %v2277, 1
      %v2595 = vsel %vm1703, %v2593, %v2594
      %v2596 = vrot.slane %v2550, 1
      %v2597 = vrot.slane %v2278, 1
      %v2598 = vsel %vm1703, %v2596, %v2597
      %2599 = vrot.lane.b32.xlu0 %v2553, 8
      %v2600 = vpop.permute.xlu0 %2599
      %2601 = vrot.lane.b32.xlu0 %v2556, 8
      %v2602 = vpop.permute.xlu0 %2601
      %2603 = vrot.lane.b32.xlu0 %v2559, 8
      %v2604 = vpop.permute.xlu0 %2603
      %2605 = vrot.lane.b32.xlu0 %v2562, 8
      %v2606 = vpop.permute.xlu0 %2605
      %2607 = vrot.lane.b32.xlu0 %v2565, 8
      %v2608 = vpop.permute.xlu0 %2607
      %2609 = vrot.lane.b32.xlu0 %v2568, 8
      %v2610 = vpop.permute.xlu0 %2609
      %2611 = vrot.lane.b32.xlu0 %v2571, 8
      %v2612 = vpop.permute.xlu0 %2611
      %2613 = vrot.lane.b32.xlu0 %v2574, 8
      %v2614 = vpop.permute.xlu0 %2613
      %2615 = vrot.lane.b32.xlu0 %v2577, 8
      %v2616 = vpop.permute.xlu0 %2615
      %2617 = vrot.lane.b32.xlu0 %v2580, 8
      %v2618 = vpop.permute.xlu0 %2617
      %2619 = vrot.lane.b32.xlu0 %v2583, 8
      %v2620 = vpop.permute.xlu0 %2619
      %2621 = vrot.lane.b32.xlu0 %v2586, 8
      %v2622 = vpop.permute.xlu0 %2621
      %2623 = vrot.lane.b32.xlu0 %v2589, 8
      %v2624 = vpop.permute.xlu0 %2623
      %2625 = vrot.lane.b32.xlu0 %v2592, 8
      %v2626 = vpop.permute.xlu0 %2625
      %2627 = vrot.lane.b32.xlu0 %v2595, 8
      %v2628 = vpop.permute.xlu0 %2627
      %2629 = vrot.lane.b32.xlu0 %v2598, 8
      %v2630 = vpop.permute.xlu0 %2629
      %v2632 = vsel %vm1784, %v2215, %v2472
      %v2634 = vsel %vm1784, %v2216, %v2474
      %v2636 = vsel %vm1784, %v2217, %v2476
      %v2638 = vsel %vm1784, %v2218, %v2478
      %v2640 = vsel %vm1784, %v2219, %v2480
      %v2642 = vsel %vm1784, %v2220, %v2482
      %v2644 = vsel %vm1784, %v2221, %v2484
      %v2646 = vsel %vm1784, %v2222, %v2486
      %v2648 = vsel %vm1784, %v2223, %v2488
      %v2650 = vsel %vm1784, %v2224, %v2490
      %v2652 = vsel %vm1784, %v2225, %v2492
      %v2654 = vsel %vm1784, %v2226, %v2494
      %v2656 = vsel %vm1784, %v2227, %v2496
      %v2658 = vsel %vm1784, %v2228, %v2498
      %v2660 = vsel %vm1784, %v2229, %v2500
      %v2662 = vsel %vm1784, %v2230, %v2502
      %v2664 = vsel %vm1817, %v2632, %v2600
      %v2666 = vsel %vm1817, %v2634, %v2602
      %v2668 = vsel %vm1817, %v2636, %v2604
      %v2670 = vsel %vm1817, %v2638, %v2606
      %v2672 = vsel %vm1817, %v2640, %v2608
      %v2674 = vsel %vm1817, %v2642, %v2610
      %v2676 = vsel %vm1817, %v2644, %v2612
      %v2678 = vsel %vm1817, %v2646, %v2614
      %v2680 = vsel %vm1817, %v2648, %v2616
      %v2682 = vsel %vm1817, %v2650, %v2618
      %v2684 = vsel %vm1817, %v2652, %v2620
      %v2686 = vsel %vm1817, %v2654, %v2622
      %v2688 = vsel %vm1817, %v2656, %v2624
      %v2690 = vsel %vm1817, %v2658, %v2626
      %v2692 = vsel %vm1817, %v2660, %v2628
      %v2694 = vsel %vm1817, %v2662, %v2630
      %s2695 = scalar_lea.vmem %s2, 8
      %v2696 = vld [vmem:[%s2695] sm:$0xf]
      %v2697 = vld [vmem:[%s2695 + $0x4] sm:$0x3]
      %v2700 = vunpack.c.l.b16 %v2696
      %v2701 = vunpack.c.l.b16 %v2697
      %v2702 = vpack.c.b16 %v2701, %v2700
      %v2703 = vsel %vm1857, %v2664, 0
      %v2705 = vsel %vm1857, %v2666, 0
      %v2707 = vsel %vm1857, %v2668, 0
      %v2709 = vsel %vm1857, %v2670, 0
      %v2711 = vsel %vm1857, %v2672, 0
      %v2713 = vsel %vm1857, %v2674, 0
      %v2715 = vsel %vm1857, %v2676, 0
      %v2717 = vsel %vm1857, %v2678, 0
      %v2719 = vsel %vm1857, %v2680, 0
      %v2721 = vsel %vm1857, %v2682, 0
      %v2723 = vsel %vm1857, %v2684, 0
      %v2725 = vsel %vm1857, %v2686, 0
      %v2727 = vsel %vm1857, %v2688, 0
      %v2729 = vsel %vm1857, %v2690, 0
      %v2731 = vsel %vm1857, %v2692, 0
      %v2733 = vsel %vm1857, %v2694, 0
      %v2736 = vsel %vm1890, %v2702, 0
      %2738 = vmatprep.subr.bf16.mxu0 0
      %2739 = vmatpush1.bf16.msra.mxu0 0
      %2740 = vmatprep.subr.bf16.mxu0 0
      %2741 = vmatpush1.bf16.msra.mxu0 0
      %2742 = vmatprep.subr.bf16.mxu0 0
      %2743 = vmatpush1.bf16.msra.mxu0 0
      %2744 = vmatprep.subr.bf16.mxu0 0
      %2745 = vmatpush1.bf16.msra.mxu0 0
      %2746 = vmatprep.subr.bf16.mxu0 0
      %2747 = vmatpush1.bf16.msra.mxu0 0
      %2748 = vmatprep.subr.bf16.mxu0 0
      %2749 = vmatpush1.bf16.msra.mxu0 0
      %2750 = vmatprep.subr.bf16.mxu0 0
      %2751 = vmatpush1.bf16.msra.mxu0 0
      %2752 = vmatprep.subr.bf16.mxu0 0
      %2753 = vmatpush1.bf16.msra.mxu0 %v2736
      %2754 = vmatprep.subr.bf16.mxu0 0
      %2755 = vmatpush2.bf16.msra.mxu0 0
      %2756 = vmatprep.subr.bf16.mxu0 0
      %2757 = vmatpush2.bf16.msra.mxu0 0
      %2758 = vmatprep.subr.bf16.mxu0 0
      %2759 = vmatpush2.bf16.msra.mxu0 0
      %2760 = vmatprep.subr.bf16.mxu0 0
      %2761 = vmatpush2.bf16.msra.mxu0 0
      %2762 = vmatprep.subr.bf16.mxu0 0
      %2763 = vmatpush2.bf16.msra.mxu0 0
      %2764 = vmatprep.subr.bf16.mxu0 0
      %2765 = vmatpush2.bf16.msra.mxu0 0
      %2766 = vmatprep.subr.bf16.mxu0 0
      %2767 = vmatpush2.bf16.msra.mxu0 0
      %2768 = vmatprep.subr.bf16.mxu0 0
      %2769 = vmatpush2.bf16.msra.mxu0 0
      %2770 = vmatprep.mubr.bf16.mxu0 0
      %2771 = vmatmul.mubr.bf16.gmra.mxu0 %v2703
      %v2772 = vpop.f32.mrf.mxu0
      %v2773 = vadd.f32 0.0, %v2772
      %v2774 = vpop.f32.mrf.mxu0
      %v2775 = vpop.f32.mrf.mxu0
      %v2776 = vadd.f32 0.0, %v2775
      %v2777 = vpop.f32.mrf.mxu0
      %2778 = vmatprep.mubr.bf16.mxu0 0
      %2779 = vmatmul.mubr.bf16.gmra.mxu0 %v2705
      %v2780 = vpop.f32.mrf.mxu0
      %v2781 = vadd.f32 0.0, %v2780
      %v2782 = vpop.f32.mrf.mxu0
      %v2783 = vpop.f32.mrf.mxu0
      %v2784 = vadd.f32 0.0, %v2783
      %v2785 = vpop.f32.mrf.mxu0
      %2786 = vmatprep.mubr.bf16.mxu0 0
      %2787 = vmatmul.mubr.bf16.gmra.mxu0 %v2707
      %v2788 = vpop.f32.mrf.mxu0
      %v2789 = vadd.f32 0.0, %v2788
      %v2790 = vpop.f32.mrf.mxu0
      %v2791 = vpop.f32.mrf.mxu0
      %v2792 = vadd.f32 0.0, %v2791
      %v2793 = vpop.f32.mrf.mxu0
      %2794 = vmatprep.mubr.bf16.mxu0 0
      %2795 = vmatmul.mubr.bf16.gmra.mxu0 %v2709
      %v2796 = vpop.f32.mrf.mxu0
      %v2797 = vadd.f32 0.0, %v2796
      %v2798 = vpop.f32.mrf.mxu0
      %v2799 = vpop.f32.mrf.mxu0
      %v2800 = vadd.f32 0.0, %v2799
      %v2801 = vpop.f32.mrf.mxu0
      %2802 = vmatprep.mubr.bf16.mxu0 0
      %2803 = vmatmul.mubr.bf16.gmra.mxu0 %v2711
      %v2804 = vpop.f32.mrf.mxu0
      %v2805 = vadd.f32 0.0, %v2804
      %v2806 = vpop.f32.mrf.mxu0
      %v2807 = vpop.f32.mrf.mxu0
      %v2808 = vadd.f32 0.0, %v2807
      %v2809 = vpop.f32.mrf.mxu0
      %2810 = vmatprep.mubr.bf16.mxu0 0
      %2811 = vmatmul.mubr.bf16.gmra.mxu0 %v2713
      %v2812 = vpop.f32.mrf.mxu0
      %v2813 = vadd.f32 0.0, %v2812
      %v2814 = vpop.f32.mrf.mxu0
      %v2815 = vpop.f32.mrf.mxu0
      %v2816 = vadd.f32 0.0, %v2815
      %v2817 = vpop.f32.mrf.mxu0
      %2818 = vmatprep.mubr.bf16.mxu0 0
      %2819 = vmatmul.mubr.bf16.gmra.mxu0 %v2715
      %v2820 = vpop.f32.mrf.mxu0
      %v2821 = vadd.f32 0.0, %v2820
      %v2822 = vpop.f32.mrf.mxu0
      %v2823 = vpop.f32.mrf.mxu0
      %v2824 = vadd.f32 0.0, %v2823
      %v2825 = vpop.f32.mrf.mxu0
      %2826 = vmatprep.mubr.bf16.mxu0 0
      %2827 = vmatmul.mubr.bf16.gmra.mxu0 %v2717
      %v2828 = vpop.f32.mrf.mxu0
      %v2829 = vadd.f32 0.0, %v2828
      %v2830 = vpop.f32.mrf.mxu0
      %v2831 = vpop.f32.mrf.mxu0
      %v2832 = vadd.f32 0.0, %v2831
      %v2833 = vpop.f32.mrf.mxu0
      %2834 = vmatprep.mubr.bf16.mxu0 0
      %2835 = vmatmul.mubr.bf16.gmra.mxu0 %v2719
      %v2836 = vpop.f32.mrf.mxu0
      %v2837 = vadd.f32 0.0, %v2836
      %v2838 = vpop.f32.mrf.mxu0
      %v2839 = vpop.f32.mrf.mxu0
      %v2840 = vadd.f32 0.0, %v2839
      %v2841 = vpop.f32.mrf.mxu0
      %2842 = vmatprep.mubr.bf16.mxu0 0
      %2843 = vmatmul.mubr.bf16.gmra.mxu0 %v2721
      %v2844 = vpop.f32.mrf.mxu0
      %v2845 = vadd.f32 0.0, %v2844
      %v2846 = vpop.f32.mrf.mxu0
      %v2847 = vpop.f32.mrf.mxu0
      %v2848 = vadd.f32 0.0, %v2847
      %v2849 = vpop.f32.mrf.mxu0
      %2850 = vmatprep.mubr.bf16.mxu0 0
      %2851 = vmatmul.mubr.bf16.gmra.mxu0 %v2723
      %v2852 = vpop.f32.mrf.mxu0
      %v2853 = vadd.f32 0.0, %v2852
      %v2854 = vpop.f32.mrf.mxu0
      %v2855 = vpop.f32.mrf.mxu0
      %v2856 = vadd.f32 0.0, %v2855
      %v2857 = vpop.f32.mrf.mxu0
      %2858 = vmatprep.mubr.bf16.mxu0 0
      %2859 = vmatmul.mubr.bf16.gmra.mxu0 %v2725
      %v2860 = vpop.f32.mrf.mxu0
      %v2861 = vadd.f32 0.0, %v2860
      %v2862 = vpop.f32.mrf.mxu0
      %v2863 = vpop.f32.mrf.mxu0
      %v2864 = vadd.f32 0.0, %v2863
      %v2865 = vpop.f32.mrf.mxu0
      %2866 = vmatprep.mubr.bf16.mxu0 0
      %2867 = vmatmul.mubr.bf16.gmra.mxu0 %v2727
      %v2868 = vpop.f32.mrf.mxu0
      %v2869 = vadd.f32 0.0, %v2868
      %v2870 = vpop.f32.mrf.mxu0
      %v2871 = vpop.f32.mrf.mxu0
      %v2872 = vadd.f32 0.0, %v2871
      %v2873 = vpop.f32.mrf.mxu0
      %2874 = vmatprep.mubr.bf16.mxu0 0
      %2875 = vmatmul.mubr.bf16.gmra.mxu0 %v2729
      %v2876 = vpop.f32.mrf.mxu0
      %v2877 = vadd.f32 0.0, %v2876
      %v2878 = vpop.f32.mrf.mxu0
      %v2879 = vpop.f32.mrf.mxu0
      %v2880 = vadd.f32 0.0, %v2879
      %v2881 = vpop.f32.mrf.mxu0
      %2882 = vmatprep.mubr.bf16.mxu0 0
      %2883 = vmatmul.mubr.bf16.gmra.mxu0 %v2731
      %v2884 = vpop.f32.mrf.mxu0
      %v2885 = vadd.f32 0.0, %v2884
      %v2886 = vpop.f32.mrf.mxu0
      %v2887 = vpop.f32.mrf.mxu0
      %v2888 = vadd.f32 0.0, %v2887
      %v2889 = vpop.f32.mrf.mxu0
      %2890 = vmatprep.mubr.bf16.mxu0 0
      %2891 = vmatmul.mubr.bf16.gmra.mxu0 %v2733
      %v2892 = vpop.f32.mrf.mxu0
      %v2893 = vadd.f32 0.0, %v2892
      %v2894 = vpop.f32.mrf.mxu0
      %v2895 = vpop.f32.mrf.mxu0
      %v2896 = vadd.f32 0.0, %v2895
      %v2897 = vpop.f32.mrf.mxu0
      %2898 = vdwg.mxu0
      %v2899 = vld [vmem:[#allocation4] sm:$0xff]
      %v2900 = vld [vmem:[#allocation4 + $0x8] sm:$0xff]
      %v2901 = vld [vmem:[#allocation4 + $0x10] sm:$0xff]
      %v2902 = vld [vmem:[#allocation4 + $0x18] sm:$0xff]
      %v2903 = vld [vmem:[#allocation4 + $0x20] sm:$0xff]
      %v2904 = vld [vmem:[#allocation4 + $0x28] sm:$0xff]
      %v2905 = vld [vmem:[#allocation4 + $0x30] sm:$0xff]
      %v2906 = vld [vmem:[#allocation4 + $0x38] sm:$0xff]
      %v2907 = vld [vmem:[#allocation4 + $0x40] sm:$0xff]
      %v2908 = vld [vmem:[#allocation4 + $0x48] sm:$0xff]
      %v2909 = vld [vmem:[#allocation4 + $0x50] sm:$0xff]
      %v2910 = vld [vmem:[#allocation4 + $0x58] sm:$0xff]
      %v2911 = vld [vmem:[#allocation4 + $0x60] sm:$0xff]
      %v2912 = vld [vmem:[#allocation4 + $0x68] sm:$0xff]
      %v2913 = vld [vmem:[#allocation4 + $0x70] sm:$0xff]
      %v2914 = vld [vmem:[#allocation4 + $0x78] sm:$0xff]
      %v2915 = vld [vmem:[#allocation4 + $0x80] sm:$0xff]
      %v2916 = vld [vmem:[#allocation4 + $0x88] sm:$0xff]
      %v2917 = vld [vmem:[#allocation4 + $0x90] sm:$0xff]
      %v2918 = vld [vmem:[#allocation4 + $0x98] sm:$0xff]
      %v2919 = vld [vmem:[#allocation4 + $0xa0] sm:$0xff]
      %v2920 = vld [vmem:[#allocation4 + $0xa8] sm:$0xff]
      %v2921 = vld [vmem:[#allocation4 + $0xb0] sm:$0xff]
      %v2922 = vld [vmem:[#allocation4 + $0xb8] sm:$0xff]
      %v2923 = vld [vmem:[#allocation4 + $0xc0] sm:$0xff]
      %v2924 = vld [vmem:[#allocation4 + $0xc8] sm:$0xff]
      %v2925 = vld [vmem:[#allocation4 + $0xd0] sm:$0xff]
      %v2926 = vld [vmem:[#allocation4 + $0xd8] sm:$0xff]
      %v2927 = vld [vmem:[#allocation4 + $0xe0] sm:$0xff]
      %v2928 = vld [vmem:[#allocation4 + $0xe8] sm:$0xff]
      %v2929 = vld [vmem:[#allocation4 + $0xf0] sm:$0xff]
      %v2930 = vld [vmem:[#allocation4 + $0xf8] sm:$0xff]
      %v2931 = vadd.f32 %v2899, %v2773
      %v2932 = vadd.f32 %v2900, %v2776
      %v2933 = vadd.f32 %v2901, %v2781
      %v2934 = vadd.f32 %v2902, %v2784
      %v2935 = vadd.f32 %v2903, %v2789
      %v2936 = vadd.f32 %v2904, %v2792
      %v2937 = vadd.f32 %v2905, %v2797
      %v2938 = vadd.f32 %v2906, %v2800
      %v2939 = vadd.f32 %v2907, %v2805
      %v2940 = vadd.f32 %v2908, %v2808
      %v2941 = vadd.f32 %v2909, %v2813
      %v2942 = vadd.f32 %v2910, %v2816
      %v2943 = vadd.f32 %v2911, %v2821
      %v2944 = vadd.f32 %v2912, %v2824
      %v2945 = vadd.f32 %v2913, %v2829
      %v2946 = vadd.f32 %v2914, %v2832
      %v2947 = vadd.f32 %v2915, %v2837
      %v2948 = vadd.f32 %v2916, %v2840
      %v2949 = vadd.f32 %v2917, %v2845
      %v2950 = vadd.f32 %v2918, %v2848
      %v2951 = vadd.f32 %v2919, %v2853
      %v2952 = vadd.f32 %v2920, %v2856
      %v2953 = vadd.f32 %v2921, %v2861
      %v2954 = vadd.f32 %v2922, %v2864
      %v2955 = vadd.f32 %v2923, %v2869
      %v2956 = vadd.f32 %v2924, %v2872
      %v2957 = vadd.f32 %v2925, %v2877
      %v2958 = vadd.f32 %v2926, %v2880
      %v2959 = vadd.f32 %v2927, %v2885
      %v2960 = vadd.f32 %v2928, %v2888
      %v2961 = vadd.f32 %v2929, %v2893
      %v2962 = vadd.f32 %v2930, %v2896
      %2963 = vst.msk [vmem:[#allocation4] sm:$0xff] %vm1784, %v2931
      %2964 = vst.msk [vmem:[#allocation4 + $0x8] sm:$0xff] %vm1784, %v2932
      %2965 = vst.msk [vmem:[#allocation4 + $0x10] sm:$0xff] %vm1784, %v2933
      %2966 = vst.msk [vmem:[#allocation4 + $0x18] sm:$0xff] %vm1784, %v2934
      %2967 = vst.msk [vmem:[#allocation4 + $0x20] sm:$0xff] %vm1784, %v2935
      %2968 = vst.msk [vmem:[#allocation4 + $0x28] sm:$0xff] %vm1784, %v2936
      %2969 = vst.msk [vmem:[#allocation4 + $0x30] sm:$0xff] %vm1784, %v2937
      %2970 = vst.msk [vmem:[#allocation4 + $0x38] sm:$0xff] %vm1784, %v2938
      %2971 = vst.msk [vmem:[#allocation4 + $0x40] sm:$0xff] %vm1784, %v2939
      %2972 = vst.msk [vmem:[#allocation4 + $0x48] sm:$0xff] %vm1784, %v2940
      %2973 = vst.msk [vmem:[#allocation4 + $0x50] sm:$0xff] %vm1784, %v2941
      %2974 = vst.msk [vmem:[#allocation4 + $0x58] sm:$0xff] %vm1784, %v2942
      %2975 = vst.msk [vmem:[#allocation4 + $0x60] sm:$0xff] %vm1784, %v2943
      %2976 = vst.msk [vmem:[#allocation4 + $0x68] sm:$0xff] %vm1784, %v2944
      %2977 = vst.msk [vmem:[#allocation4 + $0x70] sm:$0xff] %vm1784, %v2945
      %2978 = vst.msk [vmem:[#allocation4 + $0x78] sm:$0xff] %vm1784, %v2946
      %2979 = vst.msk [vmem:[#allocation4 + $0x80] sm:$0xff] %vm1784, %v2947
      %2980 = vst.msk [vmem:[#allocation4 + $0x88] sm:$0xff] %vm1784, %v2948
      %2981 = vst.msk [vmem:[#allocation4 + $0x90] sm:$0xff] %vm1784, %v2949
      %2982 = vst.msk [vmem:[#allocation4 + $0x98] sm:$0xff] %vm1784, %v2950
      %2983 = vst.msk [vmem:[#allocation4 + $0xa0] sm:$0xff] %vm1784, %v2951
      %2984 = vst.msk [vmem:[#allocation4 + $0xa8] sm:$0xff] %vm1784, %v2952
      %2985 = vst.msk [vmem:[#allocation4 + $0xb0] sm:$0xff] %vm1784, %v2953
      %2986 = vst.msk [vmem:[#allocation4 + $0xb8] sm:$0xff] %vm1784, %v2954
      %2987 = vst.msk [vmem:[#allocation4 + $0xc0] sm:$0xff] %vm1784, %v2955
      %2988 = vst.msk [vmem:[#allocation4 + $0xc8] sm:$0xff] %vm1784, %v2956
      %2989 = vst.msk [vmem:[#allocation4 + $0xd0] sm:$0xff] %vm1784, %v2957
      %2990 = vst.msk [vmem:[#allocation4 + $0xd8] sm:$0xff] %vm1784, %v2958
      %2991 = vst.msk [vmem:[#allocation4 + $0xe0] sm:$0xff] %vm1784, %v2959
      %2992 = vst.msk [vmem:[#allocation4 + $0xe8] sm:$0xff] %vm1784, %v2960
      %2993 = vst.msk [vmem:[#allocation4 + $0xf0] sm:$0xff] %vm1784, %v2961
      %2994 = vst.msk [vmem:[#allocation4 + $0xf8] sm:$0xff] %vm1784, %v2962
      %s2995 = scalar_lea.vmem [#allocation2], 24
      %v2996 = vld [vmem:[%s2995] sm:$0xf]
      %v2997 = vld [vmem:[%s2995 + $0x4] sm:$0xf]
      %v2998 = vld [vmem:[%s2995 + $0xc] sm:$0xf]
      %v2999 = vld [vmem:[%s2995 + $0x10] sm:$0xf]
      %v3000 = vld [vmem:[%s2995 + $0x18] sm:$0xf]
      %v3001 = vld [vmem:[%s2995 + $0x1c] sm:$0xf]
      %v3002 = vld [vmem:[%s2995 + $0x24] sm:$0xf]
      %v3003 = vld [vmem:[%s2995 + $0x28] sm:$0xf]
      %v3004 = vld [vmem:[%s2995 + $0x30] sm:$0xf]
      %v3005 = vld [vmem:[%s2995 + $0x34] sm:$0xf]
      %v3006 = vld [vmem:[%s2995 + $0x3c] sm:$0xf]
      %v3007 = vld [vmem:[%s2995 + $0x40] sm:$0xf]
      %v3008 = vld [vmem:[%s2995 + $0x48] sm:$0xf]
      %v3009 = vld [vmem:[%s2995 + $0x4c] sm:$0xf]
      %v3010 = vld [vmem:[%s2995 + $0x54] sm:$0xf]
      %v3011 = vld [vmem:[%s2995 + $0x58] sm:$0xf]
      %v3012 = vld [vmem:[%s2995 + $0x60] sm:$0xf]
      %v3013 = vld [vmem:[%s2995 + $0x64] sm:$0xf]
      %v3014 = vld [vmem:[%s2995 + $0x6c] sm:$0xf]
      %v3015 = vld [vmem:[%s2995 + $0x70] sm:$0xf]
      %v3016 = vld [vmem:[%s2995 + $0x78] sm:$0xf]
      %v3017 = vld [vmem:[%s2995 + $0x7c] sm:$0xf]
      %v3018 = vld [vmem:[%s2995 + $0x84] sm:$0xf]
      %v3019 = vld [vmem:[%s2995 + $0x88] sm:$0xf]
      %v3020 = vld [vmem:[%s2995 + $0x90] sm:$0xf]
      %v3021 = vld [vmem:[%s2995 + $0x94] sm:$0xf]
      %v3022 = vld [vmem:[%s2995 + $0x9c] sm:$0xf]
      %v3023 = vld [vmem:[%s2995 + $0xa0] sm:$0xf]
      %v3024 = vld [vmem:[%s2995 + $0xa8] sm:$0xf]
      %v3025 = vld [vmem:[%s2995 + $0xac] sm:$0xf]
      %v3026 = vld [vmem:[%s2995 + $0xb4] sm:$0xf]
      %v3027 = vld [vmem:[%s2995 + $0xb8] sm:$0xf]
      %v3028 = vld [vmem:[%s2995 + $0x8] sm:$0x1]
      %v3029 = vld [vmem:[%s2995 + $0x14] sm:$0x1]
      %v3030 = vld [vmem:[%s2995 + $0x20] sm:$0x1]
      %v3031 = vld [vmem:[%s2995 + $0x2c] sm:$0x1]
      %v3032 = vld [vmem:[%s2995 + $0x38] sm:$0x1]
      %v3033 = vld [vmem:[%s2995 + $0x44] sm:$0x1]
      %v3034 = vld [vmem:[%s2995 + $0x50] sm:$0x1]
      %v3035 = vld [vmem:[%s2995 + $0x5c] sm:$0x1]
      %v3036 = vld [vmem:[%s2995 + $0x68] sm:$0x1]
      %v3037 = vld [vmem:[%s2995 + $0x74] sm:$0x1]
      %v3038 = vld [vmem:[%s2995 + $0x80] sm:$0x1]
      %v3039 = vld [vmem:[%s2995 + $0x8c] sm:$0x1]
      %v3040 = vld [vmem:[%s2995 + $0x98] sm:$0x1]
      %v3041 = vld [vmem:[%s2995 + $0xa4] sm:$0x1]
      %v3042 = vld [vmem:[%s2995 + $0xb0] sm:$0x1]
      %v3043 = vld [vmem:[%s2995 + $0xbc] sm:$0x1]
      %v3044 = vld [vmem:[%s2995] sm:$0xe]
      %v3045 = vld [vmem:[%s2995 + $0xc] sm:$0xe]
      %v3046 = vld [vmem:[%s2995 + $0x18] sm:$0xe]
      %v3047 = vld [vmem:[%s2995 + $0x24] sm:$0xe]
      %v3048 = vld [vmem:[%s2995 + $0x30] sm:$0xe]
      %v3049 = vld [vmem:[%s2995 + $0x3c] sm:$0xe]
      %v3050 = vld [vmem:[%s2995 + $0x48] sm:$0xe]
      %v3051 = vld [vmem:[%s2995 + $0x54] sm:$0xe]
      %v3052 = vld [vmem:[%s2995 + $0x60] sm:$0xe]
      %v3053 = vld [vmem:[%s2995 + $0x6c] sm:$0xe]
      %v3054 = vld [vmem:[%s2995 + $0x78] sm:$0xe]
      %v3055 = vld [vmem:[%s2995 + $0x84] sm:$0xe]
      %v3056 = vld [vmem:[%s2995 + $0x90] sm:$0xe]
      %v3057 = vld [vmem:[%s2995 + $0x9c] sm:$0xe]
      %v3058 = vld [vmem:[%s2995 + $0xa8] sm:$0xe]
      %v3059 = vld [vmem:[%s2995 + $0xb4] sm:$0xe]
      %v3092 = vunpack.c.l.b16 %v2996
      %v3093 = vunpack.c.l.b16 %v2997
      %v3094 = vunpack.c.l.b16 %v2998
      %v3095 = vunpack.c.l.b16 %v2999
      %v3096 = vunpack.c.l.b16 %v3000
      %v3097 = vunpack.c.l.b16 %v3001
      %v3098 = vunpack.c.l.b16 %v3002
      %v3099 = vunpack.c.l.b16 %v3003
      %v3100 = vunpack.c.l.b16 %v3004
      %v3101 = vunpack.c.l.b16 %v3005
      %v3102 = vunpack.c.l.b16 %v3006
      %v3103 = vunpack.c.l.b16 %v3007
      %v3104 = vunpack.c.l.b16 %v3008
      %v3105 = vunpack.c.l.b16 %v3009
      %v3106 = vunpack.c.l.b16 %v3010
      %v3107 = vunpack.c.l.b16 %v3011
      %v3108 = vunpack.c.l.b16 %v3012
      %v3109 = vunpack.c.l.b16 %v3013
      %v3110 = vunpack.c.l.b16 %v3014
      %v3111 = vunpack.c.l.b16 %v3015
      %v3112 = vunpack.c.l.b16 %v3016
      %v3113 = vunpack.c.l.b16 %v3017
      %v3114 = vunpack.c.l.b16 %v3018
      %v3115 = vunpack.c.l.b16 %v3019
      %v3116 = vunpack.c.l.b16 %v3020
      %v3117 = vunpack.c.l.b16 %v3021
      %v3118 = vunpack.c.l.b16 %v3022
      %v3119 = vunpack.c.l.b16 %v3023
      %v3120 = vunpack.c.l.b16 %v3024
      %v3121 = vunpack.c.l.b16 %v3025
      %v3122 = vunpack.c.l.b16 %v3026
      %v3123 = vunpack.c.l.b16 %v3027
      %v3124 = vpack.c.b16 %v3093, %v3092
      %v3125 = vpack.c.b16 %v3095, %v3094
      %v3126 = vpack.c.b16 %v3097, %v3096
      %v3127 = vpack.c.b16 %v3099, %v3098
      %v3128 = vpack.c.b16 %v3101, %v3100
      %v3129 = vpack.c.b16 %v3103, %v3102
      %v3130 = vpack.c.b16 %v3105, %v3104
      %v3131 = vpack.c.b16 %v3107, %v3106
      %v3132 = vpack.c.b16 %v3109, %v3108
      %v3133 = vpack.c.b16 %v3111, %v3110
      %v3134 = vpack.c.b16 %v3113, %v3112
      %v3135 = vpack.c.b16 %v3115, %v3114
      %v3136 = vpack.c.b16 %v3117, %v3116
      %v3137 = vpack.c.b16 %v3119, %v3118
      %v3138 = vpack.c.b16 %v3121, %v3120
      %v3139 = vpack.c.b16 %v3123, %v3122
      %v3156 = vunpack.c.l.b16 %v3028
      %v3157 = vunpack.c.l.b16 %v3029
      %v3158 = vunpack.c.l.b16 %v3030
      %v3159 = vunpack.c.l.b16 %v3031
      %v3160 = vunpack.c.l.b16 %v3032
      %v3161 = vunpack.c.l.b16 %v3033
      %v3162 = vunpack.c.l.b16 %v3034
      %v3163 = vunpack.c.l.b16 %v3035
      %v3164 = vunpack.c.l.b16 %v3036
      %v3165 = vunpack.c.l.b16 %v3037
      %v3166 = vunpack.c.l.b16 %v3038
      %v3167 = vunpack.c.l.b16 %v3039
      %v3168 = vunpack.c.l.b16 %v3040
      %v3169 = vunpack.c.l.b16 %v3041
      %v3170 = vunpack.c.l.b16 %v3042
      %v3171 = vunpack.c.l.b16 %v3043
      %v3172 = vpack.c.b16 %v3156, %v3156
      %v3173 = vpack.c.b16 %v3157, %v3157
      %v3174 = vpack.c.b16 %v3158, %v3158
      %v3175 = vpack.c.b16 %v3159, %v3159
      %v3176 = vpack.c.b16 %v3160, %v3160
      %v3177 = vpack.c.b16 %v3161, %v3161
      %v3178 = vpack.c.b16 %v3162, %v3162
      %v3179 = vpack.c.b16 %v3163, %v3163
      %v3180 = vpack.c.b16 %v3164, %v3164
      %v3181 = vpack.c.b16 %v3165, %v3165
      %v3182 = vpack.c.b16 %v3166, %v3166
      %v3183 = vpack.c.b16 %v3167, %v3167
      %v3184 = vpack.c.b16 %v3168, %v3168
      %v3185 = vpack.c.b16 %v3169, %v3169
      %v3186 = vpack.c.b16 %v3170, %v3170
      %v3187 = vpack.c.b16 %v3171, %v3171
      %v3189 = vshrl.u32 %v3124, 16
      %v3191 = vshll.u32 %v3124, 16
      %v3193 = vrot.slane %v3191, 1
      %v3194 = vor.u32 %v3189, %v3193
      %v3196 = vshll.u32 %v3172, 16
      %v3198 = vrot.slane %v3196, 1
      %v3199 = vsel %vm1430, %v3194, %v3198
      %v3201 = vshrl.u32 %v3125, 16
      %v3203 = vshll.u32 %v3125, 16
      %v3205 = vrot.slane %v3203, 1
      %v3206 = vor.u32 %v3201, %v3205
      %v3208 = vshll.u32 %v3173, 16
      %v3210 = vrot.slane %v3208, 1
      %v3211 = vsel %vm1430, %v3206, %v3210
      %v3213 = vshrl.u32 %v3126, 16
      %v3215 = vshll.u32 %v3126, 16
      %v3217 = vrot.slane %v3215, 1
      %v3218 = vor.u32 %v3213, %v3217
      %v3220 = vshll.u32 %v3174, 16
      %v3222 = vrot.slane %v3220, 1
      %v3223 = vsel %vm1430, %v3218, %v3222
      %v3225 = vshrl.u32 %v3127, 16
      %v3227 = vshll.u32 %v3127, 16
      %v3229 = vrot.slane %v3227, 1
      %v3230 = vor.u32 %v3225, %v3229
      %v3232 = vshll.u32 %v3175, 16
      %v3234 = vrot.slane %v3232, 1
      %v3235 = vsel %vm1430, %v3230, %v3234
      %v3237 = vshrl.u32 %v3128, 16
      %v3239 = vshll.u32 %v3128, 16
      %v3241 = vrot.slane %v3239, 1
      %v3242 = vor.u32 %v3237, %v3241
      %v3244 = vshll.u32 %v3176, 16
      %v3246 = vrot.slane %v3244, 1
      %v3247 = vsel %vm1430, %v3242, %v3246
      %v3249 = vshrl.u32 %v3129, 16
      %v3251 = vshll.u32 %v3129, 16
      %v3253 = vrot.slane %v3251, 1
      %v3254 = vor.u32 %v3249, %v3253
      %v3256 = vshll.u32 %v3177, 16
      %v3258 = vrot.slane %v3256, 1
      %v3259 = vsel %vm1430, %v3254, %v3258
      %v3261 = vshrl.u32 %v3130, 16
      %v3263 = vshll.u32 %v3130, 16
      %v3265 = vrot.slane %v3263, 1
      %v3266 = vor.u32 %v3261, %v3265
      %v3268 = vshll.u32 %v3178, 16
      %v3270 = vrot.slane %v3268, 1
      %v3271 = vsel %vm1430, %v3266, %v3270
      %v3273 = vshrl.u32 %v3131, 16
      %v3275 = vshll.u32 %v3131, 16
      %v3277 = vrot.slane %v3275, 1
      %v3278 = vor.u32 %v3273, %v3277
      %v3280 = vshll.u32 %v3179, 16
      %v3282 = vrot.slane %v3280, 1
      %v3283 = vsel %vm1430, %v3278, %v3282
      %v3285 = vshrl.u32 %v3132, 16
      %v3287 = vshll.u32 %v3132, 16
      %v3289 = vrot.slane %v3287, 1
      %v3290 = vor.u32 %v3285, %v3289
      %v3292 = vshll.u32 %v3180, 16
      %v3294 = vrot.slane %v3292, 1
      %v3295 = vsel %vm1430, %v3290, %v3294
      %v3297 = vshrl.u32 %v3133, 16
      %v3299 = vshll.u32 %v3133, 16
      %v3301 = vrot.slane %v3299, 1
      %v3302 = vor.u32 %v3297, %v3301
      %v3304 = vshll.u32 %v3181, 16
      %v3306 = vrot.slane %v3304, 1
      %v3307 = vsel %vm1430, %v3302, %v3306
      %v3309 = vshrl.u32 %v3134, 16
      %v3311 = vshll.u32 %v3134, 16
      %v3313 = vrot.slane %v3311, 1
      %v3314 = vor.u32 %v3309, %v3313
      %v3316 = vshll.u32 %v3182, 16
      %v3318 = vrot.slane %v3316, 1
      %v3319 = vsel %vm1430, %v3314, %v3318
      %v3321 = vshrl.u32 %v3135, 16
      %v3323 = vshll.u32 %v3135, 16
      %v3325 = vrot.slane %v3323, 1
      %v3326 = vor.u32 %v3321, %v3325
      %v3328 = vshll.u32 %v3183, 16
      %v3330 = vrot.slane %v3328, 1
      %v3331 = vsel %vm1430, %v3326, %v3330
      %v3333 = vshrl.u32 %v3136, 16
      %v3335 = vshll.u32 %v3136, 16
      %v3337 = vrot.slane %v3335, 1
      %v3338 = vor.u32 %v3333, %v3337
      %v3340 = vshll.u32 %v3184, 16
      %v3342 = vrot.slane %v3340, 1
      %v3343 = vsel %vm1430, %v3338, %v3342
      %v3345 = vshrl.u32 %v3137, 16
      %v3347 = vshll.u32 %v3137, 16
      %v3349 = vrot.slane %v3347, 1
      %v3350 = vor.u32 %v3345, %v3349
      %v3352 = vshll.u32 %v3185, 16
      %v3354 = vrot.slane %v3352, 1
      %v3355 = vsel %vm1430, %v3350, %v3354
      %v3357 = vshrl.u32 %v3138, 16
      %v3359 = vshll.u32 %v3138, 16
      %v3361 = vrot.slane %v3359, 1
      %v3362 = vor.u32 %v3357, %v3361
      %v3364 = vshll.u32 %v3186, 16
      %v3366 = vrot.slane %v3364, 1
      %v3367 = vsel %vm1430, %v3362, %v3366
      %v3369 = vshrl.u32 %v3139, 16
      %v3371 = vshll.u32 %v3139, 16
      %v3373 = vrot.slane %v3371, 1
      %v3374 = vor.u32 %v3369, %v3373
      %v3376 = vshll.u32 %v3187, 16
      %v3378 = vrot.slane %v3376, 1
      %v3379 = vsel %vm1430, %v3374, %v3378
      %3380 = vrot.lane.b32.xlu0 %v3199, 4
      %v3381 = vpop.permute.xlu0 %3380
      %3382 = vrot.lane.b32.xlu0 %v3211, 4
      %v3383 = vpop.permute.xlu0 %3382
      %3384 = vrot.lane.b32.xlu0 %v3223, 4
      %v3385 = vpop.permute.xlu0 %3384
      %3386 = vrot.lane.b32.xlu0 %v3235, 4
      %v3387 = vpop.permute.xlu0 %3386
      %3388 = vrot.lane.b32.xlu0 %v3247, 4
      %v3389 = vpop.permute.xlu0 %3388
      %3390 = vrot.lane.b32.xlu0 %v3259, 4
      %v3391 = vpop.permute.xlu0 %3390
      %3392 = vrot.lane.b32.xlu0 %v3271, 4
      %v3393 = vpop.permute.xlu0 %3392
      %3394 = vrot.lane.b32.xlu0 %v3283, 4
      %v3395 = vpop.permute.xlu0 %3394
      %3396 = vrot.lane.b32.xlu0 %v3295, 4
      %v3397 = vpop.permute.xlu0 %3396
      %3398 = vrot.lane.b32.xlu0 %v3307, 4
      %v3399 = vpop.permute.xlu0 %3398
      %3400 = vrot.lane.b32.xlu0 %v3319, 4
      %v3401 = vpop.permute.xlu0 %3400
      %3402 = vrot.lane.b32.xlu0 %v3331, 4
      %v3403 = vpop.permute.xlu0 %3402
      %3404 = vrot.lane.b32.xlu0 %v3343, 4
      %v3405 = vpop.permute.xlu0 %3404
      %3406 = vrot.lane.b32.xlu0 %v3355, 4
      %v3407 = vpop.permute.xlu0 %3406
      %3408 = vrot.lane.b32.xlu0 %v3367, 4
      %v3409 = vpop.permute.xlu0 %3408
      %3410 = vrot.lane.b32.xlu0 %v3379, 4
      %v3411 = vpop.permute.xlu0 %3410
      %v3428 = vunpack.c.l.b16 %v3044
      %v3429 = vunpack.c.l.b16 %v3045
      %v3430 = vunpack.c.l.b16 %v3046
      %v3431 = vunpack.c.l.b16 %v3047
      %v3432 = vunpack.c.l.b16 %v3048
      %v3433 = vunpack.c.l.b16 %v3049
      %v3434 = vunpack.c.l.b16 %v3050
      %v3435 = vunpack.c.l.b16 %v3051
      %v3436 = vunpack.c.l.b16 %v3052
      %v3437 = vunpack.c.l.b16 %v3053
      %v3438 = vunpack.c.l.b16 %v3054
      %v3439 = vunpack.c.l.b16 %v3055
      %v3440 = vunpack.c.l.b16 %v3056
      %v3441 = vunpack.c.l.b16 %v3057
      %v3442 = vunpack.c.l.b16 %v3058
      %v3443 = vunpack.c.l.b16 %v3059
      %v3444 = vpack.c.b16 %v3093, %v3428
      %v3445 = vpack.c.b16 %v3095, %v3429
      %v3446 = vpack.c.b16 %v3097, %v3430
      %v3447 = vpack.c.b16 %v3099, %v3431
      %v3448 = vpack.c.b16 %v3101, %v3432
      %v3449 = vpack.c.b16 %v3103, %v3433
      %v3450 = vpack.c.b16 %v3105, %v3434
      %v3451 = vpack.c.b16 %v3107, %v3435
      %v3452 = vpack.c.b16 %v3109, %v3436
      %v3453 = vpack.c.b16 %v3111, %v3437
      %v3454 = vpack.c.b16 %v3113, %v3438
      %v3455 = vpack.c.b16 %v3115, %v3439
      %v3456 = vpack.c.b16 %v3117, %v3440
      %v3457 = vpack.c.b16 %v3119, %v3441
      %v3458 = vpack.c.b16 %v3121, %v3442
      %v3459 = vpack.c.b16 %v3123, %v3443
      %v3460 = vrot.slane %v3444, 1
      %v3461 = vrot.slane %v3172, 1
      %v3462 = vsel %vm1703, %v3460, %v3461
      %v3463 = vrot.slane %v3445, 1
      %v3464 = vrot.slane %v3173, 1
      %v3465 = vsel %vm1703, %v3463, %v3464
      %v3466 = vrot.slane %v3446, 1
      %v3467 = vrot.slane %v3174, 1
      %v3468 = vsel %vm1703, %v3466, %v3467
      %v3469 = vrot.slane %v3447, 1
      %v3470 = vrot.slane %v3175, 1
      %v3471 = vsel %vm1703, %v3469, %v3470
      %v3472 = vrot.slane %v3448, 1
      %v3473 = vrot.slane %v3176, 1
      %v3474 = vsel %vm1703, %v3472, %v3473
      %v3475 = vrot.slane %v3449, 1
      %v3476 = vrot.slane %v3177, 1
      %v3477 = vsel %vm1703, %v3475, %v3476
      %v3478 = vrot.slane %v3450, 1
      %v3479 = vrot.slane %v3178, 1
      %v3480 = vsel %vm1703, %v3478, %v3479
      %v3481 = vrot.slane %v3451, 1
      %v3482 = vrot.slane %v3179, 1
      %v3483 = vsel %vm1703, %v3481, %v3482
      %v3484 = vrot.slane %v3452, 1
      %v3485 = vrot.slane %v3180, 1
      %v3486 = vsel %vm1703, %v3484, %v3485
      %v3487 = vrot.slane %v3453, 1
      %v3488 = vrot.slane %v3181, 1
      %v3489 = vsel %vm1703, %v3487, %v3488
      %v3490 = vrot.slane %v3454, 1
      %v3491 = vrot.slane %v3182, 1
      %v3492 = vsel %vm1703, %v3490, %v3491
      %v3493 = vrot.slane %v3455, 1
      %v3494 = vrot.slane %v3183, 1
      %v3495 = vsel %vm1703, %v3493, %v3494
      %v3496 = vrot.slane %v3456, 1
      %v3497 = vrot.slane %v3184, 1
      %v3498 = vsel %vm1703, %v3496, %v3497
      %v3499 = vrot.slane %v3457, 1
      %v3500 = vrot.slane %v3185, 1
      %v3501 = vsel %vm1703, %v3499, %v3500
      %v3502 = vrot.slane %v3458, 1
      %v3503 = vrot.slane %v3186, 1
      %v3504 = vsel %vm1703, %v3502, %v3503
      %v3505 = vrot.slane %v3459, 1
      %v3506 = vrot.slane %v3187, 1
      %v3507 = vsel %vm1703, %v3505, %v3506
      %3508 = vrot.lane.b32.xlu0 %v3462, 8
      %v3509 = vpop.permute.xlu0 %3508
      %3510 = vrot.lane.b32.xlu0 %v3465, 8
      %v3511 = vpop.permute.xlu0 %3510
      %3512 = vrot.lane.b32.xlu0 %v3468, 8
      %v3513 = vpop.permute.xlu0 %3512
      %3514 = vrot.lane.b32.xlu0 %v3471, 8
      %v3515 = vpop.permute.xlu0 %3514
      %3516 = vrot.lane.b32.xlu0 %v3474, 8
      %v3517 = vpop.permute.xlu0 %3516
      %3518 = vrot.lane.b32.xlu0 %v3477, 8
      %v3519 = vpop.permute.xlu0 %3518
      %3520 = vrot.lane.b32.xlu0 %v3480, 8
      %v3521 = vpop.permute.xlu0 %3520
      %3522 = vrot.lane.b32.xlu0 %v3483, 8
      %v3523 = vpop.permute.xlu0 %3522
      %3524 = vrot.lane.b32.xlu0 %v3486, 8
      %v3525 = vpop.permute.xlu0 %3524
      %3526 = vrot.lane.b32.xlu0 %v3489, 8
      %v3527 = vpop.permute.xlu0 %3526
      %3528 = vrot.lane.b32.xlu0 %v3492, 8
      %v3529 = vpop.permute.xlu0 %3528
      %3530 = vrot.lane.b32.xlu0 %v3495, 8
      %v3531 = vpop.permute.xlu0 %3530
      %3532 = vrot.lane.b32.xlu0 %v3498, 8
      %v3533 = vpop.permute.xlu0 %3532
      %3534 = vrot.lane.b32.xlu0 %v3501, 8
      %v3535 = vpop.permute.xlu0 %3534
      %3536 = vrot.lane.b32.xlu0 %v3504, 8
      %v3537 = vpop.permute.xlu0 %3536
      %3538 = vrot.lane.b32.xlu0 %v3507, 8
      %v3539 = vpop.permute.xlu0 %3538
      %v3541 = vsel %vm1784, %v3124, %v3381
      %v3543 = vsel %vm1784, %v3125, %v3383
      %v3545 = vsel %vm1784, %v3126, %v3385
      %v3547 = vsel %vm1784, %v3127, %v3387
      %v3549 = vsel %vm1784, %v3128, %v3389
      %v3551 = vsel %vm1784, %v3129, %v3391
      %v3553 = vsel %vm1784, %v3130, %v3393
      %v3555 = vsel %vm1784, %v3131, %v3395
      %v3557 = vsel %vm1784, %v3132, %v3397
      %v3559 = vsel %vm1784, %v3133, %v3399
      %v3561 = vsel %vm1784, %v3134, %v3401
      %v3563 = vsel %vm1784, %v3135, %v3403
      %v3565 = vsel %vm1784, %v3136, %v3405
      %v3567 = vsel %vm1784, %v3137, %v3407
      %v3569 = vsel %vm1784, %v3138, %v3409
      %v3571 = vsel %vm1784, %v3139, %v3411
      %v3573 = vsel %vm1817, %v3541, %v3509
      %v3575 = vsel %vm1817, %v3543, %v3511
      %v3577 = vsel %vm1817, %v3545, %v3513
      %v3579 = vsel %vm1817, %v3547, %v3515
      %v3581 = vsel %vm1817, %v3549, %v3517
      %v3583 = vsel %vm1817, %v3551, %v3519
      %v3585 = vsel %vm1817, %v3553, %v3521
      %v3587 = vsel %vm1817, %v3555, %v3523
      %v3589 = vsel %vm1817, %v3557, %v3525
      %v3591 = vsel %vm1817, %v3559, %v3527
      %v3593 = vsel %vm1817, %v3561, %v3529
      %v3595 = vsel %vm1817, %v3563, %v3531
      %v3597 = vsel %vm1817, %v3565, %v3533
      %v3599 = vsel %vm1817, %v3567, %v3535
      %v3601 = vsel %vm1817, %v3569, %v3537
      %v3603 = vsel %vm1817, %v3571, %v3539
      %s3604 = scalar_lea.vmem %s2, 16
      %v3605 = vld [vmem:[%s3604] sm:$0xf]
      %v3606 = vld [vmem:[%s3604 + $0x4] sm:$0x3]
      %v3609 = vunpack.c.l.b16 %v3605
      %v3610 = vunpack.c.l.b16 %v3606
      %v3611 = vpack.c.b16 %v3610, %v3609
      %v3612 = vsel %vm1857, %v3573, 0
      %v3614 = vsel %vm1857, %v3575, 0
      %v3616 = vsel %vm1857, %v3577, 0
      %v3618 = vsel %vm1857, %v3579, 0
      %v3620 = vsel %vm1857, %v3581, 0
      %v3622 = vsel %vm1857, %v3583, 0
      %v3624 = vsel %vm1857, %v3585, 0
      %v3626 = vsel %vm1857, %v3587, 0
      %v3628 = vsel %vm1857, %v3589, 0
      %v3630 = vsel %vm1857, %v3591, 0
      %v3632 = vsel %vm1857, %v3593, 0
      %v3634 = vsel %vm1857, %v3595, 0
      %v3636 = vsel %vm1857, %v3597, 0
      %v3638 = vsel %vm1857, %v3599, 0
      %v3640 = vsel %vm1857, %v3601, 0
      %v3642 = vsel %vm1857, %v3603, 0
      %v3645 = vsel %vm1890, %v3611, 0
      %3647 = vmatprep.subr.bf16.mxu0 0
      %3648 = vmatpush1.bf16.msra.mxu0 0
      %3649 = vmatprep.subr.bf16.mxu0 0
      %3650 = vmatpush1.bf16.msra.mxu0 0
      %3651 = vmatprep.subr.bf16.mxu0 0
      %3652 = vmatpush1.bf16.msra.mxu0 0
      %3653 = vmatprep.subr.bf16.mxu0 0
      %3654 = vmatpush1.bf16.msra.mxu0 0
      %3655 = vmatprep.subr.bf16.mxu0 0
      %3656 = vmatpush1.bf16.msra.mxu0 0
      %3657 = vmatprep.subr.bf16.mxu0 0
      %3658 = vmatpush1.bf16.msra.mxu0 0
      %3659 = vmatprep.subr.bf16.mxu0 0
      %3660 = vmatpush1.bf16.msra.mxu0 0
      %3661 = vmatprep.subr.bf16.mxu0 0
      %3662 = vmatpush1.bf16.msra.mxu0 %v3645
      %3663 = vmatprep.subr.bf16.mxu0 0
      %3664 = vmatpush2.bf16.msra.mxu0 0
      %3665 = vmatprep.subr.bf16.mxu0 0
      %3666 = vmatpush2.bf16.msra.mxu0 0
      %3667 = vmatprep.subr.bf16.mxu0 0
      %3668 = vmatpush2.bf16.msra.mxu0 0
      %3669 = vmatprep.subr.bf16.mxu0 0
      %3670 = vmatpush2.bf16.msra.mxu0 0
      %3671 = vmatprep.subr.bf16.mxu0 0
      %3672 = vmatpush2.bf16.msra.mxu0 0
      %3673 = vmatprep.subr.bf16.mxu0 0
      %3674 = vmatpush2.bf16.msra.mxu0 0
      %3675 = vmatprep.subr.bf16.mxu0 0
      %3676 = vmatpush2.bf16.msra.mxu0 0
      %3677 = vmatprep.subr.bf16.mxu0 0
      %3678 = vmatpush2.bf16.msra.mxu0 0
      %3679 = vmatprep.mubr.bf16.mxu0 0
      %3680 = vmatmul.mubr.bf16.gmra.mxu0 %v3612
      %v3681 = vpop.f32.mrf.mxu0
      %v3682 = vadd.f32 0.0, %v3681
      %v3683 = vpop.f32.mrf.mxu0
      %v3684 = vpop.f32.mrf.mxu0
      %v3685 = vadd.f32 0.0, %v3684
      %v3686 = vpop.f32.mrf.mxu0
      %3687 = vmatprep.mubr.bf16.mxu0 0
      %3688 = vmatmul.mubr.bf16.gmra.mxu0 %v3614
      %v3689 = vpop.f32.mrf.mxu0
      %v3690 = vadd.f32 0.0, %v3689
      %v3691 = vpop.f32.mrf.mxu0
      %v3692 = vpop.f32.mrf.mxu0
      %v3693 = vadd.f32 0.0, %v3692
      %v3694 = vpop.f32.mrf.mxu0
      %3695 = vmatprep.mubr.bf16.mxu0 0
      %3696 = vmatmul.mubr.bf16.gmra.mxu0 %v3616
      %v3697 = vpop.f32.mrf.mxu0
      %v3698 = vadd.f32 0.0, %v3697
      %v3699 = vpop.f32.mrf.mxu0
      %v3700 = vpop.f32.mrf.mxu0
      %v3701 = vadd.f32 0.0, %v3700
      %v3702 = vpop.f32.mrf.mxu0
      %3703 = vmatprep.mubr.bf16.mxu0 0
      %3704 = vmatmul.mubr.bf16.gmra.mxu0 %v3618
      %v3705 = vpop.f32.mrf.mxu0
      %v3706 = vadd.f32 0.0, %v3705
      %v3707 = vpop.f32.mrf.mxu0
      %v3708 = vpop.f32.mrf.mxu0
      %v3709 = vadd.f32 0.0, %v3708
      %v3710 = vpop.f32.mrf.mxu0
      %3711 = vmatprep.mubr.bf16.mxu0 0
      %3712 = vmatmul.mubr.bf16.gmra.mxu0 %v3620
      %v3713 = vpop.f32.mrf.mxu0
      %v3714 = vadd.f32 0.0, %v3713
      %v3715 = vpop.f32.mrf.mxu0
      %v3716 = vpop.f32.mrf.mxu0
      %v3717 = vadd.f32 0.0, %v3716
      %v3718 = vpop.f32.mrf.mxu0
      %3719 = vmatprep.mubr.bf16.mxu0 0
      %3720 = vmatmul.mubr.bf16.gmra.mxu0 %v3622
      %v3721 = vpop.f32.mrf.mxu0
      %v3722 = vadd.f32 0.0, %v3721
      %v3723 = vpop.f32.mrf.mxu0
      %v3724 = vpop.f32.mrf.mxu0
      %v3725 = vadd.f32 0.0, %v3724
      %v3726 = vpop.f32.mrf.mxu0
      %3727 = vmatprep.mubr.bf16.mxu0 0
      %3728 = vmatmul.mubr.bf16.gmra.mxu0 %v3624
      %v3729 = vpop.f32.mrf.mxu0
      %v3730 = vadd.f32 0.0, %v3729
      %v3731 = vpop.f32.mrf.mxu0
      %v3732 = vpop.f32.mrf.mxu0
      %v3733 = vadd.f32 0.0, %v3732
      %v3734 = vpop.f32.mrf.mxu0
      %3735 = vmatprep.mubr.bf16.mxu0 0
      %3736 = vmatmul.mubr.bf16.gmra.mxu0 %v3626
      %v3737 = vpop.f32.mrf.mxu0
      %v3738 = vadd.f32 0.0, %v3737
      %v3739 = vpop.f32.mrf.mxu0
      %v3740 = vpop.f32.mrf.mxu0
      %v3741 = vadd.f32 0.0, %v3740
      %v3742 = vpop.f32.mrf.mxu0
      %3743 = vmatprep.mubr.bf16.mxu0 0
      %3744 = vmatmul.mubr.bf16.gmra.mxu0 %v3628
      %v3745 = vpop.f32.mrf.mxu0
      %v3746 = vadd.f32 0.0, %v3745
      %v3747 = vpop.f32.mrf.mxu0
      %v3748 = vpop.f32.mrf.mxu0
      %v3749 = vadd.f32 0.0, %v3748
      %v3750 = vpop.f32.mrf.mxu0
      %3751 = vmatprep.mubr.bf16.mxu0 0
      %3752 = vmatmul.mubr.bf16.gmra.mxu0 %v3630
      %v3753 = vpop.f32.mrf.mxu0
      %v3754 = vadd.f32 0.0, %v3753
      %v3755 = vpop.f32.mrf.mxu0
      %v3756 = vpop.f32.mrf.mxu0
      %v3757 = vadd.f32 0.0, %v3756
      %v3758 = vpop.f32.mrf.mxu0
      %3759 = vmatprep.mubr.bf16.mxu0 0
      %3760 = vmatmul.mubr.bf16.gmra.mxu0 %v3632
      %v3761 = vpop.f32.mrf.mxu0
      %v3762 = vadd.f32 0.0, %v3761
      %v3763 = vpop.f32.mrf.mxu0
      %v3764 = vpop.f32.mrf.mxu0
      %v3765 = vadd.f32 0.0, %v3764
      %v3766 = vpop.f32.mrf.mxu0
      %3767 = vmatprep.mubr.bf16.mxu0 0
      %3768 = vmatmul.mubr.bf16.gmra.mxu0 %v3634
      %v3769 = vpop.f32.mrf.mxu0
      %v3770 = vadd.f32 0.0, %v3769
      %v3771 = vpop.f32.mrf.mxu0
      %v3772 = vpop.f32.mrf.mxu0
      %v3773 = vadd.f32 0.0, %v3772
      %v3774 = vpop.f32.mrf.mxu0
      %3775 = vmatprep.mubr.bf16.mxu0 0
      %3776 = vmatmul.mubr.bf16.gmra.mxu0 %v3636
      %v3777 = vpop.f32.mrf.mxu0
      %v3778 = vadd.f32 0.0, %v3777
      %v3779 = vpop.f32.mrf.mxu0
      %v3780 = vpop.f32.mrf.mxu0
      %v3781 = vadd.f32 0.0, %v3780
      %v3782 = vpop.f32.mrf.mxu0
      %3783 = vmatprep.mubr.bf16.mxu0 0
      %3784 = vmatmul.mubr.bf16.gmra.mxu0 %v3638
      %v3785 = vpop.f32.mrf.mxu0
      %v3786 = vadd.f32 0.0, %v3785
      %v3787 = vpop.f32.mrf.mxu0
      %v3788 = vpop.f32.mrf.mxu0
      %v3789 = vadd.f32 0.0, %v3788
      %v3790 = vpop.f32.mrf.mxu0
      %3791 = vmatprep.mubr.bf16.mxu0 0
      %3792 = vmatmul.mubr.bf16.gmra.mxu0 %v3640
      %v3793 = vpop.f32.mrf.mxu0
      %v3794 = vadd.f32 0.0, %v3793
      %v3795 = vpop.f32.mrf.mxu0
      %v3796 = vpop.f32.mrf.mxu0
      %v3797 = vadd.f32 0.0, %v3796
      %v3798 = vpop.f32.mrf.mxu0
      %3799 = vmatprep.mubr.bf16.mxu0 0
      %3800 = vmatmul.mubr.bf16.gmra.mxu0 %v3642
      %v3801 = vpop.f32.mrf.mxu0
      %v3802 = vadd.f32 0.0, %v3801
      %v3803 = vpop.f32.mrf.mxu0
      %v3804 = vpop.f32.mrf.mxu0
      %v3805 = vadd.f32 0.0, %v3804
      %v3806 = vpop.f32.mrf.mxu0
      %3807 = vdwg.mxu0
      %v3808 = vld [vmem:[#allocation4] sm:$0xff]
      %v3809 = vld [vmem:[#allocation4 + $0x8] sm:$0xff]
      %v3810 = vld [vmem:[#allocation4 + $0x10] sm:$0xff]
      %v3811 = vld [vmem:[#allocation4 + $0x18] sm:$0xff]
      %v3812 = vld [vmem:[#allocation4 + $0x20] sm:$0xff]
      %v3813 = vld [vmem:[#allocation4 + $0x28] sm:$0xff]
      %v3814 = vld [vmem:[#allocation4 + $0x30] sm:$0xff]
      %v3815 = vld [vmem:[#allocation4 + $0x38] sm:$0xff]
      %v3816 = vld [vmem:[#allocation4 + $0x40] sm:$0xff]
      %v3817 = vld [vmem:[#allocation4 + $0x48] sm:$0xff]
      %v3818 = vld [vmem:[#allocation4 + $0x50] sm:$0xff]
      %v3819 = vld [vmem:[#allocation4 + $0x58] sm:$0xff]
      %v3820 = vld [vmem:[#allocation4 + $0x60] sm:$0xff]
      %v3821 = vld [vmem:[#allocation4 + $0x68] sm:$0xff]
      %v3822 = vld [vmem:[#allocation4 + $0x70] sm:$0xff]
      %v3823 = vld [vmem:[#allocation4 + $0x78] sm:$0xff]
      %v3824 = vld [vmem:[#allocation4 + $0x80] sm:$0xff]
      %v3825 = vld [vmem:[#allocation4 + $0x88] sm:$0xff]
      %v3826 = vld [vmem:[#allocation4 + $0x90] sm:$0xff]
      %v3827 = vld [vmem:[#allocation4 + $0x98] sm:$0xff]
      %v3828 = vld [vmem:[#allocation4 + $0xa0] sm:$0xff]
      %v3829 = vld [vmem:[#allocation4 + $0xa8] sm:$0xff]
      %v3830 = vld [vmem:[#allocation4 + $0xb0] sm:$0xff]
      %v3831 = vld [vmem:[#allocation4 + $0xb8] sm:$0xff]
      %v3832 = vld [vmem:[#allocation4 + $0xc0] sm:$0xff]
      %v3833 = vld [vmem:[#allocation4 + $0xc8] sm:$0xff]
      %v3834 = vld [vmem:[#allocation4 + $0xd0] sm:$0xff]
      %v3835 = vld [vmem:[#allocation4 + $0xd8] sm:$0xff]
      %v3836 = vld [vmem:[#allocation4 + $0xe0] sm:$0xff]
      %v3837 = vld [vmem:[#allocation4 + $0xe8] sm:$0xff]
      %v3838 = vld [vmem:[#allocation4 + $0xf0] sm:$0xff]
      %v3839 = vld [vmem:[#allocation4 + $0xf8] sm:$0xff]
      %v3840 = vadd.f32 %v3808, %v3682
      %v3841 = vadd.f32 %v3809, %v3685
      %v3842 = vadd.f32 %v3810, %v3690
      %v3843 = vadd.f32 %v3811, %v3693
      %v3844 = vadd.f32 %v3812, %v3698
      %v3845 = vadd.f32 %v3813, %v3701
      %v3846 = vadd.f32 %v3814, %v3706
      %v3847 = vadd.f32 %v3815, %v3709
      %v3848 = vadd.f32 %v3816, %v3714
      %v3849 = vadd.f32 %v3817, %v3717
      %v3850 = vadd.f32 %v3818, %v3722
      %v3851 = vadd.f32 %v3819, %v3725
      %v3852 = vadd.f32 %v3820, %v3730
      %v3853 = vadd.f32 %v3821, %v3733
      %v3854 = vadd.f32 %v3822, %v3738
      %v3855 = vadd.f32 %v3823, %v3741
      %v3856 = vadd.f32 %v3824, %v3746
      %v3857 = vadd.f32 %v3825, %v3749
      %v3858 = vadd.f32 %v3826, %v3754
      %v3859 = vadd.f32 %v3827, %v3757
      %v3860 = vadd.f32 %v3828, %v3762
      %v3861 = vadd.f32 %v3829, %v3765
      %v3862 = vadd.f32 %v3830, %v3770
      %v3863 = vadd.f32 %v3831, %v3773
      %v3864 = vadd.f32 %v3832, %v3778
      %v3865 = vadd.f32 %v3833, %v3781
      %v3866 = vadd.f32 %v3834, %v3786
      %v3867 = vadd.f32 %v3835, %v3789
      %v3868 = vadd.f32 %v3836, %v3794
      %v3869 = vadd.f32 %v3837, %v3797
      %v3870 = vadd.f32 %v3838, %v3802
      %v3871 = vadd.f32 %v3839, %v3805
      %3872 = vst.msk [vmem:[#allocation4] sm:$0xff] %vm1784, %v3840
      %3873 = vst.msk [vmem:[#allocation4 + $0x8] sm:$0xff] %vm1784, %v3841
      %3874 = vst.msk [vmem:[#allocation4 + $0x10] sm:$0xff] %vm1784, %v3842
      %3875 = vst.msk [vmem:[#allocation4 + $0x18] sm:$0xff] %vm1784, %v3843
      %3876 = vst.msk [vmem:[#allocation4 + $0x20] sm:$0xff] %vm1784, %v3844
      %3877 = vst.msk [vmem:[#allocation4 + $0x28] sm:$0xff] %vm1784, %v3845
      %3878 = vst.msk [vmem:[#allocation4 + $0x30] sm:$0xff] %vm1784, %v3846
      %3879 = vst.msk [vmem:[#allocation4 + $0x38] sm:$0xff] %vm1784, %v3847
      %3880 = vst.msk [vmem:[#allocation4 + $0x40] sm:$0xff] %vm1784, %v3848
      %3881 = vst.msk [vmem:[#allocation4 + $0x48] sm:$0xff] %vm1784, %v3849
      %3882 = vst.msk [vmem:[#allocation4 + $0x50] sm:$0xff] %vm1784, %v3850
      %3883 = vst.msk [vmem:[#allocation4 + $0x58] sm:$0xff] %vm1784, %v3851
      %3884 = vst.msk [vmem:[#allocation4 + $0x60] sm:$0xff] %vm1784, %v3852
      %3885 = vst.msk [vmem:[#allocation4 + $0x68] sm:$0xff] %vm1784, %v3853
      %3886 = vst.msk [vmem:[#allocation4 + $0x70] sm:$0xff] %vm1784, %v3854
      %3887 = vst.msk [vmem:[#allocation4 + $0x78] sm:$0xff] %vm1784, %v3855
      %3888 = vst.msk [vmem:[#allocation4 + $0x80] sm:$0xff] %vm1784, %v3856
      %3889 = vst.msk [vmem:[#allocation4 + $0x88] sm:$0xff] %vm1784, %v3857
      %3890 = vst.msk [vmem:[#allocation4 + $0x90] sm:$0xff] %vm1784, %v3858
      %3891 = vst.msk [vmem:[#allocation4 + $0x98] sm:$0xff] %vm1784, %v3859
      %3892 = vst.msk [vmem:[#allocation4 + $0xa0] sm:$0xff] %vm1784, %v3860
      %3893 = vst.msk [vmem:[#allocation4 + $0xa8] sm:$0xff] %vm1784, %v3861
      %3894 = vst.msk [vmem:[#allocation4 + $0xb0] sm:$0xff] %vm1784, %v3862
      %3895 = vst.msk [vmem:[#allocation4 + $0xb8] sm:$0xff] %vm1784, %v3863
      %3896 = vst.msk [vmem:[#allocation4 + $0xc0] sm:$0xff] %vm1784, %v3864
      %3897 = vst.msk [vmem:[#allocation4 + $0xc8] sm:$0xff] %vm1784, %v3865
      %3898 = vst.msk [vmem:[#allocation4 + $0xd0] sm:$0xff] %vm1784, %v3866
      %3899 = vst.msk [vmem:[#allocation4 + $0xd8] sm:$0xff] %vm1784, %v3867
      %3900 = vst.msk [vmem:[#allocation4 + $0xe0] sm:$0xff] %vm1784, %v3868
      %3901 = vst.msk [vmem:[#allocation4 + $0xe8] sm:$0xff] %vm1784, %v3869
      %3902 = vst.msk [vmem:[#allocation4 + $0xf0] sm:$0xff] %vm1784, %v3870
      %3903 = vst.msk [vmem:[#allocation4 + $0xf8] sm:$0xff] %vm1784, %v3871
      %v3904 = vld [vmem:[#allocation3] sm:$0xf]
      %v3905 = vld [vmem:[#allocation3 + $0x4] sm:$0xf]
      %v3906 = vld [vmem:[#allocation3 + $0xc] sm:$0xf]
      %v3907 = vld [vmem:[#allocation3 + $0x10] sm:$0xf]
      %v3908 = vld [vmem:[#allocation3 + $0x18] sm:$0xf]
      %v3909 = vld [vmem:[#allocation3 + $0x1c] sm:$0xf]
      %v3910 = vld [vmem:[#allocation3 + $0x24] sm:$0xf]
      %v3911 = vld [vmem:[#allocation3 + $0x28] sm:$0xf]
      %v3912 = vld [vmem:[#allocation3 + $0x30] sm:$0xf]
      %v3913 = vld [vmem:[#allocation3 + $0x34] sm:$0xf]
      %v3914 = vld [vmem:[#allocation3 + $0x3c] sm:$0xf]
      %v3915 = vld [vmem:[#allocation3 + $0x40] sm:$0xf]
      %v3916 = vld [vmem:[#allocation3 + $0x48] sm:$0xf]
      %v3917 = vld [vmem:[#allocation3 + $0x4c] sm:$0xf]
      %v3918 = vld [vmem:[#allocation3 + $0x54] sm:$0xf]
      %v3919 = vld [vmem:[#allocation3 + $0x58] sm:$0xf]
      %v3920 = vld [vmem:[#allocation3 + $0x60] sm:$0xf]
      %v3921 = vld [vmem:[#allocation3 + $0x64] sm:$0xf]
      %v3922 = vld [vmem:[#allocation3 + $0x6c] sm:$0xf]
      %v3923 = vld [vmem:[#allocation3 + $0x70] sm:$0xf]
      %v3924 = vld [vmem:[#allocation3 + $0x78] sm:$0xf]
      %v3925 = vld [vmem:[#allocation3 + $0x7c] sm:$0xf]
      %v3926 = vld [vmem:[#allocation3 + $0x84] sm:$0xf]
      %v3927 = vld [vmem:[#allocation3 + $0x88] sm:$0xf]
      %v3928 = vld [vmem:[#allocation3 + $0x90] sm:$0xf]
      %v3929 = vld [vmem:[#allocation3 + $0x94] sm:$0xf]
      %v3930 = vld [vmem:[#allocation3 + $0x9c] sm:$0xf]
      %v3931 = vld [vmem:[#allocation3 + $0xa0] sm:$0xf]
      %v3932 = vld [vmem:[#allocation3 + $0xa8] sm:$0xf]
      %v3933 = vld [vmem:[#allocation3 + $0xac] sm:$0xf]
      %v3934 = vld [vmem:[#allocation3 + $0xb4] sm:$0xf]
      %v3935 = vld [vmem:[#allocation3 + $0xb8] sm:$0xf]
      %v3936 = vld [vmem:[#allocation3 + $0x8] sm:$0x1]
      %v3937 = vld [vmem:[#allocation3 + $0x14] sm:$0x1]
      %v3938 = vld [vmem:[#allocation3 + $0x20] sm:$0x1]
      %v3939 = vld [vmem:[#allocation3 + $0x2c] sm:$0x1]
      %v3940 = vld [vmem:[#allocation3 + $0x38] sm:$0x1]
      %v3941 = vld [vmem:[#allocation3 + $0x44] sm:$0x1]
      %v3942 = vld [vmem:[#allocation3 + $0x50] sm:$0x1]
      %v3943 = vld [vmem:[#allocation3 + $0x5c] sm:$0x1]
      %v3944 = vld [vmem:[#allocation3 + $0x68] sm:$0x1]
      %v3945 = vld [vmem:[#allocation3 + $0x74] sm:$0x1]
      %v3946 = vld [vmem:[#allocation3 + $0x80] sm:$0x1]
      %v3947 = vld [vmem:[#allocation3 + $0x8c] sm:$0x1]
      %v3948 = vld [vmem:[#allocation3 + $0x98] sm:$0x1]
      %v3949 = vld [vmem:[#allocation3 + $0xa4] sm:$0x1]
      %v3950 = vld [vmem:[#allocation3 + $0xb0] sm:$0x1]
      %v3951 = vld [vmem:[#allocation3 + $0xbc] sm:$0x1]
      %v3952 = vld [vmem:[#allocation3] sm:$0xe]
      %v3953 = vld [vmem:[#allocation3 + $0xc] sm:$0xe]
      %v3954 = vld [vmem:[#allocation3 + $0x18] sm:$0xe]
      %v3955 = vld [vmem:[#allocation3 + $0x24] sm:$0xe]
      %v3956 = vld [vmem:[#allocation3 + $0x30] sm:$0xe]
      %v3957 = vld [vmem:[#allocation3 + $0x3c] sm:$0xe]
      %v3958 = vld [vmem:[#allocation3 + $0x48] sm:$0xe]
      %v3959 = vld [vmem:[#allocation3 + $0x54] sm:$0xe]
      %v3960 = vld [vmem:[#allocation3 + $0x60] sm:$0xe]
      %v3961 = vld [vmem:[#allocation3 + $0x6c] sm:$0xe]
      %v3962 = vld [vmem:[#allocation3 + $0x78] sm:$0xe]
      %v3963 = vld [vmem:[#allocation3 + $0x84] sm:$0xe]
      %v3964 = vld [vmem:[#allocation3 + $0x90] sm:$0xe]
      %v3965 = vld [vmem:[#allocation3 + $0x9c] sm:$0xe]
      %v3966 = vld [vmem:[#allocation3 + $0xa8] sm:$0xe]
      %v3967 = vld [vmem:[#allocation3 + $0xb4] sm:$0xe]
      %v4000 = vunpack.c.l.b16 %v3904
      %v4001 = vunpack.c.l.b16 %v3905
      %v4002 = vunpack.c.l.b16 %v3906
      %v4003 = vunpack.c.l.b16 %v3907
      %v4004 = vunpack.c.l.b16 %v3908
      %v4005 = vunpack.c.l.b16 %v3909
      %v4006 = vunpack.c.l.b16 %v3910
      %v4007 = vunpack.c.l.b16 %v3911
      %v4008 = vunpack.c.l.b16 %v3912
      %v4009 = vunpack.c.l.b16 %v3913
      %v4010 = vunpack.c.l.b16 %v3914
      %v4011 = vunpack.c.l.b16 %v3915
      %v4012 = vunpack.c.l.b16 %v3916
      %v4013 = vunpack.c.l.b16 %v3917
      %v4014 = vunpack.c.l.b16 %v3918
      %v4015 = vunpack.c.l.b16 %v3919
      %v4016 = vunpack.c.l.b16 %v3920
      %v4017 = vunpack.c.l.b16 %v3921
      %v4018 = vunpack.c.l.b16 %v3922
      %v4019 = vunpack.c.l.b16 %v3923
      %v4020 = vunpack.c.l.b16 %v3924
      %v4021 = vunpack.c.l.b16 %v3925
      %v4022 = vunpack.c.l.b16 %v3926
      %v4023 = vunpack.c.l.b16 %v3927
      %v4024 = vunpack.c.l.b16 %v3928
      %v4025 = vunpack.c.l.b16 %v3929
      %v4026 = vunpack.c.l.b16 %v3930
      %v4027 = vunpack.c.l.b16 %v3931
      %v4028 = vunpack.c.l.b16 %v3932
      %v4029 = vunpack.c.l.b16 %v3933
      %v4030 = vunpack.c.l.b16 %v3934
      %v4031 = vunpack.c.l.b16 %v3935
      %v4032 = vpack.c.b16 %v4001, %v4000
      %v4033 = vpack.c.b16 %v4003, %v4002
      %v4034 = vpack.c.b16 %v4005, %v4004
      %v4035 = vpack.c.b16 %v4007, %v4006
      %v4036 = vpack.c.b16 %v4009, %v4008
      %v4037 = vpack.c.b16 %v4011, %v4010
      %v4038 = vpack.c.b16 %v4013, %v4012
      %v4039 = vpack.c.b16 %v4015, %v4014
      %v4040 = vpack.c.b16 %v4017, %v4016
      %v4041 = vpack.c.b16 %v4019, %v4018
      %v4042 = vpack.c.b16 %v4021, %v4020
      %v4043 = vpack.c.b16 %v4023, %v4022
      %v4044 = vpack.c.b16 %v4025, %v4024
      %v4045 = vpack.c.b16 %v4027, %v4026
      %v4046 = vpack.c.b16 %v4029, %v4028
      %v4047 = vpack.c.b16 %v4031, %v4030
      %v4064 = vunpack.c.l.b16 %v3936
      %v4065 = vunpack.c.l.b16 %v3937
      %v4066 = vunpack.c.l.b16 %v3938
      %v4067 = vunpack.c.l.b16 %v3939
      %v4068 = vunpack.c.l.b16 %v3940
      %v4069 = vunpack.c.l.b16 %v3941
      %v4070 = vunpack.c.l.b16 %v3942
      %v4071 = vunpack.c.l.b16 %v3943
      %v4072 = vunpack.c.l.b16 %v3944
      %v4073 = vunpack.c.l.b16 %v3945
      %v4074 = vunpack.c.l.b16 %v3946
      %v4075 = vunpack.c.l.b16 %v3947
      %v4076 = vunpack.c.l.b16 %v3948
      %v4077 = vunpack.c.l.b16 %v3949
      %v4078 = vunpack.c.l.b16 %v3950
      %v4079 = vunpack.c.l.b16 %v3951
      %v4080 = vpack.c.b16 %v4064, %v4064
      %v4081 = vpack.c.b16 %v4065, %v4065
      %v4082 = vpack.c.b16 %v4066, %v4066
      %v4083 = vpack.c.b16 %v4067, %v4067
      %v4084 = vpack.c.b16 %v4068, %v4068
      %v4085 = vpack.c.b16 %v4069, %v4069
      %v4086 = vpack.c.b16 %v4070, %v4070
      %v4087 = vpack.c.b16 %v4071, %v4071
      %v4088 = vpack.c.b16 %v4072, %v4072
      %v4089 = vpack.c.b16 %v4073, %v4073
      %v4090 = vpack.c.b16 %v4074, %v4074
      %v4091 = vpack.c.b16 %v4075, %v4075
      %v4092 = vpack.c.b16 %v4076, %v4076
      %v4093 = vpack.c.b16 %v4077, %v4077
      %v4094 = vpack.c.b16 %v4078, %v4078
      %v4095 = vpack.c.b16 %v4079, %v4079
      %v4097 = vshrl.u32 %v4032, 16
      %v4099 = vshll.u32 %v4032, 16
      %v4101 = vrot.slane %v4099, 1
      %v4102 = vor.u32 %v4097, %v4101
      %v4104 = vshll.u32 %v4080, 16
      %v4106 = vrot.slane %v4104, 1
      %v4107 = vsel %vm1430, %v4102, %v4106
      %v4109 = vshrl.u32 %v4033, 16
      %v4111 = vshll.u32 %v4033, 16
      %v4113 = vrot.slane %v4111, 1
      %v4114 = vor.u32 %v4109, %v4113
      %v4116 = vshll.u32 %v4081, 16
      %v4118 = vrot.slane %v4116, 1
      %v4119 = vsel %vm1430, %v4114, %v4118
      %v4121 = vshrl.u32 %v4034, 16
      %v4123 = vshll.u32 %v4034, 16
      %v4125 = vrot.slane %v4123, 1
      %v4126 = vor.u32 %v4121, %v4125
      %v4128 = vshll.u32 %v4082, 16
      %v4130 = vrot.slane %v4128, 1
      %v4131 = vsel %vm1430, %v4126, %v4130
      %v4133 = vshrl.u32 %v4035, 16
      %v4135 = vshll.u32 %v4035, 16
      %v4137 = vrot.slane %v4135, 1
      %v4138 = vor.u32 %v4133, %v4137
      %v4140 = vshll.u32 %v4083, 16
      %v4142 = vrot.slane %v4140, 1
      %v4143 = vsel %vm1430, %v4138, %v4142
      %v4145 = vshrl.u32 %v4036, 16
      %v4147 = vshll.u32 %v4036, 16
      %v4149 = vrot.slane %v4147, 1
      %v4150 = vor.u32 %v4145, %v4149
      %v4152 = vshll.u32 %v4084, 16
      %v4154 = vrot.slane %v4152, 1
      %v4155 = vsel %vm1430, %v4150, %v4154
      %v4157 = vshrl.u32 %v4037, 16
      %v4159 = vshll.u32 %v4037, 16
      %v4161 = vrot.slane %v4159, 1
      %v4162 = vor.u32 %v4157, %v4161
      %v4164 = vshll.u32 %v4085, 16
      %v4166 = vrot.slane %v4164, 1
      %v4167 = vsel %vm1430, %v4162, %v4166
      %v4169 = vshrl.u32 %v4038, 16
      %v4171 = vshll.u32 %v4038, 16
      %v4173 = vrot.slane %v4171, 1
      %v4174 = vor.u32 %v4169, %v4173
      %v4176 = vshll.u32 %v4086, 16
      %v4178 = vrot.slane %v4176, 1
      %v4179 = vsel %vm1430, %v4174, %v4178
      %v4181 = vshrl.u32 %v4039, 16
      %v4183 = vshll.u32 %v4039, 16
      %v4185 = vrot.slane %v4183, 1
      %v4186 = vor.u32 %v4181, %v4185
      %v4188 = vshll.u32 %v4087, 16
      %v4190 = vrot.slane %v4188, 1
      %v4191 = vsel %vm1430, %v4186, %v4190
      %v4193 = vshrl.u32 %v4040, 16
      %v4195 = vshll.u32 %v4040, 16
      %v4197 = vrot.slane %v4195, 1
      %v4198 = vor.u32 %v4193, %v4197
      %v4200 = vshll.u32 %v4088, 16
      %v4202 = vrot.slane %v4200, 1
      %v4203 = vsel %vm1430, %v4198, %v4202
      %v4205 = vshrl.u32 %v4041, 16
      %v4207 = vshll.u32 %v4041, 16
      %v4209 = vrot.slane %v4207, 1
      %v4210 = vor.u32 %v4205, %v4209
      %v4212 = vshll.u32 %v4089, 16
      %v4214 = vrot.slane %v4212, 1
      %v4215 = vsel %vm1430, %v4210, %v4214
      %v4217 = vshrl.u32 %v4042, 16
      %v4219 = vshll.u32 %v4042, 16
      %v4221 = vrot.slane %v4219, 1
      %v4222 = vor.u32 %v4217, %v4221
      %v4224 = vshll.u32 %v4090, 16
      %v4226 = vrot.slane %v4224, 1
      %v4227 = vsel %vm1430, %v4222, %v4226
      %v4229 = vshrl.u32 %v4043, 16
      %v4231 = vshll.u32 %v4043, 16
      %v4233 = vrot.slane %v4231, 1
      %v4234 = vor.u32 %v4229, %v4233
      %v4236 = vshll.u32 %v4091, 16
      %v4238 = vrot.slane %v4236, 1
      %v4239 = vsel %vm1430, %v4234, %v4238
      %v4241 = vshrl.u32 %v4044, 16
      %v4243 = vshll.u32 %v4044, 16
      %v4245 = vrot.slane %v4243, 1
      %v4246 = vor.u32 %v4241, %v4245
      %v4248 = vshll.u32 %v4092, 16
      %v4250 = vrot.slane %v4248, 1
      %v4251 = vsel %vm1430, %v4246, %v4250
      %v4253 = vshrl.u32 %v4045, 16
      %v4255 = vshll.u32 %v4045, 16
      %v4257 = vrot.slane %v4255, 1
      %v4258 = vor.u32 %v4253, %v4257
      %v4260 = vshll.u32 %v4093, 16
      %v4262 = vrot.slane %v4260, 1
      %v4263 = vsel %vm1430, %v4258, %v4262
      %v4265 = vshrl.u32 %v4046, 16
      %v4267 = vshll.u32 %v4046, 16
      %v4269 = vrot.slane %v4267, 1
      %v4270 = vor.u32 %v4265, %v4269
      %v4272 = vshll.u32 %v4094, 16
      %v4274 = vrot.slane %v4272, 1
      %v4275 = vsel %vm1430, %v4270, %v4274
      %v4277 = vshrl.u32 %v4047, 16
      %v4279 = vshll.u32 %v4047, 16
      %v4281 = vrot.slane %v4279, 1
      %v4282 = vor.u32 %v4277, %v4281
      %v4284 = vshll.u32 %v4095, 16
      %v4286 = vrot.slane %v4284, 1
      %v4287 = vsel %vm1430, %v4282, %v4286
      %4288 = vrot.lane.b32.xlu0 %v4107, 4
      %v4289 = vpop.permute.xlu0 %4288
      %4290 = vrot.lane.b32.xlu0 %v4119, 4
      %v4291 = vpop.permute.xlu0 %4290
      %4292 = vrot.lane.b32.xlu0 %v4131, 4
      %v4293 = vpop.permute.xlu0 %4292
      %4294 = vrot.lane.b32.xlu0 %v4143, 4
      %v4295 = vpop.permute.xlu0 %4294
      %4296 = vrot.lane.b32.xlu0 %v4155, 4
      %v4297 = vpop.permute.xlu0 %4296
      %4298 = vrot.lane.b32.xlu0 %v4167, 4
      %v4299 = vpop.permute.xlu0 %4298
      %4300 = vrot.lane.b32.xlu0 %v4179, 4
      %v4301 = vpop.permute.xlu0 %4300
      %4302 = vrot.lane.b32.xlu0 %v4191, 4
      %v4303 = vpop.permute.xlu0 %4302
      %4304 = vrot.lane.b32.xlu0 %v4203, 4
      %v4305 = vpop.permute.xlu0 %4304
      %4306 = vrot.lane.b32.xlu0 %v4215, 4
      %v4307 = vpop.permute.xlu0 %4306
      %4308 = vrot.lane.b32.xlu0 %v4227, 4
      %v4309 = vpop.permute.xlu0 %4308
      %4310 = vrot.lane.b32.xlu0 %v4239, 4
      %v4311 = vpop.permute.xlu0 %4310
      %4312 = vrot.lane.b32.xlu0 %v4251, 4
      %v4313 = vpop.permute.xlu0 %4312
      %4314 = vrot.lane.b32.xlu0 %v4263, 4
      %v4315 = vpop.permute.xlu0 %4314
      %4316 = vrot.lane.b32.xlu0 %v4275, 4
      %v4317 = vpop.permute.xlu0 %4316
      %4318 = vrot.lane.b32.xlu0 %v4287, 4
      %v4319 = vpop.permute.xlu0 %4318
      %v4336 = vunpack.c.l.b16 %v3952
      %v4337 = vunpack.c.l.b16 %v3953
      %v4338 = vunpack.c.l.b16 %v3954
      %v4339 = vunpack.c.l.b16 %v3955
      %v4340 = vunpack.c.l.b16 %v3956
      %v4341 = vunpack.c.l.b16 %v3957
      %v4342 = vunpack.c.l.b16 %v3958
      %v4343 = vunpack.c.l.b16 %v3959
      %v4344 = vunpack.c.l.b16 %v3960
      %v4345 = vunpack.c.l.b16 %v3961
      %v4346 = vunpack.c.l.b16 %v3962
      %v4347 = vunpack.c.l.b16 %v3963
      %v4348 = vunpack.c.l.b16 %v3964
      %v4349 = vunpack.c.l.b16 %v3965
      %v4350 = vunpack.c.l.b16 %v3966
      %v4351 = vunpack.c.l.b16 %v3967
      %v4352 = vpack.c.b16 %v4001, %v4336
      %v4353 = vpack.c.b16 %v4003, %v4337
      %v4354 = vpack.c.b16 %v4005, %v4338
      %v4355 = vpack.c.b16 %v4007, %v4339
      %v4356 = vpack.c.b16 %v4009, %v4340
      %v4357 = vpack.c.b16 %v4011, %v4341
      %v4358 = vpack.c.b16 %v4013, %v4342
      %v4359 = vpack.c.b16 %v4015, %v4343
      %v4360 = vpack.c.b16 %v4017, %v4344
      %v4361 = vpack.c.b16 %v4019, %v4345
      %v4362 = vpack.c.b16 %v4021, %v4346
      %v4363 = vpack.c.b16 %v4023, %v4347
      %v4364 = vpack.c.b16 %v4025, %v4348
      %v4365 = vpack.c.b16 %v4027, %v4349
      %v4366 = vpack.c.b16 %v4029, %v4350
      %v4367 = vpack.c.b16 %v4031, %v4351
      %v4368 = vrot.slane %v4352, 1
      %v4369 = vrot.slane %v4080, 1
      %v4370 = vsel %vm1703, %v4368, %v4369
      %v4371 = vrot.slane %v4353, 1
      %v4372 = vrot.slane %v4081, 1
      %v4373 = vsel %vm1703, %v4371, %v4372
      %v4374 = vrot.slane %v4354, 1
      %v4375 = vrot.slane %v4082, 1
      %v4376 = vsel %vm1703, %v4374, %v4375
      %v4377 = vrot.slane %v4355, 1
      %v4378 = vrot.slane %v4083, 1
      %v4379 = vsel %vm1703, %v4377, %v4378
      %v4380 = vrot.slane %v4356, 1
      %v4381 = vrot.slane %v4084, 1
      %v4382 = vsel %vm1703, %v4380, %v4381
      %v4383 = vrot.slane %v4357, 1
      %v4384 = vrot.slane %v4085, 1
      %v4385 = vsel %vm1703, %v4383, %v4384
      %v4386 = vrot.slane %v4358, 1
      %v4387 = vrot.slane %v4086, 1
      %v4388 = vsel %vm1703, %v4386, %v4387
      %v4389 = vrot.slane %v4359, 1
      %v4390 = vrot.slane %v4087, 1
      %v4391 = vsel %vm1703, %v4389, %v4390
      %v4392 = vrot.slane %v4360, 1
      %v4393 = vrot.slane %v4088, 1
      %v4394 = vsel %vm1703, %v4392, %v4393
      %v4395 = vrot.slane %v4361, 1
      %v4396 = vrot.slane %v4089, 1
      %v4397 = vsel %vm1703, %v4395, %v4396
      %v4398 = vrot.slane %v4362, 1
      %v4399 = vrot.slane %v4090, 1
      %v4400 = vsel %vm1703, %v4398, %v4399
      %v4401 = vrot.slane %v4363, 1
      %v4402 = vrot.slane %v4091, 1
      %v4403 = vsel %vm1703, %v4401, %v4402
      %v4404 = vrot.slane %v4364, 1
      %v4405 = vrot.slane %v4092, 1
      %v4406 = vsel %vm1703, %v4404, %v4405
      %v4407 = vrot.slane %v4365, 1
      %v4408 = vrot.slane %v4093, 1
      %v4409 = vsel %vm1703, %v4407, %v4408
      %v4410 = vrot.slane %v4366, 1
      %v4411 = vrot.slane %v4094, 1
      %v4412 = vsel %vm1703, %v4410, %v4411
      %v4413 = vrot.slane %v4367, 1
      %v4414 = vrot.slane %v4095, 1
      %v4415 = vsel %vm1703, %v4413, %v4414
      %4416 = vrot.lane.b32.xlu0 %v4370, 8
      %v4417 = vpop.permute.xlu0 %4416
      %4418 = vrot.lane.b32.xlu0 %v4373, 8
      %v4419 = vpop.permute.xlu0 %4418
      %4420 = vrot.lane.b32.xlu0 %v4376, 8
      %v4421 = vpop.permute.xlu0 %4420
      %4422 = vrot.lane.b32.xlu0 %v4379, 8
      %v4423 = vpop.permute.xlu0 %4422
      %4424 = vrot.lane.b32.xlu0 %v4382, 8
      %v4425 = vpop.permute.xlu0 %4424
      %4426 = vrot.lane.b32.xlu0 %v4385, 8
      %v4427 = vpop.permute.xlu0 %4426
      %4428 = vrot.lane.b32.xlu0 %v4388, 8
      %v4429 = vpop.permute.xlu0 %4428
      %4430 = vrot.lane.b32.xlu0 %v4391, 8
      %v4431 = vpop.permute.xlu0 %4430
      %4432 = vrot.lane.b32.xlu0 %v4394, 8
      %v4433 = vpop.permute.xlu0 %4432
      %4434 = vrot.lane.b32.xlu0 %v4397, 8
      %v4435 = vpop.permute.xlu0 %4434
      %4436 = vrot.lane.b32.xlu0 %v4400, 8
      %v4437 = vpop.permute.xlu0 %4436
      %4438 = vrot.lane.b32.xlu0 %v4403, 8
      %v4439 = vpop.permute.xlu0 %4438
      %4440 = vrot.lane.b32.xlu0 %v4406, 8
      %v4441 = vpop.permute.xlu0 %4440
      %4442 = vrot.lane.b32.xlu0 %v4409, 8
      %v4443 = vpop.permute.xlu0 %4442
      %4444 = vrot.lane.b32.xlu0 %v4412, 8
      %v4445 = vpop.permute.xlu0 %4444
      %4446 = vrot.lane.b32.xlu0 %v4415, 8
      %v4447 = vpop.permute.xlu0 %4446
      %v4449 = vsel %vm1784, %v4032, %v4289
      %v4451 = vsel %vm1784, %v4033, %v4291
      %v4453 = vsel %vm1784, %v4034, %v4293
      %v4455 = vsel %vm1784, %v4035, %v4295
      %v4457 = vsel %vm1784, %v4036, %v4297
      %v4459 = vsel %vm1784, %v4037, %v4299
      %v4461 = vsel %vm1784, %v4038, %v4301
      %v4463 = vsel %vm1784, %v4039, %v4303
      %v4465 = vsel %vm1784, %v4040, %v4305
      %v4467 = vsel %vm1784, %v4041, %v4307
      %v4469 = vsel %vm1784, %v4042, %v4309
      %v4471 = vsel %vm1784, %v4043, %v4311
      %v4473 = vsel %vm1784, %v4044, %v4313
      %v4475 = vsel %vm1784, %v4045, %v4315
      %v4477 = vsel %vm1784, %v4046, %v4317
      %v4479 = vsel %vm1784, %v4047, %v4319
      %v4481 = vsel %vm1817, %v4449, %v4417
      %v4483 = vsel %vm1817, %v4451, %v4419
      %v4485 = vsel %vm1817, %v4453, %v4421
      %v4487 = vsel %vm1817, %v4455, %v4423
      %v4489 = vsel %vm1817, %v4457, %v4425
      %v4491 = vsel %vm1817, %v4459, %v4427
      %v4493 = vsel %vm1817, %v4461, %v4429
      %v4495 = vsel %vm1817, %v4463, %v4431
      %v4497 = vsel %vm1817, %v4465, %v4433
      %v4499 = vsel %vm1817, %v4467, %v4435
      %v4501 = vsel %vm1817, %v4469, %v4437
      %v4503 = vsel %vm1817, %v4471, %v4439
      %v4505 = vsel %vm1817, %v4473, %v4441
      %v4507 = vsel %vm1817, %v4475, %v4443
      %v4509 = vsel %vm1817, %v4477, %v4445
      %v4511 = vsel %vm1817, %v4479, %v4447
      %v4512 = vld [vmem:[%s3] sm:$0xf]
      %v4513 = vld [vmem:[%s3 + $0x4] sm:$0x3]
      %v4516 = vunpack.c.l.b16 %v4512
      %v4517 = vunpack.c.l.b16 %v4513
      %v4518 = vpack.c.b16 %v4517, %v4516
      %v4519 = vsel %vm1857, %v4481, 0
      %v4521 = vsel %vm1857, %v4483, 0
      %v4523 = vsel %vm1857, %v4485, 0
      %v4525 = vsel %vm1857, %v4487, 0
      %v4527 = vsel %vm1857, %v4489, 0
      %v4529 = vsel %vm1857, %v4491, 0
      %v4531 = vsel %vm1857, %v4493, 0
      %v4533 = vsel %vm1857, %v4495, 0
      %v4535 = vsel %vm1857, %v4497, 0
      %v4537 = vsel %vm1857, %v4499, 0
      %v4539 = vsel %vm1857, %v4501, 0
      %v4541 = vsel %vm1857, %v4503, 0
      %v4543 = vsel %vm1857, %v4505, 0
      %v4545 = vsel %vm1857, %v4507, 0
      %v4547 = vsel %vm1857, %v4509, 0
      %v4549 = vsel %vm1857, %v4511, 0
      %v4552 = vsel %vm1890, %v4518, 0
      %4554 = vmatprep.subr.bf16.mxu0 0
      %4555 = vmatpush1.bf16.msra.mxu0 0
      %4556 = vmatprep.subr.bf16.mxu0 0
      %4557 = vmatpush1.bf16.msra.mxu0 0
      %4558 = vmatprep.subr.bf16.mxu0 0
      %4559 = vmatpush1.bf16.msra.mxu0 0
      %4560 = vmatprep.subr.bf16.mxu0 0
      %4561 = vmatpush1.bf16.msra.mxu0 0
      %4562 = vmatprep.subr.bf16.mxu0 0
      %4563 = vmatpush1.bf16.msra.mxu0 0
      %4564 = vmatprep.subr.bf16.mxu0 0
      %4565 = vmatpush1.bf16.msra.mxu0 0
      %4566 = vmatprep.subr.bf16.mxu0 0
      %4567 = vmatpush1.bf16.msra.mxu0 0
      %4568 = vmatprep.subr.bf16.mxu0 0
      %4569 = vmatpush1.bf16.msra.mxu0 %v4552
      %4570 = vmatprep.subr.bf16.mxu0 0
      %4571 = vmatpush2.bf16.msra.mxu0 0
      %4572 = vmatprep.subr.bf16.mxu0 0
      %4573 = vmatpush2.bf16.msra.mxu0 0
      %4574 = vmatprep.subr.bf16.mxu0 0
      %4575 = vmatpush2.bf16.msra.mxu0 0
      %4576 = vmatprep.subr.bf16.mxu0 0
      %4577 = vmatpush2.bf16.msra.mxu0 0
      %4578 = vmatprep.subr.bf16.mxu0 0
      %4579 = vmatpush2.bf16.msra.mxu0 0
      %4580 = vmatprep.subr.bf16.mxu0 0
      %4581 = vmatpush2.bf16.msra.mxu0 0
      %4582 = vmatprep.subr.bf16.mxu0 0
      %4583 = vmatpush2.bf16.msra.mxu0 0
      %4584 = vmatprep.subr.bf16.mxu0 0
      %4585 = vmatpush2.bf16.msra.mxu0 0
      %4586 = vmatprep.mubr.bf16.mxu0 0
      %4587 = vmatmul.mubr.bf16.gmra.mxu0 %v4519
      %v4588 = vpop.f32.mrf.mxu0
      %v4589 = vadd.f32 0.0, %v4588
      %v4590 = vpop.f32.mrf.mxu0
      %v4591 = vpop.f32.mrf.mxu0
      %v4592 = vadd.f32 0.0, %v4591
      %v4593 = vpop.f32.mrf.mxu0
      %4594 = vmatprep.mubr.bf16.mxu0 0
      %4595 = vmatmul.mubr.bf16.gmra.mxu0 %v4521
      %v4596 = vpop.f32.mrf.mxu0
      %v4597 = vadd.f32 0.0, %v4596
      %v4598 = vpop.f32.mrf.mxu0
      %v4599 = vpop.f32.mrf.mxu0
      %v4600 = vadd.f32 0.0, %v4599
      %v4601 = vpop.f32.mrf.mxu0
      %4602 = vmatprep.mubr.bf16.mxu0 0
      %4603 = vmatmul.mubr.bf16.gmra.mxu0 %v4523
      %v4604 = vpop.f32.mrf.mxu0
      %v4605 = vadd.f32 0.0, %v4604
      %v4606 = vpop.f32.mrf.mxu0
      %v4607 = vpop.f32.mrf.mxu0
      %v4608 = vadd.f32 0.0, %v4607
      %v4609 = vpop.f32.mrf.mxu0
      %4610 = vmatprep.mubr.bf16.mxu0 0
      %4611 = vmatmul.mubr.bf16.gmra.mxu0 %v4525
      %v4612 = vpop.f32.mrf.mxu0
      %v4613 = vadd.f32 0.0, %v4612
      %v4614 = vpop.f32.mrf.mxu0
      %v4615 = vpop.f32.mrf.mxu0
      %v4616 = vadd.f32 0.0, %v4615
      %v4617 = vpop.f32.mrf.mxu0
      %4618 = vmatprep.mubr.bf16.mxu0 0
      %4619 = vmatmul.mubr.bf16.gmra.mxu0 %v4527
      %v4620 = vpop.f32.mrf.mxu0
      %v4621 = vadd.f32 0.0, %v4620
      %v4622 = vpop.f32.mrf.mxu0
      %v4623 = vpop.f32.mrf.mxu0
      %v4624 = vadd.f32 0.0, %v4623
      %v4625 = vpop.f32.mrf.mxu0
      %4626 = vmatprep.mubr.bf16.mxu0 0
      %4627 = vmatmul.mubr.bf16.gmra.mxu0 %v4529
      %v4628 = vpop.f32.mrf.mxu0
      %v4629 = vadd.f32 0.0, %v4628
      %v4630 = vpop.f32.mrf.mxu0
      %v4631 = vpop.f32.mrf.mxu0
      %v4632 = vadd.f32 0.0, %v4631
      %v4633 = vpop.f32.mrf.mxu0
      %4634 = vmatprep.mubr.bf16.mxu0 0
      %4635 = vmatmul.mubr.bf16.gmra.mxu0 %v4531
      %v4636 = vpop.f32.mrf.mxu0
      %v4637 = vadd.f32 0.0, %v4636
      %v4638 = vpop.f32.mrf.mxu0
      %v4639 = vpop.f32.mrf.mxu0
      %v4640 = vadd.f32 0.0, %v4639
      %v4641 = vpop.f32.mrf.mxu0
      %4642 = vmatprep.mubr.bf16.mxu0 0
      %4643 = vmatmul.mubr.bf16.gmra.mxu0 %v4533
      %v4644 = vpop.f32.mrf.mxu0
      %v4645 = vadd.f32 0.0, %v4644
      %v4646 = vpop.f32.mrf.mxu0
      %v4647 = vpop.f32.mrf.mxu0
      %v4648 = vadd.f32 0.0, %v4647
      %v4649 = vpop.f32.mrf.mxu0
      %4650 = vmatprep.mubr.bf16.mxu0 0
      %4651 = vmatmul.mubr.bf16.gmra.mxu0 %v4535
      %v4652 = vpop.f32.mrf.mxu0
      %v4653 = vadd.f32 0.0, %v4652
      %v4654 = vpop.f32.mrf.mxu0
      %v4655 = vpop.f32.mrf.mxu0
      %v4656 = vadd.f32 0.0, %v4655
      %v4657 = vpop.f32.mrf.mxu0
      %4658 = vmatprep.mubr.bf16.mxu0 0
      %4659 = vmatmul.mubr.bf16.gmra.mxu0 %v4537
      %v4660 = vpop.f32.mrf.mxu0
      %v4661 = vadd.f32 0.0, %v4660
      %v4662 = vpop.f32.mrf.mxu0
      %v4663 = vpop.f32.mrf.mxu0
      %v4664 = vadd.f32 0.0, %v4663
      %v4665 = vpop.f32.mrf.mxu0
      %4666 = vmatprep.mubr.bf16.mxu0 0
      %4667 = vmatmul.mubr.bf16.gmra.mxu0 %v4539
      %v4668 = vpop.f32.mrf.mxu0
      %v4669 = vadd.f32 0.0, %v4668
      %v4670 = vpop.f32.mrf.mxu0
      %v4671 = vpop.f32.mrf.mxu0
      %v4672 = vadd.f32 0.0, %v4671
      %v4673 = vpop.f32.mrf.mxu0
      %4674 = vmatprep.mubr.bf16.mxu0 0
      %4675 = vmatmul.mubr.bf16.gmra.mxu0 %v4541
      %v4676 = vpop.f32.mrf.mxu0
      %v4677 = vadd.f32 0.0, %v4676
      %v4678 = vpop.f32.mrf.mxu0
      %v4679 = vpop.f32.mrf.mxu0
      %v4680 = vadd.f32 0.0, %v4679
      %v4681 = vpop.f32.mrf.mxu0
      %4682 = vmatprep.mubr.bf16.mxu0 0
      %4683 = vmatmul.mubr.bf16.gmra.mxu0 %v4543
      %v4684 = vpop.f32.mrf.mxu0
      %v4685 = vadd.f32 0.0, %v4684
      %v4686 = vpop.f32.mrf.mxu0
      %v4687 = vpop.f32.mrf.mxu0
      %v4688 = vadd.f32 0.0, %v4687
      %v4689 = vpop.f32.mrf.mxu0
      %4690 = vmatprep.mubr.bf16.mxu0 0
      %4691 = vmatmul.mubr.bf16.gmra.mxu0 %v4545
      %v4692 = vpop.f32.mrf.mxu0
      %v4693 = vadd.f32 0.0, %v4692
      %v4694 = vpop.f32.mrf.mxu0
      %v4695 = vpop.f32.mrf.mxu0
      %v4696 = vadd.f32 0.0, %v4695
      %v4697 = vpop.f32.mrf.mxu0
      %4698 = vmatprep.mubr.bf16.mxu0 0
      %4699 = vmatmul.mubr.bf16.gmra.mxu0 %v4547
      %v4700 = vpop.f32.mrf.mxu0
      %v4701 = vadd.f32 0.0, %v4700
      %v4702 = vpop.f32.mrf.mxu0
      %v4703 = vpop.f32.mrf.mxu0
      %v4704 = vadd.f32 0.0, %v4703
      %v4705 = vpop.f32.mrf.mxu0
      %4706 = vmatprep.mubr.bf16.mxu0 0
      %4707 = vmatmul.mubr.bf16.gmra.mxu0 %v4549
      %v4708 = vpop.f32.mrf.mxu0
      %v4709 = vadd.f32 0.0, %v4708
      %v4710 = vpop.f32.mrf.mxu0
      %v4711 = vpop.f32.mrf.mxu0
      %v4712 = vadd.f32 0.0, %v4711
      %v4713 = vpop.f32.mrf.mxu0
      %4714 = vdwg.mxu0
      %v4715 = vld [vmem:[#allocation4] sm:$0xff]
      %v4716 = vld [vmem:[#allocation4 + $0x8] sm:$0xff]
      %v4717 = vld [vmem:[#allocation4 + $0x10] sm:$0xff]
      %v4718 = vld [vmem:[#allocation4 + $0x18] sm:$0xff]
      %v4719 = vld [vmem:[#allocation4 + $0x20] sm:$0xff]
      %v4720 = vld [vmem:[#allocation4 + $0x28] sm:$0xff]
      %v4721 = vld [vmem:[#allocation4 + $0x30] sm:$0xff]
      %v4722 = vld [vmem:[#allocation4 + $0x38] sm:$0xff]
      %v4723 = vld [vmem:[#allocation4 + $0x40] sm:$0xff]
      %v4724 = vld [vmem:[#allocation4 + $0x48] sm:$0xff]
      %v4725 = vld [vmem:[#allocation4 + $0x50] sm:$0xff]
      %v4726 = vld [vmem:[#allocation4 + $0x58] sm:$0xff]
      %v4727 = vld [vmem:[#allocation4 + $0x60] sm:$0xff]
      %v4728 = vld [vmem:[#allocation4 + $0x68] sm:$0xff]
      %v4729 = vld [vmem:[#allocation4 + $0x70] sm:$0xff]
      %v4730 = vld [vmem:[#allocation4 + $0x78] sm:$0xff]
      %v4731 = vld [vmem:[#allocation4 + $0x80] sm:$0xff]
      %v4732 = vld [vmem:[#allocation4 + $0x88] sm:$0xff]
      %v4733 = vld [vmem:[#allocation4 + $0x90] sm:$0xff]
      %v4734 = vld [vmem:[#allocation4 + $0x98] sm:$0xff]
      %v4735 = vld [vmem:[#allocation4 + $0xa0] sm:$0xff]
      %v4736 = vld [vmem:[#allocation4 + $0xa8] sm:$0xff]
      %v4737 = vld [vmem:[#allocation4 + $0xb0] sm:$0xff]
      %v4738 = vld [vmem:[#allocation4 + $0xb8] sm:$0xff]
      %v4739 = vld [vmem:[#allocation4 + $0xc0] sm:$0xff]
      %v4740 = vld [vmem:[#allocation4 + $0xc8] sm:$0xff]
      %v4741 = vld [vmem:[#allocation4 + $0xd0] sm:$0xff]
      %v4742 = vld [vmem:[#allocation4 + $0xd8] sm:$0xff]
      %v4743 = vld [vmem:[#allocation4 + $0xe0] sm:$0xff]
      %v4744 = vld [vmem:[#allocation4 + $0xe8] sm:$0xff]
      %v4745 = vld [vmem:[#allocation4 + $0xf0] sm:$0xff]
      %v4746 = vld [vmem:[#allocation4 + $0xf8] sm:$0xff]
      %v4747 = vadd.f32 %v4715, %v4589
      %v4748 = vadd.f32 %v4716, %v4592
      %v4749 = vadd.f32 %v4717, %v4597
      %v4750 = vadd.f32 %v4718, %v4600
      %v4751 = vadd.f32 %v4719, %v4605
      %v4752 = vadd.f32 %v4720, %v4608
      %v4753 = vadd.f32 %v4721, %v4613
      %v4754 = vadd.f32 %v4722, %v4616
      %v4755 = vadd.f32 %v4723, %v4621
      %v4756 = vadd.f32 %v4724, %v4624
      %v4757 = vadd.f32 %v4725, %v4629
      %v4758 = vadd.f32 %v4726, %v4632
      %v4759 = vadd.f32 %v4727, %v4637
      %v4760 = vadd.f32 %v4728, %v4640
      %v4761 = vadd.f32 %v4729, %v4645
      %v4762 = vadd.f32 %v4730, %v4648
      %v4763 = vadd.f32 %v4731, %v4653
      %v4764 = vadd.f32 %v4732, %v4656
      %v4765 = vadd.f32 %v4733, %v4661
      %v4766 = vadd.f32 %v4734, %v4664
      %v4767 = vadd.f32 %v4735, %v4669
      %v4768 = vadd.f32 %v4736, %v4672
      %v4769 = vadd.f32 %v4737, %v4677
      %v4770 = vadd.f32 %v4738, %v4680
      %v4771 = vadd.f32 %v4739, %v4685
      %v4772 = vadd.f32 %v4740, %v4688
      %v4773 = vadd.f32 %v4741, %v4693
      %v4774 = vadd.f32 %v4742, %v4696
      %v4775 = vadd.f32 %v4743, %v4701
      %v4776 = vadd.f32 %v4744, %v4704
      %v4777 = vadd.f32 %v4745, %v4709
      %v4778 = vadd.f32 %v4746, %v4712
      %4779 = vst.msk [vmem:[#allocation4] sm:$0xff] %vm1784, %v4747
      %4780 = vst.msk [vmem:[#allocation4 + $0x8] sm:$0xff] %vm1784, %v4748
      %4781 = vst.msk [vmem:[#allocation4 + $0x10] sm:$0xff] %vm1784, %v4749
      %4782 = vst.msk [vmem:[#allocation4 + $0x18] sm:$0xff] %vm1784, %v4750
      %4783 = vst.msk [vmem:[#allocation4 + $0x20] sm:$0xff] %vm1784, %v4751
      %4784 = vst.msk [vmem:[#allocation4 + $0x28] sm:$0xff] %vm1784, %v4752
      %4785 = vst.msk [vmem:[#allocation4 + $0x30] sm:$0xff] %vm1784, %v4753
      %4786 = vst.msk [vmem:[#allocation4 + $0x38] sm:$0xff] %vm1784, %v4754
      %4787 = vst.msk [vmem:[#allocation4 + $0x40] sm:$0xff] %vm1784, %v4755
      %4788 = vst.msk [vmem:[#allocation4 + $0x48] sm:$0xff] %vm1784, %v4756
      %4789 = vst.msk [vmem:[#allocation4 + $0x50] sm:$0xff] %vm1784, %v4757
      %4790 = vst.msk [vmem:[#allocation4 + $0x58] sm:$0xff] %vm1784, %v4758
      %4791 = vst.msk [vmem:[#allocation4 + $0x60] sm:$0xff] %vm1784, %v4759
      %4792 = vst.msk [vmem:[#allocation4 + $0x68] sm:$0xff] %vm1784, %v4760
      %4793 = vst.msk [vmem:[#allocation4 + $0x70] sm:$0xff] %vm1784, %v4761
      %4794 = vst.msk [vmem:[#allocation4 + $0x78] sm:$0xff] %vm1784, %v4762
      %4795 = vst.msk [vmem:[#allocation4 + $0x80] sm:$0xff] %vm1784, %v4763
      %4796 = vst.msk [vmem:[#allocation4 + $0x88] sm:$0xff] %vm1784, %v4764
      %4797 = vst.msk [vmem:[#allocation4 + $0x90] sm:$0xff] %vm1784, %v4765
      %4798 = vst.msk [vmem:[#allocation4 + $0x98] sm:$0xff] %vm1784, %v4766
      %4799 = vst.msk [vmem:[#allocation4 + $0xa0] sm:$0xff] %vm1784, %v4767
      %4800 = vst.msk [vmem:[#allocation4 + $0xa8] sm:$0xff] %vm1784, %v4768
      %4801 = vst.msk [vmem:[#allocation4 + $0xb0] sm:$0xff] %vm1784, %v4769
      %4802 = vst.msk [vmem:[#allocation4 + $0xb8] sm:$0xff] %vm1784, %v4770
      %4803 = vst.msk [vmem:[#allocation4 + $0xc0] sm:$0xff] %vm1784, %v4771
      %4804 = vst.msk [vmem:[#allocation4 + $0xc8] sm:$0xff] %vm1784, %v4772
      %4805 = vst.msk [vmem:[#allocation4 + $0xd0] sm:$0xff] %vm1784, %v4773
      %4806 = vst.msk [vmem:[#allocation4 + $0xd8] sm:$0xff] %vm1784, %v4774
      %4807 = vst.msk [vmem:[#allocation4 + $0xe0] sm:$0xff] %vm1784, %v4775
      %4808 = vst.msk [vmem:[#allocation4 + $0xe8] sm:$0xff] %vm1784, %v4776
      %4809 = vst.msk [vmem:[#allocation4 + $0xf0] sm:$0xff] %vm1784, %v4777
      %4810 = vst.msk [vmem:[#allocation4 + $0xf8] sm:$0xff] %vm1784, %v4778
      %v4811 = vld [vmem:[%s1182] sm:$0xf]
      %v4812 = vld [vmem:[%s1182 + $0x4] sm:$0xf]
      %v4813 = vld [vmem:[%s1182 + $0xc] sm:$0xf]
      %v4814 = vld [vmem:[%s1182 + $0x10] sm:$0xf]
      %v4815 = vld [vmem:[%s1182 + $0x18] sm:$0xf]
      %v4816 = vld [vmem:[%s1182 + $0x1c] sm:$0xf]
      %v4817 = vld [vmem:[%s1182 + $0x24] sm:$0xf]
      %v4818 = vld [vmem:[%s1182 + $0x28] sm:$0xf]
      %v4819 = vld [vmem:[%s1182 + $0x30] sm:$0xf]
      %v4820 = vld [vmem:[%s1182 + $0x34] sm:$0xf]
      %v4821 = vld [vmem:[%s1182 + $0x3c] sm:$0xf]
      %v4822 = vld [vmem:[%s1182 + $0x40] sm:$0xf]
      %v4823 = vld [vmem:[%s1182 + $0x48] sm:$0xf]
      %v4824 = vld [vmem:[%s1182 + $0x4c] sm:$0xf]
      %v4825 = vld [vmem:[%s1182 + $0x54] sm:$0xf]
      %v4826 = vld [vmem:[%s1182 + $0x58] sm:$0xf]
      %v4827 = vld [vmem:[%s1182 + $0x60] sm:$0xf]
      %v4828 = vld [vmem:[%s1182 + $0x64] sm:$0xf]
      %v4829 = vld [vmem:[%s1182 + $0x6c] sm:$0xf]
      %v4830 = vld [vmem:[%s1182 + $0x70] sm:$0xf]
      %v4831 = vld [vmem:[%s1182 + $0x78] sm:$0xf]
      %v4832 = vld [vmem:[%s1182 + $0x7c] sm:$0xf]
      %v4833 = vld [vmem:[%s1182 + $0x84] sm:$0xf]
      %v4834 = vld [vmem:[%s1182 + $0x88] sm:$0xf]
      %v4835 = vld [vmem:[%s1182 + $0x90] sm:$0xf]
      %v4836 = vld [vmem:[%s1182 + $0x94] sm:$0xf]
      %v4837 = vld [vmem:[%s1182 + $0x9c] sm:$0xf]
      %v4838 = vld [vmem:[%s1182 + $0xa0] sm:$0xf]
      %v4839 = vld [vmem:[%s1182 + $0xa8] sm:$0xf]
      %v4840 = vld [vmem:[%s1182 + $0xac] sm:$0xf]
      %v4841 = vld [vmem:[%s1182 + $0xb4] sm:$0xf]
      %v4842 = vld [vmem:[%s1182 + $0xb8] sm:$0xf]
      %v4843 = vld [vmem:[%s1182 + $0x8] sm:$0x1]
      %v4844 = vld [vmem:[%s1182 + $0x14] sm:$0x1]
      %v4845 = vld [vmem:[%s1182 + $0x20] sm:$0x1]
      %v4846 = vld [vmem:[%s1182 + $0x2c] sm:$0x1]
      %v4847 = vld [vmem:[%s1182 + $0x38] sm:$0x1]
      %v4848 = vld [vmem:[%s1182 + $0x44] sm:$0x1]
      %v4849 = vld [vmem:[%s1182 + $0x50] sm:$0x1]
      %v4850 = vld [vmem:[%s1182 + $0x5c] sm:$0x1]
      %v4851 = vld [vmem:[%s1182 + $0x68] sm:$0x1]
      %v4852 = vld [vmem:[%s1182 + $0x74] sm:$0x1]
      %v4853 = vld [vmem:[%s1182 + $0x80] sm:$0x1]
      %v4854 = vld [vmem:[%s1182 + $0x8c] sm:$0x1]
      %v4855 = vld [vmem:[%s1182 + $0x98] sm:$0x1]
      %v4856 = vld [vmem:[%s1182 + $0xa4] sm:$0x1]
      %v4857 = vld [vmem:[%s1182 + $0xb0] sm:$0x1]
      %v4858 = vld [vmem:[%s1182 + $0xbc] sm:$0x1]
      %v4859 = vld [vmem:[%s1182] sm:$0xe]
      %v4860 = vld [vmem:[%s1182 + $0xc] sm:$0xe]
      %v4861 = vld [vmem:[%s1182 + $0x18] sm:$0xe]
      %v4862 = vld [vmem:[%s1182 + $0x24] sm:$0xe]
      %v4863 = vld [vmem:[%s1182 + $0x30] sm:$0xe]
      %v4864 = vld [vmem:[%s1182 + $0x3c] sm:$0xe]
      %v4865 = vld [vmem:[%s1182 + $0x48] sm:$0xe]
      %v4866 = vld [vmem:[%s1182 + $0x54] sm:$0xe]
      %v4867 = vld [vmem:[%s1182 + $0x60] sm:$0xe]
      %v4868 = vld [vmem:[%s1182 + $0x6c] sm:$0xe]
      %v4869 = vld [vmem:[%s1182 + $0x78] sm:$0xe]
      %v4870 = vld [vmem:[%s1182 + $0x84] sm:$0xe]
      %v4871 = vld [vmem:[%s1182 + $0x90] sm:$0xe]
      %v4872 = vld [vmem:[%s1182 + $0x9c] sm:$0xe]
      %v4873 = vld [vmem:[%s1182 + $0xa8] sm:$0xe]
      %v4874 = vld [vmem:[%s1182 + $0xb4] sm:$0xe]
      %v4907 = vunpack.c.l.b16 %v4811
      %v4908 = vunpack.c.l.b16 %v4812
      %v4909 = vunpack.c.l.b16 %v4813
      %v4910 = vunpack.c.l.b16 %v4814
      %v4911 = vunpack.c.l.b16 %v4815
      %v4912 = vunpack.c.l.b16 %v4816
      %v4913 = vunpack.c.l.b16 %v4817
      %v4914 = vunpack.c.l.b16 %v4818
      %v4915 = vunpack.c.l.b16 %v4819
      %v4916 = vunpack.c.l.b16 %v4820
      %v4917 = vunpack.c.l.b16 %v4821
      %v4918 = vunpack.c.l.b16 %v4822
      %v4919 = vunpack.c.l.b16 %v4823
      %v4920 = vunpack.c.l.b16 %v4824
      %v4921 = vunpack.c.l.b16 %v4825
      %v4922 = vunpack.c.l.b16 %v4826
      %v4923 = vunpack.c.l.b16 %v4827
      %v4924 = vunpack.c.l.b16 %v4828
      %v4925 = vunpack.c.l.b16 %v4829
      %v4926 = vunpack.c.l.b16 %v4830
      %v4927 = vunpack.c.l.b16 %v4831
      %v4928 = vunpack.c.l.b16 %v4832
      %v4929 = vunpack.c.l.b16 %v4833
      %v4930 = vunpack.c.l.b16 %v4834
      %v4931 = vunpack.c.l.b16 %v4835
      %v4932 = vunpack.c.l.b16 %v4836
      %v4933 = vunpack.c.l.b16 %v4837
      %v4934 = vunpack.c.l.b16 %v4838
      %v4935 = vunpack.c.l.b16 %v4839
      %v4936 = vunpack.c.l.b16 %v4840
      %v4937 = vunpack.c.l.b16 %v4841
      %v4938 = vunpack.c.l.b16 %v4842
      %v4939 = vpack.c.b16 %v4908, %v4907
      %v4940 = vpack.c.b16 %v4910, %v4909
      %v4941 = vpack.c.b16 %v4912, %v4911
      %v4942 = vpack.c.b16 %v4914, %v4913
      %v4943 = vpack.c.b16 %v4916, %v4915
      %v4944 = vpack.c.b16 %v4918, %v4917
      %v4945 = vpack.c.b16 %v4920, %v4919
      %v4946 = vpack.c.b16 %v4922, %v4921
      %v4947 = vpack.c.b16 %v4924, %v4923
      %v4948 = vpack.c.b16 %v4926, %v4925
      %v4949 = vpack.c.b16 %v4928, %v4927
      %v4950 = vpack.c.b16 %v4930, %v4929
      %v4951 = vpack.c.b16 %v4932, %v4931
      %v4952 = vpack.c.b16 %v4934, %v4933
      %v4953 = vpack.c.b16 %v4936, %v4935
      %v4954 = vpack.c.b16 %v4938, %v4937
      %v4971 = vunpack.c.l.b16 %v4843
      %v4972 = vunpack.c.l.b16 %v4844
      %v4973 = vunpack.c.l.b16 %v4845
      %v4974 = vunpack.c.l.b16 %v4846
      %v4975 = vunpack.c.l.b16 %v4847
      %v4976 = vunpack.c.l.b16 %v4848
      %v4977 = vunpack.c.l.b16 %v4849
      %v4978 = vunpack.c.l.b16 %v4850
      %v4979 = vunpack.c.l.b16 %v4851
      %v4980 = vunpack.c.l.b16 %v4852
      %v4981 = vunpack.c.l.b16 %v4853
      %v4982 = vunpack.c.l.b16 %v4854
      %v4983 = vunpack.c.l.b16 %v4855
      %v4984 = vunpack.c.l.b16 %v4856
      %v4985 = vunpack.c.l.b16 %v4857
      %v4986 = vunpack.c.l.b16 %v4858
      %v4987 = vpack.c.b16 %v4971, %v4971
      %v4988 = vpack.c.b16 %v4972, %v4972
      %v4989 = vpack.c.b16 %v4973, %v4973
      %v4990 = vpack.c.b16 %v4974, %v4974
      %v4991 = vpack.c.b16 %v4975, %v4975
      %v4992 = vpack.c.b16 %v4976, %v4976
      %v4993 = vpack.c.b16 %v4977, %v4977
      %v4994 = vpack.c.b16 %v4978, %v4978
      %v4995 = vpack.c.b16 %v4979, %v4979
      %v4996 = vpack.c.b16 %v4980, %v4980
      %v4997 = vpack.c.b16 %v4981, %v4981
      %v4998 = vpack.c.b16 %v4982, %v4982
      %v4999 = vpack.c.b16 %v4983, %v4983
      %v5000 = vpack.c.b16 %v4984, %v4984
      %v5001 = vpack.c.b16 %v4985, %v4985
      %v5002 = vpack.c.b16 %v4986, %v4986
      %v5004 = vshrl.u32 %v4939, 16
      %v5006 = vshll.u32 %v4939, 16
      %v5008 = vrot.slane %v5006, 1
      %v5009 = vor.u32 %v5004, %v5008
      %v5011 = vshll.u32 %v4987, 16
      %v5013 = vrot.slane %v5011, 1
      %v5014 = vsel %vm1430, %v5009, %v5013
      %v5016 = vshrl.u32 %v4940, 16
      %v5018 = vshll.u32 %v4940, 16
      %v5020 = vrot.slane %v5018, 1
      %v5021 = vor.u32 %v5016, %v5020
      %v5023 = vshll.u32 %v4988, 16
      %v5025 = vrot.slane %v5023, 1
      %v5026 = vsel %vm1430, %v5021, %v5025
      %v5028 = vshrl.u32 %v4941, 16
      %v5030 = vshll.u32 %v4941, 16
      %v5032 = vrot.slane %v5030, 1
      %v5033 = vor.u32 %v5028, %v5032
      %v5035 = vshll.u32 %v4989, 16
      %v5037 = vrot.slane %v5035, 1
      %v5038 = vsel %vm1430, %v5033, %v5037
      %v5040 = vshrl.u32 %v4942, 16
      %v5042 = vshll.u32 %v4942, 16
      %v5044 = vrot.slane %v5042, 1
      %v5045 = vor.u32 %v5040, %v5044
      %v5047 = vshll.u32 %v4990, 16
      %v5049 = vrot.slane %v5047, 1
      %v5050 = vsel %vm1430, %v5045, %v5049
      %v5052 = vshrl.u32 %v4943, 16
      %v5054 = vshll.u32 %v4943, 16
      %v5056 = vrot.slane %v5054, 1
      %v5057 = vor.u32 %v5052, %v5056
      %v5059 = vshll.u32 %v4991, 16
      %v5061 = vrot.slane %v5059, 1
      %v5062 = vsel %vm1430, %v5057, %v5061
      %v5064 = vshrl.u32 %v4944, 16
      %v5066 = vshll.u32 %v4944, 16
      %v5068 = vrot.slane %v5066, 1
      %v5069 = vor.u32 %v5064, %v5068
      %v5071 = vshll.u32 %v4992, 16
      %v5073 = vrot.slane %v5071, 1
      %v5074 = vsel %vm1430, %v5069, %v5073
      %v5076 = vshrl.u32 %v4945, 16
      %v5078 = vshll.u32 %v4945, 16
      %v5080 = vrot.slane %v5078, 1
      %v5081 = vor.u32 %v5076, %v5080
      %v5083 = vshll.u32 %v4993, 16
      %v5085 = vrot.slane %v5083, 1
      %v5086 = vsel %vm1430, %v5081, %v5085
      %v5088 = vshrl.u32 %v4946, 16
      %v5090 = vshll.u32 %v4946, 16
      %v5092 = vrot.slane %v5090, 1
      %v5093 = vor.u32 %v5088, %v5092
      %v5095 = vshll.u32 %v4994, 16
      %v5097 = vrot.slane %v5095, 1
      %v5098 = vsel %vm1430, %v5093, %v5097
      %v5100 = vshrl.u32 %v4947, 16
      %v5102 = vshll.u32 %v4947, 16
      %v5104 = vrot.slane %v5102, 1
      %v5105 = vor.u32 %v5100, %v5104
      %v5107 = vshll.u32 %v4995, 16
      %v5109 = vrot.slane %v5107, 1
      %v5110 = vsel %vm1430, %v5105, %v5109
      %v5112 = vshrl.u32 %v4948, 16
      %v5114 = vshll.u32 %v4948, 16
      %v5116 = vrot.slane %v5114, 1
      %v5117 = vor.u32 %v5112, %v5116
      %v5119 = vshll.u32 %v4996, 16
      %v5121 = vrot.slane %v5119, 1
      %v5122 = vsel %vm1430, %v5117, %v5121
      %v5124 = vshrl.u32 %v4949, 16
      %v5126 = vshll.u32 %v4949, 16
      %v5128 = vrot.slane %v5126, 1
      %v5129 = vor.u32 %v5124, %v5128
      %v5131 = vshll.u32 %v4997, 16
      %v5133 = vrot.slane %v5131, 1
      %v5134 = vsel %vm1430, %v5129, %v5133
      %v5136 = vshrl.u32 %v4950, 16
      %v5138 = vshll.u32 %v4950, 16
      %v5140 = vrot.slane %v5138, 1
      %v5141 = vor.u32 %v5136, %v5140
      %v5143 = vshll.u32 %v4998, 16
      %v5145 = vrot.slane %v5143, 1
      %v5146 = vsel %vm1430, %v5141, %v5145
      %v5148 = vshrl.u32 %v4951, 16
      %v5150 = vshll.u32 %v4951, 16
      %v5152 = vrot.slane %v5150, 1
      %v5153 = vor.u32 %v5148, %v5152
      %v5155 = vshll.u32 %v4999, 16
      %v5157 = vrot.slane %v5155, 1
      %v5158 = vsel %vm1430, %v5153, %v5157
      %v5160 = vshrl.u32 %v4952, 16
      %v5162 = vshll.u32 %v4952, 16
      %v5164 = vrot.slane %v5162, 1
      %v5165 = vor.u32 %v5160, %v5164
      %v5167 = vshll.u32 %v5000, 16
      %v5169 = vrot.slane %v5167, 1
      %v5170 = vsel %vm1430, %v5165, %v5169
      %v5172 = vshrl.u32 %v4953, 16
      %v5174 = vshll.u32 %v4953, 16
      %v5176 = vrot.slane %v5174, 1
      %v5177 = vor.u32 %v5172, %v5176
      %v5179 = vshll.u32 %v5001, 16
      %v5181 = vrot.slane %v5179, 1
      %v5182 = vsel %vm1430, %v5177, %v5181
      %v5184 = vshrl.u32 %v4954, 16
      %v5186 = vshll.u32 %v4954, 16
      %v5188 = vrot.slane %v5186, 1
      %v5189 = vor.u32 %v5184, %v5188
      %v5191 = vshll.u32 %v5002, 16
      %v5193 = vrot.slane %v5191, 1
      %v5194 = vsel %vm1430, %v5189, %v5193
      %5195 = vrot.lane.b32.xlu0 %v5014, 4
      %v5196 = vpop.permute.xlu0 %5195
      %5197 = vrot.lane.b32.xlu0 %v5026, 4
      %v5198 = vpop.permute.xlu0 %5197
      %5199 = vrot.lane.b32.xlu0 %v5038, 4
      %v5200 = vpop.permute.xlu0 %5199
      %5201 = vrot.lane.b32.xlu0 %v5050, 4
      %v5202 = vpop.permute.xlu0 %5201
      %5203 = vrot.lane.b32.xlu0 %v5062, 4
      %v5204 = vpop.permute.xlu0 %5203
      %5205 = vrot.lane.b32.xlu0 %v5074, 4
      %v5206 = vpop.permute.xlu0 %5205
      %5207 = vrot.lane.b32.xlu0 %v5086, 4
      %v5208 = vpop.permute.xlu0 %5207
      %5209 = vrot.lane.b32.xlu0 %v5098, 4
      %v5210 = vpop.permute.xlu0 %5209
      %5211 = vrot.lane.b32.xlu0 %v5110, 4
      %v5212 = vpop.permute.xlu0 %5211
      %5213 = vrot.lane.b32.xlu0 %v5122, 4
      %v5214 = vpop.permute.xlu0 %5213
      %5215 = vrot.lane.b32.xlu0 %v5134, 4
      %v5216 = vpop.permute.xlu0 %5215
      %5217 = vrot.lane.b32.xlu0 %v5146, 4
      %v5218 = vpop.permute.xlu0 %5217
      %5219 = vrot.lane.b32.xlu0 %v5158, 4
      %v5220 = vpop.permute.xlu0 %5219
      %5221 = vrot.lane.b32.xlu0 %v5170, 4
      %v5222 = vpop.permute.xlu0 %5221
      %5223 = vrot.lane.b32.xlu0 %v5182, 4
      %v5224 = vpop.permute.xlu0 %5223
      %5225 = vrot.lane.b32.xlu0 %v5194, 4
      %v5226 = vpop.permute.xlu0 %5225
      %v5243 = vunpack.c.l.b16 %v4859
      %v5244 = vunpack.c.l.b16 %v4860
      %v5245 = vunpack.c.l.b16 %v4861
      %v5246 = vunpack.c.l.b16 %v4862
      %v5247 = vunpack.c.l.b16 %v4863
      %v5248 = vunpack.c.l.b16 %v4864
      %v5249 = vunpack.c.l.b16 %v4865
      %v5250 = vunpack.c.l.b16 %v4866
      %v5251 = vunpack.c.l.b16 %v4867
      %v5252 = vunpack.c.l.b16 %v4868
      %v5253 = vunpack.c.l.b16 %v4869
      %v5254 = vunpack.c.l.b16 %v4870
      %v5255 = vunpack.c.l.b16 %v4871
      %v5256 = vunpack.c.l.b16 %v4872
      %v5257 = vunpack.c.l.b16 %v4873
      %v5258 = vunpack.c.l.b16 %v4874
      %v5259 = vpack.c.b16 %v4908, %v5243
      %v5260 = vpack.c.b16 %v4910, %v5244
      %v5261 = vpack.c.b16 %v4912, %v5245
      %v5262 = vpack.c.b16 %v4914, %v5246
      %v5263 = vpack.c.b16 %v4916, %v5247
      %v5264 = vpack.c.b16 %v4918, %v5248
      %v5265 = vpack.c.b16 %v4920, %v5249
      %v5266 = vpack.c.b16 %v4922, %v5250
      %v5267 = vpack.c.b16 %v4924, %v5251
      %v5268 = vpack.c.b16 %v4926, %v5252
      %v5269 = vpack.c.b16 %v4928, %v5253
      %v5270 = vpack.c.b16 %v4930, %v5254
      %v5271 = vpack.c.b16 %v4932, %v5255
      %v5272 = vpack.c.b16 %v4934, %v5256
      %v5273 = vpack.c.b16 %v4936, %v5257
      %v5274 = vpack.c.b16 %v4938, %v5258
      %v5275 = vrot.slane %v5259, 1
      %v5276 = vrot.slane %v4987, 1
      %v5277 = vsel %vm1703, %v5275, %v5276
      %v5278 = vrot.slane %v5260, 1
      %v5279 = vrot.slane %v4988, 1
      %v5280 = vsel %vm1703, %v5278, %v5279
      %v5281 = vrot.slane %v5261, 1
      %v5282 = vrot.slane %v4989, 1
      %v5283 = vsel %vm1703, %v5281, %v5282
      %v5284 = vrot.slane %v5262, 1
      %v5285 = vrot.slane %v4990, 1
      %v5286 = vsel %vm1703, %v5284, %v5285
      %v5287 = vrot.slane %v5263, 1
      %v5288 = vrot.slane %v4991, 1
      %v5289 = vsel %vm1703, %v5287, %v5288
      %v5290 = vrot.slane %v5264, 1
      %v5291 = vrot.slane %v4992, 1
      %v5292 = vsel %vm1703, %v5290, %v5291
      %v5293 = vrot.slane %v5265, 1
      %v5294 = vrot.slane %v4993, 1
      %v5295 = vsel %vm1703, %v5293, %v5294
      %v5296 = vrot.slane %v5266, 1
      %v5297 = vrot.slane %v4994, 1
      %v5298 = vsel %vm1703, %v5296, %v5297
      %v5299 = vrot.slane %v5267, 1
      %v5300 = vrot.slane %v4995, 1
      %v5301 = vsel %vm1703, %v5299, %v5300
      %v5302 = vrot.slane %v5268, 1
      %v5303 = vrot.slane %v4996, 1
      %v5304 = vsel %vm1703, %v5302, %v5303
      %v5305 = vrot.slane %v5269, 1
      %v5306 = vrot.slane %v4997, 1
      %v5307 = vsel %vm1703, %v5305, %v5306
      %v5308 = vrot.slane %v5270, 1
      %v5309 = vrot.slane %v4998, 1
      %v5310 = vsel %vm1703, %v5308, %v5309
      %v5311 = vrot.slane %v5271, 1
      %v5312 = vrot.slane %v4999, 1
      %v5313 = vsel %vm1703, %v5311, %v5312
      %v5314 = vrot.slane %v5272, 1
      %v5315 = vrot.slane %v5000, 1
      %v5316 = vsel %vm1703, %v5314, %v5315
      %v5317 = vrot.slane %v5273, 1
      %v5318 = vrot.slane %v5001, 1
      %v5319 = vsel %vm1703, %v5317, %v5318
      %v5320 = vrot.slane %v5274, 1
      %v5321 = vrot.slane %v5002, 1
      %v5322 = vsel %vm1703, %v5320, %v5321
      %5323 = vrot.lane.b32.xlu0 %v5277, 8
      %v5324 = vpop.permute.xlu0 %5323
      %5325 = vrot.lane.b32.xlu0 %v5280, 8
      %v5326 = vpop.permute.xlu0 %5325
      %5327 = vrot.lane.b32.xlu0 %v5283, 8
      %v5328 = vpop.permute.xlu0 %5327
      %5329 = vrot.lane.b32.xlu0 %v5286, 8
      %v5330 = vpop.permute.xlu0 %5329
      %5331 = vrot.lane.b32.xlu0 %v5289, 8
      %v5332 = vpop.permute.xlu0 %5331
      %5333 = vrot.lane.b32.xlu0 %v5292, 8
      %v5334 = vpop.permute.xlu0 %5333
      %5335 = vrot.lane.b32.xlu0 %v5295, 8
      %v5336 = vpop.permute.xlu0 %5335
      %5337 = vrot.lane.b32.xlu0 %v5298, 8
      %v5338 = vpop.permute.xlu0 %5337
      %5339 = vrot.lane.b32.xlu0 %v5301, 8
      %v5340 = vpop.permute.xlu0 %5339
      %5341 = vrot.lane.b32.xlu0 %v5304, 8
      %v5342 = vpop.permute.xlu0 %5341
      %5343 = vrot.lane.b32.xlu0 %v5307, 8
      %v5344 = vpop.permute.xlu0 %5343
      %5345 = vrot.lane.b32.xlu0 %v5310, 8
      %v5346 = vpop.permute.xlu0 %5345
      %5347 = vrot.lane.b32.xlu0 %v5313, 8
      %v5348 = vpop.permute.xlu0 %5347
      %5349 = vrot.lane.b32.xlu0 %v5316, 8
      %v5350 = vpop.permute.xlu0 %5349
      %5351 = vrot.lane.b32.xlu0 %v5319, 8
      %v5352 = vpop.permute.xlu0 %5351
      %5353 = vrot.lane.b32.xlu0 %v5322, 8
      %v5354 = vpop.permute.xlu0 %5353
      %v5356 = vsel %vm1784, %v4939, %v5196
      %v5358 = vsel %vm1784, %v4940, %v5198
      %v5360 = vsel %vm1784, %v4941, %v5200
      %v5362 = vsel %vm1784, %v4942, %v5202
      %v5364 = vsel %vm1784, %v4943, %v5204
      %v5366 = vsel %vm1784, %v4944, %v5206
      %v5368 = vsel %vm1784, %v4945, %v5208
      %v5370 = vsel %vm1784, %v4946, %v5210
      %v5372 = vsel %vm1784, %v4947, %v5212
      %v5374 = vsel %vm1784, %v4948, %v5214
      %v5376 = vsel %vm1784, %v4949, %v5216
      %v5378 = vsel %vm1784, %v4950, %v5218
      %v5380 = vsel %vm1784, %v4951, %v5220
      %v5382 = vsel %vm1784, %v4952, %v5222
      %v5384 = vsel %vm1784, %v4953, %v5224
      %v5386 = vsel %vm1784, %v4954, %v5226
      %v5388 = vsel %vm1817, %v5356, %v5324
      %v5390 = vsel %vm1817, %v5358, %v5326
      %v5392 = vsel %vm1817, %v5360, %v5328
      %v5394 = vsel %vm1817, %v5362, %v5330
      %v5396 = vsel %vm1817, %v5364, %v5332
      %v5398 = vsel %vm1817, %v5366, %v5334
      %v5400 = vsel %vm1817, %v5368, %v5336
      %v5402 = vsel %vm1817, %v5370, %v5338
      %v5404 = vsel %vm1817, %v5372, %v5340
      %v5406 = vsel %vm1817, %v5374, %v5342
      %v5408 = vsel %vm1817, %v5376, %v5344
      %v5410 = vsel %vm1817, %v5378, %v5346
      %v5412 = vsel %vm1817, %v5380, %v5348
      %v5414 = vsel %vm1817, %v5382, %v5350
      %v5416 = vsel %vm1817, %v5384, %v5352
      %v5418 = vsel %vm1817, %v5386, %v5354
      %s5419 = scalar_lea.vmem %s3, 8
      %v5420 = vld [vmem:[%s5419] sm:$0xf]
      %v5421 = vld [vmem:[%s5419 + $0x4] sm:$0x3]
      %v5424 = vunpack.c.l.b16 %v5420
      %v5425 = vunpack.c.l.b16 %v5421
      %v5426 = vpack.c.b16 %v5425, %v5424
      %v5427 = vsel %vm1857, %v5388, 0
      %v5429 = vsel %vm1857, %v5390, 0
      %v5431 = vsel %vm1857, %v5392, 0
      %v5433 = vsel %vm1857, %v5394, 0
      %v5435 = vsel %vm1857, %v5396, 0
      %v5437 = vsel %vm1857, %v5398, 0
      %v5439 = vsel %vm1857, %v5400, 0
      %v5441 = vsel %vm1857, %v5402, 0
      %v5443 = vsel %vm1857, %v5404, 0
      %v5445 = vsel %vm1857, %v5406, 0
      %v5447 = vsel %vm1857, %v5408, 0
      %v5449 = vsel %vm1857, %v5410, 0
      %v5451 = vsel %vm1857, %v5412, 0
      %v5453 = vsel %vm1857, %v5414, 0
      %v5455 = vsel %vm1857, %v5416, 0
      %v5457 = vsel %vm1857, %v5418, 0
      %v5460 = vsel %vm1890, %v5426, 0
      %5462 = vmatprep.subr.bf16.mxu0 0
      %5463 = vmatpush1.bf16.msra.mxu0 0
      %5464 = vmatprep.subr.bf16.mxu0 0
      %5465 = vmatpush1.bf16.msra.mxu0 0
      %5466 = vmatprep.subr.bf16.mxu0 0
      %5467 = vmatpush1.bf16.msra.mxu0 0
      %5468 = vmatprep.subr.bf16.mxu0 0
      %5469 = vmatpush1.bf16.msra.mxu0 0
      %5470 = vmatprep.subr.bf16.mxu0 0
      %5471 = vmatpush1.bf16.msra.mxu0 0
      %5472 = vmatprep.subr.bf16.mxu0 0
      %5473 = vmatpush1.bf16.msra.mxu0 0
      %5474 = vmatprep.subr.bf16.mxu0 0
      %5475 = vmatpush1.bf16.msra.mxu0 0
      %5476 = vmatprep.subr.bf16.mxu0 0
      %5477 = vmatpush1.bf16.msra.mxu0 %v5460
      %5478 = vmatprep.subr.bf16.mxu0 0
      %5479 = vmatpush2.bf16.msra.mxu0 0
      %5480 = vmatprep.subr.bf16.mxu0 0
      %5481 = vmatpush2.bf16.msra.mxu0 0
      %5482 = vmatprep.subr.bf16.mxu0 0
      %5483 = vmatpush2.bf16.msra.mxu0 0
      %5484 = vmatprep.subr.bf16.mxu0 0
      %5485 = vmatpush2.bf16.msra.mxu0 0
      %5486 = vmatprep.subr.bf16.mxu0 0
      %5487 = vmatpush2.bf16.msra.mxu0 0
      %5488 = vmatprep.subr.bf16.mxu0 0
      %5489 = vmatpush2.bf16.msra.mxu0 0
      %5490 = vmatprep.subr.bf16.mxu0 0
      %5491 = vmatpush2.bf16.msra.mxu0 0
      %5492 = vmatprep.subr.bf16.mxu0 0
      %5493 = vmatpush2.bf16.msra.mxu0 0
      %5494 = vmatprep.mubr.bf16.mxu0 0
      %5495 = vmatmul.mubr.bf16.gmra.mxu0 %v5427
      %v5496 = vpop.f32.mrf.mxu0
      %v5497 = vadd.f32 0.0, %v5496
      %v5498 = vpop.f32.mrf.mxu0
      %v5499 = vpop.f32.mrf.mxu0
      %v5500 = vadd.f32 0.0, %v5499
      %v5501 = vpop.f32.mrf.mxu0
      %5502 = vmatprep.mubr.bf16.mxu0 0
      %5503 = vmatmul.mubr.bf16.gmra.mxu0 %v5429
      %v5504 = vpop.f32.mrf.mxu0
      %v5505 = vadd.f32 0.0, %v5504
      %v5506 = vpop.f32.mrf.mxu0
      %v5507 = vpop.f32.mrf.mxu0
      %v5508 = vadd.f32 0.0, %v5507
      %v5509 = vpop.f32.mrf.mxu0
      %5510 = vmatprep.mubr.bf16.mxu0 0
      %5511 = vmatmul.mubr.bf16.gmra.mxu0 %v5431
      %v5512 = vpop.f32.mrf.mxu0
      %v5513 = vadd.f32 0.0, %v5512
      %v5514 = vpop.f32.mrf.mxu0
      %v5515 = vpop.f32.mrf.mxu0
      %v5516 = vadd.f32 0.0, %v5515
      %v5517 = vpop.f32.mrf.mxu0
      %5518 = vmatprep.mubr.bf16.mxu0 0
      %5519 = vmatmul.mubr.bf16.gmra.mxu0 %v5433
      %v5520 = vpop.f32.mrf.mxu0
      %v5521 = vadd.f32 0.0, %v5520
      %v5522 = vpop.f32.mrf.mxu0
      %v5523 = vpop.f32.mrf.mxu0
      %v5524 = vadd.f32 0.0, %v5523
      %v5525 = vpop.f32.mrf.mxu0
      %5526 = vmatprep.mubr.bf16.mxu0 0
      %5527 = vmatmul.mubr.bf16.gmra.mxu0 %v5435
      %v5528 = vpop.f32.mrf.mxu0
      %v5529 = vadd.f32 0.0, %v5528
      %v5530 = vpop.f32.mrf.mxu0
      %v5531 = vpop.f32.mrf.mxu0
      %v5532 = vadd.f32 0.0, %v5531
      %v5533 = vpop.f32.mrf.mxu0
      %5534 = vmatprep.mubr.bf16.mxu0 0
      %5535 = vmatmul.mubr.bf16.gmra.mxu0 %v5437
      %v5536 = vpop.f32.mrf.mxu0
      %v5537 = vadd.f32 0.0, %v5536
      %v5538 = vpop.f32.mrf.mxu0
      %v5539 = vpop.f32.mrf.mxu0
      %v5540 = vadd.f32 0.0, %v5539
      %v5541 = vpop.f32.mrf.mxu0
      %5542 = vmatprep.mubr.bf16.mxu0 0
      %5543 = vmatmul.mubr.bf16.gmra.mxu0 %v5439
      %v5544 = vpop.f32.mrf.mxu0
      %v5545 = vadd.f32 0.0, %v5544
      %v5546 = vpop.f32.mrf.mxu0
      %v5547 = vpop.f32.mrf.mxu0
      %v5548 = vadd.f32 0.0, %v5547
      %v5549 = vpop.f32.mrf.mxu0
      %5550 = vmatprep.mubr.bf16.mxu0 0
      %5551 = vmatmul.mubr.bf16.gmra.mxu0 %v5441
      %v5552 = vpop.f32.mrf.mxu0
      %v5553 = vadd.f32 0.0, %v5552
      %v5554 = vpop.f32.mrf.mxu0
      %v5555 = vpop.f32.mrf.mxu0
      %v5556 = vadd.f32 0.0, %v5555
      %v5557 = vpop.f32.mrf.mxu0
      %5558 = vmatprep.mubr.bf16.mxu0 0
      %5559 = vmatmul.mubr.bf16.gmra.mxu0 %v5443
      %v5560 = vpop.f32.mrf.mxu0
      %v5561 = vadd.f32 0.0, %v5560
      %v5562 = vpop.f32.mrf.mxu0
      %v5563 = vpop.f32.mrf.mxu0
      %v5564 = vadd.f32 0.0, %v5563
      %v5565 = vpop.f32.mrf.mxu0
      %5566 = vmatprep.mubr.bf16.mxu0 0
      %5567 = vmatmul.mubr.bf16.gmra.mxu0 %v5445
      %v5568 = vpop.f32.mrf.mxu0
      %v5569 = vadd.f32 0.0, %v5568
      %v5570 = vpop.f32.mrf.mxu0
      %v5571 = vpop.f32.mrf.mxu0
      %v5572 = vadd.f32 0.0, %v5571
      %v5573 = vpop.f32.mrf.mxu0
      %5574 = vmatprep.mubr.bf16.mxu0 0
      %5575 = vmatmul.mubr.bf16.gmra.mxu0 %v5447
      %v5576 = vpop.f32.mrf.mxu0
      %v5577 = vadd.f32 0.0, %v5576
      %v5578 = vpop.f32.mrf.mxu0
      %v5579 = vpop.f32.mrf.mxu0
      %v5580 = vadd.f32 0.0, %v5579
      %v5581 = vpop.f32.mrf.mxu0
      %5582 = vmatprep.mubr.bf16.mxu0 0
      %5583 = vmatmul.mubr.bf16.gmra.mxu0 %v5449
      %v5584 = vpop.f32.mrf.mxu0
      %v5585 = vadd.f32 0.0, %v5584
      %v5586 = vpop.f32.mrf.mxu0
      %v5587 = vpop.f32.mrf.mxu0
      %v5588 = vadd.f32 0.0, %v5587
      %v5589 = vpop.f32.mrf.mxu0
      %5590 = vmatprep.mubr.bf16.mxu0 0
      %5591 = vmatmul.mubr.bf16.gmra.mxu0 %v5451
      %v5592 = vpop.f32.mrf.mxu0
      %v5593 = vadd.f32 0.0, %v5592
      %v5594 = vpop.f32.mrf.mxu0
      %v5595 = vpop.f32.mrf.mxu0
      %v5596 = vadd.f32 0.0, %v5595
      %v5597 = vpop.f32.mrf.mxu0
      %5598 = vmatprep.mubr.bf16.mxu0 0
      %5599 = vmatmul.mubr.bf16.gmra.mxu0 %v5453
      %v5600 = vpop.f32.mrf.mxu0
      %v5601 = vadd.f32 0.0, %v5600
      %v5602 = vpop.f32.mrf.mxu0
      %v5603 = vpop.f32.mrf.mxu0
      %v5604 = vadd.f32 0.0, %v5603
      %v5605 = vpop.f32.mrf.mxu0
      %5606 = vmatprep.mubr.bf16.mxu0 0
      %5607 = vmatmul.mubr.bf16.gmra.mxu0 %v5455
      %v5608 = vpop.f32.mrf.mxu0
      %v5609 = vadd.f32 0.0, %v5608
      %v5610 = vpop.f32.mrf.mxu0
      %v5611 = vpop.f32.mrf.mxu0
      %v5612 = vadd.f32 0.0, %v5611
      %v5613 = vpop.f32.mrf.mxu0
      %5614 = vmatprep.mubr.bf16.mxu0 0
      %5615 = vmatmul.mubr.bf16.gmra.mxu0 %v5457
      %v5616 = vpop.f32.mrf.mxu0
      %v5617 = vadd.f32 0.0, %v5616
      %v5618 = vpop.f32.mrf.mxu0
      %v5619 = vpop.f32.mrf.mxu0
      %v5620 = vadd.f32 0.0, %v5619
      %v5621 = vpop.f32.mrf.mxu0
      %5622 = vdwg.mxu0
      %v5623 = vld [vmem:[#allocation4] sm:$0xff]
      %v5624 = vld [vmem:[#allocation4 + $0x8] sm:$0xff]
      %v5625 = vld [vmem:[#allocation4 + $0x10] sm:$0xff]
      %v5626 = vld [vmem:[#allocation4 + $0x18] sm:$0xff]
      %v5627 = vld [vmem:[#allocation4 + $0x20] sm:$0xff]
      %v5628 = vld [vmem:[#allocation4 + $0x28] sm:$0xff]
      %v5629 = vld [vmem:[#allocation4 + $0x30] sm:$0xff]
      %v5630 = vld [vmem:[#allocation4 + $0x38] sm:$0xff]
      %v5631 = vld [vmem:[#allocation4 + $0x40] sm:$0xff]
      %v5632 = vld [vmem:[#allocation4 + $0x48] sm:$0xff]
      %v5633 = vld [vmem:[#allocation4 + $0x50] sm:$0xff]
      %v5634 = vld [vmem:[#allocation4 + $0x58] sm:$0xff]
      %v5635 = vld [vmem:[#allocation4 + $0x60] sm:$0xff]
      %v5636 = vld [vmem:[#allocation4 + $0x68] sm:$0xff]
      %v5637 = vld [vmem:[#allocation4 + $0x70] sm:$0xff]
      %v5638 = vld [vmem:[#allocation4 + $0x78] sm:$0xff]
      %v5639 = vld [vmem:[#allocation4 + $0x80] sm:$0xff]
      %v5640 = vld [vmem:[#allocation4 + $0x88] sm:$0xff]
      %v5641 = vld [vmem:[#allocation4 + $0x90] sm:$0xff]
      %v5642 = vld [vmem:[#allocation4 + $0x98] sm:$0xff]
      %v5643 = vld [vmem:[#allocation4 + $0xa0] sm:$0xff]
      %v5644 = vld [vmem:[#allocation4 + $0xa8] sm:$0xff]
      %v5645 = vld [vmem:[#allocation4 + $0xb0] sm:$0xff]
      %v5646 = vld [vmem:[#allocation4 + $0xb8] sm:$0xff]
      %v5647 = vld [vmem:[#allocation4 + $0xc0] sm:$0xff]
      %v5648 = vld [vmem:[#allocation4 + $0xc8] sm:$0xff]
      %v5649 = vld [vmem:[#allocation4 + $0xd0] sm:$0xff]
      %v5650 = vld [vmem:[#allocation4 + $0xd8] sm:$0xff]
      %v5651 = vld [vmem:[#allocation4 + $0xe0] sm:$0xff]
      %v5652 = vld [vmem:[#allocation4 + $0xe8] sm:$0xff]
      %v5653 = vld [vmem:[#allocation4 + $0xf0] sm:$0xff]
      %v5654 = vld [vmem:[#allocation4 + $0xf8] sm:$0xff]
      %v5655 = vadd.f32 %v5623, %v5497
      %v5656 = vadd.f32 %v5624, %v5500
      %v5657 = vadd.f32 %v5625, %v5505
      %v5658 = vadd.f32 %v5626, %v5508
      %v5659 = vadd.f32 %v5627, %v5513
      %v5660 = vadd.f32 %v5628, %v5516
      %v5661 = vadd.f32 %v5629, %v5521
      %v5662 = vadd.f32 %v5630, %v5524
      %v5663 = vadd.f32 %v5631, %v5529
      %v5664 = vadd.f32 %v5632, %v5532
      %v5665 = vadd.f32 %v5633, %v5537
      %v5666 = vadd.f32 %v5634, %v5540
      %v5667 = vadd.f32 %v5635, %v5545
      %v5668 = vadd.f32 %v5636, %v5548
      %v5669 = vadd.f32 %v5637, %v5553
      %v5670 = vadd.f32 %v5638, %v5556
      %v5671 = vadd.f32 %v5639, %v5561
      %v5672 = vadd.f32 %v5640, %v5564
      %v5673 = vadd.f32 %v5641, %v5569
      %v5674 = vadd.f32 %v5642, %v5572
      %v5675 = vadd.f32 %v5643, %v5577
      %v5676 = vadd.f32 %v5644, %v5580
      %v5677 = vadd.f32 %v5645, %v5585
      %v5678 = vadd.f32 %v5646, %v5588
      %v5679 = vadd.f32 %v5647, %v5593
      %v5680 = vadd.f32 %v5648, %v5596
      %v5681 = vadd.f32 %v5649, %v5601
      %v5682 = vadd.f32 %v5650, %v5604
      %v5683 = vadd.f32 %v5651, %v5609
      %v5684 = vadd.f32 %v5652, %v5612
      %v5685 = vadd.f32 %v5653, %v5617
      %v5686 = vadd.f32 %v5654, %v5620
      %5687 = vst.msk [vmem:[#allocation4] sm:$0xff] %vm1784, %v5655
      %5688 = vst.msk [vmem:[#allocation4 + $0x8] sm:$0xff] %vm1784, %v5656
      %5689 = vst.msk [vmem:[#allocation4 + $0x10] sm:$0xff] %vm1784, %v5657
      %5690 = vst.msk [vmem:[#allocation4 + $0x18] sm:$0xff] %vm1784, %v5658
      %5691 = vst.msk [vmem:[#allocation4 + $0x20] sm:$0xff] %vm1784, %v5659
      %5692 = vst.msk [vmem:[#allocation4 + $0x28] sm:$0xff] %vm1784, %v5660
      %5693 = vst.msk [vmem:[#allocation4 + $0x30] sm:$0xff] %vm1784, %v5661
      %5694 = vst.msk [vmem:[#allocation4 + $0x38] sm:$0xff] %vm1784, %v5662
      %5695 = vst.msk [vmem:[#allocation4 + $0x40] sm:$0xff] %vm1784, %v5663
      %5696 = vst.msk [vmem:[#allocation4 + $0x48] sm:$0xff] %vm1784, %v5664
      %5697 = vst.msk [vmem:[#allocation4 + $0x50] sm:$0xff] %vm1784, %v5665
      %5698 = vst.msk [vmem:[#allocation4 + $0x58] sm:$0xff] %vm1784, %v5666
      %5699 = vst.msk [vmem:[#allocation4 + $0x60] sm:$0xff] %vm1784, %v5667
      %5700 = vst.msk [vmem:[#allocation4 + $0x68] sm:$0xff] %vm1784, %v5668
      %5701 = vst.msk [vmem:[#allocation4 + $0x70] sm:$0xff] %vm1784, %v5669
      %5702 = vst.msk [vmem:[#allocation4 + $0x78] sm:$0xff] %vm1784, %v5670
      %5703 = vst.msk [vmem:[#allocation4 + $0x80] sm:$0xff] %vm1784, %v5671
      %5704 = vst.msk [vmem:[#allocation4 + $0x88] sm:$0xff] %vm1784, %v5672
      %5705 = vst.msk [vmem:[#allocation4 + $0x90] sm:$0xff] %vm1784, %v5673
      %5706 = vst.msk [vmem:[#allocation4 + $0x98] sm:$0xff] %vm1784, %v5674
      %5707 = vst.msk [vmem:[#allocation4 + $0xa0] sm:$0xff] %vm1784, %v5675
      %5708 = vst.msk [vmem:[#allocation4 + $0xa8] sm:$0xff] %vm1784, %v5676
      %5709 = vst.msk [vmem:[#allocation4 + $0xb0] sm:$0xff] %vm1784, %v5677
      %5710 = vst.msk [vmem:[#allocation4 + $0xb8] sm:$0xff] %vm1784, %v5678
      %5711 = vst.msk [vmem:[#allocation4 + $0xc0] sm:$0xff] %vm1784, %v5679
      %5712 = vst.msk [vmem:[#allocation4 + $0xc8] sm:$0xff] %vm1784, %v5680
      %5713 = vst.msk [vmem:[#allocation4 + $0xd0] sm:$0xff] %vm1784, %v5681
      %5714 = vst.msk [vmem:[#allocation4 + $0xd8] sm:$0xff] %vm1784, %v5682
      %5715 = vst.msk [vmem:[#allocation4 + $0xe0] sm:$0xff] %vm1784, %v5683
      %5716 = vst.msk [vmem:[#allocation4 + $0xe8] sm:$0xff] %vm1784, %v5684
      %5717 = vst.msk [vmem:[#allocation4 + $0xf0] sm:$0xff] %vm1784, %v5685
      %5718 = vst.msk [vmem:[#allocation4 + $0xf8] sm:$0xff] %vm1784, %v5686
      %s5719 = scalar_lea.vmem [#allocation3], 24
      %v5720 = vld [vmem:[%s5719] sm:$0xf]
      %v5721 = vld [vmem:[%s5719 + $0x4] sm:$0xf]
      %v5722 = vld [vmem:[%s5719 + $0xc] sm:$0xf]
      %v5723 = vld [vmem:[%s5719 + $0x10] sm:$0xf]
      %v5724 = vld [vmem:[%s5719 + $0x18] sm:$0xf]
      %v5725 = vld [vmem:[%s5719 + $0x1c] sm:$0xf]
      %v5726 = vld [vmem:[%s5719 + $0x24] sm:$0xf]
      %v5727 = vld [vmem:[%s5719 + $0x28] sm:$0xf]
      %v5728 = vld [vmem:[%s5719 + $0x30] sm:$0xf]
      %v5729 = vld [vmem:[%s5719 + $0x34] sm:$0xf]
      %v5730 = vld [vmem:[%s5719 + $0x3c] sm:$0xf]
      %v5731 = vld [vmem:[%s5719 + $0x40] sm:$0xf]
      %v5732 = vld [vmem:[%s5719 + $0x48] sm:$0xf]
      %v5733 = vld [vmem:[%s5719 + $0x4c] sm:$0xf]
      %v5734 = vld [vmem:[%s5719 + $0x54] sm:$0xf]
      %v5735 = vld [vmem:[%s5719 + $0x58] sm:$0xf]
      %v5736 = vld [vmem:[%s5719 + $0x60] sm:$0xf]
      %v5737 = vld [vmem:[%s5719 + $0x64] sm:$0xf]
      %v5738 = vld [vmem:[%s5719 + $0x6c] sm:$0xf]
      %v5739 = vld [vmem:[%s5719 + $0x70] sm:$0xf]
      %v5740 = vld [vmem:[%s5719 + $0x78] sm:$0xf]
      %v5741 = vld [vmem:[%s5719 + $0x7c] sm:$0xf]
      %v5742 = vld [vmem:[%s5719 + $0x84] sm:$0xf]
      %v5743 = vld [vmem:[%s5719 + $0x88] sm:$0xf]
      %v5744 = vld [vmem:[%s5719 + $0x90] sm:$0xf]
      %v5745 = vld [vmem:[%s5719 + $0x94] sm:$0xf]
      %v5746 = vld [vmem:[%s5719 + $0x9c] sm:$0xf]
      %v5747 = vld [vmem:[%s5719 + $0xa0] sm:$0xf]
      %v5748 = vld [vmem:[%s5719 + $0xa8] sm:$0xf]
      %v5749 = vld [vmem:[%s5719 + $0xac] sm:$0xf]
      %v5750 = vld [vmem:[%s5719 + $0xb4] sm:$0xf]
      %v5751 = vld [vmem:[%s5719 + $0xb8] sm:$0xf]
      %v5752 = vld [vmem:[%s5719 + $0x8] sm:$0x1]
      %v5753 = vld [vmem:[%s5719 + $0x14] sm:$0x1]
      %v5754 = vld [vmem:[%s5719 + $0x20] sm:$0x1]
      %v5755 = vld [vmem:[%s5719 + $0x2c] sm:$0x1]
      %v5756 = vld [vmem:[%s5719 + $0x38] sm:$0x1]
      %v5757 = vld [vmem:[%s5719 + $0x44] sm:$0x1]
      %v5758 = vld [vmem:[%s5719 + $0x50] sm:$0x1]
      %v5759 = vld [vmem:[%s5719 + $0x5c] sm:$0x1]
      %v5760 = vld [vmem:[%s5719 + $0x68] sm:$0x1]
      %v5761 = vld [vmem:[%s5719 + $0x74] sm:$0x1]
      %v5762 = vld [vmem:[%s5719 + $0x80] sm:$0x1]
      %v5763 = vld [vmem:[%s5719 + $0x8c] sm:$0x1]
      %v5764 = vld [vmem:[%s5719 + $0x98] sm:$0x1]
      %v5765 = vld [vmem:[%s5719 + $0xa4] sm:$0x1]
      %v5766 = vld [vmem:[%s5719 + $0xb0] sm:$0x1]
      %v5767 = vld [vmem:[%s5719 + $0xbc] sm:$0x1]
      %v5768 = vld [vmem:[%s5719] sm:$0xe]
      %v5769 = vld [vmem:[%s5719 + $0xc] sm:$0xe]
      %v5770 = vld [vmem:[%s5719 + $0x18] sm:$0xe]
      %v5771 = vld [vmem:[%s5719 + $0x24] sm:$0xe]
      %v5772 = vld [vmem:[%s5719 + $0x30] sm:$0xe]
      %v5773 = vld [vmem:[%s5719 + $0x3c] sm:$0xe]
      %v5774 = vld [vmem:[%s5719 + $0x48] sm:$0xe]
      %v5775 = vld [vmem:[%s5719 + $0x54] sm:$0xe]
      %v5776 = vld [vmem:[%s5719 + $0x60] sm:$0xe]
      %v5777 = vld [vmem:[%s5719 + $0x6c] sm:$0xe]
      %v5778 = vld [vmem:[%s5719 + $0x78] sm:$0xe]
      %v5779 = vld [vmem:[%s5719 + $0x84] sm:$0xe]
      %v5780 = vld [vmem:[%s5719 + $0x90] sm:$0xe]
      %v5781 = vld [vmem:[%s5719 + $0x9c] sm:$0xe]
      %v5782 = vld [vmem:[%s5719 + $0xa8] sm:$0xe]
      %v5783 = vld [vmem:[%s5719 + $0xb4] sm:$0xe]
      %v5816 = vunpack.c.l.b16 %v5720
      %v5817 = vunpack.c.l.b16 %v5721
      %v5818 = vunpack.c.l.b16 %v5722
      %v5819 = vunpack.c.l.b16 %v5723
      %v5820 = vunpack.c.l.b16 %v5724
      %v5821 = vunpack.c.l.b16 %v5725
      %v5822 = vunpack.c.l.b16 %v5726
      %v5823 = vunpack.c.l.b16 %v5727
      %v5824 = vunpack.c.l.b16 %v5728
      %v5825 = vunpack.c.l.b16 %v5729
      %v5826 = vunpack.c.l.b16 %v5730
      %v5827 = vunpack.c.l.b16 %v5731
      %v5828 = vunpack.c.l.b16 %v5732
      %v5829 = vunpack.c.l.b16 %v5733
      %v5830 = vunpack.c.l.b16 %v5734
      %v5831 = vunpack.c.l.b16 %v5735
      %v5832 = vunpack.c.l.b16 %v5736
      %v5833 = vunpack.c.l.b16 %v5737
      %v5834 = vunpack.c.l.b16 %v5738
      %v5835 = vunpack.c.l.b16 %v5739
      %v5836 = vunpack.c.l.b16 %v5740
      %v5837 = vunpack.c.l.b16 %v5741
      %v5838 = vunpack.c.l.b16 %v5742
      %v5839 = vunpack.c.l.b16 %v5743
      %v5840 = vunpack.c.l.b16 %v5744
      %v5841 = vunpack.c.l.b16 %v5745
      %v5842 = vunpack.c.l.b16 %v5746
      %v5843 = vunpack.c.l.b16 %v5747
      %v5844 = vunpack.c.l.b16 %v5748
      %v5845 = vunpack.c.l.b16 %v5749
      %v5846 = vunpack.c.l.b16 %v5750
      %v5847 = vunpack.c.l.b16 %v5751
      %v5848 = vpack.c.b16 %v5817, %v5816
      %v5849 = vpack.c.b16 %v5819, %v5818
      %v5850 = vpack.c.b16 %v5821, %v5820
      %v5851 = vpack.c.b16 %v5823, %v5822
      %v5852 = vpack.c.b16 %v5825, %v5824
      %v5853 = vpack.c.b16 %v5827, %v5826
      %v5854 = vpack.c.b16 %v5829, %v5828
      %v5855 = vpack.c.b16 %v5831, %v5830
      %v5856 = vpack.c.b16 %v5833, %v5832
      %v5857 = vpack.c.b16 %v5835, %v5834
      %v5858 = vpack.c.b16 %v5837, %v5836
      %v5859 = vpack.c.b16 %v5839, %v5838
      %v5860 = vpack.c.b16 %v5841, %v5840
      %v5861 = vpack.c.b16 %v5843, %v5842
      %v5862 = vpack.c.b16 %v5845, %v5844
      %v5863 = vpack.c.b16 %v5847, %v5846
      %v5880 = vunpack.c.l.b16 %v5752
      %v5881 = vunpack.c.l.b16 %v5753
      %v5882 = vunpack.c.l.b16 %v5754
      %v5883 = vunpack.c.l.b16 %v5755
      %v5884 = vunpack.c.l.b16 %v5756
      %v5885 = vunpack.c.l.b16 %v5757
      %v5886 = vunpack.c.l.b16 %v5758
      %v5887 = vunpack.c.l.b16 %v5759
      %v5888 = vunpack.c.l.b16 %v5760
      %v5889 = vunpack.c.l.b16 %v5761
      %v5890 = vunpack.c.l.b16 %v5762
      %v5891 = vunpack.c.l.b16 %v5763
      %v5892 = vunpack.c.l.b16 %v5764
      %v5893 = vunpack.c.l.b16 %v5765
      %v5894 = vunpack.c.l.b16 %v5766
      %v5895 = vunpack.c.l.b16 %v5767
      %v5896 = vpack.c.b16 %v5880, %v5880
      %v5897 = vpack.c.b16 %v5881, %v5881
      %v5898 = vpack.c.b16 %v5882, %v5882
      %v5899 = vpack.c.b16 %v5883, %v5883
      %v5900 = vpack.c.b16 %v5884, %v5884
      %v5901 = vpack.c.b16 %v5885, %v5885
      %v5902 = vpack.c.b16 %v5886, %v5886
      %v5903 = vpack.c.b16 %v5887, %v5887
      %v5904 = vpack.c.b16 %v5888, %v5888
      %v5905 = vpack.c.b16 %v5889, %v5889
      %v5906 = vpack.c.b16 %v5890, %v5890
      %v5907 = vpack.c.b16 %v5891, %v5891
      %v5908 = vpack.c.b16 %v5892, %v5892
      %v5909 = vpack.c.b16 %v5893, %v5893
      %v5910 = vpack.c.b16 %v5894, %v5894
      %v5911 = vpack.c.b16 %v5895, %v5895
      %v5913 = vshrl.u32 %v5848, 16
      %v5915 = vshll.u32 %v5848, 16
      %v5917 = vrot.slane %v5915, 1
      %v5918 = vor.u32 %v5913, %v5917
      %v5920 = vshll.u32 %v5896, 16
      %v5922 = vrot.slane %v5920, 1
      %v5923 = vsel %vm1430, %v5918, %v5922
      %v5925 = vshrl.u32 %v5849, 16
      %v5927 = vshll.u32 %v5849, 16
      %v5929 = vrot.slane %v5927, 1
      %v5930 = vor.u32 %v5925, %v5929
      %v5932 = vshll.u32 %v5897, 16
      %v5934 = vrot.slane %v5932, 1
      %v5935 = vsel %vm1430, %v5930, %v5934
      %v5937 = vshrl.u32 %v5850, 16
      %v5939 = vshll.u32 %v5850, 16
      %v5941 = vrot.slane %v5939, 1
      %v5942 = vor.u32 %v5937, %v5941
      %v5944 = vshll.u32 %v5898, 16
      %v5946 = vrot.slane %v5944, 1
      %v5947 = vsel %vm1430, %v5942, %v5946
      %v5949 = vshrl.u32 %v5851, 16
      %v5951 = vshll.u32 %v5851, 16
      %v5953 = vrot.slane %v5951, 1
      %v5954 = vor.u32 %v5949, %v5953
      %v5956 = vshll.u32 %v5899, 16
      %v5958 = vrot.slane %v5956, 1
      %v5959 = vsel %vm1430, %v5954, %v5958
      %v5961 = vshrl.u32 %v5852, 16
      %v5963 = vshll.u32 %v5852, 16
      %v5965 = vrot.slane %v5963, 1
      %v5966 = vor.u32 %v5961, %v5965
      %v5968 = vshll.u32 %v5900, 16
      %v5970 = vrot.slane %v5968, 1
      %v5971 = vsel %vm1430, %v5966, %v5970
      %v5973 = vshrl.u32 %v5853, 16
      %v5975 = vshll.u32 %v5853, 16
      %v5977 = vrot.slane %v5975, 1
      %v5978 = vor.u32 %v5973, %v5977
      %v5980 = vshll.u32 %v5901, 16
      %v5982 = vrot.slane %v5980, 1
      %v5983 = vsel %vm1430, %v5978, %v5982
      %v5985 = vshrl.u32 %v5854, 16
      %v5987 = vshll.u32 %v5854, 16
      %v5989 = vrot.slane %v5987, 1
      %v5990 = vor.u32 %v5985, %v5989
      %v5992 = vshll.u32 %v5902, 16
      %v5994 = vrot.slane %v5992, 1
      %v5995 = vsel %vm1430, %v5990, %v5994
      %v5997 = vshrl.u32 %v5855, 16
      %v5999 = vshll.u32 %v5855, 16
      %v6001 = vrot.slane %v5999, 1
      %v6002 = vor.u32 %v5997, %v6001
      %v6004 = vshll.u32 %v5903, 16
      %v6006 = vrot.slane %v6004, 1
      %v6007 = vsel %vm1430, %v6002, %v6006
      %v6009 = vshrl.u32 %v5856, 16
      %v6011 = vshll.u32 %v5856, 16
      %v6013 = vrot.slane %v6011, 1
      %v6014 = vor.u32 %v6009, %v6013
      %v6016 = vshll.u32 %v5904, 16
      %v6018 = vrot.slane %v6016, 1
      %v6019 = vsel %vm1430, %v6014, %v6018
      %v6021 = vshrl.u32 %v5857, 16
      %v6023 = vshll.u32 %v5857, 16
      %v6025 = vrot.slane %v6023, 1
      %v6026 = vor.u32 %v6021, %v6025
      %v6028 = vshll.u32 %v5905, 16
      %v6030 = vrot.slane %v6028, 1
      %v6031 = vsel %vm1430, %v6026, %v6030
      %v6033 = vshrl.u32 %v5858, 16
      %v6035 = vshll.u32 %v5858, 16
      %v6037 = vrot.slane %v6035, 1
      %v6038 = vor.u32 %v6033, %v6037
      %v6040 = vshll.u32 %v5906, 16
      %v6042 = vrot.slane %v6040, 1
      %v6043 = vsel %vm1430, %v6038, %v6042
      %v6045 = vshrl.u32 %v5859, 16
      %v6047 = vshll.u32 %v5859, 16
      %v6049 = vrot.slane %v6047, 1
      %v6050 = vor.u32 %v6045, %v6049
      %v6052 = vshll.u32 %v5907, 16
      %v6054 = vrot.slane %v6052, 1
      %v6055 = vsel %vm1430, %v6050, %v6054
      %v6057 = vshrl.u32 %v5860, 16
      %v6059 = vshll.u32 %v5860, 16
      %v6061 = vrot.slane %v6059, 1
      %v6062 = vor.u32 %v6057, %v6061
      %v6064 = vshll.u32 %v5908, 16
      %v6066 = vrot.slane %v6064, 1
      %v6067 = vsel %vm1430, %v6062, %v6066
      %v6069 = vshrl.u32 %v5861, 16
      %v6071 = vshll.u32 %v5861, 16
      %v6073 = vrot.slane %v6071, 1
      %v6074 = vor.u32 %v6069, %v6073
      %v6076 = vshll.u32 %v5909, 16
      %v6078 = vrot.slane %v6076, 1
      %v6079 = vsel %vm1430, %v6074, %v6078
      %v6081 = vshrl.u32 %v5862, 16
      %v6083 = vshll.u32 %v5862, 16
      %v6085 = vrot.slane %v6083, 1
      %v6086 = vor.u32 %v6081, %v6085
      %v6088 = vshll.u32 %v5910, 16
      %v6090 = vrot.slane %v6088, 1
      %v6091 = vsel %vm1430, %v6086, %v6090
      %v6093 = vshrl.u32 %v5863, 16
      %v6095 = vshll.u32 %v5863, 16
      %v6097 = vrot.slane %v6095, 1
      %v6098 = vor.u32 %v6093, %v6097
      %v6100 = vshll.u32 %v5911, 16
      %v6102 = vrot.slane %v6100, 1
      %v6103 = vsel %vm1430, %v6098, %v6102
      %6104 = vrot.lane.b32.xlu0 %v5923, 4
      %v6105 = vpop.permute.xlu0 %6104
      %6106 = vrot.lane.b32.xlu0 %v5935, 4
      %v6107 = vpop.permute.xlu0 %6106
      %6108 = vrot.lane.b32.xlu0 %v5947, 4
      %v6109 = vpop.permute.xlu0 %6108
      %6110 = vrot.lane.b32.xlu0 %v5959, 4
      %v6111 = vpop.permute.xlu0 %6110
      %6112 = vrot.lane.b32.xlu0 %v5971, 4
      %v6113 = vpop.permute.xlu0 %6112
      %6114 = vrot.lane.b32.xlu0 %v5983, 4
      %v6115 = vpop.permute.xlu0 %6114
      %6116 = vrot.lane.b32.xlu0 %v5995, 4
      %v6117 = vpop.permute.xlu0 %6116
      %6118 = vrot.lane.b32.xlu0 %v6007, 4
      %v6119 = vpop.permute.xlu0 %6118
      %6120 = vrot.lane.b32.xlu0 %v6019, 4
      %v6121 = vpop.permute.xlu0 %6120
      %6122 = vrot.lane.b32.xlu0 %v6031, 4
      %v6123 = vpop.permute.xlu0 %6122
      %6124 = vrot.lane.b32.xlu0 %v6043, 4
      %v6125 = vpop.permute.xlu0 %6124
      %6126 = vrot.lane.b32.xlu0 %v6055, 4
      %v6127 = vpop.permute.xlu0 %6126
      %6128 = vrot.lane.b32.xlu0 %v6067, 4
      %v6129 = vpop.permute.xlu0 %6128
      %6130 = vrot.lane.b32.xlu0 %v6079, 4
      %v6131 = vpop.permute.xlu0 %6130
      %6132 = vrot.lane.b32.xlu0 %v6091, 4
      %v6133 = vpop.permute.xlu0 %6132
      %6134 = vrot.lane.b32.xlu0 %v6103, 4
      %v6135 = vpop.permute.xlu0 %6134
      %v6152 = vunpack.c.l.b16 %v5768
      %v6153 = vunpack.c.l.b16 %v5769
      %v6154 = vunpack.c.l.b16 %v5770
      %v6155 = vunpack.c.l.b16 %v5771
      %v6156 = vunpack.c.l.b16 %v5772
      %v6157 = vunpack.c.l.b16 %v5773
      %v6158 = vunpack.c.l.b16 %v5774
      %v6159 = vunpack.c.l.b16 %v5775
      %v6160 = vunpack.c.l.b16 %v5776
      %v6161 = vunpack.c.l.b16 %v5777
      %v6162 = vunpack.c.l.b16 %v5778
      %v6163 = vunpack.c.l.b16 %v5779
      %v6164 = vunpack.c.l.b16 %v5780
      %v6165 = vunpack.c.l.b16 %v5781
      %v6166 = vunpack.c.l.b16 %v5782
      %v6167 = vunpack.c.l.b16 %v5783
      %v6168 = vpack.c.b16 %v5817, %v6152
      %v6169 = vpack.c.b16 %v5819, %v6153
      %v6170 = vpack.c.b16 %v5821, %v6154
      %v6171 = vpack.c.b16 %v5823, %v6155
      %v6172 = vpack.c.b16 %v5825, %v6156
      %v6173 = vpack.c.b16 %v5827, %v6157
      %v6174 = vpack.c.b16 %v5829, %v6158
      %v6175 = vpack.c.b16 %v5831, %v6159
      %v6176 = vpack.c.b16 %v5833, %v6160
      %v6177 = vpack.c.b16 %v5835, %v6161
      %v6178 = vpack.c.b16 %v5837, %v6162
      %v6179 = vpack.c.b16 %v5839, %v6163
      %v6180 = vpack.c.b16 %v5841, %v6164
      %v6181 = vpack.c.b16 %v5843, %v6165
      %v6182 = vpack.c.b16 %v5845, %v6166
      %v6183 = vpack.c.b16 %v5847, %v6167
      %v6184 = vrot.slane %v6168, 1
      %v6185 = vrot.slane %v5896, 1
      %v6186 = vsel %vm1703, %v6184, %v6185
      %v6187 = vrot.slane %v6169, 1
      %v6188 = vrot.slane %v5897, 1
      %v6189 = vsel %vm1703, %v6187, %v6188
      %v6190 = vrot.slane %v6170, 1
      %v6191 = vrot.slane %v5898, 1
      %v6192 = vsel %vm1703, %v6190, %v6191
      %v6193 = vrot.slane %v6171, 1
      %v6194 = vrot.slane %v5899, 1
      %v6195 = vsel %vm1703, %v6193, %v6194
      %v6196 = vrot.slane %v6172, 1
      %v6197 = vrot.slane %v5900, 1
      %v6198 = vsel %vm1703, %v6196, %v6197
      %v6199 = vrot.slane %v6173, 1
      %v6200 = vrot.slane %v5901, 1
      %v6201 = vsel %vm1703, %v6199, %v6200
      %v6202 = vrot.slane %v6174, 1
      %v6203 = vrot.slane %v5902, 1
      %v6204 = vsel %vm1703, %v6202, %v6203
      %v6205 = vrot.slane %v6175, 1
      %v6206 = vrot.slane %v5903, 1
      %v6207 = vsel %vm1703, %v6205, %v6206
      %v6208 = vrot.slane %v6176, 1
      %v6209 = vrot.slane %v5904, 1
      %v6210 = vsel %vm1703, %v6208, %v6209
      %v6211 = vrot.slane %v6177, 1
      %v6212 = vrot.slane %v5905, 1
      %v6213 = vsel %vm1703, %v6211, %v6212
      %v6214 = vrot.slane %v6178, 1
      %v6215 = vrot.slane %v5906, 1
      %v6216 = vsel %vm1703, %v6214, %v6215
      %v6217 = vrot.slane %v6179, 1
      %v6218 = vrot.slane %v5907, 1
      %v6219 = vsel %vm1703, %v6217, %v6218
      %v6220 = vrot.slane %v6180, 1
      %v6221 = vrot.slane %v5908, 1
      %v6222 = vsel %vm1703, %v6220, %v6221
      %v6223 = vrot.slane %v6181, 1
      %v6224 = vrot.slane %v5909, 1
      %v6225 = vsel %vm1703, %v6223, %v6224
      %v6226 = vrot.slane %v6182, 1
      %v6227 = vrot.slane %v5910, 1
      %v6228 = vsel %vm1703, %v6226, %v6227
      %v6229 = vrot.slane %v6183, 1
      %v6230 = vrot.slane %v5911, 1
      %v6231 = vsel %vm1703, %v6229, %v6230
      %6232 = vrot.lane.b32.xlu0 %v6186, 8
      %v6233 = vpop.permute.xlu0 %6232
      %6234 = vrot.lane.b32.xlu0 %v6189, 8
      %v6235 = vpop.permute.xlu0 %6234
      %6236 = vrot.lane.b32.xlu0 %v6192, 8
      %v6237 = vpop.permute.xlu0 %6236
      %6238 = vrot.lane.b32.xlu0 %v6195, 8
      %v6239 = vpop.permute.xlu0 %6238
      %6240 = vrot.lane.b32.xlu0 %v6198, 8
      %v6241 = vpop.permute.xlu0 %6240
      %6242 = vrot.lane.b32.xlu0 %v6201, 8
      %v6243 = vpop.permute.xlu0 %6242
      %6244 = vrot.lane.b32.xlu0 %v6204, 8
      %v6245 = vpop.permute.xlu0 %6244
      %6246 = vrot.lane.b32.xlu0 %v6207, 8
      %v6247 = vpop.permute.xlu0 %6246
      %6248 = vrot.lane.b32.xlu0 %v6210, 8
      %v6249 = vpop.permute.xlu0 %6248
      %6250 = vrot.lane.b32.xlu0 %v6213, 8
      %v6251 = vpop.permute.xlu0 %6250
      %6252 = vrot.lane.b32.xlu0 %v6216, 8
      %v6253 = vpop.permute.xlu0 %6252
      %6254 = vrot.lane.b32.xlu0 %v6219, 8
      %v6255 = vpop.permute.xlu0 %6254
      %6256 = vrot.lane.b32.xlu0 %v6222, 8
      %v6257 = vpop.permute.xlu0 %6256
      %6258 = vrot.lane.b32.xlu0 %v6225, 8
      %v6259 = vpop.permute.xlu0 %6258
      %6260 = vrot.lane.b32.xlu0 %v6228, 8
      %v6261 = vpop.permute.xlu0 %6260
      %6262 = vrot.lane.b32.xlu0 %v6231, 8
      %v6263 = vpop.permute.xlu0 %6262
      %v6265 = vsel %vm1784, %v5848, %v6105
      %v6267 = vsel %vm1784, %v5849, %v6107
      %v6269 = vsel %vm1784, %v5850, %v6109
      %v6271 = vsel %vm1784, %v5851, %v6111
      %v6273 = vsel %vm1784, %v5852, %v6113
      %v6275 = vsel %vm1784, %v5853, %v6115
      %v6277 = vsel %vm1784, %v5854, %v6117
      %v6279 = vsel %vm1784, %v5855, %v6119
      %v6281 = vsel %vm1784, %v5856, %v6121
      %v6283 = vsel %vm1784, %v5857, %v6123
      %v6285 = vsel %vm1784, %v5858, %v6125
      %v6287 = vsel %vm1784, %v5859, %v6127
      %v6289 = vsel %vm1784, %v5860, %v6129
      %v6291 = vsel %vm1784, %v5861, %v6131
      %v6293 = vsel %vm1784, %v5862, %v6133
      %v6295 = vsel %vm1784, %v5863, %v6135
      %v6297 = vsel %vm1817, %v6265, %v6233
      %v6299 = vsel %vm1817, %v6267, %v6235
      %v6301 = vsel %vm1817, %v6269, %v6237
      %v6303 = vsel %vm1817, %v6271, %v6239
      %v6305 = vsel %vm1817, %v6273, %v6241
      %v6307 = vsel %vm1817, %v6275, %v6243
      %v6309 = vsel %vm1817, %v6277, %v6245
      %v6311 = vsel %vm1817, %v6279, %v6247
      %v6313 = vsel %vm1817, %v6281, %v6249
      %v6315 = vsel %vm1817, %v6283, %v6251
      %v6317 = vsel %vm1817, %v6285, %v6253
      %v6319 = vsel %vm1817, %v6287, %v6255
      %v6321 = vsel %vm1817, %v6289, %v6257
      %v6323 = vsel %vm1817, %v6291, %v6259
      %v6325 = vsel %vm1817, %v6293, %v6261
      %v6327 = vsel %vm1817, %v6295, %v6263
      %s6328 = scalar_lea.vmem %s3, 16
      %v6329 = vld [vmem:[%s6328] sm:$0xf]
      %v6330 = vld [vmem:[%s6328 + $0x4] sm:$0x3]
      %v6333 = vunpack.c.l.b16 %v6329
      %v6334 = vunpack.c.l.b16 %v6330
      %v6335 = vpack.c.b16 %v6334, %v6333
      %v6336 = vsel %vm1857, %v6297, 0
      %v6338 = vsel %vm1857, %v6299, 0
      %v6340 = vsel %vm1857, %v6301, 0
      %v6342 = vsel %vm1857, %v6303, 0
      %v6344 = vsel %vm1857, %v6305, 0
      %v6346 = vsel %vm1857, %v6307, 0
      %v6348 = vsel %vm1857, %v6309, 0
      %v6350 = vsel %vm1857, %v6311, 0
      %v6352 = vsel %vm1857, %v6313, 0
      %v6354 = vsel %vm1857, %v6315, 0
      %v6356 = vsel %vm1857, %v6317, 0
      %v6358 = vsel %vm1857, %v6319, 0
      %v6360 = vsel %vm1857, %v6321, 0
      %v6362 = vsel %vm1857, %v6323, 0
      %v6364 = vsel %vm1857, %v6325, 0
      %v6366 = vsel %vm1857, %v6327, 0
      %v6369 = vsel %vm1890, %v6335, 0
      %6371 = vmatprep.subr.bf16.mxu0 0
      %6372 = vmatpush1.bf16.msra.mxu0 0
      %6373 = vmatprep.subr.bf16.mxu0 0
      %6374 = vmatpush1.bf16.msra.mxu0 0
      %6375 = vmatprep.subr.bf16.mxu0 0
      %6376 = vmatpush1.bf16.msra.mxu0 0
      %6377 = vmatprep.subr.bf16.mxu0 0
      %6378 = vmatpush1.bf16.msra.mxu0 0
      %6379 = vmatprep.subr.bf16.mxu0 0
      %6380 = vmatpush1.bf16.msra.mxu0 0
      %6381 = vmatprep.subr.bf16.mxu0 0
      %6382 = vmatpush1.bf16.msra.mxu0 0
      %6383 = vmatprep.subr.bf16.mxu0 0
      %6384 = vmatpush1.bf16.msra.mxu0 0
      %6385 = vmatprep.subr.bf16.mxu0 0
      %6386 = vmatpush1.bf16.msra.mxu0 %v6369
      %6387 = vmatprep.subr.bf16.mxu0 0
      %6388 = vmatpush2.bf16.msra.mxu0 0
      %6389 = vmatprep.subr.bf16.mxu0 0
      %6390 = vmatpush2.bf16.msra.mxu0 0
      %6391 = vmatprep.subr.bf16.mxu0 0
      %6392 = vmatpush2.bf16.msra.mxu0 0
      %6393 = vmatprep.subr.bf16.mxu0 0
      %6394 = vmatpush2.bf16.msra.mxu0 0
      %6395 = vmatprep.subr.bf16.mxu0 0
      %6396 = vmatpush2.bf16.msra.mxu0 0
      %6397 = vmatprep.subr.bf16.mxu0 0
      %6398 = vmatpush2.bf16.msra.mxu0 0
      %6399 = vmatprep.subr.bf16.mxu0 0
      %6400 = vmatpush2.bf16.msra.mxu0 0
      %6401 = vmatprep.subr.bf16.mxu0 0
      %6402 = vmatpush2.bf16.msra.mxu0 0
      %6403 = vmatprep.mubr.bf16.mxu0 0
      %6404 = vmatmul.mubr.bf16.gmra.mxu0 %v6336
      %v6405 = vpop.f32.mrf.mxu0
      %v6406 = vadd.f32 0.0, %v6405
      %v6407 = vpop.f32.mrf.mxu0
      %v6408 = vpop.f32.mrf.mxu0
      %v6409 = vadd.f32 0.0, %v6408
      %v6410 = vpop.f32.mrf.mxu0
      %6411 = vmatprep.mubr.bf16.mxu0 0
      %6412 = vmatmul.mubr.bf16.gmra.mxu0 %v6338
      %v6413 = vpop.f32.mrf.mxu0
      %v6414 = vadd.f32 0.0, %v6413
      %v6415 = vpop.f32.mrf.mxu0
      %v6416 = vpop.f32.mrf.mxu0
      %v6417 = vadd.f32 0.0, %v6416
      %v6418 = vpop.f32.mrf.mxu0
      %6419 = vmatprep.mubr.bf16.mxu0 0
      %6420 = vmatmul.mubr.bf16.gmra.mxu0 %v6340
      %v6421 = vpop.f32.mrf.mxu0
      %v6422 = vadd.f32 0.0, %v6421
      %v6423 = vpop.f32.mrf.mxu0
      %v6424 = vpop.f32.mrf.mxu0
      %v6425 = vadd.f32 0.0, %v6424
      %v6426 = vpop.f32.mrf.mxu0
      %6427 = vmatprep.mubr.bf16.mxu0 0
      %6428 = vmatmul.mubr.bf16.gmra.mxu0 %v6342
      %v6429 = vpop.f32.mrf.mxu0
      %v6430 = vadd.f32 0.0, %v6429
      %v6431 = vpop.f32.mrf.mxu0
      %v6432 = vpop.f32.mrf.mxu0
      %v6433 = vadd.f32 0.0, %v6432
      %v6434 = vpop.f32.mrf.mxu0
      %6435 = vmatprep.mubr.bf16.mxu0 0
      %6436 = vmatmul.mubr.bf16.gmra.mxu0 %v6344
      %v6437 = vpop.f32.mrf.mxu0
      %v6438 = vadd.f32 0.0, %v6437
      %v6439 = vpop.f32.mrf.mxu0
      %v6440 = vpop.f32.mrf.mxu0
      %v6441 = vadd.f32 0.0, %v6440
      %v6442 = vpop.f32.mrf.mxu0
      %6443 = vmatprep.mubr.bf16.mxu0 0
      %6444 = vmatmul.mubr.bf16.gmra.mxu0 %v6346
      %v6445 = vpop.f32.mrf.mxu0
      %v6446 = vadd.f32 0.0, %v6445
      %v6447 = vpop.f32.mrf.mxu0
      %v6448 = vpop.f32.mrf.mxu0
      %v6449 = vadd.f32 0.0, %v6448
      %v6450 = vpop.f32.mrf.mxu0
      %6451 = vmatprep.mubr.bf16.mxu0 0
      %6452 = vmatmul.mubr.bf16.gmra.mxu0 %v6348
      %v6453 = vpop.f32.mrf.mxu0
      %v6454 = vadd.f32 0.0, %v6453
      %v6455 = vpop.f32.mrf.mxu0
      %v6456 = vpop.f32.mrf.mxu0
      %v6457 = vadd.f32 0.0, %v6456
      %v6458 = vpop.f32.mrf.mxu0
      %6459 = vmatprep.mubr.bf16.mxu0 0
      %6460 = vmatmul.mubr.bf16.gmra.mxu0 %v6350
      %v6461 = vpop.f32.mrf.mxu0
      %v6462 = vadd.f32 0.0, %v6461
      %v6463 = vpop.f32.mrf.mxu0
      %v6464 = vpop.f32.mrf.mxu0
      %v6465 = vadd.f32 0.0, %v6464
      %v6466 = vpop.f32.mrf.mxu0
      %6467 = vmatprep.mubr.bf16.mxu0 0
      %6468 = vmatmul.mubr.bf16.gmra.mxu0 %v6352
      %v6469 = vpop.f32.mrf.mxu0
      %v6470 = vadd.f32 0.0, %v6469
      %v6471 = vpop.f32.mrf.mxu0
      %v6472 = vpop.f32.mrf.mxu0
      %v6473 = vadd.f32 0.0, %v6472
      %v6474 = vpop.f32.mrf.mxu0
      %6475 = vmatprep.mubr.bf16.mxu0 0
      %6476 = vmatmul.mubr.bf16.gmra.mxu0 %v6354
      %v6477 = vpop.f32.mrf.mxu0
      %v6478 = vadd.f32 0.0, %v6477
      %v6479 = vpop.f32.mrf.mxu0
      %v6480 = vpop.f32.mrf.mxu0
      %v6481 = vadd.f32 0.0, %v6480
      %v6482 = vpop.f32.mrf.mxu0
      %6483 = vmatprep.mubr.bf16.mxu0 0
      %6484 = vmatmul.mubr.bf16.gmra.mxu0 %v6356
      %v6485 = vpop.f32.mrf.mxu0
      %v6486 = vadd.f32 0.0, %v6485
      %v6487 = vpop.f32.mrf.mxu0
      %v6488 = vpop.f32.mrf.mxu0
      %v6489 = vadd.f32 0.0, %v6488
      %v6490 = vpop.f32.mrf.mxu0
      %6491 = vmatprep.mubr.bf16.mxu0 0
      %6492 = vmatmul.mubr.bf16.gmra.mxu0 %v6358
      %v6493 = vpop.f32.mrf.mxu0
      %v6494 = vadd.f32 0.0, %v6493
      %v6495 = vpop.f32.mrf.mxu0
      %v6496 = vpop.f32.mrf.mxu0
      %v6497 = vadd.f32 0.0, %v6496
      %v6498 = vpop.f32.mrf.mxu0
      %6499 = vmatprep.mubr.bf16.mxu0 0
      %6500 = vmatmul.mubr.bf16.gmra.mxu0 %v6360
      %v6501 = vpop.f32.mrf.mxu0
      %v6502 = vadd.f32 0.0, %v6501
      %v6503 = vpop.f32.mrf.mxu0
      %v6504 = vpop.f32.mrf.mxu0
      %v6505 = vadd.f32 0.0, %v6504
      %v6506 = vpop.f32.mrf.mxu0
      %6507 = vmatprep.mubr.bf16.mxu0 0
      %6508 = vmatmul.mubr.bf16.gmra.mxu0 %v6362
      %v6509 = vpop.f32.mrf.mxu0
      %v6510 = vadd.f32 0.0, %v6509
      %v6511 = vpop.f32.mrf.mxu0
      %v6512 = vpop.f32.mrf.mxu0
      %v6513 = vadd.f32 0.0, %v6512
      %v6514 = vpop.f32.mrf.mxu0
      %6515 = vmatprep.mubr.bf16.mxu0 0
      %6516 = vmatmul.mubr.bf16.gmra.mxu0 %v6364
      %v6517 = vpop.f32.mrf.mxu0
      %v6518 = vadd.f32 0.0, %v6517
      %v6519 = vpop.f32.mrf.mxu0
      %v6520 = vpop.f32.mrf.mxu0
      %v6521 = vadd.f32 0.0, %v6520
      %v6522 = vpop.f32.mrf.mxu0
      %6523 = vmatprep.mubr.bf16.mxu0 0
      %6524 = vmatmul.mubr.bf16.gmra.mxu0 %v6366
      %v6525 = vpop.f32.mrf.mxu0
      %v6526 = vadd.f32 0.0, %v6525
      %v6527 = vpop.f32.mrf.mxu0
      %v6528 = vpop.f32.mrf.mxu0
      %v6529 = vadd.f32 0.0, %v6528
      %v6530 = vpop.f32.mrf.mxu0
      %6531 = vdwg.mxu0
      %v6532 = vld [vmem:[#allocation4] sm:$0xff]
      %v6533 = vld [vmem:[#allocation4 + $0x8] sm:$0xff]
      %v6534 = vld [vmem:[#allocation4 + $0x10] sm:$0xff]
      %v6535 = vld [vmem:[#allocation4 + $0x18] sm:$0xff]
      %v6536 = vld [vmem:[#allocation4 + $0x20] sm:$0xff]
      %v6537 = vld [vmem:[#allocation4 + $0x28] sm:$0xff]
      %v6538 = vld [vmem:[#allocation4 + $0x30] sm:$0xff]
      %v6539 = vld [vmem:[#allocation4 + $0x38] sm:$0xff]
      %v6540 = vld [vmem:[#allocation4 + $0x40] sm:$0xff]
      %v6541 = vld [vmem:[#allocation4 + $0x48] sm:$0xff]
      %v6542 = vld [vmem:[#allocation4 + $0x50] sm:$0xff]
      %v6543 = vld [vmem:[#allocation4 + $0x58] sm:$0xff]
      %v6544 = vld [vmem:[#allocation4 + $0x60] sm:$0xff]
      %v6545 = vld [vmem:[#allocation4 + $0x68] sm:$0xff]
      %v6546 = vld [vmem:[#allocation4 + $0x70] sm:$0xff]
      %v6547 = vld [vmem:[#allocation4 + $0x78] sm:$0xff]
      %v6548 = vld [vmem:[#allocation4 + $0x80] sm:$0xff]
      %v6549 = vld [vmem:[#allocation4 + $0x88] sm:$0xff]
      %v6550 = vld [vmem:[#allocation4 + $0x90] sm:$0xff]
      %v6551 = vld [vmem:[#allocation4 + $0x98] sm:$0xff]
      %v6552 = vld [vmem:[#allocation4 + $0xa0] sm:$0xff]
      %v6553 = vld [vmem:[#allocation4 + $0xa8] sm:$0xff]
      %v6554 = vld [vmem:[#allocation4 + $0xb0] sm:$0xff]
      %v6555 = vld [vmem:[#allocation4 + $0xb8] sm:$0xff]
      %v6556 = vld [vmem:[#allocation4 + $0xc0] sm:$0xff]
      %v6557 = vld [vmem:[#allocation4 + $0xc8] sm:$0xff]
      %v6558 = vld [vmem:[#allocation4 + $0xd0] sm:$0xff]
      %v6559 = vld [vmem:[#allocation4 + $0xd8] sm:$0xff]
      %v6560 = vld [vmem:[#allocation4 + $0xe0] sm:$0xff]
      %v6561 = vld [vmem:[#allocation4 + $0xe8] sm:$0xff]
      %v6562 = vld [vmem:[#allocation4 + $0xf0] sm:$0xff]
      %v6563 = vld [vmem:[#allocation4 + $0xf8] sm:$0xff]
      %v6564 = vadd.f32 %v6532, %v6406
      %v6565 = vadd.f32 %v6533, %v6409
      %v6566 = vadd.f32 %v6534, %v6414
      %v6567 = vadd.f32 %v6535, %v6417
      %v6568 = vadd.f32 %v6536, %v6422
      %v6569 = vadd.f32 %v6537, %v6425
      %v6570 = vadd.f32 %v6538, %v6430
      %v6571 = vadd.f32 %v6539, %v6433
      %v6572 = vadd.f32 %v6540, %v6438
      %v6573 = vadd.f32 %v6541, %v6441
      %v6574 = vadd.f32 %v6542, %v6446
      %v6575 = vadd.f32 %v6543, %v6449
      %v6576 = vadd.f32 %v6544, %v6454
      %v6577 = vadd.f32 %v6545, %v6457
      %v6578 = vadd.f32 %v6546, %v6462
      %v6579 = vadd.f32 %v6547, %v6465
      %v6580 = vadd.f32 %v6548, %v6470
      %v6581 = vadd.f32 %v6549, %v6473
      %v6582 = vadd.f32 %v6550, %v6478
      %v6583 = vadd.f32 %v6551, %v6481
      %v6584 = vadd.f32 %v6552, %v6486
      %v6585 = vadd.f32 %v6553, %v6489
      %v6586 = vadd.f32 %v6554, %v6494
      %v6587 = vadd.f32 %v6555, %v6497
      %v6588 = vadd.f32 %v6556, %v6502
      %v6589 = vadd.f32 %v6557, %v6505
      %v6590 = vadd.f32 %v6558, %v6510
      %v6591 = vadd.f32 %v6559, %v6513
      %v6592 = vadd.f32 %v6560, %v6518
      %v6593 = vadd.f32 %v6561, %v6521
      %v6594 = vadd.f32 %v6562, %v6526
      %v6595 = vadd.f32 %v6563, %v6529
      %6596 = vst.msk [vmem:[#allocation4] sm:$0xff] %vm1784, %v6564
      %6597 = vst.msk [vmem:[#allocation4 + $0x8] sm:$0xff] %vm1784, %v6565
      %6598 = vst.msk [vmem:[#allocation4 + $0x10] sm:$0xff] %vm1784, %v6566
      %6599 = vst.msk [vmem:[#allocation4 + $0x18] sm:$0xff] %vm1784, %v6567
      %6600 = vst.msk [vmem:[#allocation4 + $0x20] sm:$0xff] %vm1784, %v6568
      %6601 = vst.msk [vmem:[#allocation4 + $0x28] sm:$0xff] %vm1784, %v6569
      %6602 = vst.msk [vmem:[#allocation4 + $0x30] sm:$0xff] %vm1784, %v6570
      %6603 = vst.msk [vmem:[#allocation4 + $0x38] sm:$0xff] %vm1784, %v6571
      %6604 = vst.msk [vmem:[#allocation4 + $0x40] sm:$0xff] %vm1784, %v6572
      %6605 = vst.msk [vmem:[#allocation4 + $0x48] sm:$0xff] %vm1784, %v6573
      %6606 = vst.msk [vmem:[#allocation4 + $0x50] sm:$0xff] %vm1784, %v6574
      %6607 = vst.msk [vmem:[#allocation4 + $0x58] sm:$0xff] %vm1784, %v6575
      %6608 = vst.msk [vmem:[#allocation4 + $0x60] sm:$0xff] %vm1784, %v6576
      %6609 = vst.msk [vmem:[#allocation4 + $0x68] sm:$0xff] %vm1784, %v6577
      %6610 = vst.msk [vmem:[#allocation4 + $0x70] sm:$0xff] %vm1784, %v6578
      %6611 = vst.msk [vmem:[#allocation4 + $0x78] sm:$0xff] %vm1784, %v6579
      %6612 = vst.msk [vmem:[#allocation4 + $0x80] sm:$0xff] %vm1784, %v6580
      %6613 = vst.msk [vmem:[#allocation4 + $0x88] sm:$0xff] %vm1784, %v6581
      %6614 = vst.msk [vmem:[#allocation4 + $0x90] sm:$0xff] %vm1784, %v6582
      %6615 = vst.msk [vmem:[#allocation4 + $0x98] sm:$0xff] %vm1784, %v6583
      %6616 = vst.msk [vmem:[#allocation4 + $0xa0] sm:$0xff] %vm1784, %v6584
      %6617 = vst.msk [vmem:[#allocation4 + $0xa8] sm:$0xff] %vm1784, %v6585
      %6618 = vst.msk [vmem:[#allocation4 + $0xb0] sm:$0xff] %vm1784, %v6586
      %6619 = vst.msk [vmem:[#allocation4 + $0xb8] sm:$0xff] %vm1784, %v6587
      %6620 = vst.msk [vmem:[#allocation4 + $0xc0] sm:$0xff] %vm1784, %v6588
      %6621 = vst.msk [vmem:[#allocation4 + $0xc8] sm:$0xff] %vm1784, %v6589
      %6622 = vst.msk [vmem:[#allocation4 + $0xd0] sm:$0xff] %vm1784, %v6590
      %6623 = vst.msk [vmem:[#allocation4 + $0xd8] sm:$0xff] %vm1784, %v6591
      %6624 = vst.msk [vmem:[#allocation4 + $0xe0] sm:$0xff] %vm1784, %v6592
      %6625 = vst.msk [vmem:[#allocation4 + $0xe8] sm:$0xff] %vm1784, %v6593
      %6626 = vst.msk [vmem:[#allocation4 + $0xf0] sm:$0xff] %vm1784, %v6594
      %6627 = vst.msk [vmem:[#allocation4 + $0xf8] sm:$0xff] %vm1784, %v6595
      %v6628 = vld [vmem:[#allocation4] sm:$0xff]
      %v6629 = vld [vmem:[#allocation4 + $0x8] sm:$0xff]
      %v6630 = vld [vmem:[#allocation4 + $0x10] sm:$0xff]
      %v6631 = vld [vmem:[#allocation4 + $0x18] sm:$0xff]
      %v6632 = vld [vmem:[#allocation4 + $0x20] sm:$0xff]
      %v6633 = vld [vmem:[#allocation4 + $0x28] sm:$0xff]
      %v6634 = vld [vmem:[#allocation4 + $0x30] sm:$0xff]
      %v6635 = vld [vmem:[#allocation4 + $0x38] sm:$0xff]
      %v6636 = vld [vmem:[#allocation4 + $0x40] sm:$0xff]
      %v6637 = vld [vmem:[#allocation4 + $0x48] sm:$0xff]
      %v6638 = vld [vmem:[#allocation4 + $0x50] sm:$0xff]
      %v6639 = vld [vmem:[#allocation4 + $0x58] sm:$0xff]
      %v6640 = vld [vmem:[#allocation4 + $0x60] sm:$0xff]
      %v6641 = vld [vmem:[#allocation4 + $0x68] sm:$0xff]
      %v6642 = vld [vmem:[#allocation4 + $0x70] sm:$0xff]
      %v6643 = vld [vmem:[#allocation4 + $0x78] sm:$0xff]
      %v6644 = vld [vmem:[#allocation4 + $0x80] sm:$0xff]
      %v6645 = vld [vmem:[#allocation4 + $0x88] sm:$0xff]
      %v6646 = vld [vmem:[#allocation4 + $0x90] sm:$0xff]
      %v6647 = vld [vmem:[#allocation4 + $0x98] sm:$0xff]
      %v6648 = vld [vmem:[#allocation4 + $0xa0] sm:$0xff]
      %v6649 = vld [vmem:[#allocation4 + $0xa8] sm:$0xff]
      %v6650 = vld [vmem:[#allocation4 + $0xb0] sm:$0xff]
      %v6651 = vld [vmem:[#allocation4 + $0xb8] sm:$0xff]
      %v6652 = vld [vmem:[#allocation4 + $0xc0] sm:$0xff]
      %v6653 = vld [vmem:[#allocation4 + $0xc8] sm:$0xff]
      %v6654 = vld [vmem:[#allocation4 + $0xd0] sm:$0xff]
      %v6655 = vld [vmem:[#allocation4 + $0xd8] sm:$0xff]
      %v6656 = vld [vmem:[#allocation4 + $0xe0] sm:$0xff]
      %v6657 = vld [vmem:[#allocation4 + $0xe8] sm:$0xff]
      %v6658 = vld [vmem:[#allocation4 + $0xf0] sm:$0xff]
      %v6659 = vld [vmem:[#allocation4 + $0xf8] sm:$0xff]
      %v6660 = vpack.c.bf16 %v6629, %v6628
      %v6661 = vpack.c.bf16 %v6631, %v6630
      %v6662 = vpack.c.bf16 %v6633, %v6632
      %v6663 = vpack.c.bf16 %v6635, %v6634
      %v6664 = vpack.c.bf16 %v6637, %v6636
      %v6665 = vpack.c.bf16 %v6639, %v6638
      %v6666 = vpack.c.bf16 %v6641, %v6640
      %v6667 = vpack.c.bf16 %v6643, %v6642
      %v6668 = vpack.c.bf16 %v6645, %v6644
      %v6669 = vpack.c.bf16 %v6647, %v6646
      %v6670 = vpack.c.bf16 %v6649, %v6648
      %v6671 = vpack.c.bf16 %v6651, %v6650
      %v6672 = vpack.c.bf16 %v6653, %v6652
      %v6673 = vpack.c.bf16 %v6655, %v6654
      %v6674 = vpack.c.bf16 %v6657, %v6656
      %v6675 = vpack.c.bf16 %v6659, %v6658
      %v6692 = vunpack.c.l.b16 %v6660
      %v6693 = vunpack.c.h.b16 %v6660
      %v6694 = vunpack.c.l.b16 %v6661
      %v6695 = vunpack.c.h.b16 %v6661
      %v6696 = vunpack.c.l.b16 %v6662
      %v6697 = vunpack.c.h.b16 %v6662
      %v6698 = vunpack.c.l.b16 %v6663
      %v6699 = vunpack.c.h.b16 %v6663
      %v6700 = vunpack.c.l.b16 %v6664
      %v6701 = vunpack.c.h.b16 %v6664
      %v6702 = vunpack.c.l.b16 %v6665
      %v6703 = vunpack.c.h.b16 %v6665
      %v6704 = vunpack.c.l.b16 %v6666
      %v6705 = vunpack.c.h.b16 %v6666
      %v6706 = vunpack.c.l.b16 %v6667
      %v6707 = vunpack.c.h.b16 %v6667
      %v6708 = vunpack.c.l.b16 %v6668
      %v6709 = vunpack.c.h.b16 %v6668
      %v6710 = vunpack.c.l.b16 %v6669
      %v6711 = vunpack.c.h.b16 %v6669
      %v6712 = vunpack.c.l.b16 %v6670
      %v6713 = vunpack.c.h.b16 %v6670
      %v6714 = vunpack.c.l.b16 %v6671
      %v6715 = vunpack.c.h.b16 %v6671
      %v6716 = vunpack.c.l.b16 %v6672
      %v6717 = vunpack.c.h.b16 %v6672
      %v6718 = vunpack.c.l.b16 %v6673
      %v6719 = vunpack.c.h.b16 %v6673
      %v6720 = vunpack.c.l.b16 %v6674
      %v6721 = vunpack.c.h.b16 %v6674
      %v6722 = vunpack.c.l.b16 %v6675
      %v6723 = vunpack.c.h.b16 %v6675
      %v6724 = vpack.c.b16 %v6692, %v6692
      %v6725 = vpack.c.b16 %v6693, %v6693
      %v6726 = vpack.c.b16 %v6694, %v6694
      %v6727 = vpack.c.b16 %v6695, %v6695
      %v6728 = vpack.c.b16 %v6696, %v6696
      %v6729 = vpack.c.b16 %v6697, %v6697
      %v6730 = vpack.c.b16 %v6698, %v6698
      %v6731 = vpack.c.b16 %v6699, %v6699
      %v6732 = vpack.c.b16 %v6700, %v6700
      %v6733 = vpack.c.b16 %v6701, %v6701
      %v6734 = vpack.c.b16 %v6702, %v6702
      %v6735 = vpack.c.b16 %v6703, %v6703
      %v6736 = vpack.c.b16 %v6704, %v6704
      %v6737 = vpack.c.b16 %v6705, %v6705
      %v6738 = vpack.c.b16 %v6706, %v6706
      %v6739 = vpack.c.b16 %v6707, %v6707
      %v6740 = vpack.c.b16 %v6708, %v6708
      %v6741 = vpack.c.b16 %v6709, %v6709
      %v6742 = vpack.c.b16 %v6710, %v6710
      %v6743 = vpack.c.b16 %v6711, %v6711
      %v6744 = vpack.c.b16 %v6712, %v6712
      %v6745 = vpack.c.b16 %v6713, %v6713
      %v6746 = vpack.c.b16 %v6714, %v6714
      %v6747 = vpack.c.b16 %v6715, %v6715
      %v6748 = vpack.c.b16 %v6716, %v6716
      %v6749 = vpack.c.b16 %v6717, %v6717
      %v6750 = vpack.c.b16 %v6718, %v6718
      %v6751 = vpack.c.b16 %v6719, %v6719
      %v6752 = vpack.c.b16 %v6720, %v6720
      %v6753 = vpack.c.b16 %v6721, %v6721
      %v6754 = vpack.c.b16 %v6722, %v6722
      %v6755 = vpack.c.b16 %v6723, %v6723
      %6788 = vst.msk [vmem:[%s251] sm:$0xf] %vm725, %v6724
      %6789 = vst.msk [vmem:[%s251 + $0x4] sm:$0xf] %vm725, %v6725
      %6790 = vst.msk [vmem:[%s251 + $0x8] sm:$0xf] %vm725, %v6726
      %6791 = vst.msk [vmem:[%s251 + $0xc] sm:$0xf] %vm725, %v6727
      %6792 = vst.msk [vmem:[%s251 + $0x10] sm:$0xf] %vm725, %v6728
      %6793 = vst.msk [vmem:[%s251 + $0x14] sm:$0xf] %vm725, %v6729
      %6794 = vst.msk [vmem:[%s251 + $0x18] sm:$0xf] %vm725, %v6730
      %6795 = vst.msk [vmem:[%s251 + $0x1c] sm:$0xf] %vm725, %v6731
      %6796 = vst.msk [vmem:[%s251 + $0x20] sm:$0xf] %vm725, %v6732
      %6797 = vst.msk [vmem:[%s251 + $0x24] sm:$0xf] %vm725, %v6733
      %6798 = vst.msk [vmem:[%s251 + $0x28] sm:$0xf] %vm725, %v6734
      %6799 = vst.msk [vmem:[%s251 + $0x2c] sm:$0xf] %vm725, %v6735
      %6800 = vst.msk [vmem:[%s251 + $0x30] sm:$0xf] %vm725, %v6736
      %6801 = vst.msk [vmem:[%s251 + $0x34] sm:$0xf] %vm725, %v6737
      %6802 = vst.msk [vmem:[%s251 + $0x38] sm:$0xf] %vm725, %v6738
      %6803 = vst.msk [vmem:[%s251 + $0x3c] sm:$0xf] %vm725, %v6739
      %6804 = vst.msk [vmem:[%s251 + $0x40] sm:$0xf] %vm725, %v6740
      %6805 = vst.msk [vmem:[%s251 + $0x44] sm:$0xf] %vm725, %v6741
      %6806 = vst.msk [vmem:[%s251 + $0x48] sm:$0xf] %vm725, %v6742
      %6807 = vst.msk [vmem:[%s251 + $0x4c] sm:$0xf] %vm725, %v6743
      %6808 = vst.msk [vmem:[%s251 + $0x50] sm:$0xf] %vm725, %v6744
      %6809 = vst.msk [vmem:[%s251 + $0x54] sm:$0xf] %vm725, %v6745
      %6810 = vst.msk [vmem:[%s251 + $0x58] sm:$0xf] %vm725, %v6746
      %6811 = vst.msk [vmem:[%s251 + $0x5c] sm:$0xf] %vm725, %v6747
      %6812 = vst.msk [vmem:[%s251 + $0x60] sm:$0xf] %vm725, %v6748
      %6813 = vst.msk [vmem:[%s251 + $0x64] sm:$0xf] %vm725, %v6749
      %6814 = vst.msk [vmem:[%s251 + $0x68] sm:$0xf] %vm725, %v6750
      %6815 = vst.msk [vmem:[%s251 + $0x6c] sm:$0xf] %vm725, %v6751
      %6816 = vst.msk [vmem:[%s251 + $0x70] sm:$0xf] %vm725, %v6752
      %6817 = vst.msk [vmem:[%s251 + $0x74] sm:$0xf] %vm725, %v6753
      %6818 = vst.msk [vmem:[%s251 + $0x78] sm:$0xf] %vm725, %v6754
      %6819 = vst.msk [vmem:[%s251 + $0x7c] sm:$0xf] %vm725, %v6755
      %v6820 = vsel %vm1784, %v6628, 0.0
      %v6821 = vsel %vm1784, %v6629, 0.0
      %v6822 = vadd.f32 %v6820, %v6821
      %v6823 = vsel %vm1784, %v6630, 0.0
      %v6824 = vadd.f32 %v6822, %v6823
      %v6825 = vsel %vm1784, %v6631, 0.0
      %v6826 = vadd.f32 %v6824, %v6825
      %v6827 = vsel %vm1784, %v6632, 0.0
      %v6828 = vadd.f32 %v6826, %v6827
      %v6829 = vsel %vm1784, %v6633, 0.0
      %v6830 = vadd.f32 %v6828, %v6829
      %v6831 = vsel %vm1784, %v6634, 0.0
      %v6832 = vadd.f32 %v6830, %v6831
      %v6833 = vsel %vm1784, %v6635, 0.0
      %v6834 = vadd.f32 %v6832, %v6833
      %v6835 = vsel %vm1784, %v6636, 0.0
      %v6836 = vadd.f32 %v6834, %v6835
      %v6837 = vsel %vm1784, %v6637, 0.0
      %v6838 = vadd.f32 %v6836, %v6837
      %v6839 = vsel %vm1784, %v6638, 0.0
      %v6840 = vadd.f32 %v6838, %v6839
      %v6841 = vsel %vm1784, %v6639, 0.0
      %v6842 = vadd.f32 %v6840, %v6841
      %v6843 = vsel %vm1784, %v6640, 0.0
      %v6844 = vadd.f32 %v6842, %v6843
      %v6845 = vsel %vm1784, %v6641, 0.0
      %v6846 = vadd.f32 %v6844, %v6845
      %v6847 = vsel %vm1784, %v6642, 0.0
      %v6848 = vadd.f32 %v6846, %v6847
      %v6849 = vsel %vm1784, %v6643, 0.0
      %v6850 = vadd.f32 %v6848, %v6849
      %v6851 = vsel %vm1784, %v6644, 0.0
      %v6852 = vadd.f32 %v6850, %v6851
      %v6853 = vsel %vm1784, %v6645, 0.0
      %v6854 = vadd.f32 %v6852, %v6853
      %v6855 = vsel %vm1784, %v6646, 0.0
      %v6856 = vadd.f32 %v6854, %v6855
      %v6857 = vsel %vm1784, %v6647, 0.0
      %v6858 = vadd.f32 %v6856, %v6857
      %v6859 = vsel %vm1784, %v6648, 0.0
      %v6860 = vadd.f32 %v6858, %v6859
      %v6861 = vsel %vm1784, %v6649, 0.0
      %v6862 = vadd.f32 %v6860, %v6861
      %v6863 = vsel %vm1784, %v6650, 0.0
      %v6864 = vadd.f32 %v6862, %v6863
      %v6865 = vsel %vm1784, %v6651, 0.0
      %v6866 = vadd.f32 %v6864, %v6865
      %v6867 = vsel %vm1784, %v6652, 0.0
      %v6868 = vadd.f32 %v6866, %v6867
      %v6869 = vsel %vm1784, %v6653, 0.0
      %v6870 = vadd.f32 %v6868, %v6869
      %v6871 = vsel %vm1784, %v6654, 0.0
      %v6872 = vadd.f32 %v6870, %v6871
      %v6873 = vsel %vm1784, %v6655, 0.0
      %v6874 = vadd.f32 %v6872, %v6873
      %v6875 = vsel %vm1784, %v6656, 0.0
      %v6876 = vadd.f32 %v6874, %v6875
      %v6877 = vsel %vm1784, %v6657, 0.0
      %v6878 = vadd.f32 %v6876, %v6877
      %v6879 = vsel %vm1784, %v6658, 0.0
      %v6880 = vadd.f32 %v6878, %v6879
      %v6881 = vsel %vm1784, %v6659, 0.0
      %v6882 = vadd.f32 %v6880, %v6881
      %v6883 = vrot.slane %v6882, 4
      %v6884 = vadd.f32 %v6882, %v6883
      %v6885 = vrot.slane %v6884, 2
      %v6886 = vadd.f32 %v6884, %v6885
      %v6887 = vrot.slane %v6886, 1
      %v6888 = vadd.f32 %v6886, %v6887
      %v6889 = vmul.f32 %v6628, %v6628
      %v6890 = vmul.f32 %v6629, %v6629
      %v6891 = vmul.f32 %v6630, %v6630
      %v6892 = vmul.f32 %v6631, %v6631
      %v6893 = vmul.f32 %v6632, %v6632
      %v6894 = vmul.f32 %v6633, %v6633
      %v6895 = vmul.f32 %v6634, %v6634
      %v6896 = vmul.f32 %v6635, %v6635
      %v6897 = vmul.f32 %v6636, %v6636
      %v6898 = vmul.f32 %v6637, %v6637
      %v6899 = vmul.f32 %v6638, %v6638
      %v6900 = vmul.f32 %v6639, %v6639
      %v6901 = vmul.f32 %v6640, %v6640
      %v6902 = vmul.f32 %v6641, %v6641
      %v6903 = vmul.f32 %v6642, %v6642
      %v6904 = vmul.f32 %v6643, %v6643
      %v6905 = vmul.f32 %v6644, %v6644
      %v6906 = vmul.f32 %v6645, %v6645
      %v6907 = vmul.f32 %v6646, %v6646
      %v6908 = vmul.f32 %v6647, %v6647
      %v6909 = vmul.f32 %v6648, %v6648
      %v6910 = vmul.f32 %v6649, %v6649
      %v6911 = vmul.f32 %v6650, %v6650
      %v6912 = vmul.f32 %v6651, %v6651
      %v6913 = vmul.f32 %v6652, %v6652
      %v6914 = vmul.f32 %v6653, %v6653
      %v6915 = vmul.f32 %v6654, %v6654
      %v6916 = vmul.f32 %v6655, %v6655
      %v6917 = vmul.f32 %v6656, %v6656
      %v6918 = vmul.f32 %v6657, %v6657
      %v6919 = vmul.f32 %v6658, %v6658
      %v6920 = vmul.f32 %v6659, %v6659
      %v6921 = vsel %vm1784, %v6889, 0.0
      %v6922 = vsel %vm1784, %v6890, 0.0
      %v6923 = vadd.f32 %v6921, %v6922
      %v6924 = vsel %vm1784, %v6891, 0.0
      %v6925 = vadd.f32 %v6923, %v6924
      %v6926 = vsel %vm1784, %v6892, 0.0
      %v6927 = vadd.f32 %v6925, %v6926
      %v6928 = vsel %vm1784, %v6893, 0.0
      %v6929 = vadd.f32 %v6927, %v6928
      %v6930 = vsel %vm1784, %v6894, 0.0
      %v6931 = vadd.f32 %v6929, %v6930
      %v6932 = vsel %vm1784, %v6895, 0.0
      %v6933 = vadd.f32 %v6931, %v6932
      %v6934 = vsel %vm1784, %v6896, 0.0
      %v6935 = vadd.f32 %v6933, %v6934
      %v6936 = vsel %vm1784, %v6897, 0.0
      %v6937 = vadd.f32 %v6935, %v6936
      %v6938 = vsel %vm1784, %v6898, 0.0
      %v6939 = vadd.f32 %v6937, %v6938
      %v6940 = vsel %vm1784, %v6899, 0.0
      %v6941 = vadd.f32 %v6939, %v6940
      %v6942 = vsel %vm1784, %v6900, 0.0
      %v6943 = vadd.f32 %v6941, %v6942
      %v6944 = vsel %vm1784, %v6901, 0.0
      %v6945 = vadd.f32 %v6943, %v6944
      %v6946 = vsel %vm1784, %v6902, 0.0
      %v6947 = vadd.f32 %v6945, %v6946
      %v6948 = vsel %vm1784, %v6903, 0.0
      %v6949 = vadd.f32 %v6947, %v6948
      %v6950 = vsel %vm1784, %v6904, 0.0
      %v6951 = vadd.f32 %v6949, %v6950
      %v6952 = vsel %vm1784, %v6905, 0.0
      %v6953 = vadd.f32 %v6951, %v6952
      %v6954 = vsel %vm1784, %v6906, 0.0
      %v6955 = vadd.f32 %v6953, %v6954
      %v6956 = vsel %vm1784, %v6907, 0.0
      %v6957 = vadd.f32 %v6955, %v6956
      %v6958 = vsel %vm1784, %v6908, 0.0
      %v6959 = vadd.f32 %v6957, %v6958
      %v6960 = vsel %vm1784, %v6909, 0.0
      %v6961 = vadd.f32 %v6959, %v6960
      %v6962 = vsel %vm1784, %v6910, 0.0
      %v6963 = vadd.f32 %v6961, %v6962
      %v6964 = vsel %vm1784, %v6911, 0.0
      %v6965 = vadd.f32 %v6963, %v6964
      %v6966 = vsel %vm1784, %v6912, 0.0
      %v6967 = vadd.f32 %v6965, %v6966
      %v6968 = vsel %vm1784, %v6913, 0.0
      %v6969 = vadd.f32 %v6967, %v6968
      %v6970 = vsel %vm1784, %v6914, 0.0
      %v6971 = vadd.f32 %v6969, %v6970
      %v6972 = vsel %vm1784, %v6915, 0.0
      %v6973 = vadd.f32 %v6971, %v6972
      %v6974 = vsel %vm1784, %v6916, 0.0
      %v6975 = vadd.f32 %v6973, %v6974
      %v6976 = vsel %vm1784, %v6917, 0.0
      %v6977 = vadd.f32 %v6975, %v6976
      %v6978 = vsel %vm1784, %v6918, 0.0
      %v6979 = vadd.f32 %v6977, %v6978
      %v6980 = vsel %vm1784, %v6919, 0.0
      %v6981 = vadd.f32 %v6979, %v6980
      %v6982 = vsel %vm1784, %v6920, 0.0
      %v6983 = vadd.f32 %v6981, %v6982
      %v6984 = vrot.slane %v6983, 4
      %v6985 = vadd.f32 %v6983, %v6984
      %v6986 = vrot.slane %v6985, 2
      %v6987 = vadd.f32 %v6985, %v6986
      %v6988 = vrot.slane %v6987, 1
      %v6989 = vadd.f32 %v6987, %v6988
      %vm6990 = vcmask 1040384
      %v6991 = vsel %vm6990, %v6888, %v6989
      %vm6992 = vcmask 25600
      %6993 = vst.msk [vmem:[%s255] sm:$0x3] %vm6992, %v6991
      %p6994 = scmp.lt.s32.totalorder %s17, 1
      %s6995 = scalar_select %p6994, %s17, 1
      %s6996 = smul.addr %s6995, 32
      %s6997 = smul.addr %s6996, 4
      %s6998 = scalar_lea.vmem %s4, %s6997
      %p6999 = scmp.lt.s32.totalorder %s17, 1
      %s7000 = scalar_select %p6999, %s17, 1
      %s7001 = smul.addr %s7000, 2
      %s7002 = scalar_lea.vmem %s5, %s7001
      // Predicated region
      $region37: #{up_block_forward.5} parent=35 // pred_check
        %p7003 = pneg %p129
      $region38: #{up_block_forward.5} parent=35 // pred_check_branch
        %7005 = sbr.rel (%p7003) target = $region40
      $region39: #{up_block_forward.5} parent=35 // pred_region
        _
      $region40: #{up_block_forward.5} parent=35 // pred_fallthru
        _
      // Predicated region
      $region41: #{up_block_forward.5} parent=35 // pred_check
        %p7006 = pneg %p155
      $region42: #{up_block_forward.5} parent=35 // pred_check_branch
        %7008 = sbr.rel (%p7006) target = $region44
      $region43: #{up_block_forward.5} parent=35 // pred_region
        _
      $region44: #{up_block_forward.5} parent=35 // pred_fallthru
        _
    $region36: #{up_block_forward.5} parent=5 // pred_fallthru
      _
    %p7009 = scmp.le.s32.totalorder 2, %s12
    // Predicated region
    $region45: #{up_block_forward.5} parent=5 // pred_check
      %p7010 = pneg %p7009
    $region46: #{up_block_forward.5} parent=5 // pred_check_branch
      %7012 = sbr.rel (%p7010) target = $region48
    $region47: #{up_block_forward.5} parent=5 // pred_region
      %s7013 = ssub.s32 %s12, 2
      // Predicated region
      $region49: #{up_block_forward.5} parent=47 // pred_check
        %p7014 = pneg %p135
      $region50: #{up_block_forward.5} parent=47 // pred_check_branch
        %7016 = sbr.rel (%p7014) target = $region52
      $region51: #{up_block_forward.5} parent=47 // pred_region
        %p7017 = scmp.lt.s32.totalorder %s18, 1
        %s7018 = scalar_select %p7017, %s18, 1
        %s7019 = smul.addr %s7018, 32
        %s7020 = smul.addr %s7019, 4
        %s7021 = scalar_lea.vmem %s4, %s7020
      $region52: #{up_block_forward.5} parent=47 // pred_fallthru
        _
      // Predicated region
      $region53: #{up_block_forward.5} parent=47 // pred_check
        %p7022 = pneg %p161
      $region54: #{up_block_forward.5} parent=47 // pred_check_branch
        %7024 = sbr.rel (%p7022) target = $region56
      $region55: #{up_block_forward.5} parent=47 // pred_region
        %p7025 = scmp.lt.s32.totalorder %s18, 1
        %s7026 = scalar_select %p7025, %s18, 1
        %s7027 = smul.addr %s7026, 2
        %s7028 = scalar_lea.vmem %s5, %s7027
      $region56: #{up_block_forward.5} parent=47 // pred_fallthru
        _
    $region48: #{up_block_forward.5} parent=5 // pred_fallthru
      _
  $region6: #{up_block_forward.5} parent=0 // loop_footer
    %s16 = sadd.s32 1, %s12
  $region7: #{up_block_forward.5} parent=0 // loop_footer_branch
    %11 = sbr.rel target = $region3
  $region8: #{up_block_forward.5} parent=0 // loop_exit
    _

</llo_original>
